<compile_context>
chip_gen: v6e
topology: v6e:2x2x1
jax: 0.10.0
libtpu: 0.0.40
codegen_flags: <defaults>
</compile_context>

<pallas_src>
import functools

import jax
import jax.numpy as jnp
from jax import lax
from jax.experimental import pallas as pl
from jax.experimental.pallas import tpu as pltpu


# Tap tables shared by the kernel and the weight packer (order must match!).
# ConvTranspose2d(k=4,s=2,p=1): output phase p reads input offset dr with
# kernel row k  (oy = 2*iy - 1 + ky).
_DECONV_TAPS = (((0, 1), (-1, 3)),    # even output rows/cols: (dr, k)
                ((0, 2), (1, 0)))     # odd  output rows/cols
# Conv2d(k=4,s=2,p=1) consumed in deconv-phase space: hr1 phase parity p is
# read with offset dr by kernel row k  (input row = 2*m - 1 + kh).
_CONV2_SRC = (((0, 1), (1, 3)),       # hr1 phase parity 0: (dr, k)
              ((-1, 0), (0, 2)))      # hr1 phase parity 1


# ------------------------------ fused kernel --------------------------------

def _upblock1_kernel(alpha_ref, x_ref, wc_ref, w0_ref, w1p_ref, w2p_ref,
                     w3p_ref, out_ref, *, h, w, bt):
    """A batch tile of `bt` images of UpBlock1, fully fused.

    x_ref  : [bt*h*w, 64]   f32   (batch-major, row-major flattened NHWC)
    wc_ref : [64, 64]       bf16  (1x1 conv,  [Cin, Cout])
    w0_ref : [128, 128]     bf16  (1x1 conv0, [Cin, Cout])
    w1p_ref: [2, 2, 256, 128] bf16  (deconv1, K-packed per output phase)
    w2p_ref: [2, 2, 512, 64]  bf16  (conv2,   K-packed per hr1 phase)
    w3p_ref: [2, 2, 256, 128] bf16  (deconv3, K-packed per output phase)
    out_ref: [2, 2, bt*h*w, 128] bf16  (out[py,px] = full[2r+py, 2c+px])
    """
    m = h * w                 # pixels per image
    mt = bt * m               # stacked rows in this grid step

    a_act = alpha_ref[0]      # self.act slope
    e1 = alpha_ref[1]         # folded deconv1-PReLU o act-PReLU slope
    e2 = alpha_ref[2]         # folded conv2-PReLU  o act-PReLU slope
    e3 = alpha_ref[3]         # folded deconv3-PReLU o act-PReLU slope

    def prelu(v, a):
        return jnp.where(v >= 0, v, a * v)

    def mm(lhs, rhs):         # bf16 x bf16 -> f32 accumulation on the MXU
        return jnp.dot(lhs, rhs, preferred_element_type=jnp.float32)

    # Per-image row/col index of every stacked row (used for zero-pad masks;
    # because it is taken mod m, it also masks cross-image roll wrap-around).
    idx = lax.broadcasted_iota(jnp.int32, (mt, 1), 0)
    pix = (idx & (m - 1)) if (m & (m - 1)) == 0 else idx % m
    if (w & (w - 1)) == 0:    # power-of-two fast path (used in the demo)
        ri = pix >> (w.bit_length() - 1)
        ci = pix & (w - 1)
    else:
        ri = pix // w
        ci = pix % w

    mask_cache = {}

    def boundary_mask(dr, dc):
        key = (dr, dc)
        if key not in mask_cache:
            conds = []
            if dr > 0:
                conds.append(ri < h - dr)
            if dr < 0:
                conds.append(ri >= -dr)
            if dc > 0:
                conds.append(ci < w - dc)
            if dc < 0:
                conds.append(ci >= -dc)
            mk = conds[0]
            for cnd in conds[1:]:
                mk = mk & cnd
            mask_cache[key] = mk
        return mask_cache[key]

    class Shifted:
        """`v` read at spatial offset (dr, dc) with zero padding, as bf16.

        v is a batch-major row-major flattened [bt*h*w, C] stack, so a (dr, dc)
        spatial shift is one sublane roll of the flat matrix plus a per-image
        boundary mask.  Each offset is computed & cast to bf16 at most once."""

        def __init__(self, v):
            self.v = v            # f32 [mt, C]
            self.cache = {}

        def __call__(self, dr, dc):
            key = (dr, dc)
            if key not in self.cache:
                if dr == 0 and dc == 0:
                    sh = self.v
                else:
                    sh = pltpu.roll(self.v, (-(dr * w + dc)) % mt, 0)
                    sh = jnp.where(boundary_mask(dr, dc), sh, 0.0)
                self.cache[key] = sh.astype(jnp.bfloat16)
            return self.cache[key]

    def deconv_phase(src, wp_ref, py, px):
        # K-fused ConvTranspose2d(k=4,s=2,p=1) output phase: one K=256 matmul.
        lhs = jnp.concatenate(
            [src(dr, dc)
             for (dr, _ky) in _DECONV_TAPS[py]
             for (dc, _kx) in _DECONV_TAPS[px]], axis=-1)      # [mt, 256] bf16
        return mm(lhs, wp_ref[py, px])                          # [mt, 128] f32

    xs = Shifted(x_ref[...])                                    # [mt, 64]

    # x1 = act(conv1x1(x))
    x1 = prelu(mm(xs(0, 0), wc_ref[...]), a_act)                # [mt, 64] f32

    # hr1 = prelu(deconv1(x), e1) ; hr2 = act(conv0(hr1))   (per output phase)
    hr1_s = [[None, None], [None, None]]
    hr2 = [[None, None], [None, None]]
    for py in range(2):
        for px in range(2):
            hr1 = prelu(deconv_phase(xs, w1p_ref, py, px), e1)  # [mt,128] f32
            hr1_s[py][px] = Shifted(hr1)
            hr1_bf = hr1_s[py][px](0, 0)                        # reuse bf16 cast
            hr2[py][px] = prelu(mm(hr1_bf, w0_ref[...]),
                                a_act).astype(jnp.bfloat16)     # keep bf16

    # lr1 = prelu(conv2(hr1), e2) ; d = lr1 - x1   (4 K=512 matmuls total)
    acc = None
    for pr in range(2):
        for pc in range(2):
            lhs = jnp.concatenate(
                [hr1_s[pr][pc](dr, dc)
                 for (dr, _kh) in _CONV2_SRC[pr]
                 for (dc, _kw) in _CONV2_SRC[pc]], axis=-1)     # [mt, 512] bf16
            t = mm(lhs, w2p_ref[pr, pc])                        # [mt, 64] f32
            acc = t if acc is None else acc + t
    lr1 = prelu(acc, e2)
    ds = Shifted(lr1 - x1)

    # out = prelu(deconv3(d), e3) + hr2                          (per phase)
    for py in range(2):
        for px in range(2):
            o = prelu(deconv_phase(ds, w3p_ref, py, px), e3) \
                + hr2[py][px].astype(jnp.float32)
            out_ref[py, px] = o.astype(out_ref.dtype)


# ------------------------- one-time weight repacking -------------------------

def _pack_deconv(w):
    """ConvTranspose2d weight [Cin, Cout, 4, 4] -> K-packed [2, 2, 4*Cin, Cout]."""
    wt = jnp.transpose(w, (2, 3, 0, 1))                 # [ky, kx, Cin, Cout]
    phases = []
    for py in range(2):
        row = []
        for px in range(2):
            blocks = [wt[ky, kx]
                      for (_dr, ky) in _DECONV_TAPS[py]
                      for (_dc, kx) in _DECONV_TAPS[px]]
            row.append(jnp.concatenate(blocks, axis=0))
        phases.append(jnp.stack(row))
    return jnp.stack(phases)


def _pack_conv2(w):
    """Conv2d weight [Cout, Cin, 4, 4] -> K-packed per hr1 phase [2, 2, 4*Cin, Cout]."""
    wt = jnp.transpose(w, (2, 3, 1, 0))                 # [kh, kw, Cin, Cout]
    phases = []
    for pr in range(2):
        row = []
        for pc in range(2):
            blocks = [wt[kh, kw]
                      for (_dr, kh) in _CONV2_SRC[pr]
                      for (_dc, kw) in _CONV2_SRC[pc]]
            row.append(jnp.concatenate(blocks, axis=0))
        phases.append(jnp.stack(row))
    return jnp.stack(phases)


def prepare_params(p):
    """Repack/transpose weights once (bf16, MXU-native) and fold PReLU slopes."""
    def bf(a):
        return a.astype(jnp.bfloat16)

    def fold(a_inner, a_outer):
        # prelu(prelu(v, ai), ao) == prelu(v, ai*ao) when ai >= 0 else prelu(v, ai)
        return jnp.where(a_inner >= 0, a_inner * a_outer, a_inner)

    a_act = jnp.asarray(p['act_alpha'], jnp.float32)
    alphas = jnp.stack([
        a_act,
        fold(jnp.asarray(p['conv1_alpha'], jnp.float32), a_act),
        fold(jnp.asarray(p['conv2_alpha'], jnp.float32), a_act),
        fold(jnp.asarray(p['conv3_alpha'], jnp.float32), a_act),
    ]).astype(jnp.float32)

    return {
        'alphas': alphas,
        'wc': bf(p['conv_w'][:, :, 0, 0].T),        # [64, 64]
        'w0': bf(p['conv0_w'][:, :, 0, 0].T),       # [128, 128]
        'w1p': bf(_pack_deconv(p['deconv1_w'])),    # [2, 2, 256, 128]
        'w2p': bf(_pack_conv2(p['conv2_w'])),       # [2, 2, 512, 64]
        'w3p': bf(_pack_deconv(p['deconv3_w'])),    # [2, 2, 256, 128]
    }


# ----------------------------- UpBlock1 forward ------------------------------

def upblock1_forward(x_nchw, pp, *, batch_tile=None, out_layout="nchw"):
    n, c, h, w = (int(s) for s in x_nchw.shape)
    m = h * w

    # Batch tile: stack images along M until the matmul has >= ~512 rows.
    if batch_tile is None:
        target = max(1, -(-512 // m))
        bt = 1
        for d in range(1, n + 1):
            if n % d == 0 and d <= target:
                bt = d
    else:
        bt = int(batch_tile)
    assert n % bt == 0, "batch tile must divide the batch"
    nb = n // bt
    mt = bt * m

    x_flat = jnp.transpose(x_nchw, (0, 2, 3, 1)).reshape(nb, mt, c)
    x_flat = x_flat.astype(jnp.float32)

    kernel = functools.partial(_upblock1_kernel, h=h, w=w, bt=bt)
    out_phases = pl.pallas_call(
        kernel,
        out_shape=jax.ShapeDtypeStruct((nb, 2, 2, mt, 128), jnp.bfloat16),
        grid=(nb,),
        in_specs=[
            pl.BlockSpec(memory_space=pltpu.MemorySpace.SMEM),          # alphas
            pl.BlockSpec((None, mt, c), lambda g: (g, 0, 0)),           # x
            pl.BlockSpec((64, 64), lambda g: (0, 0)),                   # wc
            pl.BlockSpec((128, 128), lambda g: (0, 0)),                 # w0
            pl.BlockSpec((2, 2, 256, 128), lambda g: (0, 0, 0, 0)),     # w1 packed
            pl.BlockSpec((2, 2, 512, 64), lambda g: (0, 0, 0, 0)),      # w2 packed
            pl.BlockSpec((2, 2, 256, 128), lambda g: (0, 0, 0, 0)),     # w3 packed
        ],
        out_specs=pl.BlockSpec((None, 2, 2, mt, 128),
                               lambda g: (g, 0, 0, 0, 0)),
        compiler_params=pltpu.CompilerParams(
            dimension_semantics=("parallel",),
            vmem_limit_bytes=32 * 1024 * 1024,      # fits v7x's 64 MiB VMEM too
        ),
    )(pp['alphas'], x_flat, pp['wc'], pp['w0'], pp['w1p'], pp['w2p'], pp['w3p'])

    # phase layout -> full-res image (bf16 transposes, cast to f32 at the end).
    out = out_phases.reshape(nb, 2, 2, bt, h, w, 128)
    out = jnp.transpose(out, (0, 3, 4, 1, 5, 2, 6)).reshape(n, 2 * h, 2 * w, 128)
    if out_layout == "nhwc":        # consumers that take NHWC skip the transpose
        return out.astype(jnp.float32)
    return jnp.transpose(out, (0, 3, 1, 2)).astype(jnp.float32)   # NCHW


# ----------------------------- pure-JAX reference ----------------------------

def _prelu(x, alpha):
    return jnp.where(x >= 0, x, alpha * x)


def _conv_ref(x, w, stride, pad):
    return lax.conv_general_dilated(
        x, w, window_strides=(stride, stride), padding=[(pad, pad), (pad, pad)],
        dimension_numbers=('NCHW', 'OIHW', 'NCHW'),
        precision=lax.Precision.HIGHEST)


def _deconv_ref(x, w):   # ConvTranspose2d(k=4, s=2, p=1), w: [Cin, Cout, 4, 4]
    w_conv = jnp.transpose(w, (1, 0, 2, 3))[:, :, ::-1, ::-1]  # OIHW, flipped
    return lax.conv_general_dilated(
        x, w_conv, window_strides=(1, 1), padding=[(2, 2), (2, 2)],
        lhs_dilation=(2, 2),
        dimension_numbers=('NCHW', 'OIHW', 'NCHW'),
        precision=lax.Precision.HIGHEST)


def upblock1_reference(x, p):
    a = p['act_alpha']
    x1 = _prelu(_conv_ref(x, p['conv_w'], 1, 0), a)
    hr = _prelu(_deconv_ref(x, p['deconv1_w']), p['conv1_alpha'])
    hr1 = _prelu(hr, a)
    hr2 = _prelu(_conv_ref(hr1, p['conv0_w'], 1, 0), a)
    lr = _prelu(_conv_ref(hr1, p['conv2_w'], 2, 1), p['conv2_alpha'])
    lr1 = _prelu(lr, a)
    h0 = _prelu(_deconv_ref(lr1 - x1, p['deconv3_w']), p['conv3_alpha'])
    h01 = _prelu(h0, a)
    return h01 + hr2


# ----------------------------------- main ------------------------------------

if __name__ == "__main__":
    key = jax.random.PRNGKey(0)
    keys = jax.random.split(key, 6)
    N, C, H, W = 2, 64, 8, 8   # UpBlock1 expects 64 input channels

    def uinit(k, shape, fan_in):
        b = 1.0 / (fan_in ** 0.5)
        return jax.random.uniform(k, shape, jnp.float32, -b, b)

    params = {
        'conv_w':    uinit(keys[0], (64, 64, 1, 1), 64),        # Conv2d(64,64,1)
        'conv0_w':   uinit(keys[1], (128, 128, 1, 1), 128),     # Conv2d(128,128,1)
        'deconv1_w': uinit(keys[2], (64, 128, 4, 4), 64 * 16),  # ConvT(64,128,4)
        'conv2_w':   uinit(keys[3], (64, 128, 4, 4), 128 * 16), # Conv2d(128,64,4)
        'deconv3_w': uinit(keys[4], (64, 128, 4, 4), 64 * 16),  # ConvT(64,128,4)
        'act_alpha':   jnp.float32(0.25),   # PReLU default init
        'conv1_alpha': jnp.float32(0.25),
        'conv2_alpha': jnp.float32(0.25),
        'conv3_alpha': jnp.float32(0.25),
    }

    x = jax.random.normal(keys[5], (N, C, H, W), jnp.float32)

    packed = prepare_params(params)            # one-time bf16 weight repack
    fwd = jax.jit(upblock1_forward, static_argnames=("batch_tile", "out_layout"))

    out = jax.block_until_ready(fwd(x, packed))
    ref = jax.block_until_ready(upblock1_reference(x, params))

    assert out.shape == (N, 128, 2 * H, 2 * W), out.shape
    err = float(jnp.max(jnp.abs(out - ref)))
    # bf16 MXU operands + bf16 hr2/output vs. an f32-HIGHEST reference.
    if not err < 4e-2:
        raise AssertionError(f"mismatch vs reference: max abs err {err}")
    print("KERNEL_OK")
</pallas_src>

<mosaic_0001>
module attributes {stable_mosaic.version = 11 : i64} {
  func.func @_upblock1_kernel(%arg0: i32, %arg1: memref<4xf32, #tpu.memory_space<smem>>, %arg2: memref<1x128x64xf32, #tpu.memory_space<vmem>>, %arg3: memref<64x64xbf16, #tpu.memory_space<vmem>>, %arg4: memref<128x128xbf16, #tpu.memory_space<vmem>>, %arg5: memref<2x2x256x128xbf16, #tpu.memory_space<vmem>>, %arg6: memref<2x2x512x64xbf16, #tpu.memory_space<vmem>>, %arg7: memref<2x2x256x128xbf16, #tpu.memory_space<vmem>>, %arg8: memref<1x2x2x128x128xbf16, #tpu.memory_space<vmem>>) attributes {dimension_semantics = [#tpu.dimension_semantics<parallel>], iteration_bounds = array<i64: 1>, scalar_prefetch = 0 : i64, scratch_operands = 0 : i64, tpu.core_type = #tpu.core_type<tc>, window_params = [{transform_indices = @transform_0, window_bounds = array<i64: 4>}, {transform_indices = @transform_1, window_bounds = array<i64: 1, 128, 64>}, {pipeline_mode = #tpu.pipeline_mode<synchronous>, transform_indices = @transform_2, window_bounds = array<i64: 64, 64>}, {pipeline_mode = #tpu.pipeline_mode<synchronous>, transform_indices = @transform_3, window_bounds = array<i64: 128, 128>}, {pipeline_mode = #tpu.pipeline_mode<synchronous>, transform_indices = @transform_4, window_bounds = array<i64: 2, 2, 256, 128>}, {pipeline_mode = #tpu.pipeline_mode<synchronous>, transform_indices = @transform_5, window_bounds = array<i64: 2, 2, 512, 64>}, {pipeline_mode = #tpu.pipeline_mode<synchronous>, transform_indices = @transform_6, window_bounds = array<i64: 2, 2, 256, 128>}, {transform_indices = @transform_7, window_bounds = array<i64: 1, 2, 2, 128, 128>}]} {
    %c0 = arith.constant 0 : index
    %0 = memref.load %arg1[%c0] : memref<4xf32, #tpu.memory_space<smem>>
    %c1 = arith.constant 1 : index
    %1 = memref.load %arg1[%c1] : memref<4xf32, #tpu.memory_space<smem>>
    %c2 = arith.constant 2 : index
    %2 = memref.load %arg1[%c2] : memref<4xf32, #tpu.memory_space<smem>>
    %c3 = arith.constant 3 : index
    %3 = memref.load %arg1[%c3] : memref<4xf32, #tpu.memory_space<smem>>
    %4 = tpu.iota {dimensions = array<i32: 0>} : vector<128x1xi32>
    %c63_i32 = arith.constant 63 : i32
    %5 = vector.broadcast %c63_i32 : i32 to vector<128x1xi32>
    %6 = arith.andi %4, %5 : vector<128x1xi32>
    %c3_i32 = arith.constant 3 : i32
    %7 = vector.broadcast %c3_i32 : i32 to vector<128x1xi32>
    %8 = arith.shrsi %6, %7 : vector<128x1xi32>
    %c7_i32 = arith.constant 7 : i32
    %9 = vector.broadcast %c7_i32 : i32 to vector<128x1xi32>
    %10 = arith.andi %6, %9 : vector<128x1xi32>
    %c0_0 = arith.constant 0 : index
    %c0_1 = arith.constant 0 : index
    %c0_2 = arith.constant 0 : index
    %11 = vector.load %arg2[%c0_0, %c0_1, %c0_2] : memref<1x128x64xf32, #tpu.memory_space<vmem>>, vector<1x128x64xf32>
    %12 = vector.shape_cast %11 : vector<1x128x64xf32> to vector<128x64xf32>
    %13 = arith.truncf %12 : vector<128x64xf32> to vector<128x64xbf16>
    %c0_3 = arith.constant 0 : index
    %c0_4 = arith.constant 0 : index
    %14 = vector.load %arg3[%c0_3, %c0_4] : memref<64x64xbf16, #tpu.memory_space<vmem>>, vector<64x64xbf16>
    %cst = arith.constant dense<0.000000e+00> : vector<128x64xf32>
    %15 = tpu.matmul %13, %14, %cst {dimension_numbers = #tpu.dot_dimension_numbers<[1], [0], [0], [1], [0, 0, 1, 1], [], []>} : vector<128x64xbf16>, vector<64x64xbf16>, vector<128x64xf32> -> vector<128x64xf32>
    %cst_5 = arith.constant 0.000000e+00 : f32
    %16 = vector.broadcast %cst_5 : f32 to vector<128x64xf32>
    %17 = arith.cmpf oge, %15, %16 : vector<128x64xf32>
    %18 = vector.broadcast %0 : f32 to vector<128x64xf32>
    %19 = arith.mulf %18, %15 : vector<128x64xf32>
    %20 = arith.select %17, %15, %19 : vector<128x64xi1>, vector<128x64xf32>
    %c1_i32 = arith.constant 1 : i32
    %21 = tpu.dynamic_rotate %12 by %c1_i32 dim 0 : vector<128x64xf32>, i32 -> vector<128x64xf32>
    %c1_i32_6 = arith.constant 1 : i32
    %22 = vector.broadcast %c1_i32_6 : i32 to vector<128x1xi32>
    %23 = arith.cmpi sge, %10, %22 : vector<128x1xi32>
    %cst_7 = arith.constant 0.000000e+00 : f32
    %24 = vector.shape_cast %23 : vector<128x1xi1> to vector<128x1xi1>
    %25 = vector.broadcast %24 : vector<128x1xi1> to vector<128x64xi1>
    %26 = vector.broadcast %cst_7 : f32 to vector<128x64xf32>
    %27 = arith.select %25, %21, %26 : vector<128x64xi1>, vector<128x64xf32>
    %28 = arith.truncf %27 : vector<128x64xf32> to vector<128x64xbf16>
    %c8_i32 = arith.constant 8 : i32
    %29 = tpu.dynamic_rotate %12 by %c8_i32 dim 0 : vector<128x64xf32>, i32 -> vector<128x64xf32>
    %c1_i32_8 = arith.constant 1 : i32
    %30 = vector.broadcast %c1_i32_8 : i32 to vector<128x1xi32>
    %31 = arith.cmpi sge, %8, %30 : vector<128x1xi32>
    %cst_9 = arith.constant 0.000000e+00 : f32
    %32 = vector.shape_cast %31 : vector<128x1xi1> to vector<128x1xi1>
    %33 = vector.broadcast %32 : vector<128x1xi1> to vector<128x64xi1>
    %34 = vector.broadcast %cst_9 : f32 to vector<128x64xf32>
    %35 = arith.select %33, %29, %34 : vector<128x64xi1>, vector<128x64xf32>
    %36 = arith.truncf %35 : vector<128x64xf32> to vector<128x64xbf16>
    %c9_i32 = arith.constant 9 : i32
    %37 = tpu.dynamic_rotate %12 by %c9_i32 dim 0 : vector<128x64xf32>, i32 -> vector<128x64xf32>
    %c1_i32_10 = arith.constant 1 : i32
    %38 = vector.broadcast %c1_i32_10 : i32 to vector<128x1xi32>
    %39 = arith.cmpi sge, %8, %38 : vector<128x1xi32>
    %c1_i32_11 = arith.constant 1 : i32
    %40 = vector.broadcast %c1_i32_11 : i32 to vector<128x1xi32>
    %41 = arith.cmpi sge, %10, %40 : vector<128x1xi32>
    %42 = arith.andi %39, %41 : vector<128x1xi1>
    %cst_12 = arith.constant 0.000000e+00 : f32
    %43 = vector.shape_cast %42 : vector<128x1xi1> to vector<128x1xi1>
    %44 = vector.broadcast %43 : vector<128x1xi1> to vector<128x64xi1>
    %45 = vector.broadcast %cst_12 : f32 to vector<128x64xf32>
    %46 = arith.select %44, %37, %45 : vector<128x64xi1>, vector<128x64xf32>
    %47 = arith.truncf %46 : vector<128x64xf32> to vector<128x64xbf16>
    %48 = tpu.concatenate %13, %28, %36, %47 in 1 : vector<128x64xbf16>, vector<128x64xbf16>, vector<128x64xbf16>, vector<128x64xbf16> -> vector<128x256xbf16>
    %c0_13 = arith.constant 0 : index
    %c0_14 = arith.constant 0 : index
    %c0_15 = arith.constant 0 : index
    %c0_16 = arith.constant 0 : index
    %49 = vector.load %arg5[%c0_13, %c0_14, %c0_15, %c0_16] : memref<2x2x256x128xbf16, #tpu.memory_space<vmem>>, vector<1x1x256x128xbf16>
    %50 = vector.shape_cast %49 : vector<1x1x256x128xbf16> to vector<256x128xbf16>
    %cst_17 = arith.constant dense<0.000000e+00> : vector<128x128xf32>
    %51 = tpu.matmul %48, %50, %cst_17 {dimension_numbers = #tpu.dot_dimension_numbers<[1], [0], [0], [1], [0, 0, 1, 1], [], []>} : vector<128x256xbf16>, vector<256x128xbf16>, vector<128x128xf32> -> vector<128x128xf32>
    %cst_18 = arith.constant 0.000000e+00 : f32
    %52 = vector.broadcast %cst_18 : f32 to vector<128x128xf32>
    %53 = arith.cmpf oge, %51, %52 : vector<128x128xf32>
    %54 = vector.broadcast %1 : f32 to vector<128x128xf32>
    %55 = arith.mulf %54, %51 : vector<128x128xf32>
    %56 = arith.select %53, %51, %55 : vector<128x128xi1>, vector<128x128xf32>
    %57 = arith.truncf %56 : vector<128x128xf32> to vector<128x128xbf16>
    %c0_19 = arith.constant 0 : index
    %c0_20 = arith.constant 0 : index
    %58 = vector.load %arg4[%c0_19, %c0_20] : memref<128x128xbf16, #tpu.memory_space<vmem>>, vector<128x128xbf16>
    %cst_21 = arith.constant dense<0.000000e+00> : vector<128x128xf32>
    %59 = tpu.matmul %57, %58, %cst_21 {dimension_numbers = #tpu.dot_dimension_numbers<[1], [0], [0], [1], [0, 0, 1, 1], [], []>} : vector<128x128xbf16>, vector<128x128xbf16>, vector<128x128xf32> -> vector<128x128xf32>
    %cst_22 = arith.constant 0.000000e+00 : f32
    %60 = vector.broadcast %cst_22 : f32 to vector<128x128xf32>
    %61 = arith.cmpf oge, %59, %60 : vector<128x128xf32>
    %62 = vector.broadcast %0 : f32 to vector<128x128xf32>
    %63 = arith.mulf %62, %59 : vector<128x128xf32>
    %64 = arith.select %61, %59, %63 : vector<128x128xi1>, vector<128x128xf32>
    %65 = arith.truncf %64 : vector<128x128xf32> to vector<128x128xbf16>
    %c127_i32 = arith.constant 127 : i32
    %66 = tpu.dynamic_rotate %12 by %c127_i32 dim 0 : vector<128x64xf32>, i32 -> vector<128x64xf32>
    %c7_i32_23 = arith.constant 7 : i32
    %67 = vector.broadcast %c7_i32_23 : i32 to vector<128x1xi32>
    %68 = arith.cmpi slt, %10, %67 : vector<128x1xi32>
    %cst_24 = arith.constant 0.000000e+00 : f32
    %69 = vector.shape_cast %68 : vector<128x1xi1> to vector<128x1xi1>
    %70 = vector.broadcast %69 : vector<128x1xi1> to vector<128x64xi1>
    %71 = vector.broadcast %cst_24 : f32 to vector<128x64xf32>
    %72 = arith.select %70, %66, %71 : vector<128x64xi1>, vector<128x64xf32>
    %73 = arith.truncf %72 : vector<128x64xf32> to vector<128x64xbf16>
    %c7_i32_25 = arith.constant 7 : i32
    %74 = tpu.dynamic_rotate %12 by %c7_i32_25 dim 0 : vector<128x64xf32>, i32 -> vector<128x64xf32>
    %c1_i32_26 = arith.constant 1 : i32
    %75 = vector.broadcast %c1_i32_26 : i32 to vector<128x1xi32>
    %76 = arith.cmpi sge, %8, %75 : vector<128x1xi32>
    %c7_i32_27 = arith.constant 7 : i32
    %77 = vector.broadcast %c7_i32_27 : i32 to vector<128x1xi32>
    %78 = arith.cmpi slt, %10, %77 : vector<128x1xi32>
    %79 = arith.andi %76, %78 : vector<128x1xi1>
    %cst_28 = arith.constant 0.000000e+00 : f32
    %80 = vector.shape_cast %79 : vector<128x1xi1> to vector<128x1xi1>
    %81 = vector.broadcast %80 : vector<128x1xi1> to vector<128x64xi1>
    %82 = vector.broadcast %cst_28 : f32 to vector<128x64xf32>
    %83 = arith.select %81, %74, %82 : vector<128x64xi1>, vector<128x64xf32>
    %84 = arith.truncf %83 : vector<128x64xf32> to vector<128x64xbf16>
    %85 = tpu.concatenate %13, %73, %36, %84 in 1 : vector<128x64xbf16>, vector<128x64xbf16>, vector<128x64xbf16>, vector<128x64xbf16> -> vector<128x256xbf16>
    %c0_29 = arith.constant 0 : index
    %c1_30 = arith.constant 1 : index
    %c0_31 = arith.constant 0 : index
    %c0_32 = arith.constant 0 : index
    %86 = vector.load %arg5[%c0_29, %c1_30, %c0_31, %c0_32] : memref<2x2x256x128xbf16, #tpu.memory_space<vmem>>, vector<1x1x256x128xbf16>
    %87 = vector.shape_cast %86 : vector<1x1x256x128xbf16> to vector<256x128xbf16>
    %cst_33 = arith.constant dense<0.000000e+00> : vector<128x128xf32>
    %88 = tpu.matmul %85, %87, %cst_33 {dimension_numbers = #tpu.dot_dimension_numbers<[1], [0], [0], [1], [0, 0, 1, 1], [], []>} : vector<128x256xbf16>, vector<256x128xbf16>, vector<128x128xf32> -> vector<128x128xf32>
    %cst_34 = arith.constant 0.000000e+00 : f32
    %89 = vector.broadcast %cst_34 : f32 to vector<128x128xf32>
    %90 = arith.cmpf oge, %88, %89 : vector<128x128xf32>
    %91 = vector.broadcast %1 : f32 to vector<128x128xf32>
    %92 = arith.mulf %91, %88 : vector<128x128xf32>
    %93 = arith.select %90, %88, %92 : vector<128x128xi1>, vector<128x128xf32>
    %94 = arith.truncf %93 : vector<128x128xf32> to vector<128x128xbf16>
    %c0_35 = arith.constant 0 : index
    %c0_36 = arith.constant 0 : index
    %95 = vector.load %arg4[%c0_35, %c0_36] : memref<128x128xbf16, #tpu.memory_space<vmem>>, vector<128x128xbf16>
    %cst_37 = arith.constant dense<0.000000e+00> : vector<128x128xf32>
    %96 = tpu.matmul %94, %95, %cst_37 {dimension_numbers = #tpu.dot_dimension_numbers<[1], [0], [0], [1], [0, 0, 1, 1], [], []>} : vector<128x128xbf16>, vector<128x128xbf16>, vector<128x128xf32> -> vector<128x128xf32>
    %cst_38 = arith.constant 0.000000e+00 : f32
    %97 = vector.broadcast %cst_38 : f32 to vector<128x128xf32>
    %98 = arith.cmpf oge, %96, %97 : vector<128x128xf32>
    %99 = vector.broadcast %0 : f32 to vector<128x128xf32>
    %100 = arith.mulf %99, %96 : vector<128x128xf32>
    %101 = arith.select %98, %96, %100 : vector<128x128xi1>, vector<128x128xf32>
    %102 = arith.truncf %101 : vector<128x128xf32> to vector<128x128xbf16>
    %c120_i32 = arith.constant 120 : i32
    %103 = tpu.dynamic_rotate %12 by %c120_i32 dim 0 : vector<128x64xf32>, i32 -> vector<128x64xf32>
    %c7_i32_39 = arith.constant 7 : i32
    %104 = vector.broadcast %c7_i32_39 : i32 to vector<128x1xi32>
    %105 = arith.cmpi slt, %8, %104 : vector<128x1xi32>
    %cst_40 = arith.constant 0.000000e+00 : f32
    %106 = vector.shape_cast %105 : vector<128x1xi1> to vector<128x1xi1>
    %107 = vector.broadcast %106 : vector<128x1xi1> to vector<128x64xi1>
    %108 = vector.broadcast %cst_40 : f32 to vector<128x64xf32>
    %109 = arith.select %107, %103, %108 : vector<128x64xi1>, vector<128x64xf32>
    %110 = arith.truncf %109 : vector<128x64xf32> to vector<128x64xbf16>
    %c121_i32 = arith.constant 121 : i32
    %111 = tpu.dynamic_rotate %12 by %c121_i32 dim 0 : vector<128x64xf32>, i32 -> vector<128x64xf32>
    %c7_i32_41 = arith.constant 7 : i32
    %112 = vector.broadcast %c7_i32_41 : i32 to vector<128x1xi32>
    %113 = arith.cmpi slt, %8, %112 : vector<128x1xi32>
    %c1_i32_42 = arith.constant 1 : i32
    %114 = vector.broadcast %c1_i32_42 : i32 to vector<128x1xi32>
    %115 = arith.cmpi sge, %10, %114 : vector<128x1xi32>
    %116 = arith.andi %113, %115 : vector<128x1xi1>
    %cst_43 = arith.constant 0.000000e+00 : f32
    %117 = vector.shape_cast %116 : vector<128x1xi1> to vector<128x1xi1>
    %118 = vector.broadcast %117 : vector<128x1xi1> to vector<128x64xi1>
    %119 = vector.broadcast %cst_43 : f32 to vector<128x64xf32>
    %120 = arith.select %118, %111, %119 : vector<128x64xi1>, vector<128x64xf32>
    %121 = arith.truncf %120 : vector<128x64xf32> to vector<128x64xbf16>
    %122 = tpu.concatenate %13, %28, %110, %121 in 1 : vector<128x64xbf16>, vector<128x64xbf16>, vector<128x64xbf16>, vector<128x64xbf16> -> vector<128x256xbf16>
    %c1_44 = arith.constant 1 : index
    %c0_45 = arith.constant 0 : index
    %c0_46 = arith.constant 0 : index
    %c0_47 = arith.constant 0 : index
    %123 = vector.load %arg5[%c1_44, %c0_45, %c0_46, %c0_47] : memref<2x2x256x128xbf16, #tpu.memory_space<vmem>>, vector<1x1x256x128xbf16>
    %124 = vector.shape_cast %123 : vector<1x1x256x128xbf16> to vector<256x128xbf16>
    %cst_48 = arith.constant dense<0.000000e+00> : vector<128x128xf32>
    %125 = tpu.matmul %122, %124, %cst_48 {dimension_numbers = #tpu.dot_dimension_numbers<[1], [0], [0], [1], [0, 0, 1, 1], [], []>} : vector<128x256xbf16>, vector<256x128xbf16>, vector<128x128xf32> -> vector<128x128xf32>
    %cst_49 = arith.constant 0.000000e+00 : f32
    %126 = vector.broadcast %cst_49 : f32 to vector<128x128xf32>
    %127 = arith.cmpf oge, %125, %126 : vector<128x128xf32>
    %128 = vector.broadcast %1 : f32 to vector<128x128xf32>
    %129 = arith.mulf %128, %125 : vector<128x128xf32>
    %130 = arith.select %127, %125, %129 : vector<128x128xi1>, vector<128x128xf32>
    %131 = arith.truncf %130 : vector<128x128xf32> to vector<128x128xbf16>
    %c0_50 = arith.constant 0 : index
    %c0_51 = arith.constant 0 : index
    %132 = vector.load %arg4[%c0_50, %c0_51] : memref<128x128xbf16, #tpu.memory_space<vmem>>, vector<128x128xbf16>
    %cst_52 = arith.constant dense<0.000000e+00> : vector<128x128xf32>
    %133 = tpu.matmul %131, %132, %cst_52 {dimension_numbers = #tpu.dot_dimension_numbers<[1], [0], [0], [1], [0, 0, 1, 1], [], []>} : vector<128x128xbf16>, vector<128x128xbf16>, vector<128x128xf32> -> vector<128x128xf32>
    %cst_53 = arith.constant 0.000000e+00 : f32
    %134 = vector.broadcast %cst_53 : f32 to vector<128x128xf32>
    %135 = arith.cmpf oge, %133, %134 : vector<128x128xf32>
    %136 = vector.broadcast %0 : f32 to vector<128x128xf32>
    %137 = arith.mulf %136, %133 : vector<128x128xf32>
    %138 = arith.select %135, %133, %137 : vector<128x128xi1>, vector<128x128xf32>
    %139 = arith.truncf %138 : vector<128x128xf32> to vector<128x128xbf16>
    %c119_i32 = arith.constant 119 : i32
    %140 = tpu.dynamic_rotate %12 by %c119_i32 dim 0 : vector<128x64xf32>, i32 -> vector<128x64xf32>
    %c7_i32_54 = arith.constant 7 : i32
    %141 = vector.broadcast %c7_i32_54 : i32 to vector<128x1xi32>
    %142 = arith.cmpi slt, %8, %141 : vector<128x1xi32>
    %c7_i32_55 = arith.constant 7 : i32
    %143 = vector.broadcast %c7_i32_55 : i32 to vector<128x1xi32>
    %144 = arith.cmpi slt, %10, %143 : vector<128x1xi32>
    %145 = arith.andi %142, %144 : vector<128x1xi1>
    %cst_56 = arith.constant 0.000000e+00 : f32
    %146 = vector.shape_cast %145 : vector<128x1xi1> to vector<128x1xi1>
    %147 = vector.broadcast %146 : vector<128x1xi1> to vector<128x64xi1>
    %148 = vector.broadcast %cst_56 : f32 to vector<128x64xf32>
    %149 = arith.select %147, %140, %148 : vector<128x64xi1>, vector<128x64xf32>
    %150 = arith.truncf %149 : vector<128x64xf32> to vector<128x64xbf16>
    %151 = tpu.concatenate %13, %73, %110, %150 in 1 : vector<128x64xbf16>, vector<128x64xbf16>, vector<128x64xbf16>, vector<128x64xbf16> -> vector<128x256xbf16>
    %c1_57 = arith.constant 1 : index
    %c1_58 = arith.constant 1 : index
    %c0_59 = arith.constant 0 : index
    %c0_60 = arith.constant 0 : index
    %152 = vector.load %arg5[%c1_57, %c1_58, %c0_59, %c0_60] : memref<2x2x256x128xbf16, #tpu.memory_space<vmem>>, vector<1x1x256x128xbf16>
    %153 = vector.shape_cast %152 : vector<1x1x256x128xbf16> to vector<256x128xbf16>
    %cst_61 = arith.constant dense<0.000000e+00> : vector<128x128xf32>
    %154 = tpu.matmul %151, %153, %cst_61 {dimension_numbers = #tpu.dot_dimension_numbers<[1], [0], [0], [1], [0, 0, 1, 1], [], []>} : vector<128x256xbf16>, vector<256x128xbf16>, vector<128x128xf32> -> vector<128x128xf32>
    %cst_62 = arith.constant 0.000000e+00 : f32
    %155 = vector.broadcast %cst_62 : f32 to vector<128x128xf32>
    %156 = arith.cmpf oge, %154, %155 : vector<128x128xf32>
    %157 = vector.broadcast %1 : f32 to vector<128x128xf32>
    %158 = arith.mulf %157, %154 : vector<128x128xf32>
    %159 = arith.select %156, %154, %158 : vector<128x128xi1>, vector<128x128xf32>
    %160 = arith.truncf %159 : vector<128x128xf32> to vector<128x128xbf16>
    %c0_63 = arith.constant 0 : index
    %c0_64 = arith.constant 0 : index
    %161 = vector.load %arg4[%c0_63, %c0_64] : memref<128x128xbf16, #tpu.memory_space<vmem>>, vector<128x128xbf16>
    %cst_65 = arith.constant dense<0.000000e+00> : vector<128x128xf32>
    %162 = tpu.matmul %160, %161, %cst_65 {dimension_numbers = #tpu.dot_dimension_numbers<[1], [0], [0], [1], [0, 0, 1, 1], [], []>} : vector<128x128xbf16>, vector<128x128xbf16>, vector<128x128xf32> -> vector<128x128xf32>
    %cst_66 = arith.constant 0.000000e+00 : f32
    %163 = vector.broadcast %cst_66 : f32 to vector<128x128xf32>
    %164 = arith.cmpf oge, %162, %163 : vector<128x128xf32>
    %165 = vector.broadcast %0 : f32 to vector<128x128xf32>
    %166 = arith.mulf %165, %162 : vector<128x128xf32>
    %167 = arith.select %164, %162, %166 : vector<128x128xi1>, vector<128x128xf32>
    %168 = arith.truncf %167 : vector<128x128xf32> to vector<128x128xbf16>
    %c127_i32_67 = arith.constant 127 : i32
    %169 = tpu.dynamic_rotate %56 by %c127_i32_67 dim 0 : vector<128x128xf32>, i32 -> vector<128x128xf32>
    %cst_68 = arith.constant 0.000000e+00 : f32
    %170 = vector.shape_cast %68 : vector<128x1xi1> to vector<128x1xi1>
    %171 = vector.broadcast %170 : vector<128x1xi1> to vector<128x128xi1>
    %172 = vector.broadcast %cst_68 : f32 to vector<128x128xf32>
    %173 = arith.select %171, %169, %172 : vector<128x128xi1>, vector<128x128xf32>
    %174 = arith.truncf %173 : vector<128x128xf32> to vector<128x128xbf16>
    %c120_i32_69 = arith.constant 120 : i32
    %175 = tpu.dynamic_rotate %56 by %c120_i32_69 dim 0 : vector<128x128xf32>, i32 -> vector<128x128xf32>
    %cst_70 = arith.constant 0.000000e+00 : f32
    %176 = vector.shape_cast %105 : vector<128x1xi1> to vector<128x1xi1>
    %177 = vector.broadcast %176 : vector<128x1xi1> to vector<128x128xi1>
    %178 = vector.broadcast %cst_70 : f32 to vector<128x128xf32>
    %179 = arith.select %177, %175, %178 : vector<128x128xi1>, vector<128x128xf32>
    %180 = arith.truncf %179 : vector<128x128xf32> to vector<128x128xbf16>
    %c119_i32_71 = arith.constant 119 : i32
    %181 = tpu.dynamic_rotate %56 by %c119_i32_71 dim 0 : vector<128x128xf32>, i32 -> vector<128x128xf32>
    %cst_72 = arith.constant 0.000000e+00 : f32
    %182 = vector.shape_cast %145 : vector<128x1xi1> to vector<128x1xi1>
    %183 = vector.broadcast %182 : vector<128x1xi1> to vector<128x128xi1>
    %184 = vector.broadcast %cst_72 : f32 to vector<128x128xf32>
    %185 = arith.select %183, %181, %184 : vector<128x128xi1>, vector<128x128xf32>
    %186 = arith.truncf %185 : vector<128x128xf32> to vector<128x128xbf16>
    %187 = tpu.concatenate %57, %174, %180, %186 in 1 : vector<128x128xbf16>, vector<128x128xbf16>, vector<128x128xbf16>, vector<128x128xbf16> -> vector<128x512xbf16>
    %c0_73 = arith.constant 0 : index
    %c0_74 = arith.constant 0 : index
    %c0_75 = arith.constant 0 : index
    %c0_76 = arith.constant 0 : index
    %188 = vector.load %arg6[%c0_73, %c0_74, %c0_75, %c0_76] : memref<2x2x512x64xbf16, #tpu.memory_space<vmem>>, vector<1x1x512x64xbf16>
    %189 = vector.shape_cast %188 : vector<1x1x512x64xbf16> to vector<512x64xbf16>
    %cst_77 = arith.constant dense<0.000000e+00> : vector<128x64xf32>
    %190 = tpu.matmul %187, %189, %cst_77 {dimension_numbers = #tpu.dot_dimension_numbers<[1], [0], [0], [1], [0, 0, 1, 1], [], []>} : vector<128x512xbf16>, vector<512x64xbf16>, vector<128x64xf32> -> vector<128x64xf32>
    %c1_i32_78 = arith.constant 1 : i32
    %191 = tpu.dynamic_rotate %93 by %c1_i32_78 dim 0 : vector<128x128xf32>, i32 -> vector<128x128xf32>
    %cst_79 = arith.constant 0.000000e+00 : f32
    %192 = vector.shape_cast %23 : vector<128x1xi1> to vector<128x1xi1>
    %193 = vector.broadcast %192 : vector<128x1xi1> to vector<128x128xi1>
    %194 = vector.broadcast %cst_79 : f32 to vector<128x128xf32>
    %195 = arith.select %193, %191, %194 : vector<128x128xi1>, vector<128x128xf32>
    %196 = arith.truncf %195 : vector<128x128xf32> to vector<128x128xbf16>
    %c121_i32_80 = arith.constant 121 : i32
    %197 = tpu.dynamic_rotate %93 by %c121_i32_80 dim 0 : vector<128x128xf32>, i32 -> vector<128x128xf32>
    %cst_81 = arith.constant 0.000000e+00 : f32
    %198 = vector.shape_cast %116 : vector<128x1xi1> to vector<128x1xi1>
    %199 = vector.broadcast %198 : vector<128x1xi1> to vector<128x128xi1>
    %200 = vector.broadcast %cst_81 : f32 to vector<128x128xf32>
    %201 = arith.select %199, %197, %200 : vector<128x128xi1>, vector<128x128xf32>
    %202 = arith.truncf %201 : vector<128x128xf32> to vector<128x128xbf16>
    %c120_i32_82 = arith.constant 120 : i32
    %203 = tpu.dynamic_rotate %93 by %c120_i32_82 dim 0 : vector<128x128xf32>, i32 -> vector<128x128xf32>
    %cst_83 = arith.constant 0.000000e+00 : f32
    %204 = vector.shape_cast %105 : vector<128x1xi1> to vector<128x1xi1>
    %205 = vector.broadcast %204 : vector<128x1xi1> to vector<128x128xi1>
    %206 = vector.broadcast %cst_83 : f32 to vector<128x128xf32>
    %207 = arith.select %205, %203, %206 : vector<128x128xi1>, vector<128x128xf32>
    %208 = arith.truncf %207 : vector<128x128xf32> to vector<128x128xbf16>
    %209 = tpu.concatenate %196, %94, %202, %208 in 1 : vector<128x128xbf16>, vector<128x128xbf16>, vector<128x128xbf16>, vector<128x128xbf16> -> vector<128x512xbf16>
    %c0_84 = arith.constant 0 : index
    %c1_85 = arith.constant 1 : index
    %c0_86 = arith.constant 0 : index
    %c0_87 = arith.constant 0 : index
    %210 = vector.load %arg6[%c0_84, %c1_85, %c0_86, %c0_87] : memref<2x2x512x64xbf16, #tpu.memory_space<vmem>>, vector<1x1x512x64xbf16>
    %211 = vector.shape_cast %210 : vector<1x1x512x64xbf16> to vector<512x64xbf16>
    %cst_88 = arith.constant dense<0.000000e+00> : vector<128x64xf32>
    %212 = tpu.matmul %209, %211, %cst_88 {dimension_numbers = #tpu.dot_dimension_numbers<[1], [0], [0], [1], [0, 0, 1, 1], [], []>} : vector<128x512xbf16>, vector<512x64xbf16>, vector<128x64xf32> -> vector<128x64xf32>
    %213 = arith.addf %190, %212 : vector<128x64xf32>
    %c8_i32_89 = arith.constant 8 : i32
    %214 = tpu.dynamic_rotate %130 by %c8_i32_89 dim 0 : vector<128x128xf32>, i32 -> vector<128x128xf32>
    %cst_90 = arith.constant 0.000000e+00 : f32
    %215 = vector.shape_cast %31 : vector<128x1xi1> to vector<128x1xi1>
    %216 = vector.broadcast %215 : vector<128x1xi1> to vector<128x128xi1>
    %217 = vector.broadcast %cst_90 : f32 to vector<128x128xf32>
    %218 = arith.select %216, %214, %217 : vector<128x128xi1>, vector<128x128xf32>
    %219 = arith.truncf %218 : vector<128x128xf32> to vector<128x128xbf16>
    %c7_i32_91 = arith.constant 7 : i32
    %220 = tpu.dynamic_rotate %130 by %c7_i32_91 dim 0 : vector<128x128xf32>, i32 -> vector<128x128xf32>
    %cst_92 = arith.constant 0.000000e+00 : f32
    %221 = vector.shape_cast %79 : vector<128x1xi1> to vector<128x1xi1>
    %222 = vector.broadcast %221 : vector<128x1xi1> to vector<128x128xi1>
    %223 = vector.broadcast %cst_92 : f32 to vector<128x128xf32>
    %224 = arith.select %222, %220, %223 : vector<128x128xi1>, vector<128x128xf32>
    %225 = arith.truncf %224 : vector<128x128xf32> to vector<128x128xbf16>
    %c127_i32_93 = arith.constant 127 : i32
    %226 = tpu.dynamic_rotate %130 by %c127_i32_93 dim 0 : vector<128x128xf32>, i32 -> vector<128x128xf32>
    %cst_94 = arith.constant 0.000000e+00 : f32
    %227 = vector.shape_cast %68 : vector<128x1xi1> to vector<128x1xi1>
    %228 = vector.broadcast %227 : vector<128x1xi1> to vector<128x128xi1>
    %229 = vector.broadcast %cst_94 : f32 to vector<128x128xf32>
    %230 = arith.select %228, %226, %229 : vector<128x128xi1>, vector<128x128xf32>
    %231 = arith.truncf %230 : vector<128x128xf32> to vector<128x128xbf16>
    %232 = tpu.concatenate %219, %225, %131, %231 in 1 : vector<128x128xbf16>, vector<128x128xbf16>, vector<128x128xbf16>, vector<128x128xbf16> -> vector<128x512xbf16>
    %c1_95 = arith.constant 1 : index
    %c0_96 = arith.constant 0 : index
    %c0_97 = arith.constant 0 : index
    %c0_98 = arith.constant 0 : index
    %233 = vector.load %arg6[%c1_95, %c0_96, %c0_97, %c0_98] : memref<2x2x512x64xbf16, #tpu.memory_space<vmem>>, vector<1x1x512x64xbf16>
    %234 = vector.shape_cast %233 : vector<1x1x512x64xbf16> to vector<512x64xbf16>
    %cst_99 = arith.constant dense<0.000000e+00> : vector<128x64xf32>
    %235 = tpu.matmul %232, %234, %cst_99 {dimension_numbers = #tpu.dot_dimension_numbers<[1], [0], [0], [1], [0, 0, 1, 1], [], []>} : vector<128x512xbf16>, vector<512x64xbf16>, vector<128x64xf32> -> vector<128x64xf32>
    %236 = arith.addf %213, %235 : vector<128x64xf32>
    %c9_i32_100 = arith.constant 9 : i32
    %237 = tpu.dynamic_rotate %159 by %c9_i32_100 dim 0 : vector<128x128xf32>, i32 -> vector<128x128xf32>
    %cst_101 = arith.constant 0.000000e+00 : f32
    %238 = vector.shape_cast %42 : vector<128x1xi1> to vector<128x1xi1>
    %239 = vector.broadcast %238 : vector<128x1xi1> to vector<128x128xi1>
    %240 = vector.broadcast %cst_101 : f32 to vector<128x128xf32>
    %241 = arith.select %239, %237, %240 : vector<128x128xi1>, vector<128x128xf32>
    %242 = arith.truncf %241 : vector<128x128xf32> to vector<128x128xbf16>
    %c8_i32_102 = arith.constant 8 : i32
    %243 = tpu.dynamic_rotate %159 by %c8_i32_102 dim 0 : vector<128x128xf32>, i32 -> vector<128x128xf32>
    %cst_103 = arith.constant 0.000000e+00 : f32
    %244 = vector.shape_cast %31 : vector<128x1xi1> to vector<128x1xi1>
    %245 = vector.broadcast %244 : vector<128x1xi1> to vector<128x128xi1>
    %246 = vector.broadcast %cst_103 : f32 to vector<128x128xf32>
    %247 = arith.select %245, %243, %246 : vector<128x128xi1>, vector<128x128xf32>
    %248 = arith.truncf %247 : vector<128x128xf32> to vector<128x128xbf16>
    %c1_i32_104 = arith.constant 1 : i32
    %249 = tpu.dynamic_rotate %159 by %c1_i32_104 dim 0 : vector<128x128xf32>, i32 -> vector<128x128xf32>
    %cst_105 = arith.constant 0.000000e+00 : f32
    %250 = vector.shape_cast %23 : vector<128x1xi1> to vector<128x1xi1>
    %251 = vector.broadcast %250 : vector<128x1xi1> to vector<128x128xi1>
    %252 = vector.broadcast %cst_105 : f32 to vector<128x128xf32>
    %253 = arith.select %251, %249, %252 : vector<128x128xi1>, vector<128x128xf32>
    %254 = arith.truncf %253 : vector<128x128xf32> to vector<128x128xbf16>
    %255 = tpu.concatenate %242, %248, %254, %160 in 1 : vector<128x128xbf16>, vector<128x128xbf16>, vector<128x128xbf16>, vector<128x128xbf16> -> vector<128x512xbf16>
    %c1_106 = arith.constant 1 : index
    %c1_107 = arith.constant 1 : index
    %c0_108 = arith.constant 0 : index
    %c0_109 = arith.constant 0 : index
    %256 = vector.load %arg6[%c1_106, %c1_107, %c0_108, %c0_109] : memref<2x2x512x64xbf16, #tpu.memory_space<vmem>>, vector<1x1x512x64xbf16>
    %257 = vector.shape_cast %256 : vector<1x1x512x64xbf16> to vector<512x64xbf16>
    %cst_110 = arith.constant dense<0.000000e+00> : vector<128x64xf32>
    %258 = tpu.matmul %255, %257, %cst_110 {dimension_numbers = #tpu.dot_dimension_numbers<[1], [0], [0], [1], [0, 0, 1, 1], [], []>} : vector<128x512xbf16>, vector<512x64xbf16>, vector<128x64xf32> -> vector<128x64xf32>
    %259 = arith.addf %236, %258 : vector<128x64xf32>
    %cst_111 = arith.constant 0.000000e+00 : f32
    %260 = vector.broadcast %cst_111 : f32 to vector<128x64xf32>
    %261 = arith.cmpf oge, %259, %260 : vector<128x64xf32>
    %262 = vector.broadcast %2 : f32 to vector<128x64xf32>
    %263 = arith.mulf %262, %259 : vector<128x64xf32>
    %264 = arith.select %261, %259, %263 : vector<128x64xi1>, vector<128x64xf32>
    %265 = arith.subf %264, %20 : vector<128x64xf32>
    %266 = arith.truncf %265 : vector<128x64xf32> to vector<128x64xbf16>
    %c1_i32_112 = arith.constant 1 : i32
    %267 = tpu.dynamic_rotate %265 by %c1_i32_112 dim 0 : vector<128x64xf32>, i32 -> vector<128x64xf32>
    %cst_113 = arith.constant 0.000000e+00 : f32
    %268 = vector.shape_cast %23 : vector<128x1xi1> to vector<128x1xi1>
    %269 = vector.broadcast %268 : vector<128x1xi1> to vector<128x64xi1>
    %270 = vector.broadcast %cst_113 : f32 to vector<128x64xf32>
    %271 = arith.select %269, %267, %270 : vector<128x64xi1>, vector<128x64xf32>
    %272 = arith.truncf %271 : vector<128x64xf32> to vector<128x64xbf16>
    %c8_i32_114 = arith.constant 8 : i32
    %273 = tpu.dynamic_rotate %265 by %c8_i32_114 dim 0 : vector<128x64xf32>, i32 -> vector<128x64xf32>
    %cst_115 = arith.constant 0.000000e+00 : f32
    %274 = vector.shape_cast %31 : vector<128x1xi1> to vector<128x1xi1>
    %275 = vector.broadcast %274 : vector<128x1xi1> to vector<128x64xi1>
    %276 = vector.broadcast %cst_115 : f32 to vector<128x64xf32>
    %277 = arith.select %275, %273, %276 : vector<128x64xi1>, vector<128x64xf32>
    %278 = arith.truncf %277 : vector<128x64xf32> to vector<128x64xbf16>
    %c9_i32_116 = arith.constant 9 : i32
    %279 = tpu.dynamic_rotate %265 by %c9_i32_116 dim 0 : vector<128x64xf32>, i32 -> vector<128x64xf32>
    %cst_117 = arith.constant 0.000000e+00 : f32
    %280 = vector.shape_cast %42 : vector<128x1xi1> to vector<128x1xi1>
    %281 = vector.broadcast %280 : vector<128x1xi1> to vector<128x64xi1>
    %282 = vector.broadcast %cst_117 : f32 to vector<128x64xf32>
    %283 = arith.select %281, %279, %282 : vector<128x64xi1>, vector<128x64xf32>
    %284 = arith.truncf %283 : vector<128x64xf32> to vector<128x64xbf16>
    %285 = tpu.concatenate %266, %272, %278, %284 in 1 : vector<128x64xbf16>, vector<128x64xbf16>, vector<128x64xbf16>, vector<128x64xbf16> -> vector<128x256xbf16>
    %c0_118 = arith.constant 0 : index
    %c0_119 = arith.constant 0 : index
    %c0_120 = arith.constant 0 : index
    %c0_121 = arith.constant 0 : index
    %286 = vector.load %arg7[%c0_118, %c0_119, %c0_120, %c0_121] : memref<2x2x256x128xbf16, #tpu.memory_space<vmem>>, vector<1x1x256x128xbf16>
    %287 = vector.shape_cast %286 : vector<1x1x256x128xbf16> to vector<256x128xbf16>
    %cst_122 = arith.constant dense<0.000000e+00> : vector<128x128xf32>
    %288 = tpu.matmul %285, %287, %cst_122 {dimension_numbers = #tpu.dot_dimension_numbers<[1], [0], [0], [1], [0, 0, 1, 1], [], []>} : vector<128x256xbf16>, vector<256x128xbf16>, vector<128x128xf32> -> vector<128x128xf32>
    %cst_123 = arith.constant 0.000000e+00 : f32
    %289 = vector.broadcast %cst_123 : f32 to vector<128x128xf32>
    %290 = arith.cmpf oge, %288, %289 : vector<128x128xf32>
    %291 = vector.broadcast %3 : f32 to vector<128x128xf32>
    %292 = arith.mulf %291, %288 : vector<128x128xf32>
    %293 = arith.select %290, %288, %292 : vector<128x128xi1>, vector<128x128xf32>
    %294 = arith.extf %65 : vector<128x128xbf16> to vector<128x128xf32>
    %295 = arith.addf %293, %294 : vector<128x128xf32>
    %296 = arith.truncf %295 : vector<128x128xf32> to vector<128x128xbf16>
    %c0_124 = arith.constant 0 : index
    %c0_125 = arith.constant 0 : index
    %c0_126 = arith.constant 0 : index
    %c0_127 = arith.constant 0 : index
    %c0_128 = arith.constant 0 : index
    %297 = vector.load %arg8[%c0_124, %c0_125, %c0_126, %c0_127, %c0_128] : memref<1x2x2x128x128xbf16, #tpu.memory_space<vmem>>, vector<1x1x1x128x128xbf16>
    %298 = vector.shape_cast %297 : vector<1x1x1x128x128xbf16> to vector<128x128xbf16>
    %299 = vector.shape_cast %296 : vector<128x128xbf16> to vector<1x1x1x128x128xbf16>
    tpu.vector_store %arg8[%c0_124, %c0_125, %c0_126, %c0_127, %c0_128], %299 {strides = array<i32>} : memref<1x2x2x128x128xbf16, #tpu.memory_space<vmem>>, vector<1x1x1x128x128xbf16>,
    %c127_i32_129 = arith.constant 127 : i32
    %300 = tpu.dynamic_rotate %265 by %c127_i32_129 dim 0 : vector<128x64xf32>, i32 -> vector<128x64xf32>
    %cst_130 = arith.constant 0.000000e+00 : f32
    %301 = vector.shape_cast %68 : vector<128x1xi1> to vector<128x1xi1>
    %302 = vector.broadcast %301 : vector<128x1xi1> to vector<128x64xi1>
    %303 = vector.broadcast %cst_130 : f32 to vector<128x64xf32>
    %304 = arith.select %302, %300, %303 : vector<128x64xi1>, vector<128x64xf32>
    %305 = arith.truncf %304 : vector<128x64xf32> to vector<128x64xbf16>
    %c7_i32_131 = arith.constant 7 : i32
    %306 = tpu.dynamic_rotate %265 by %c7_i32_131 dim 0 : vector<128x64xf32>, i32 -> vector<128x64xf32>
    %cst_132 = arith.constant 0.000000e+00 : f32
    %307 = vector.shape_cast %79 : vector<128x1xi1> to vector<128x1xi1>
    %308 = vector.broadcast %307 : vector<128x1xi1> to vector<128x64xi1>
    %309 = vector.broadcast %cst_132 : f32 to vector<128x64xf32>
    %310 = arith.select %308, %306, %309 : vector<128x64xi1>, vector<128x64xf32>
    %311 = arith.truncf %310 : vector<128x64xf32> to vector<128x64xbf16>
    %312 = tpu.concatenate %266, %305, %278, %311 in 1 : vector<128x64xbf16>, vector<128x64xbf16>, vector<128x64xbf16>, vector<128x64xbf16> -> vector<128x256xbf16>
    %c0_133 = arith.constant 0 : index
    %c1_134 = arith.constant 1 : index
    %c0_135 = arith.constant 0 : index
    %c0_136 = arith.constant 0 : index
    %313 = vector.load %arg7[%c0_133, %c1_134, %c0_135, %c0_136] : memref<2x2x256x128xbf16, #tpu.memory_space<vmem>>, vector<1x1x256x128xbf16>
    %314 = vector.shape_cast %313 : vector<1x1x256x128xbf16> to vector<256x128xbf16>
    %cst_137 = arith.constant dense<0.000000e+00> : vector<128x128xf32>
    %315 = tpu.matmul %312, %314, %cst_137 {dimension_numbers = #tpu.dot_dimension_numbers<[1], [0], [0], [1], [0, 0, 1, 1], [], []>} : vector<128x256xbf16>, vector<256x128xbf16>, vector<128x128xf32> -> vector<128x128xf32>
    %cst_138 = arith.constant 0.000000e+00 : f32
    %316 = vector.broadcast %cst_138 : f32 to vector<128x128xf32>
    %317 = arith.cmpf oge, %315, %316 : vector<128x128xf32>
    %318 = vector.broadcast %3 : f32 to vector<128x128xf32>
    %319 = arith.mulf %318, %315 : vector<128x128xf32>
    %320 = arith.select %317, %315, %319 : vector<128x128xi1>, vector<128x128xf32>
    %321 = arith.extf %102 : vector<128x128xbf16> to vector<128x128xf32>
    %322 = arith.addf %320, %321 : vector<128x128xf32>
    %323 = arith.truncf %322 : vector<128x128xf32> to vector<128x128xbf16>
    %c0_139 = arith.constant 0 : index
    %c0_140 = arith.constant 0 : index
    %c1_141 = arith.constant 1 : index
    %c0_142 = arith.constant 0 : index
    %c0_143 = arith.constant 0 : index
    %324 = vector.load %arg8[%c0_139, %c0_140, %c1_141, %c0_142, %c0_143] : memref<1x2x2x128x128xbf16, #tpu.memory_space<vmem>>, vector<1x1x1x128x128xbf16>
    %325 = vector.shape_cast %324 : vector<1x1x1x128x128xbf16> to vector<128x128xbf16>
    %326 = vector.shape_cast %323 : vector<128x128xbf16> to vector<1x1x1x128x128xbf16>
    tpu.vector_store %arg8[%c0_139, %c0_140, %c1_141, %c0_142, %c0_143], %326 {strides = array<i32>} : memref<1x2x2x128x128xbf16, #tpu.memory_space<vmem>>, vector<1x1x1x128x128xbf16>,
    %c120_i32_144 = arith.constant 120 : i32
    %327 = tpu.dynamic_rotate %265 by %c120_i32_144 dim 0 : vector<128x64xf32>, i32 -> vector<128x64xf32>
    %cst_145 = arith.constant 0.000000e+00 : f32
    %328 = vector.shape_cast %105 : vector<128x1xi1> to vector<128x1xi1>
    %329 = vector.broadcast %328 : vector<128x1xi1> to vector<128x64xi1>
    %330 = vector.broadcast %cst_145 : f32 to vector<128x64xf32>
    %331 = arith.select %329, %327, %330 : vector<128x64xi1>, vector<128x64xf32>
    %332 = arith.truncf %331 : vector<128x64xf32> to vector<128x64xbf16>
    %c121_i32_146 = arith.constant 121 : i32
    %333 = tpu.dynamic_rotate %265 by %c121_i32_146 dim 0 : vector<128x64xf32>, i32 -> vector<128x64xf32>
    %cst_147 = arith.constant 0.000000e+00 : f32
    %334 = vector.shape_cast %116 : vector<128x1xi1> to vector<128x1xi1>
    %335 = vector.broadcast %334 : vector<128x1xi1> to vector<128x64xi1>
    %336 = vector.broadcast %cst_147 : f32 to vector<128x64xf32>
    %337 = arith.select %335, %333, %336 : vector<128x64xi1>, vector<128x64xf32>
    %338 = arith.truncf %337 : vector<128x64xf32> to vector<128x64xbf16>
    %339 = tpu.concatenate %266, %272, %332, %338 in 1 : vector<128x64xbf16>, vector<128x64xbf16>, vector<128x64xbf16>, vector<128x64xbf16> -> vector<128x256xbf16>
    %c1_148 = arith.constant 1 : index
    %c0_149 = arith.constant 0 : index
    %c0_150 = arith.constant 0 : index
    %c0_151 = arith.constant 0 : index
    %340 = vector.load %arg7[%c1_148, %c0_149, %c0_150, %c0_151] : memref<2x2x256x128xbf16, #tpu.memory_space<vmem>>, vector<1x1x256x128xbf16>
    %341 = vector.shape_cast %340 : vector<1x1x256x128xbf16> to vector<256x128xbf16>
    %cst_152 = arith.constant dense<0.000000e+00> : vector<128x128xf32>
    %342 = tpu.matmul %339, %341, %cst_152 {dimension_numbers = #tpu.dot_dimension_numbers<[1], [0], [0], [1], [0, 0, 1, 1], [], []>} : vector<128x256xbf16>, vector<256x128xbf16>, vector<128x128xf32> -> vector<128x128xf32>
    %cst_153 = arith.constant 0.000000e+00 : f32
    %343 = vector.broadcast %cst_153 : f32 to vector<128x128xf32>
    %344 = arith.cmpf oge, %342, %343 : vector<128x128xf32>
    %345 = vector.broadcast %3 : f32 to vector<128x128xf32>
    %346 = arith.mulf %345, %342 : vector<128x128xf32>
    %347 = arith.select %344, %342, %346 : vector<128x128xi1>, vector<128x128xf32>
    %348 = arith.extf %139 : vector<128x128xbf16> to vector<128x128xf32>
    %349 = arith.addf %347, %348 : vector<128x128xf32>
    %350 = arith.truncf %349 : vector<128x128xf32> to vector<128x128xbf16>
    %c0_154 = arith.constant 0 : index
    %c1_155 = arith.constant 1 : index
    %c0_156 = arith.constant 0 : index
    %c0_157 = arith.constant 0 : index
    %c0_158 = arith.constant 0 : index
    %351 = vector.load %arg8[%c0_154, %c1_155, %c0_156, %c0_157, %c0_158] : memref<1x2x2x128x128xbf16, #tpu.memory_space<vmem>>, vector<1x1x1x128x128xbf16>
    %352 = vector.shape_cast %351 : vector<1x1x1x128x128xbf16> to vector<128x128xbf16>
    %353 = vector.shape_cast %350 : vector<128x128xbf16> to vector<1x1x1x128x128xbf16>
    tpu.vector_store %arg8[%c0_154, %c1_155, %c0_156, %c0_157, %c0_158], %353 {strides = array<i32>} : memref<1x2x2x128x128xbf16, #tpu.memory_space<vmem>>, vector<1x1x1x128x128xbf16>,
    %c119_i32_159 = arith.constant 119 : i32
    %354 = tpu.dynamic_rotate %265 by %c119_i32_159 dim 0 : vector<128x64xf32>, i32 -> vector<128x64xf32>
    %cst_160 = arith.constant 0.000000e+00 : f32
    %355 = vector.shape_cast %145 : vector<128x1xi1> to vector<128x1xi1>
    %356 = vector.broadcast %355 : vector<128x1xi1> to vector<128x64xi1>
    %357 = vector.broadcast %cst_160 : f32 to vector<128x64xf32>
    %358 = arith.select %356, %354, %357 : vector<128x64xi1>, vector<128x64xf32>
    %359 = arith.truncf %358 : vector<128x64xf32> to vector<128x64xbf16>
    %360 = tpu.concatenate %266, %305, %332, %359 in 1 : vector<128x64xbf16>, vector<128x64xbf16>, vector<128x64xbf16>, vector<128x64xbf16> -> vector<128x256xbf16>
    %c1_161 = arith.constant 1 : index
    %c1_162 = arith.constant 1 : index
    %c0_163 = arith.constant 0 : index
    %c0_164 = arith.constant 0 : index
    %361 = vector.load %arg7[%c1_161, %c1_162, %c0_163, %c0_164] : memref<2x2x256x128xbf16, #tpu.memory_space<vmem>>, vector<1x1x256x128xbf16>
    %362 = vector.shape_cast %361 : vector<1x1x256x128xbf16> to vector<256x128xbf16>
    %cst_165 = arith.constant dense<0.000000e+00> : vector<128x128xf32>
    %363 = tpu.matmul %360, %362, %cst_165 {dimension_numbers = #tpu.dot_dimension_numbers<[1], [0], [0], [1], [0, 0, 1, 1], [], []>} : vector<128x256xbf16>, vector<256x128xbf16>, vector<128x128xf32> -> vector<128x128xf32>
    %cst_166 = arith.constant 0.000000e+00 : f32
    %364 = vector.broadcast %cst_166 : f32 to vector<128x128xf32>
    %365 = arith.cmpf oge, %363, %364 : vector<128x128xf32>
    %366 = vector.broadcast %3 : f32 to vector<128x128xf32>
    %367 = arith.mulf %366, %363 : vector<128x128xf32>
    %368 = arith.select %365, %363, %367 : vector<128x128xi1>, vector<128x128xf32>
    %369 = arith.extf %168 : vector<128x128xbf16> to vector<128x128xf32>
    %370 = arith.addf %368, %369 : vector<128x128xf32>
    %371 = arith.truncf %370 : vector<128x128xf32> to vector<128x128xbf16>
    %c0_167 = arith.constant 0 : index
    %c1_168 = arith.constant 1 : index
    %c1_169 = arith.constant 1 : index
    %c0_170 = arith.constant 0 : index
    %c0_171 = arith.constant 0 : index
    %372 = vector.load %arg8[%c0_167, %c1_168, %c1_169, %c0_170, %c0_171] : memref<1x2x2x128x128xbf16, #tpu.memory_space<vmem>>, vector<1x1x1x128x128xbf16>
    %373 = vector.shape_cast %372 : vector<1x1x1x128x128xbf16> to vector<128x128xbf16>
    %374 = vector.shape_cast %371 : vector<128x128xbf16> to vector<1x1x1x128x128xbf16>
    tpu.vector_store %arg8[%c0_167, %c1_168, %c1_169, %c0_170, %c0_171], %374 {strides = array<i32>} : memref<1x2x2x128x128xbf16, #tpu.memory_space<vmem>>, vector<1x1x1x128x128xbf16>,
    return
  }
  func.func @transform_0(%arg0: i32) -> i32 {
    %c0_i32 = arith.constant 0 : i32
    %c0_i32_0 = arith.constant 0 : i32
    return %c0_i32 : i32
  }
  func.func @transform_1(%arg0: i32) -> (i32, i32, i32) {
    %c0_i32 = arith.constant 0 : i32
    %c0_i32_0 = arith.constant 0 : i32
    %c0_i32_1 = arith.constant 0 : i32
    return %arg0, %c0_i32, %c0_i32_0 : i32, i32, i32
  }
  func.func @transform_2(%arg0: i32) -> (i32, i32) {
    %c0_i32 = arith.constant 0 : i32
    %c0_i32_0 = arith.constant 0 : i32
    %c0_i32_1 = arith.constant 0 : i32
    return %c0_i32, %c0_i32_0 : i32, i32
  }
  func.func @transform_3(%arg0: i32) -> (i32, i32) {
    %c0_i32 = arith.constant 0 : i32
    %c0_i32_0 = arith.constant 0 : i32
    %c0_i32_1 = arith.constant 0 : i32
    return %c0_i32, %c0_i32_0 : i32, i32
  }
  func.func @transform_4(%arg0: i32) -> (i32, i32, i32, i32) {
    %c0_i32 = arith.constant 0 : i32
    %c0_i32_0 = arith.constant 0 : i32
    %c0_i32_1 = arith.constant 0 : i32
    %c0_i32_2 = arith.constant 0 : i32
    %c0_i32_3 = arith.constant 0 : i32
    return %c0_i32, %c0_i32_0, %c0_i32_1, %c0_i32_2 : i32, i32, i32, i32
  }
  func.func @transform_5(%arg0: i32) -> (i32, i32, i32, i32) {
    %c0_i32 = arith.constant 0 : i32
    %c0_i32_0 = arith.constant 0 : i32
    %c0_i32_1 = arith.constant 0 : i32
    %c0_i32_2 = arith.constant 0 : i32
    %c0_i32_3 = arith.constant 0 : i32
    return %c0_i32, %c0_i32_0, %c0_i32_1, %c0_i32_2 : i32, i32, i32, i32
  }
  func.func @transform_6(%arg0: i32) -> (i32, i32, i32, i32) {
    %c0_i32 = arith.constant 0 : i32
    %c0_i32_0 = arith.constant 0 : i32
    %c0_i32_1 = arith.constant 0 : i32
    %c0_i32_2 = arith.constant 0 : i32
    %c0_i32_3 = arith.constant 0 : i32
    return %c0_i32, %c0_i32_0, %c0_i32_1, %c0_i32_2 : i32, i32, i32, i32
  }
  func.func @transform_7(%arg0: i32) -> (i32, i32, i32, i32, i32) {
    %c0_i32 = arith.constant 0 : i32
    %c0_i32_0 = arith.constant 0 : i32
    %c0_i32_1 = arith.constant 0 : i32
    %c0_i32_2 = arith.constant 0 : i32
    %c0_i32_3 = arith.constant 0 : i32
    return %arg0, %c0_i32, %c0_i32_0, %c0_i32_1, %c0_i32_2 : i32, i32, i32, i32, i32
  }
}

</mosaic_0001>

<llo_original>
// kernel: upblock1_forward.1
$region0: #{upblock1_forward.1}
  #allocation0 [shape = 'u32[]', space=smem, size = 0x4, offset = 0x4, fixed_abs, tag = 'smem constant byte address 0x4 - core index']
  #allocation1 [shape = 'u32[144,128]{1,0:T(1,128)}', space=vmem, size = 0x12000, scoped, tag = 'internal scratch']
  %s0 = inlined_call_operand.vmem [shape: f32[4], index: 0, kind: input, shape index: {}]
  %s1 = inlined_call_operand.vmem [shape: f32[1,128,64], index: 1, kind: input, shape index: {}]
  %s2 = inlined_call_operand.vmem [shape: bf16[64,64], index: 2, kind: input, shape index: {}]
  %s3 = inlined_call_operand.vmem [shape: bf16[128,128], index: 3, kind: input, shape index: {}]
  %s4 = inlined_call_operand.vmem [shape: bf16[2,2,256,128], index: 4, kind: input, shape index: {}]
  %s5 = inlined_call_operand.vmem [shape: bf16[2,2,512,64], index: 5, kind: input, shape index: {}]
  %s6 = inlined_call_operand.vmem [shape: bf16[2,2,256,128], index: 6, kind: input, shape index: {}]
  %s7 = inlined_call_operand.vmem [shape: bf16[1,2,2,128,128], index: 7, kind: output, shape index: {}]
  %s8 = sld [smem:[#allocation0]]
  $region42: #{upblock1_forward.1} parent=0
    _
  %s10 = ssub.s32 1, %s8
  %s11 = scalar_select 0, %s10, %s8
  $region1: #{upblock1_forward.1} parent=0
    #allocation2 [shape = 'u8[512]{0}', space=smem, size = 0x200, scoped, tag = 'input window, operand 0, single buffered']
    #allocation3 [shape = 's32[1]{0}', space=sflag, size = 0x4, scoped, tag = 'scoped memory for upblock1_forward.1']
    %12 = vsyncpa [#allocation3], 0
    // Predicated region
    $region2: #{upblock1_forward.1} parent=1 // pred_check
      _
    $region3: #{upblock1_forward.1} parent=1 // pred_check_branch
      %14 = sbr.rel (0) target = $region5
    $region4: #{upblock1_forward.1} parent=1 // pred_region
      %s16 = ssub.s32 16, 16
      %17 = vsyncadd [#allocation3], %s16
      %s19 = sshll.u32 %s0, 4
      %s20 = int_to_ptr.vmem [resolvable:$true] %s19
      %22 = dma.vmem_to_smem %s20, 16, [#allocation2], [#allocation3]
    $region5: #{upblock1_forward.1} parent=1 // pred_fallthru
      _
    // Predicated region
    $region6: #{upblock1_forward.1} parent=1 // pred_check
      _
    $region7: #{upblock1_forward.1} parent=1 // pred_check_branch
      %24 = sbr.rel (0) target = $region9
    $region8: #{upblock1_forward.1} parent=1 // pred_region
      _
    $region9: #{upblock1_forward.1} parent=1 // pred_fallthru
      _
    // Predicated region
    $region10: #{upblock1_forward.1} parent=1 // pred_check
      _
    $region11: #{upblock1_forward.1} parent=1 // pred_check_branch
      %26 = sbr.rel (0) target = $region13
    $region12: #{upblock1_forward.1} parent=1 // pred_region
      _
    $region13: #{upblock1_forward.1} parent=1 // pred_fallthru
      _
    // Predicated region
    $region14: #{upblock1_forward.1} parent=1 // pred_check
      _
    $region15: #{upblock1_forward.1} parent=1 // pred_check_branch
      %28 = sbr.rel (0) target = $region17
    $region16: #{upblock1_forward.1} parent=1 // pred_region
      _
    $region17: #{upblock1_forward.1} parent=1 // pred_fallthru
      _
    // Predicated region
    $region18: #{upblock1_forward.1} parent=1 // pred_check
      _
    $region19: #{upblock1_forward.1} parent=1 // pred_check_branch
      %30 = sbr.rel (0) target = $region21
    $region20: #{upblock1_forward.1} parent=1 // pred_region
      _
    $region21: #{upblock1_forward.1} parent=1 // pred_fallthru
      _
    // Predicated region
    $region22: #{upblock1_forward.1} parent=1 // pred_check
      _
    $region23: #{upblock1_forward.1} parent=1 // pred_check_branch
      %32 = sbr.rel (0) target = $region25
    $region24: #{upblock1_forward.1} parent=1 // pred_region
      _
    $region25: #{upblock1_forward.1} parent=1 // pred_fallthru
      _
    // Predicated region
    $region26: #{upblock1_forward.1} parent=1 // pred_check
      _
    $region27: #{upblock1_forward.1} parent=1 // pred_check_branch
      %34 = sbr.rel (0) target = $region29
    $region28: #{upblock1_forward.1} parent=1 // pred_region
      _
    $region29: #{upblock1_forward.1} parent=1 // pred_fallthru
      _
    // Predicated region
    $region30: #{upblock1_forward.1} parent=1 // pred_check
      _
    $region31: #{upblock1_forward.1} parent=1 // pred_check_branch
      %36 = sbr.rel (0) target = $region33
    $region32: #{upblock1_forward.1} parent=1 // pred_region
      %37 = dma.done [#allocation3], 16
    $region33: #{upblock1_forward.1} parent=1 // pred_fallthru
      _
    %38 = sfence
    %s40 = sld [smem:[#allocation2]]
    %s41 = sld [smem:[#allocation2 + $0x1]]
    %s42 = sld [smem:[#allocation2 + $0x2]]
    %s43 = sld [smem:[#allocation2 + $0x3]]
    %v44 = vlaneseq
    %v45 = vshrl.u32 %v44, 7
    %v46 = vadd.s32 %v45, 8
    %v47 = vadd.s32 %v45, 16
    %v48 = vadd.s32 %v45, 24
    %v49 = vadd.s32 %v45, 32
    %v50 = vadd.s32 %v45, 40
    %v51 = vadd.s32 %v45, 48
    %v52 = vadd.s32 %v45, 56
    %v53 = vadd.s32 %v45, 64
    %v54 = vadd.s32 %v45, 72
    %v55 = vadd.s32 %v45, 80
    %v56 = vadd.s32 %v45, 88
    %v57 = vadd.s32 %v45, 96
    %v58 = vadd.s32 %v45, 104
    %v59 = vadd.s32 %v45, 112
    %v60 = vadd.s32 %v45, 120
    %v61 = vand.u32 %v45, 63
    %v62 = vand.u32 %v46, 63
    %v63 = vand.u32 %v47, 63
    %v64 = vand.u32 %v48, 63
    %v65 = vand.u32 %v49, 63
    %v66 = vand.u32 %v50, 63
    %v67 = vand.u32 %v51, 63
    %v68 = vand.u32 %v52, 63
    %v69 = vand.u32 %v53, 63
    %v70 = vand.u32 %v54, 63
    %v71 = vand.u32 %v55, 63
    %v72 = vand.u32 %v56, 63
    %v73 = vand.u32 %v57, 63
    %v74 = vand.u32 %v58, 63
    %v75 = vand.u32 %v59, 63
    %v76 = vand.u32 %v60, 63
    %v77 = vshra.s32 %v61, 3
    %v78 = vshra.s32 %v62, 3
    %v79 = vshra.s32 %v63, 3
    %v80 = vshra.s32 %v64, 3
    %v81 = vshra.s32 %v65, 3
    %v82 = vshra.s32 %v66, 3
    %v83 = vshra.s32 %v67, 3
    %v84 = vshra.s32 %v68, 3
    %v85 = vshra.s32 %v69, 3
    %v86 = vshra.s32 %v70, 3
    %v87 = vshra.s32 %v71, 3
    %v88 = vshra.s32 %v72, 3
    %v89 = vshra.s32 %v73, 3
    %v90 = vshra.s32 %v74, 3
    %v91 = vshra.s32 %v75, 3
    %v92 = vshra.s32 %v76, 3
    %v93 = vand.u32 %v61, 7
    %v94 = vand.u32 %v62, 7
    %v95 = vand.u32 %v63, 7
    %v96 = vand.u32 %v64, 7
    %v97 = vand.u32 %v65, 7
    %v98 = vand.u32 %v66, 7
    %v99 = vand.u32 %v67, 7
    %v100 = vand.u32 %v68, 7
    %v101 = vand.u32 %v69, 7
    %v102 = vand.u32 %v70, 7
    %v103 = vand.u32 %v71, 7
    %v104 = vand.u32 %v72, 7
    %v105 = vand.u32 %v73, 7
    %v106 = vand.u32 %v74, 7
    %v107 = vand.u32 %v75, 7
    %v108 = vand.u32 %v76, 7
    %v109 = vld [vmem:[%s1] sm:$0xff]
    %v110 = vld [vmem:[%s1 + $0x8] sm:$0xff]
    %v111 = vld [vmem:[%s1 + $0x10] sm:$0xff]
    %v112 = vld [vmem:[%s1 + $0x18] sm:$0xff]
    %v113 = vld [vmem:[%s1 + $0x20] sm:$0xff]
    %v114 = vld [vmem:[%s1 + $0x28] sm:$0xff]
    %v115 = vld [vmem:[%s1 + $0x30] sm:$0xff]
    %v116 = vld [vmem:[%s1 + $0x38] sm:$0xff]
    %v117 = vld [vmem:[%s1 + $0x40] sm:$0xff]
    %v118 = vld [vmem:[%s1 + $0x48] sm:$0xff]
    %v119 = vld [vmem:[%s1 + $0x50] sm:$0xff]
    %v120 = vld [vmem:[%s1 + $0x58] sm:$0xff]
    %v121 = vld [vmem:[%s1 + $0x60] sm:$0xff]
    %v122 = vld [vmem:[%s1 + $0x68] sm:$0xff]
    %v123 = vld [vmem:[%s1 + $0x70] sm:$0xff]
    %v124 = vld [vmem:[%s1 + $0x78] sm:$0xff]
    %v125 = vpack.c.bf16 %v110, %v109
    %v126 = vpack.c.bf16 %v112, %v111
    %v127 = vpack.c.bf16 %v114, %v113
    %v128 = vpack.c.bf16 %v116, %v115
    %v129 = vpack.c.bf16 %v118, %v117
    %v130 = vpack.c.bf16 %v120, %v119
    %v131 = vpack.c.bf16 %v122, %v121
    %v132 = vpack.c.bf16 %v124, %v123
    %v133 = vld [vmem:[%s2] sm:$0xf]
    %v134 = vld [vmem:[%s2 + $0x4] sm:$0xf]
    %v135 = vld [vmem:[%s2 + $0x8] sm:$0xf]
    %v136 = vld [vmem:[%s2 + $0xc] sm:$0xf]
    %v137 = vld [vmem:[%s2 + $0x10] sm:$0xf]
    %v138 = vld [vmem:[%s2 + $0x14] sm:$0xf]
    %v139 = vld [vmem:[%s2 + $0x18] sm:$0xf]
    %v140 = vld [vmem:[%s2 + $0x1c] sm:$0xf]
    %v149 = vunpack.c.l.b16 %v133
    %v150 = vunpack.c.l.b16 %v134
    %v151 = vunpack.c.l.b16 %v135
    %v152 = vunpack.c.l.b16 %v136
    %v153 = vunpack.c.l.b16 %v137
    %v154 = vunpack.c.l.b16 %v138
    %v155 = vunpack.c.l.b16 %v139
    %v156 = vunpack.c.l.b16 %v140
    %v157 = vpack.c.b16 %v150, %v149
    %v158 = vpack.c.b16 %v152, %v151
    %v159 = vpack.c.b16 %v154, %v153
    %v160 = vpack.c.b16 %v156, %v155
    %vm165 = vcmask 523264
    %v167 = vsel %vm165, %v125, 0
    %v170 = vsel %vm165, %v126, 0
    %v173 = vsel %vm165, %v127, 0
    %v176 = vsel %vm165, %v128, 0
    %v179 = vsel %vm165, %v129, 0
    %v182 = vsel %vm165, %v130, 0
    %v185 = vsel %vm165, %v131, 0
    %v188 = vsel %vm165, %v132, 0
    %190 = vmatprep.subr.bf16.mxu0 0
    %191 = vmatpush1.bf16.msra.mxu0 0
    %192 = vmatprep.subr.bf16.mxu0 0
    %193 = vmatpush1.bf16.msra.mxu0 0
    %194 = vmatprep.subr.bf16.mxu0 0
    %195 = vmatpush1.bf16.msra.mxu0 0
    %196 = vmatprep.subr.bf16.mxu0 0
    %197 = vmatpush1.bf16.msra.mxu0 0
    %198 = vmatprep.subr.bf16.mxu0 0
    %199 = vmatpush1.bf16.msra.mxu0 %v160
    %200 = vmatprep.subr.bf16.mxu0 0
    %201 = vmatpush1.bf16.msra.mxu0 %v159
    %202 = vmatprep.subr.bf16.mxu0 0
    %203 = vmatpush1.bf16.msra.mxu0 %v158
    %204 = vmatprep.subr.bf16.mxu0 0
    %205 = vmatpush1.bf16.msra.mxu0 %v157
    %206 = vmatprep.subr.bf16.mxu0 0
    %207 = vmatpush2.bf16.msra.mxu0 0
    %208 = vmatprep.subr.bf16.mxu0 0
    %209 = vmatpush2.bf16.msra.mxu0 0
    %210 = vmatprep.subr.bf16.mxu0 0
    %211 = vmatpush2.bf16.msra.mxu0 0
    %212 = vmatprep.subr.bf16.mxu0 0
    %213 = vmatpush2.bf16.msra.mxu0 0
    %214 = vmatprep.subr.bf16.mxu0 0
    %215 = vmatpush2.bf16.msra.mxu0 0
    %216 = vmatprep.subr.bf16.mxu0 0
    %217 = vmatpush2.bf16.msra.mxu0 0
    %218 = vmatprep.subr.bf16.mxu0 0
    %219 = vmatpush2.bf16.msra.mxu0 0
    %220 = vmatprep.subr.bf16.mxu0 0
    %221 = vmatpush2.bf16.msra.mxu0 0
    %222 = vmatprep.mubr.bf16.mxu0 0
    %223 = vmatmul.mubr.bf16.gmra.mxu0 %v167
    %v224 = vpop.f32.mrf.mxu0
    %v225 = vadd.f32 0.0, %v224
    %v226 = vpop.f32.mrf.mxu0
    %v227 = vpop.f32.mrf.mxu0
    %v228 = vadd.f32 0.0, %v227
    %v229 = vpop.f32.mrf.mxu0
    %230 = vmatprep.mubr.bf16.mxu0 0
    %231 = vmatmul.mubr.bf16.gmra.mxu0 %v170
    %v232 = vpop.f32.mrf.mxu0
    %v233 = vadd.f32 0.0, %v232
    %v234 = vpop.f32.mrf.mxu0
    %v235 = vpop.f32.mrf.mxu0
    %v236 = vadd.f32 0.0, %v235
    %v237 = vpop.f32.mrf.mxu0
    %238 = vmatprep.mubr.bf16.mxu0 0
    %239 = vmatmul.mubr.bf16.gmra.mxu0 %v173
    %v240 = vpop.f32.mrf.mxu0
    %v241 = vadd.f32 0.0, %v240
    %v242 = vpop.f32.mrf.mxu0
    %v243 = vpop.f32.mrf.mxu0
    %v244 = vadd.f32 0.0, %v243
    %v245 = vpop.f32.mrf.mxu0
    %246 = vmatprep.mubr.bf16.mxu0 0
    %247 = vmatmul.mubr.bf16.gmra.mxu0 %v176
    %v248 = vpop.f32.mrf.mxu0
    %v249 = vadd.f32 0.0, %v248
    %v250 = vpop.f32.mrf.mxu0
    %v251 = vpop.f32.mrf.mxu0
    %v252 = vadd.f32 0.0, %v251
    %v253 = vpop.f32.mrf.mxu0
    %254 = vmatprep.mubr.bf16.mxu0 0
    %255 = vmatmul.mubr.bf16.gmra.mxu0 %v179
    %v256 = vpop.f32.mrf.mxu0
    %v257 = vadd.f32 0.0, %v256
    %v258 = vpop.f32.mrf.mxu0
    %v259 = vpop.f32.mrf.mxu0
    %v260 = vadd.f32 0.0, %v259
    %v261 = vpop.f32.mrf.mxu0
    %262 = vmatprep.mubr.bf16.mxu0 0
    %263 = vmatmul.mubr.bf16.gmra.mxu0 %v182
    %v264 = vpop.f32.mrf.mxu0
    %v265 = vadd.f32 0.0, %v264
    %v266 = vpop.f32.mrf.mxu0
    %v267 = vpop.f32.mrf.mxu0
    %v268 = vadd.f32 0.0, %v267
    %v269 = vpop.f32.mrf.mxu0
    %270 = vmatprep.mubr.bf16.mxu0 0
    %271 = vmatmul.mubr.bf16.gmra.mxu0 %v185
    %v272 = vpop.f32.mrf.mxu0
    %v273 = vadd.f32 0.0, %v272
    %v274 = vpop.f32.mrf.mxu0
    %v275 = vpop.f32.mrf.mxu0
    %v276 = vadd.f32 0.0, %v275
    %v277 = vpop.f32.mrf.mxu0
    %278 = vmatprep.mubr.bf16.mxu0 0
    %279 = vmatmul.mubr.bf16.gmra.mxu0 %v188
    %v280 = vpop.f32.mrf.mxu0
    %v281 = vadd.f32 0.0, %v280
    %v282 = vpop.f32.mrf.mxu0
    %v283 = vpop.f32.mrf.mxu0
    %v284 = vadd.f32 0.0, %v283
    %v285 = vpop.f32.mrf.mxu0
    %286 = vdwg.mxu0
    %vm287 = vcmp.ge.f32.partialorder %v225, 0.0
    %vm288 = vcmp.ge.f32.partialorder %v228, 0.0
    %vm289 = vcmp.ge.f32.partialorder %v233, 0.0
    %vm290 = vcmp.ge.f32.partialorder %v236, 0.0
    %vm291 = vcmp.ge.f32.partialorder %v241, 0.0
    %vm292 = vcmp.ge.f32.partialorder %v244, 0.0
    %vm293 = vcmp.ge.f32.partialorder %v249, 0.0
    %vm294 = vcmp.ge.f32.partialorder %v252, 0.0
    %vm295 = vcmp.ge.f32.partialorder %v257, 0.0
    %vm296 = vcmp.ge.f32.partialorder %v260, 0.0
    %vm297 = vcmp.ge.f32.partialorder %v265, 0.0
    %vm298 = vcmp.ge.f32.partialorder %v268, 0.0
    %vm299 = vcmp.ge.f32.partialorder %v273, 0.0
    %vm300 = vcmp.ge.f32.partialorder %v276, 0.0
    %vm301 = vcmp.ge.f32.partialorder %v281, 0.0
    %vm302 = vcmp.ge.f32.partialorder %v284, 0.0
    %v303 = vstv %s40
    %v304 = vmul.f32 %v303, %v225
    %v305 = vmul.f32 %v303, %v228
    %v306 = vmul.f32 %v303, %v233
    %v307 = vmul.f32 %v303, %v236
    %v308 = vmul.f32 %v303, %v241
    %v309 = vmul.f32 %v303, %v244
    %v310 = vmul.f32 %v303, %v249
    %v311 = vmul.f32 %v303, %v252
    %v312 = vmul.f32 %v303, %v257
    %v313 = vmul.f32 %v303, %v260
    %v314 = vmul.f32 %v303, %v265
    %v315 = vmul.f32 %v303, %v268
    %v316 = vmul.f32 %v303, %v273
    %v317 = vmul.f32 %v303, %v276
    %v318 = vmul.f32 %v303, %v281
    %v319 = vmul.f32 %v303, %v284
    %v320 = vsel %vm287, %v225, %v304
    %v321 = vsel %vm288, %v228, %v305
    %v322 = vsel %vm289, %v233, %v306
    %v323 = vsel %vm290, %v236, %v307
    %v324 = vsel %vm291, %v241, %v308
    %v325 = vsel %vm292, %v244, %v309
    %v326 = vsel %vm293, %v249, %v310
    %v327 = vsel %vm294, %v252, %v311
    %v328 = vsel %vm295, %v257, %v312
    %v329 = vsel %vm296, %v260, %v313
    %v330 = vsel %vm297, %v265, %v314
    %v331 = vsel %vm298, %v268, %v315
    %v332 = vsel %vm299, %v273, %v316
    %v333 = vsel %vm300, %v276, %v317
    %v334 = vsel %vm301, %v281, %v318
    %v335 = vsel %vm302, %v284, %v319
    %v336 = vrot.slane %v109, 7
    %v337 = vrot.slane %v110, 7
    %v338 = vrot.slane %v111, 7
    %v339 = vrot.slane %v112, 7
    %v340 = vrot.slane %v113, 7
    %v341 = vrot.slane %v114, 7
    %v342 = vrot.slane %v115, 7
    %v343 = vrot.slane %v116, 7
    %v344 = vrot.slane %v117, 7
    %v345 = vrot.slane %v118, 7
    %v346 = vrot.slane %v119, 7
    %v347 = vrot.slane %v120, 7
    %v348 = vrot.slane %v121, 7
    %v349 = vrot.slane %v122, 7
    %v350 = vrot.slane %v123, 7
    %v351 = vrot.slane %v124, 7
    %vm352 = vcmp.lt.s32.totalorder %v45, 1
    %v353 = vsel %vm352, %v350, %v351
    %v354 = vsel %vm352, %v349, %v350
    %v355 = vsel %vm352, %v348, %v349
    %v356 = vsel %vm352, %v347, %v348
    %v357 = vsel %vm352, %v346, %v347
    %v358 = vsel %vm352, %v345, %v346
    %v359 = vsel %vm352, %v344, %v345
    %v360 = vsel %vm352, %v343, %v344
    %v361 = vsel %vm352, %v342, %v343
    %v362 = vsel %vm352, %v341, %v342
    %v363 = vsel %vm352, %v340, %v341
    %v364 = vsel %vm352, %v339, %v340
    %v365 = vsel %vm352, %v338, %v339
    %v366 = vsel %vm352, %v337, %v338
    %v367 = vsel %vm352, %v336, %v337
    %v368 = vsel %vm352, %v351, %v336
    %vm369 = vcmp.ge.s32.totalorder %v93, 1
    %vm370 = vcmp.ge.s32.totalorder %v94, 1
    %vm371 = vcmp.ge.s32.totalorder %v95, 1
    %vm372 = vcmp.ge.s32.totalorder %v96, 1
    %vm373 = vcmp.ge.s32.totalorder %v97, 1
    %vm374 = vcmp.ge.s32.totalorder %v98, 1
    %vm375 = vcmp.ge.s32.totalorder %v99, 1
    %vm376 = vcmp.ge.s32.totalorder %v100, 1
    %vm377 = vcmp.ge.s32.totalorder %v101, 1
    %vm378 = vcmp.ge.s32.totalorder %v102, 1
    %vm379 = vcmp.ge.s32.totalorder %v103, 1
    %vm380 = vcmp.ge.s32.totalorder %v104, 1
    %vm381 = vcmp.ge.s32.totalorder %v105, 1
    %vm382 = vcmp.ge.s32.totalorder %v106, 1
    %vm383 = vcmp.ge.s32.totalorder %v107, 1
    %vm384 = vcmp.ge.s32.totalorder %v108, 1
    %v385 = vsel %vm369, 1, 0
    %v386 = vsel %vm370, 1, 0
    %v387 = vsel %vm371, 1, 0
    %v388 = vsel %vm372, 1, 0
    %v389 = vsel %vm373, 1, 0
    %v390 = vsel %vm374, 1, 0
    %v391 = vsel %vm375, 1, 0
    %v392 = vsel %vm376, 1, 0
    %v393 = vsel %vm377, 1, 0
    %v394 = vsel %vm378, 1, 0
    %v395 = vsel %vm379, 1, 0
    %v396 = vsel %vm380, 1, 0
    %v397 = vsel %vm381, 1, 0
    %v398 = vsel %vm382, 1, 0
    %v399 = vsel %vm383, 1, 0
    %v400 = vsel %vm384, 1, 0
    %vm401 = vcmp.eq.s32.totalorder %v385, 1
    %vm402 = vcmp.eq.s32.totalorder %v386, 1
    %vm403 = vcmp.eq.s32.totalorder %v387, 1
    %vm404 = vcmp.eq.s32.totalorder %v388, 1
    %vm405 = vcmp.eq.s32.totalorder %v389, 1
    %vm406 = vcmp.eq.s32.totalorder %v390, 1
    %vm407 = vcmp.eq.s32.totalorder %v391, 1
    %vm408 = vcmp.eq.s32.totalorder %v392, 1
    %vm409 = vcmp.eq.s32.totalorder %v393, 1
    %vm410 = vcmp.eq.s32.totalorder %v394, 1
    %vm411 = vcmp.eq.s32.totalorder %v395, 1
    %vm412 = vcmp.eq.s32.totalorder %v396, 1
    %vm413 = vcmp.eq.s32.totalorder %v397, 1
    %vm414 = vcmp.eq.s32.totalorder %v398, 1
    %vm415 = vcmp.eq.s32.totalorder %v399, 1
    %vm416 = vcmp.eq.s32.totalorder %v400, 1
    %v417 = vsel %vm401, %v368, 0.0
    %v418 = vsel %vm402, %v367, 0.0
    %v419 = vsel %vm403, %v366, 0.0
    %v420 = vsel %vm404, %v365, 0.0
    %v421 = vsel %vm405, %v364, 0.0
    %v422 = vsel %vm406, %v363, 0.0
    %v423 = vsel %vm407, %v362, 0.0
    %v424 = vsel %vm408, %v361, 0.0
    %v425 = vsel %vm409, %v360, 0.0
    %v426 = vsel %vm410, %v359, 0.0
    %v427 = vsel %vm411, %v358, 0.0
    %v428 = vsel %vm412, %v357, 0.0
    %v429 = vsel %vm413, %v356, 0.0
    %v430 = vsel %vm414, %v355, 0.0
    %v431 = vsel %vm415, %v354, 0.0
    %v432 = vsel %vm416, %v353, 0.0
    %v433 = vpack.c.bf16 %v418, %v417
    %v434 = vpack.c.bf16 %v420, %v419
    %v435 = vpack.c.bf16 %v422, %v421
    %v436 = vpack.c.bf16 %v424, %v423
    %v437 = vpack.c.bf16 %v426, %v425
    %v438 = vpack.c.bf16 %v428, %v427
    %v439 = vpack.c.bf16 %v430, %v429
    %v440 = vpack.c.bf16 %v432, %v431
    %vm441 = vcmp.ge.s32.totalorder %v77, 1
    %vm442 = vcmp.ge.s32.totalorder %v78, 1
    %vm443 = vcmp.ge.s32.totalorder %v79, 1
    %vm444 = vcmp.ge.s32.totalorder %v80, 1
    %vm445 = vcmp.ge.s32.totalorder %v81, 1
    %vm446 = vcmp.ge.s32.totalorder %v82, 1
    %vm447 = vcmp.ge.s32.totalorder %v83, 1
    %vm448 = vcmp.ge.s32.totalorder %v84, 1
    %vm449 = vcmp.ge.s32.totalorder %v85, 1
    %vm450 = vcmp.ge.s32.totalorder %v86, 1
    %vm451 = vcmp.ge.s32.totalorder %v87, 1
    %vm452 = vcmp.ge.s32.totalorder %v88, 1
    %vm453 = vcmp.ge.s32.totalorder %v89, 1
    %vm454 = vcmp.ge.s32.totalorder %v90, 1
    %vm455 = vcmp.ge.s32.totalorder %v91, 1
    %vm456 = vcmp.ge.s32.totalorder %v92, 1
    %v457 = vsel %vm441, 1, 0
    %v458 = vsel %vm442, 1, 0
    %v459 = vsel %vm443, 1, 0
    %v460 = vsel %vm444, 1, 0
    %v461 = vsel %vm445, 1, 0
    %v462 = vsel %vm446, 1, 0
    %v463 = vsel %vm447, 1, 0
    %v464 = vsel %vm448, 1, 0
    %v465 = vsel %vm449, 1, 0
    %v466 = vsel %vm450, 1, 0
    %v467 = vsel %vm451, 1, 0
    %v468 = vsel %vm452, 1, 0
    %v469 = vsel %vm453, 1, 0
    %v470 = vsel %vm454, 1, 0
    %v471 = vsel %vm455, 1, 0
    %v472 = vsel %vm456, 1, 0
    %vm473 = vcmp.eq.s32.totalorder %v457, 1
    %vm474 = vcmp.eq.s32.totalorder %v458, 1
    %vm475 = vcmp.eq.s32.totalorder %v459, 1
    %vm476 = vcmp.eq.s32.totalorder %v460, 1
    %vm477 = vcmp.eq.s32.totalorder %v461, 1
    %vm478 = vcmp.eq.s32.totalorder %v462, 1
    %vm479 = vcmp.eq.s32.totalorder %v463, 1
    %vm480 = vcmp.eq.s32.totalorder %v464, 1
    %vm481 = vcmp.eq.s32.totalorder %v465, 1
    %vm482 = vcmp.eq.s32.totalorder %v466, 1
    %vm483 = vcmp.eq.s32.totalorder %v467, 1
    %vm484 = vcmp.eq.s32.totalorder %v468, 1
    %vm485 = vcmp.eq.s32.totalorder %v469, 1
    %vm486 = vcmp.eq.s32.totalorder %v470, 1
    %vm487 = vcmp.eq.s32.totalorder %v471, 1
    %vm488 = vcmp.eq.s32.totalorder %v472, 1
    %v489 = vsel %vm473, %v124, 0.0
    %v490 = vsel %vm474, %v109, 0.0
    %v491 = vsel %vm475, %v110, 0.0
    %v492 = vsel %vm476, %v111, 0.0
    %v493 = vsel %vm477, %v112, 0.0
    %v494 = vsel %vm478, %v113, 0.0
    %v495 = vsel %vm479, %v114, 0.0
    %v496 = vsel %vm480, %v115, 0.0
    %v497 = vsel %vm481, %v116, 0.0
    %v498 = vsel %vm482, %v117, 0.0
    %v499 = vsel %vm483, %v118, 0.0
    %v500 = vsel %vm484, %v119, 0.0
    %v501 = vsel %vm485, %v120, 0.0
    %v502 = vsel %vm486, %v121, 0.0
    %v503 = vsel %vm487, %v122, 0.0
    %v504 = vsel %vm488, %v123, 0.0
    %v505 = vpack.c.bf16 %v490, %v489
    %v506 = vpack.c.bf16 %v492, %v491
    %v507 = vpack.c.bf16 %v494, %v493
    %v508 = vpack.c.bf16 %v496, %v495
    %v509 = vpack.c.bf16 %v498, %v497
    %v510 = vpack.c.bf16 %v500, %v499
    %v511 = vpack.c.bf16 %v502, %v501
    %v512 = vpack.c.bf16 %v504, %v503
    %vm513 = vmand %vm441, %vm369
    %vm514 = vmand %vm442, %vm370
    %vm515 = vmand %vm443, %vm371
    %vm516 = vmand %vm444, %vm372
    %vm517 = vmand %vm445, %vm373
    %vm518 = vmand %vm446, %vm374
    %vm519 = vmand %vm447, %vm375
    %vm520 = vmand %vm448, %vm376
    %vm521 = vmand %vm449, %vm377
    %vm522 = vmand %vm450, %vm378
    %vm523 = vmand %vm451, %vm379
    %vm524 = vmand %vm452, %vm380
    %vm525 = vmand %vm453, %vm381
    %vm526 = vmand %vm454, %vm382
    %vm527 = vmand %vm455, %vm383
    %vm528 = vmand %vm456, %vm384
    %v529 = vsel %vm513, 1, 0
    %v530 = vsel %vm514, 1, 0
    %v531 = vsel %vm515, 1, 0
    %v532 = vsel %vm516, 1, 0
    %v533 = vsel %vm517, 1, 0
    %v534 = vsel %vm518, 1, 0
    %v535 = vsel %vm519, 1, 0
    %v536 = vsel %vm520, 1, 0
    %v537 = vsel %vm521, 1, 0
    %v538 = vsel %vm522, 1, 0
    %v539 = vsel %vm523, 1, 0
    %v540 = vsel %vm524, 1, 0
    %v541 = vsel %vm525, 1, 0
    %v542 = vsel %vm526, 1, 0
    %v543 = vsel %vm527, 1, 0
    %v544 = vsel %vm528, 1, 0
    %vm545 = vcmp.eq.s32.totalorder %v529, 1
    %vm546 = vcmp.eq.s32.totalorder %v530, 1
    %vm547 = vcmp.eq.s32.totalorder %v531, 1
    %vm548 = vcmp.eq.s32.totalorder %v532, 1
    %vm549 = vcmp.eq.s32.totalorder %v533, 1
    %vm550 = vcmp.eq.s32.totalorder %v534, 1
    %vm551 = vcmp.eq.s32.totalorder %v535, 1
    %vm552 = vcmp.eq.s32.totalorder %v536, 1
    %vm553 = vcmp.eq.s32.totalorder %v537, 1
    %vm554 = vcmp.eq.s32.totalorder %v538, 1
    %vm555 = vcmp.eq.s32.totalorder %v539, 1
    %vm556 = vcmp.eq.s32.totalorder %v540, 1
    %vm557 = vcmp.eq.s32.totalorder %v541, 1
    %vm558 = vcmp.eq.s32.totalorder %v542, 1
    %vm559 = vcmp.eq.s32.totalorder %v543, 1
    %vm560 = vcmp.eq.s32.totalorder %v544, 1
    %v561 = vsel %vm545, %v353, 0.0
    %v562 = vsel %vm546, %v368, 0.0
    %v563 = vsel %vm547, %v367, 0.0
    %v564 = vsel %vm548, %v366, 0.0
    %v565 = vsel %vm549, %v365, 0.0
    %v566 = vsel %vm550, %v364, 0.0
    %v567 = vsel %vm551, %v363, 0.0
    %v568 = vsel %vm552, %v362, 0.0
    %v569 = vsel %vm553, %v361, 0.0
    %v570 = vsel %vm554, %v360, 0.0
    %v571 = vsel %vm555, %v359, 0.0
    %v572 = vsel %vm556, %v358, 0.0
    %v573 = vsel %vm557, %v357, 0.0
    %v574 = vsel %vm558, %v356, 0.0
    %v575 = vsel %vm559, %v355, 0.0
    %v576 = vsel %vm560, %v354, 0.0
    %v577 = vpack.c.bf16 %v562, %v561
    %v578 = vpack.c.bf16 %v564, %v563
    %v579 = vpack.c.bf16 %v566, %v565
    %v580 = vpack.c.bf16 %v568, %v567
    %v581 = vpack.c.bf16 %v570, %v569
    %v582 = vpack.c.bf16 %v572, %v571
    %v583 = vpack.c.bf16 %v574, %v573
    %v584 = vpack.c.bf16 %v576, %v575
    %593 = vrot.lane.b32.xlu0 %v433, 64
    %v594 = vpop.permute.xlu0 %593
    %595 = vrot.lane.b32.xlu0 %v434, 64
    %v596 = vpop.permute.xlu0 %595
    %597 = vrot.lane.b32.xlu0 %v435, 64
    %v598 = vpop.permute.xlu0 %597
    %599 = vrot.lane.b32.xlu0 %v436, 64
    %v600 = vpop.permute.xlu0 %599
    %601 = vrot.lane.b32.xlu0 %v437, 64
    %v602 = vpop.permute.xlu0 %601
    %603 = vrot.lane.b32.xlu0 %v438, 64
    %v604 = vpop.permute.xlu0 %603
    %605 = vrot.lane.b32.xlu0 %v439, 64
    %v606 = vpop.permute.xlu0 %605
    %607 = vrot.lane.b32.xlu0 %v440, 64
    %v608 = vpop.permute.xlu0 %607
    %617 = vrot.lane.b32.xlu0 %v577, 64
    %v618 = vpop.permute.xlu0 %617
    %619 = vrot.lane.b32.xlu0 %v578, 64
    %v620 = vpop.permute.xlu0 %619
    %621 = vrot.lane.b32.xlu0 %v579, 64
    %v622 = vpop.permute.xlu0 %621
    %623 = vrot.lane.b32.xlu0 %v580, 64
    %v624 = vpop.permute.xlu0 %623
    %625 = vrot.lane.b32.xlu0 %v581, 64
    %v626 = vpop.permute.xlu0 %625
    %627 = vrot.lane.b32.xlu0 %v582, 64
    %v628 = vpop.permute.xlu0 %627
    %629 = vrot.lane.b32.xlu0 %v583, 64
    %v630 = vpop.permute.xlu0 %629
    %631 = vrot.lane.b32.xlu0 %v584, 64
    %v632 = vpop.permute.xlu0 %631
    %v634 = vsel %vm165, %v125, %v594
    %v637 = vsel %vm165, %v126, %v596
    %v640 = vsel %vm165, %v127, %v598
    %v643 = vsel %vm165, %v128, %v600
    %v646 = vsel %vm165, %v129, %v602
    %v649 = vsel %vm165, %v130, %v604
    %v652 = vsel %vm165, %v131, %v606
    %v655 = vsel %vm165, %v132, %v608
    %v659 = vsel %vm165, %v505, %v618
    %v663 = vsel %vm165, %v506, %v620
    %v667 = vsel %vm165, %v507, %v622
    %v671 = vsel %vm165, %v508, %v624
    %v675 = vsel %vm165, %v509, %v626
    %v679 = vsel %vm165, %v510, %v628
    %v683 = vsel %vm165, %v511, %v630
    %v687 = vsel %vm165, %v512, %v632
    %v689 = vld [vmem:[%s4] sm:$0xf]
    %v690 = vld [vmem:[%s4 + $0x4] sm:$0xf]
    %v691 = vld [vmem:[%s4 + $0x8] sm:$0xf]
    %v692 = vld [vmem:[%s4 + $0xc] sm:$0xf]
    %v693 = vld [vmem:[%s4 + $0x10] sm:$0xf]
    %v694 = vld [vmem:[%s4 + $0x14] sm:$0xf]
    %v695 = vld [vmem:[%s4 + $0x18] sm:$0xf]
    %v696 = vld [vmem:[%s4 + $0x1c] sm:$0xf]
    %v697 = vld [vmem:[%s4 + $0x20] sm:$0xf]
    %v698 = vld [vmem:[%s4 + $0x24] sm:$0xf]
    %v699 = vld [vmem:[%s4 + $0x28] sm:$0xf]
    %v700 = vld [vmem:[%s4 + $0x2c] sm:$0xf]
    %v701 = vld [vmem:[%s4 + $0x30] sm:$0xf]
    %v702 = vld [vmem:[%s4 + $0x34] sm:$0xf]
    %v703 = vld [vmem:[%s4 + $0x38] sm:$0xf]
    %v704 = vld [vmem:[%s4 + $0x3c] sm:$0xf]
    %v705 = vld [vmem:[%s4 + $0x40] sm:$0xf]
    %v706 = vld [vmem:[%s4 + $0x44] sm:$0xf]
    %v707 = vld [vmem:[%s4 + $0x48] sm:$0xf]
    %v708 = vld [vmem:[%s4 + $0x4c] sm:$0xf]
    %v709 = vld [vmem:[%s4 + $0x50] sm:$0xf]
    %v710 = vld [vmem:[%s4 + $0x54] sm:$0xf]
    %v711 = vld [vmem:[%s4 + $0x58] sm:$0xf]
    %v712 = vld [vmem:[%s4 + $0x5c] sm:$0xf]
    %v713 = vld [vmem:[%s4 + $0x60] sm:$0xf]
    %v714 = vld [vmem:[%s4 + $0x64] sm:$0xf]
    %v715 = vld [vmem:[%s4 + $0x68] sm:$0xf]
    %v716 = vld [vmem:[%s4 + $0x6c] sm:$0xf]
    %v717 = vld [vmem:[%s4 + $0x70] sm:$0xf]
    %v718 = vld [vmem:[%s4 + $0x74] sm:$0xf]
    %v719 = vld [vmem:[%s4 + $0x78] sm:$0xf]
    %v720 = vld [vmem:[%s4 + $0x7c] sm:$0xf]
    %v753 = vunpack.c.l.b16 %v689
    %v754 = vunpack.c.l.b16 %v690
    %v755 = vunpack.c.l.b16 %v691
    %v756 = vunpack.c.l.b16 %v692
    %v757 = vunpack.c.l.b16 %v693
    %v758 = vunpack.c.l.b16 %v694
    %v759 = vunpack.c.l.b16 %v695
    %v760 = vunpack.c.l.b16 %v696
    %v761 = vunpack.c.l.b16 %v697
    %v762 = vunpack.c.l.b16 %v698
    %v763 = vunpack.c.l.b16 %v699
    %v764 = vunpack.c.l.b16 %v700
    %v765 = vunpack.c.l.b16 %v701
    %v766 = vunpack.c.l.b16 %v702
    %v767 = vunpack.c.l.b16 %v703
    %v768 = vunpack.c.l.b16 %v704
    %v769 = vunpack.c.l.b16 %v705
    %v770 = vunpack.c.l.b16 %v706
    %v771 = vunpack.c.l.b16 %v707
    %v772 = vunpack.c.l.b16 %v708
    %v773 = vunpack.c.l.b16 %v709
    %v774 = vunpack.c.l.b16 %v710
    %v775 = vunpack.c.l.b16 %v711
    %v776 = vunpack.c.l.b16 %v712
    %v777 = vunpack.c.l.b16 %v713
    %v778 = vunpack.c.l.b16 %v714
    %v779 = vunpack.c.l.b16 %v715
    %v780 = vunpack.c.l.b16 %v716
    %v781 = vunpack.c.l.b16 %v717
    %v782 = vunpack.c.l.b16 %v718
    %v783 = vunpack.c.l.b16 %v719
    %v784 = vunpack.c.l.b16 %v720
    %v785 = vpack.c.b16 %v754, %v753
    %v786 = vpack.c.b16 %v756, %v755
    %v787 = vpack.c.b16 %v758, %v757
    %v788 = vpack.c.b16 %v760, %v759
    %v789 = vpack.c.b16 %v762, %v761
    %v790 = vpack.c.b16 %v764, %v763
    %v791 = vpack.c.b16 %v766, %v765
    %v792 = vpack.c.b16 %v768, %v767
    %v793 = vpack.c.b16 %v770, %v769
    %v794 = vpack.c.b16 %v772, %v771
    %v795 = vpack.c.b16 %v774, %v773
    %v796 = vpack.c.b16 %v776, %v775
    %v797 = vpack.c.b16 %v778, %v777
    %v798 = vpack.c.b16 %v780, %v779
    %v799 = vpack.c.b16 %v782, %v781
    %v800 = vpack.c.b16 %v784, %v783
    %817 = vmatprep.subr.bf16.mxu0 0
    %818 = vmatpush1.bf16.msra.mxu0 %v792
    %819 = vmatprep.subr.bf16.mxu0 0
    %820 = vmatpush1.bf16.msra.mxu0 %v791
    %821 = vmatprep.subr.bf16.mxu0 0
    %822 = vmatpush1.bf16.msra.mxu0 %v790
    %823 = vmatprep.subr.bf16.mxu0 0
    %824 = vmatpush1.bf16.msra.mxu0 %v789
    %825 = vmatprep.subr.bf16.mxu0 0
    %826 = vmatpush1.bf16.msra.mxu0 %v788
    %827 = vmatprep.subr.bf16.mxu0 0
    %828 = vmatpush1.bf16.msra.mxu0 %v787
    %829 = vmatprep.subr.bf16.mxu0 0
    %830 = vmatpush1.bf16.msra.mxu0 %v786
    %831 = vmatprep.subr.bf16.mxu0 0
    %832 = vmatpush1.bf16.msra.mxu0 %v785
    %833 = vmatprep.subr.bf16.mxu0 0
    %834 = vmatpush2.bf16.msra.mxu0 %v800
    %835 = vmatprep.subr.bf16.mxu0 0
    %836 = vmatpush2.bf16.msra.mxu0 %v799
    %837 = vmatprep.subr.bf16.mxu0 0
    %838 = vmatpush2.bf16.msra.mxu0 %v798
    %839 = vmatprep.subr.bf16.mxu0 0
    %840 = vmatpush2.bf16.msra.mxu0 %v797
    %841 = vmatprep.subr.bf16.mxu0 0
    %842 = vmatpush2.bf16.msra.mxu0 %v796
    %843 = vmatprep.subr.bf16.mxu0 0
    %844 = vmatpush2.bf16.msra.mxu0 %v795
    %845 = vmatprep.subr.bf16.mxu0 0
    %846 = vmatpush2.bf16.msra.mxu0 %v794
    %847 = vmatprep.subr.bf16.mxu0 0
    %848 = vmatpush2.bf16.msra.mxu0 %v793
    %849 = vmatprep.mubr.bf16.mxu0 %v659
    %850 = vmatmul.mubr.bf16.gmra.mxu0 %v634
    %v851 = vpop.f32.mrf.mxu0
    %v852 = vadd.f32 0.0, %v851
    %v853 = vpop.f32.mrf.mxu0
    %v854 = vpop.f32.mrf.mxu0
    %v855 = vadd.f32 0.0, %v854
    %v856 = vpop.f32.mrf.mxu0
    %857 = vmatprep.mubr.bf16.mxu0 %v663
    %858 = vmatmul.mubr.bf16.gmra.mxu0 %v637
    %v859 = vpop.f32.mrf.mxu0
    %v860 = vadd.f32 0.0, %v859
    %v861 = vpop.f32.mrf.mxu0
    %v862 = vpop.f32.mrf.mxu0
    %v863 = vadd.f32 0.0, %v862
    %v864 = vpop.f32.mrf.mxu0
    %865 = vmatprep.mubr.bf16.mxu0 %v667
    %866 = vmatmul.mubr.bf16.gmra.mxu0 %v640
    %v867 = vpop.f32.mrf.mxu0
    %v868 = vadd.f32 0.0, %v867
    %v869 = vpop.f32.mrf.mxu0
    %v870 = vpop.f32.mrf.mxu0
    %v871 = vadd.f32 0.0, %v870
    %v872 = vpop.f32.mrf.mxu0
    %873 = vmatprep.mubr.bf16.mxu0 %v671
    %874 = vmatmul.mubr.bf16.gmra.mxu0 %v643
    %v875 = vpop.f32.mrf.mxu0
    %v876 = vadd.f32 0.0, %v875
    %v877 = vpop.f32.mrf.mxu0
    %v878 = vpop.f32.mrf.mxu0
    %v879 = vadd.f32 0.0, %v878
    %v880 = vpop.f32.mrf.mxu0
    %881 = vmatprep.mubr.bf16.mxu0 %v675
    %882 = vmatmul.mubr.bf16.gmra.mxu0 %v646
    %v883 = vpop.f32.mrf.mxu0
    %v884 = vadd.f32 0.0, %v883
    %v885 = vpop.f32.mrf.mxu0
    %v886 = vpop.f32.mrf.mxu0
    %v887 = vadd.f32 0.0, %v886
    %v888 = vpop.f32.mrf.mxu0
    %889 = vmatprep.mubr.bf16.mxu0 %v679
    %890 = vmatmul.mubr.bf16.gmra.mxu0 %v649
    %v891 = vpop.f32.mrf.mxu0
    %v892 = vadd.f32 0.0, %v891
    %v893 = vpop.f32.mrf.mxu0
    %v894 = vpop.f32.mrf.mxu0
    %v895 = vadd.f32 0.0, %v894
    %v896 = vpop.f32.mrf.mxu0
    %897 = vmatprep.mubr.bf16.mxu0 %v683
    %898 = vmatmul.mubr.bf16.gmra.mxu0 %v652
    %v899 = vpop.f32.mrf.mxu0
    %v900 = vadd.f32 0.0, %v899
    %v901 = vpop.f32.mrf.mxu0
    %v902 = vpop.f32.mrf.mxu0
    %v903 = vadd.f32 0.0, %v902
    %v904 = vpop.f32.mrf.mxu0
    %905 = vmatprep.mubr.bf16.mxu0 %v687
    %906 = vmatmul.mubr.bf16.gmra.mxu0 %v655
    %v907 = vpop.f32.mrf.mxu0
    %v908 = vadd.f32 0.0, %v907
    %v909 = vpop.f32.mrf.mxu0
    %v910 = vpop.f32.mrf.mxu0
    %v911 = vadd.f32 0.0, %v910
    %v912 = vpop.f32.mrf.mxu0
    %913 = vdwg.mxu0
    %vm914 = vcmp.ge.f32.partialorder %v852, 0.0
    %vm915 = vcmp.ge.f32.partialorder %v855, 0.0
    %vm916 = vcmp.ge.f32.partialorder %v860, 0.0
    %vm917 = vcmp.ge.f32.partialorder %v863, 0.0
    %vm918 = vcmp.ge.f32.partialorder %v868, 0.0
    %vm919 = vcmp.ge.f32.partialorder %v871, 0.0
    %vm920 = vcmp.ge.f32.partialorder %v876, 0.0
    %vm921 = vcmp.ge.f32.partialorder %v879, 0.0
    %vm922 = vcmp.ge.f32.partialorder %v884, 0.0
    %vm923 = vcmp.ge.f32.partialorder %v887, 0.0
    %vm924 = vcmp.ge.f32.partialorder %v892, 0.0
    %vm925 = vcmp.ge.f32.partialorder %v895, 0.0
    %vm926 = vcmp.ge.f32.partialorder %v900, 0.0
    %vm927 = vcmp.ge.f32.partialorder %v903, 0.0
    %vm928 = vcmp.ge.f32.partialorder %v908, 0.0
    %vm929 = vcmp.ge.f32.partialorder %v911, 0.0
    %v930 = vstv %s41
    %v931 = vmul.f32 %v930, %v852
    %v932 = vmul.f32 %v930, %v855
    %v933 = vmul.f32 %v930, %v860
    %v934 = vmul.f32 %v930, %v863
    %v935 = vmul.f32 %v930, %v868
    %v936 = vmul.f32 %v930, %v871
    %v937 = vmul.f32 %v930, %v876
    %v938 = vmul.f32 %v930, %v879
    %v939 = vmul.f32 %v930, %v884
    %v940 = vmul.f32 %v930, %v887
    %v941 = vmul.f32 %v930, %v892
    %v942 = vmul.f32 %v930, %v895
    %v943 = vmul.f32 %v930, %v900
    %v944 = vmul.f32 %v930, %v903
    %v945 = vmul.f32 %v930, %v908
    %v946 = vmul.f32 %v930, %v911
    %v947 = vsel %vm914, %v852, %v931
    %v948 = vsel %vm915, %v855, %v932
    %v949 = vsel %vm916, %v860, %v933
    %v950 = vsel %vm917, %v863, %v934
    %v951 = vsel %vm918, %v868, %v935
    %v952 = vsel %vm919, %v871, %v936
    %v953 = vsel %vm920, %v876, %v937
    %v954 = vsel %vm921, %v879, %v938
    %v955 = vsel %vm922, %v884, %v939
    %v956 = vsel %vm923, %v887, %v940
    %v957 = vsel %vm924, %v892, %v941
    %v958 = vsel %vm925, %v895, %v942
    %v959 = vsel %vm926, %v900, %v943
    %v960 = vsel %vm927, %v903, %v944
    %v961 = vsel %vm928, %v908, %v945
    %v962 = vsel %vm929, %v911, %v946
    %v963 = vpack.c.bf16 %v948, %v947
    %v964 = vpack.c.bf16 %v950, %v949
    %v965 = vpack.c.bf16 %v952, %v951
    %v966 = vpack.c.bf16 %v954, %v953
    %v967 = vpack.c.bf16 %v956, %v955
    %v968 = vpack.c.bf16 %v958, %v957
    %v969 = vpack.c.bf16 %v960, %v959
    %v970 = vpack.c.bf16 %v962, %v961
    %v971 = vld [vmem:[%s3] sm:$0xf]
    %v972 = vld [vmem:[%s3 + $0x4] sm:$0xf]
    %v973 = vld [vmem:[%s3 + $0x8] sm:$0xf]
    %v974 = vld [vmem:[%s3 + $0xc] sm:$0xf]
    %v975 = vld [vmem:[%s3 + $0x10] sm:$0xf]
    %v976 = vld [vmem:[%s3 + $0x14] sm:$0xf]
    %v977 = vld [vmem:[%s3 + $0x18] sm:$0xf]
    %v978 = vld [vmem:[%s3 + $0x1c] sm:$0xf]
    %v979 = vld [vmem:[%s3 + $0x20] sm:$0xf]
    %v980 = vld [vmem:[%s3 + $0x24] sm:$0xf]
    %v981 = vld [vmem:[%s3 + $0x28] sm:$0xf]
    %v982 = vld [vmem:[%s3 + $0x2c] sm:$0xf]
    %v983 = vld [vmem:[%s3 + $0x30] sm:$0xf]
    %v984 = vld [vmem:[%s3 + $0x34] sm:$0xf]
    %v985 = vld [vmem:[%s3 + $0x38] sm:$0xf]
    %v986 = vld [vmem:[%s3 + $0x3c] sm:$0xf]
    %v1003 = vunpack.c.l.b16 %v971
    %v1004 = vunpack.c.l.b16 %v972
    %v1005 = vunpack.c.l.b16 %v973
    %v1006 = vunpack.c.l.b16 %v974
    %v1007 = vunpack.c.l.b16 %v975
    %v1008 = vunpack.c.l.b16 %v976
    %v1009 = vunpack.c.l.b16 %v977
    %v1010 = vunpack.c.l.b16 %v978
    %v1011 = vunpack.c.l.b16 %v979
    %v1012 = vunpack.c.l.b16 %v980
    %v1013 = vunpack.c.l.b16 %v981
    %v1014 = vunpack.c.l.b16 %v982
    %v1015 = vunpack.c.l.b16 %v983
    %v1016 = vunpack.c.l.b16 %v984
    %v1017 = vunpack.c.l.b16 %v985
    %v1018 = vunpack.c.l.b16 %v986
    %v1019 = vpack.c.b16 %v1004, %v1003
    %v1020 = vpack.c.b16 %v1006, %v1005
    %v1021 = vpack.c.b16 %v1008, %v1007
    %v1022 = vpack.c.b16 %v1010, %v1009
    %v1023 = vpack.c.b16 %v1012, %v1011
    %v1024 = vpack.c.b16 %v1014, %v1013
    %v1025 = vpack.c.b16 %v1016, %v1015
    %v1026 = vpack.c.b16 %v1018, %v1017
    %1035 = vmatprep.subr.bf16.mxu0 0
    %1036 = vmatpush1.bf16.msra.mxu0 %v1026
    %1037 = vmatprep.subr.bf16.mxu0 0
    %1038 = vmatpush1.bf16.msra.mxu0 %v1025
    %1039 = vmatprep.subr.bf16.mxu0 0
    %1040 = vmatpush1.bf16.msra.mxu0 %v1024
    %1041 = vmatprep.subr.bf16.mxu0 0
    %1042 = vmatpush1.bf16.msra.mxu0 %v1023
    %1043 = vmatprep.subr.bf16.mxu0 0
    %1044 = vmatpush1.bf16.msra.mxu0 %v1022
    %1045 = vmatprep.subr.bf16.mxu0 0
    %1046 = vmatpush1.bf16.msra.mxu0 %v1021
    %1047 = vmatprep.subr.bf16.mxu0 0
    %1048 = vmatpush1.bf16.msra.mxu0 %v1020
    %1049 = vmatprep.subr.bf16.mxu0 0
    %1050 = vmatpush1.bf16.msra.mxu0 %v1019
    %1051 = vmatprep.subr.bf16.mxu0 0
    %1052 = vmatpush2.bf16.msra.mxu0 0
    %1053 = vmatprep.subr.bf16.mxu0 0
    %1054 = vmatpush2.bf16.msra.mxu0 0
    %1055 = vmatprep.subr.bf16.mxu0 0
    %1056 = vmatpush2.bf16.msra.mxu0 0
    %1057 = vmatprep.subr.bf16.mxu0 0
    %1058 = vmatpush2.bf16.msra.mxu0 0
    %1059 = vmatprep.subr.bf16.mxu0 0
    %1060 = vmatpush2.bf16.msra.mxu0 0
    %1061 = vmatprep.subr.bf16.mxu0 0
    %1062 = vmatpush2.bf16.msra.mxu0 0
    %1063 = vmatprep.subr.bf16.mxu0 0
    %1064 = vmatpush2.bf16.msra.mxu0 0
    %1065 = vmatprep.subr.bf16.mxu0 0
    %1066 = vmatpush2.bf16.msra.mxu0 0
    %1067 = vmatprep.mubr.bf16.mxu0 0
    %1068 = vmatmul.mubr.bf16.gmra.mxu0 %v963
    %v1069 = vpop.f32.mrf.mxu0
    %v1070 = vadd.f32 0.0, %v1069
    %v1071 = vpop.f32.mrf.mxu0
    %v1072 = vpop.f32.mrf.mxu0
    %v1073 = vadd.f32 0.0, %v1072
    %v1074 = vpop.f32.mrf.mxu0
    %1075 = vmatprep.mubr.bf16.mxu0 0
    %1076 = vmatmul.mubr.bf16.gmra.mxu0 %v964
    %v1077 = vpop.f32.mrf.mxu0
    %v1078 = vadd.f32 0.0, %v1077
    %v1079 = vpop.f32.mrf.mxu0
    %v1080 = vpop.f32.mrf.mxu0
    %v1081 = vadd.f32 0.0, %v1080
    %v1082 = vpop.f32.mrf.mxu0
    %1083 = vmatprep.mubr.bf16.mxu0 0
    %1084 = vmatmul.mubr.bf16.gmra.mxu0 %v965
    %v1085 = vpop.f32.mrf.mxu0
    %v1086 = vadd.f32 0.0, %v1085
    %v1087 = vpop.f32.mrf.mxu0
    %v1088 = vpop.f32.mrf.mxu0
    %v1089 = vadd.f32 0.0, %v1088
    %v1090 = vpop.f32.mrf.mxu0
    %1091 = vmatprep.mubr.bf16.mxu0 0
    %1092 = vmatmul.mubr.bf16.gmra.mxu0 %v966
    %v1093 = vpop.f32.mrf.mxu0
    %v1094 = vadd.f32 0.0, %v1093
    %v1095 = vpop.f32.mrf.mxu0
    %v1096 = vpop.f32.mrf.mxu0
    %v1097 = vadd.f32 0.0, %v1096
    %v1098 = vpop.f32.mrf.mxu0
    %1099 = vmatprep.mubr.bf16.mxu0 0
    %1100 = vmatmul.mubr.bf16.gmra.mxu0 %v967
    %v1101 = vpop.f32.mrf.mxu0
    %v1102 = vadd.f32 0.0, %v1101
    %v1103 = vpop.f32.mrf.mxu0
    %v1104 = vpop.f32.mrf.mxu0
    %v1105 = vadd.f32 0.0, %v1104
    %v1106 = vpop.f32.mrf.mxu0
    %1107 = vmatprep.mubr.bf16.mxu0 0
    %1108 = vmatmul.mubr.bf16.gmra.mxu0 %v968
    %v1109 = vpop.f32.mrf.mxu0
    %v1110 = vadd.f32 0.0, %v1109
    %v1111 = vpop.f32.mrf.mxu0
    %v1112 = vpop.f32.mrf.mxu0
    %v1113 = vadd.f32 0.0, %v1112
    %v1114 = vpop.f32.mrf.mxu0
    %1115 = vmatprep.mubr.bf16.mxu0 0
    %1116 = vmatmul.mubr.bf16.gmra.mxu0 %v969
    %v1117 = vpop.f32.mrf.mxu0
    %v1118 = vadd.f32 0.0, %v1117
    %v1119 = vpop.f32.mrf.mxu0
    %v1120 = vpop.f32.mrf.mxu0
    %v1121 = vadd.f32 0.0, %v1120
    %v1122 = vpop.f32.mrf.mxu0
    %1123 = vmatprep.mubr.bf16.mxu0 0
    %1124 = vmatmul.mubr.bf16.gmra.mxu0 %v970
    %v1125 = vpop.f32.mrf.mxu0
    %v1126 = vadd.f32 0.0, %v1125
    %v1127 = vpop.f32.mrf.mxu0
    %v1128 = vpop.f32.mrf.mxu0
    %v1129 = vadd.f32 0.0, %v1128
    %v1130 = vpop.f32.mrf.mxu0
    %1131 = vdwg.mxu0
    %vm1132 = vcmp.ge.f32.partialorder %v1070, 0.0
    %vm1133 = vcmp.ge.f32.partialorder %v1073, 0.0
    %vm1134 = vcmp.ge.f32.partialorder %v1078, 0.0
    %vm1135 = vcmp.ge.f32.partialorder %v1081, 0.0
    %vm1136 = vcmp.ge.f32.partialorder %v1086, 0.0
    %vm1137 = vcmp.ge.f32.partialorder %v1089, 0.0
    %vm1138 = vcmp.ge.f32.partialorder %v1094, 0.0
    %vm1139 = vcmp.ge.f32.partialorder %v1097, 0.0
    %vm1140 = vcmp.ge.f32.partialorder %v1102, 0.0
    %vm1141 = vcmp.ge.f32.partialorder %v1105, 0.0
    %vm1142 = vcmp.ge.f32.partialorder %v1110, 0.0
    %vm1143 = vcmp.ge.f32.partialorder %v1113, 0.0
    %vm1144 = vcmp.ge.f32.partialorder %v1118, 0.0
    %vm1145 = vcmp.ge.f32.partialorder %v1121, 0.0
    %vm1146 = vcmp.ge.f32.partialorder %v1126, 0.0
    %vm1147 = vcmp.ge.f32.partialorder %v1129, 0.0
    %v1148 = vmul.f32 %v303, %v1070
    %v1149 = vmul.f32 %v303, %v1073
    %v1150 = vmul.f32 %v303, %v1078
    %v1151 = vmul.f32 %v303, %v1081
    %v1152 = vmul.f32 %v303, %v1086
    %v1153 = vmul.f32 %v303, %v1089
    %v1154 = vmul.f32 %v303, %v1094
    %v1155 = vmul.f32 %v303, %v1097
    %v1156 = vmul.f32 %v303, %v1102
    %v1157 = vmul.f32 %v303, %v1105
    %v1158 = vmul.f32 %v303, %v1110
    %v1159 = vmul.f32 %v303, %v1113
    %v1160 = vmul.f32 %v303, %v1118
    %v1161 = vmul.f32 %v303, %v1121
    %v1162 = vmul.f32 %v303, %v1126
    %v1163 = vmul.f32 %v303, %v1129
    %v1164 = vsel %vm1132, %v1070, %v1148
    %v1165 = vsel %vm1133, %v1073, %v1149
    %v1166 = vsel %vm1134, %v1078, %v1150
    %v1167 = vsel %vm1135, %v1081, %v1151
    %v1168 = vsel %vm1136, %v1086, %v1152
    %v1169 = vsel %vm1137, %v1089, %v1153
    %v1170 = vsel %vm1138, %v1094, %v1154
    %v1171 = vsel %vm1139, %v1097, %v1155
    %v1172 = vsel %vm1140, %v1102, %v1156
    %v1173 = vsel %vm1141, %v1105, %v1157
    %v1174 = vsel %vm1142, %v1110, %v1158
    %v1175 = vsel %vm1143, %v1113, %v1159
    %v1176 = vsel %vm1144, %v1118, %v1160
    %v1177 = vsel %vm1145, %v1121, %v1161
    %v1178 = vsel %vm1146, %v1126, %v1162
    %v1179 = vsel %vm1147, %v1129, %v1163
    %v1180 = vpack.c.bf16 %v1165, %v1164
    %v1181 = vpack.c.bf16 %v1167, %v1166
    %v1182 = vpack.c.bf16 %v1169, %v1168
    %v1183 = vpack.c.bf16 %v1171, %v1170
    %v1184 = vpack.c.bf16 %v1173, %v1172
    %v1185 = vpack.c.bf16 %v1175, %v1174
    %v1186 = vpack.c.bf16 %v1177, %v1176
    %v1187 = vpack.c.bf16 %v1179, %v1178
    %v1188 = vrot.slane %v109, 1
    %v1189 = vrot.slane %v110, 1
    %v1190 = vrot.slane %v111, 1
    %v1191 = vrot.slane %v112, 1
    %v1192 = vrot.slane %v113, 1
    %v1193 = vrot.slane %v114, 1
    %v1194 = vrot.slane %v115, 1
    %v1195 = vrot.slane %v116, 1
    %v1196 = vrot.slane %v117, 1
    %v1197 = vrot.slane %v118, 1
    %v1198 = vrot.slane %v119, 1
    %v1199 = vrot.slane %v120, 1
    %v1200 = vrot.slane %v121, 1
    %v1201 = vrot.slane %v122, 1
    %v1202 = vrot.slane %v123, 1
    %v1203 = vrot.slane %v124, 1
    %vm1204 = vcmp.lt.s32.totalorder %v45, 7
    %v1205 = vsel %vm1204, %v1202, %v1203
    %v1206 = vsel %vm1204, %v1201, %v1202
    %v1207 = vsel %vm1204, %v1200, %v1201
    %v1208 = vsel %vm1204, %v1199, %v1200
    %v1209 = vsel %vm1204, %v1198, %v1199
    %v1210 = vsel %vm1204, %v1197, %v1198
    %v1211 = vsel %vm1204, %v1196, %v1197
    %v1212 = vsel %vm1204, %v1195, %v1196
    %v1213 = vsel %vm1204, %v1194, %v1195
    %v1214 = vsel %vm1204, %v1193, %v1194
    %v1215 = vsel %vm1204, %v1192, %v1193
    %v1216 = vsel %vm1204, %v1191, %v1192
    %v1217 = vsel %vm1204, %v1190, %v1191
    %v1218 = vsel %vm1204, %v1189, %v1190
    %v1219 = vsel %vm1204, %v1188, %v1189
    %v1220 = vsel %vm1204, %v1203, %v1188
    %vm1221 = vcmp.lt.s32.totalorder %v93, 7
    %vm1222 = vcmp.lt.s32.totalorder %v94, 7
    %vm1223 = vcmp.lt.s32.totalorder %v95, 7
    %vm1224 = vcmp.lt.s32.totalorder %v96, 7
    %vm1225 = vcmp.lt.s32.totalorder %v97, 7
    %vm1226 = vcmp.lt.s32.totalorder %v98, 7
    %vm1227 = vcmp.lt.s32.totalorder %v99, 7
    %vm1228 = vcmp.lt.s32.totalorder %v100, 7
    %vm1229 = vcmp.lt.s32.totalorder %v101, 7
    %vm1230 = vcmp.lt.s32.totalorder %v102, 7
    %vm1231 = vcmp.lt.s32.totalorder %v103, 7
    %vm1232 = vcmp.lt.s32.totalorder %v104, 7
    %vm1233 = vcmp.lt.s32.totalorder %v105, 7
    %vm1234 = vcmp.lt.s32.totalorder %v106, 7
    %vm1235 = vcmp.lt.s32.totalorder %v107, 7
    %vm1236 = vcmp.lt.s32.totalorder %v108, 7
    %v1237 = vsel %vm1221, 1, 0
    %v1238 = vsel %vm1222, 1, 0
    %v1239 = vsel %vm1223, 1, 0
    %v1240 = vsel %vm1224, 1, 0
    %v1241 = vsel %vm1225, 1, 0
    %v1242 = vsel %vm1226, 1, 0
    %v1243 = vsel %vm1227, 1, 0
    %v1244 = vsel %vm1228, 1, 0
    %v1245 = vsel %vm1229, 1, 0
    %v1246 = vsel %vm1230, 1, 0
    %v1247 = vsel %vm1231, 1, 0
    %v1248 = vsel %vm1232, 1, 0
    %v1249 = vsel %vm1233, 1, 0
    %v1250 = vsel %vm1234, 1, 0
    %v1251 = vsel %vm1235, 1, 0
    %v1252 = vsel %vm1236, 1, 0
    %vm1253 = vcmp.eq.s32.totalorder %v1237, 1
    %vm1254 = vcmp.eq.s32.totalorder %v1238, 1
    %vm1255 = vcmp.eq.s32.totalorder %v1239, 1
    %vm1256 = vcmp.eq.s32.totalorder %v1240, 1
    %vm1257 = vcmp.eq.s32.totalorder %v1241, 1
    %vm1258 = vcmp.eq.s32.totalorder %v1242, 1
    %vm1259 = vcmp.eq.s32.totalorder %v1243, 1
    %vm1260 = vcmp.eq.s32.totalorder %v1244, 1
    %vm1261 = vcmp.eq.s32.totalorder %v1245, 1
    %vm1262 = vcmp.eq.s32.totalorder %v1246, 1
    %vm1263 = vcmp.eq.s32.totalorder %v1247, 1
    %vm1264 = vcmp.eq.s32.totalorder %v1248, 1
    %vm1265 = vcmp.eq.s32.totalorder %v1249, 1
    %vm1266 = vcmp.eq.s32.totalorder %v1250, 1
    %vm1267 = vcmp.eq.s32.totalorder %v1251, 1
    %vm1268 = vcmp.eq.s32.totalorder %v1252, 1
    %v1269 = vsel %vm1253, %v1219, 0.0
    %v1270 = vsel %vm1254, %v1218, 0.0
    %v1271 = vsel %vm1255, %v1217, 0.0
    %v1272 = vsel %vm1256, %v1216, 0.0
    %v1273 = vsel %vm1257, %v1215, 0.0
    %v1274 = vsel %vm1258, %v1214, 0.0
    %v1275 = vsel %vm1259, %v1213, 0.0
    %v1276 = vsel %vm1260, %v1212, 0.0
    %v1277 = vsel %vm1261, %v1211, 0.0
    %v1278 = vsel %vm1262, %v1210, 0.0
    %v1279 = vsel %vm1263, %v1209, 0.0
    %v1280 = vsel %vm1264, %v1208, 0.0
    %v1281 = vsel %vm1265, %v1207, 0.0
    %v1282 = vsel %vm1266, %v1206, 0.0
    %v1283 = vsel %vm1267, %v1205, 0.0
    %v1284 = vsel %vm1268, %v1220, 0.0
    %v1285 = vpack.c.bf16 %v1270, %v1269
    %v1286 = vpack.c.bf16 %v1272, %v1271
    %v1287 = vpack.c.bf16 %v1274, %v1273
    %v1288 = vpack.c.bf16 %v1276, %v1275
    %v1289 = vpack.c.bf16 %v1278, %v1277
    %v1290 = vpack.c.bf16 %v1280, %v1279
    %v1291 = vpack.c.bf16 %v1282, %v1281
    %v1292 = vpack.c.bf16 %v1284, %v1283
    %vm1293 = vmand %vm441, %vm1221
    %vm1294 = vmand %vm442, %vm1222
    %vm1295 = vmand %vm443, %vm1223
    %vm1296 = vmand %vm444, %vm1224
    %vm1297 = vmand %vm445, %vm1225
    %vm1298 = vmand %vm446, %vm1226
    %vm1299 = vmand %vm447, %vm1227
    %vm1300 = vmand %vm448, %vm1228
    %vm1301 = vmand %vm449, %vm1229
    %vm1302 = vmand %vm450, %vm1230
    %vm1303 = vmand %vm451, %vm1231
    %vm1304 = vmand %vm452, %vm1232
    %vm1305 = vmand %vm453, %vm1233
    %vm1306 = vmand %vm454, %vm1234
    %vm1307 = vmand %vm455, %vm1235
    %vm1308 = vmand %vm456, %vm1236
    %v1309 = vsel %vm1293, 1, 0
    %v1310 = vsel %vm1294, 1, 0
    %v1311 = vsel %vm1295, 1, 0
    %v1312 = vsel %vm1296, 1, 0
    %v1313 = vsel %vm1297, 1, 0
    %v1314 = vsel %vm1298, 1, 0
    %v1315 = vsel %vm1299, 1, 0
    %v1316 = vsel %vm1300, 1, 0
    %v1317 = vsel %vm1301, 1, 0
    %v1318 = vsel %vm1302, 1, 0
    %v1319 = vsel %vm1303, 1, 0
    %v1320 = vsel %vm1304, 1, 0
    %v1321 = vsel %vm1305, 1, 0
    %v1322 = vsel %vm1306, 1, 0
    %v1323 = vsel %vm1307, 1, 0
    %v1324 = vsel %vm1308, 1, 0
    %vm1325 = vcmp.eq.s32.totalorder %v1309, 1
    %vm1326 = vcmp.eq.s32.totalorder %v1310, 1
    %vm1327 = vcmp.eq.s32.totalorder %v1311, 1
    %vm1328 = vcmp.eq.s32.totalorder %v1312, 1
    %vm1329 = vcmp.eq.s32.totalorder %v1313, 1
    %vm1330 = vcmp.eq.s32.totalorder %v1314, 1
    %vm1331 = vcmp.eq.s32.totalorder %v1315, 1
    %vm1332 = vcmp.eq.s32.totalorder %v1316, 1
    %vm1333 = vcmp.eq.s32.totalorder %v1317, 1
    %vm1334 = vcmp.eq.s32.totalorder %v1318, 1
    %vm1335 = vcmp.eq.s32.totalorder %v1319, 1
    %vm1336 = vcmp.eq.s32.totalorder %v1320, 1
    %vm1337 = vcmp.eq.s32.totalorder %v1321, 1
    %vm1338 = vcmp.eq.s32.totalorder %v1322, 1
    %vm1339 = vcmp.eq.s32.totalorder %v1323, 1
    %vm1340 = vcmp.eq.s32.totalorder %v1324, 1
    %v1341 = vsel %vm1325, %v1220, 0.0
    %v1342 = vsel %vm1326, %v1219, 0.0
    %v1343 = vsel %vm1327, %v1218, 0.0
    %v1344 = vsel %vm1328, %v1217, 0.0
    %v1345 = vsel %vm1329, %v1216, 0.0
    %v1346 = vsel %vm1330, %v1215, 0.0
    %v1347 = vsel %vm1331, %v1214, 0.0
    %v1348 = vsel %vm1332, %v1213, 0.0
    %v1349 = vsel %vm1333, %v1212, 0.0
    %v1350 = vsel %vm1334, %v1211, 0.0
    %v1351 = vsel %vm1335, %v1210, 0.0
    %v1352 = vsel %vm1336, %v1209, 0.0
    %v1353 = vsel %vm1337, %v1208, 0.0
    %v1354 = vsel %vm1338, %v1207, 0.0
    %v1355 = vsel %vm1339, %v1206, 0.0
    %v1356 = vsel %vm1340, %v1205, 0.0
    %v1357 = vpack.c.bf16 %v1342, %v1341
    %v1358 = vpack.c.bf16 %v1344, %v1343
    %v1359 = vpack.c.bf16 %v1346, %v1345
    %v1360 = vpack.c.bf16 %v1348, %v1347
    %v1361 = vpack.c.bf16 %v1350, %v1349
    %v1362 = vpack.c.bf16 %v1352, %v1351
    %v1363 = vpack.c.bf16 %v1354, %v1353
    %v1364 = vpack.c.bf16 %v1356, %v1355
    %1373 = vrot.lane.b32.xlu0 %v1285, 64
    %v1374 = vpop.permute.xlu0 %1373
    %1375 = vrot.lane.b32.xlu0 %v1286, 64
    %v1376 = vpop.permute.xlu0 %1375
    %1377 = vrot.lane.b32.xlu0 %v1287, 64
    %v1378 = vpop.permute.xlu0 %1377
    %1379 = vrot.lane.b32.xlu0 %v1288, 64
    %v1380 = vpop.permute.xlu0 %1379
    %1381 = vrot.lane.b32.xlu0 %v1289, 64
    %v1382 = vpop.permute.xlu0 %1381
    %1383 = vrot.lane.b32.xlu0 %v1290, 64
    %v1384 = vpop.permute.xlu0 %1383
    %1385 = vrot.lane.b32.xlu0 %v1291, 64
    %v1386 = vpop.permute.xlu0 %1385
    %1387 = vrot.lane.b32.xlu0 %v1292, 64
    %v1388 = vpop.permute.xlu0 %1387
    %1397 = vrot.lane.b32.xlu0 %v1357, 64
    %v1398 = vpop.permute.xlu0 %1397
    %1399 = vrot.lane.b32.xlu0 %v1358, 64
    %v1400 = vpop.permute.xlu0 %1399
    %1401 = vrot.lane.b32.xlu0 %v1359, 64
    %v1402 = vpop.permute.xlu0 %1401
    %1403 = vrot.lane.b32.xlu0 %v1360, 64
    %v1404 = vpop.permute.xlu0 %1403
    %1405 = vrot.lane.b32.xlu0 %v1361, 64
    %v1406 = vpop.permute.xlu0 %1405
    %1407 = vrot.lane.b32.xlu0 %v1362, 64
    %v1408 = vpop.permute.xlu0 %1407
    %1409 = vrot.lane.b32.xlu0 %v1363, 64
    %v1410 = vpop.permute.xlu0 %1409
    %1411 = vrot.lane.b32.xlu0 %v1364, 64
    %v1412 = vpop.permute.xlu0 %1411
    %v1414 = vsel %vm165, %v125, %v1374
    %v1417 = vsel %vm165, %v126, %v1376
    %v1420 = vsel %vm165, %v127, %v1378
    %v1423 = vsel %vm165, %v128, %v1380
    %v1426 = vsel %vm165, %v129, %v1382
    %v1429 = vsel %vm165, %v130, %v1384
    %v1432 = vsel %vm165, %v131, %v1386
    %v1435 = vsel %vm165, %v132, %v1388
    %v1438 = vsel %vm165, %v505, %v1398
    %v1441 = vsel %vm165, %v506, %v1400
    %v1444 = vsel %vm165, %v507, %v1402
    %v1447 = vsel %vm165, %v508, %v1404
    %v1450 = vsel %vm165, %v509, %v1406
    %v1453 = vsel %vm165, %v510, %v1408
    %v1456 = vsel %vm165, %v511, %v1410
    %v1459 = vsel %vm165, %v512, %v1412
    %s1461 = scalar_lea.vmem %s4, 128
    %v1462 = vld [vmem:[%s1461] sm:$0xf]
    %v1463 = vld [vmem:[%s1461 + $0x4] sm:$0xf]
    %v1464 = vld [vmem:[%s1461 + $0x8] sm:$0xf]
    %v1465 = vld [vmem:[%s1461 + $0xc] sm:$0xf]
    %v1466 = vld [vmem:[%s1461 + $0x10] sm:$0xf]
    %v1467 = vld [vmem:[%s1461 + $0x14] sm:$0xf]
    %v1468 = vld [vmem:[%s1461 + $0x18] sm:$0xf]
    %v1469 = vld [vmem:[%s1461 + $0x1c] sm:$0xf]
    %v1470 = vld [vmem:[%s1461 + $0x20] sm:$0xf]
    %v1471 = vld [vmem:[%s1461 + $0x24] sm:$0xf]
    %v1472 = vld [vmem:[%s1461 + $0x28] sm:$0xf]
    %v1473 = vld [vmem:[%s1461 + $0x2c] sm:$0xf]
    %v1474 = vld [vmem:[%s1461 + $0x30] sm:$0xf]
    %v1475 = vld [vmem:[%s1461 + $0x34] sm:$0xf]
    %v1476 = vld [vmem:[%s1461 + $0x38] sm:$0xf]
    %v1477 = vld [vmem:[%s1461 + $0x3c] sm:$0xf]
    %v1478 = vld [vmem:[%s1461 + $0x40] sm:$0xf]
    %v1479 = vld [vmem:[%s1461 + $0x44] sm:$0xf]
    %v1480 = vld [vmem:[%s1461 + $0x48] sm:$0xf]
    %v1481 = vld [vmem:[%s1461 + $0x4c] sm:$0xf]
    %v1482 = vld [vmem:[%s1461 + $0x50] sm:$0xf]
    %v1483 = vld [vmem:[%s1461 + $0x54] sm:$0xf]
    %v1484 = vld [vmem:[%s1461 + $0x58] sm:$0xf]
    %v1485 = vld [vmem:[%s1461 + $0x5c] sm:$0xf]
    %v1486 = vld [vmem:[%s1461 + $0x60] sm:$0xf]
    %v1487 = vld [vmem:[%s1461 + $0x64] sm:$0xf]
    %v1488 = vld [vmem:[%s1461 + $0x68] sm:$0xf]
    %v1489 = vld [vmem:[%s1461 + $0x6c] sm:$0xf]
    %v1490 = vld [vmem:[%s1461 + $0x70] sm:$0xf]
    %v1491 = vld [vmem:[%s1461 + $0x74] sm:$0xf]
    %v1492 = vld [vmem:[%s1461 + $0x78] sm:$0xf]
    %v1493 = vld [vmem:[%s1461 + $0x7c] sm:$0xf]
    %v1526 = vunpack.c.l.b16 %v1462
    %v1527 = vunpack.c.l.b16 %v1463
    %v1528 = vunpack.c.l.b16 %v1464
    %v1529 = vunpack.c.l.b16 %v1465
    %v1530 = vunpack.c.l.b16 %v1466
    %v1531 = vunpack.c.l.b16 %v1467
    %v1532 = vunpack.c.l.b16 %v1468
    %v1533 = vunpack.c.l.b16 %v1469
    %v1534 = vunpack.c.l.b16 %v1470
    %v1535 = vunpack.c.l.b16 %v1471
    %v1536 = vunpack.c.l.b16 %v1472
    %v1537 = vunpack.c.l.b16 %v1473
    %v1538 = vunpack.c.l.b16 %v1474
    %v1539 = vunpack.c.l.b16 %v1475
    %v1540 = vunpack.c.l.b16 %v1476
    %v1541 = vunpack.c.l.b16 %v1477
    %v1542 = vunpack.c.l.b16 %v1478
    %v1543 = vunpack.c.l.b16 %v1479
    %v1544 = vunpack.c.l.b16 %v1480
    %v1545 = vunpack.c.l.b16 %v1481
    %v1546 = vunpack.c.l.b16 %v1482
    %v1547 = vunpack.c.l.b16 %v1483
    %v1548 = vunpack.c.l.b16 %v1484
    %v1549 = vunpack.c.l.b16 %v1485
    %v1550 = vunpack.c.l.b16 %v1486
    %v1551 = vunpack.c.l.b16 %v1487
    %v1552 = vunpack.c.l.b16 %v1488
    %v1553 = vunpack.c.l.b16 %v1489
    %v1554 = vunpack.c.l.b16 %v1490
    %v1555 = vunpack.c.l.b16 %v1491
    %v1556 = vunpack.c.l.b16 %v1492
    %v1557 = vunpack.c.l.b16 %v1493
    %v1558 = vpack.c.b16 %v1527, %v1526
    %v1559 = vpack.c.b16 %v1529, %v1528
    %v1560 = vpack.c.b16 %v1531, %v1530
    %v1561 = vpack.c.b16 %v1533, %v1532
    %v1562 = vpack.c.b16 %v1535, %v1534
    %v1563 = vpack.c.b16 %v1537, %v1536
    %v1564 = vpack.c.b16 %v1539, %v1538
    %v1565 = vpack.c.b16 %v1541, %v1540
    %v1566 = vpack.c.b16 %v1543, %v1542
    %v1567 = vpack.c.b16 %v1545, %v1544
    %v1568 = vpack.c.b16 %v1547, %v1546
    %v1569 = vpack.c.b16 %v1549, %v1548
    %v1570 = vpack.c.b16 %v1551, %v1550
    %v1571 = vpack.c.b16 %v1553, %v1552
    %v1572 = vpack.c.b16 %v1555, %v1554
    %v1573 = vpack.c.b16 %v1557, %v1556
    %1590 = vmatprep.subr.bf16.mxu0 0
    %1591 = vmatpush1.bf16.msra.mxu0 %v1565
    %1592 = vmatprep.subr.bf16.mxu0 0
    %1593 = vmatpush1.bf16.msra.mxu0 %v1564
    %1594 = vmatprep.subr.bf16.mxu0 0
    %1595 = vmatpush1.bf16.msra.mxu0 %v1563
    %1596 = vmatprep.subr.bf16.mxu0 0
    %1597 = vmatpush1.bf16.msra.mxu0 %v1562
    %1598 = vmatprep.subr.bf16.mxu0 0
    %1599 = vmatpush1.bf16.msra.mxu0 %v1561
    %1600 = vmatprep.subr.bf16.mxu0 0
    %1601 = vmatpush1.bf16.msra.mxu0 %v1560
    %1602 = vmatprep.subr.bf16.mxu0 0
    %1603 = vmatpush1.bf16.msra.mxu0 %v1559
    %1604 = vmatprep.subr.bf16.mxu0 0
    %1605 = vmatpush1.bf16.msra.mxu0 %v1558
    %1606 = vmatprep.subr.bf16.mxu0 0
    %1607 = vmatpush2.bf16.msra.mxu0 %v1573
    %1608 = vmatprep.subr.bf16.mxu0 0
    %1609 = vmatpush2.bf16.msra.mxu0 %v1572
    %1610 = vmatprep.subr.bf16.mxu0 0
    %1611 = vmatpush2.bf16.msra.mxu0 %v1571
    %1612 = vmatprep.subr.bf16.mxu0 0
    %1613 = vmatpush2.bf16.msra.mxu0 %v1570
    %1614 = vmatprep.subr.bf16.mxu0 0
    %1615 = vmatpush2.bf16.msra.mxu0 %v1569
    %1616 = vmatprep.subr.bf16.mxu0 0
    %1617 = vmatpush2.bf16.msra.mxu0 %v1568
    %1618 = vmatprep.subr.bf16.mxu0 0
    %1619 = vmatpush2.bf16.msra.mxu0 %v1567
    %1620 = vmatprep.subr.bf16.mxu0 0
    %1621 = vmatpush2.bf16.msra.mxu0 %v1566
    %1622 = vmatprep.mubr.bf16.mxu0 %v1438
    %1623 = vmatmul.mubr.bf16.gmra.mxu0 %v1414
    %v1624 = vpop.f32.mrf.mxu0
    %v1625 = vadd.f32 0.0, %v1624
    %v1626 = vpop.f32.mrf.mxu0
    %v1627 = vpop.f32.mrf.mxu0
    %v1628 = vadd.f32 0.0, %v1627
    %v1629 = vpop.f32.mrf.mxu0
    %1630 = vmatprep.mubr.bf16.mxu0 %v1441
    %1631 = vmatmul.mubr.bf16.gmra.mxu0 %v1417
    %v1632 = vpop.f32.mrf.mxu0
    %v1633 = vadd.f32 0.0, %v1632
    %v1634 = vpop.f32.mrf.mxu0
    %v1635 = vpop.f32.mrf.mxu0
    %v1636 = vadd.f32 0.0, %v1635
    %v1637 = vpop.f32.mrf.mxu0
    %1638 = vmatprep.mubr.bf16.mxu0 %v1444
    %1639 = vmatmul.mubr.bf16.gmra.mxu0 %v1420
    %v1640 = vpop.f32.mrf.mxu0
    %v1641 = vadd.f32 0.0, %v1640
    %v1642 = vpop.f32.mrf.mxu0
    %v1643 = vpop.f32.mrf.mxu0
    %v1644 = vadd.f32 0.0, %v1643
    %v1645 = vpop.f32.mrf.mxu0
    %1646 = vmatprep.mubr.bf16.mxu0 %v1447
    %1647 = vmatmul.mubr.bf16.gmra.mxu0 %v1423
    %v1648 = vpop.f32.mrf.mxu0
    %v1649 = vadd.f32 0.0, %v1648
    %v1650 = vpop.f32.mrf.mxu0
    %v1651 = vpop.f32.mrf.mxu0
    %v1652 = vadd.f32 0.0, %v1651
    %v1653 = vpop.f32.mrf.mxu0
    %1654 = vmatprep.mubr.bf16.mxu0 %v1450
    %1655 = vmatmul.mubr.bf16.gmra.mxu0 %v1426
    %v1656 = vpop.f32.mrf.mxu0
    %v1657 = vadd.f32 0.0, %v1656
    %v1658 = vpop.f32.mrf.mxu0
    %v1659 = vpop.f32.mrf.mxu0
    %v1660 = vadd.f32 0.0, %v1659
    %v1661 = vpop.f32.mrf.mxu0
    %1662 = vmatprep.mubr.bf16.mxu0 %v1453
    %1663 = vmatmul.mubr.bf16.gmra.mxu0 %v1429
    %v1664 = vpop.f32.mrf.mxu0
    %v1665 = vadd.f32 0.0, %v1664
    %v1666 = vpop.f32.mrf.mxu0
    %v1667 = vpop.f32.mrf.mxu0
    %v1668 = vadd.f32 0.0, %v1667
    %v1669 = vpop.f32.mrf.mxu0
    %1670 = vmatprep.mubr.bf16.mxu0 %v1456
    %1671 = vmatmul.mubr.bf16.gmra.mxu0 %v1432
    %v1672 = vpop.f32.mrf.mxu0
    %v1673 = vadd.f32 0.0, %v1672
    %v1674 = vpop.f32.mrf.mxu0
    %v1675 = vpop.f32.mrf.mxu0
    %v1676 = vadd.f32 0.0, %v1675
    %v1677 = vpop.f32.mrf.mxu0
    %1678 = vmatprep.mubr.bf16.mxu0 %v1459
    %1679 = vmatmul.mubr.bf16.gmra.mxu0 %v1435
    %v1680 = vpop.f32.mrf.mxu0
    %v1681 = vadd.f32 0.0, %v1680
    %v1682 = vpop.f32.mrf.mxu0
    %v1683 = vpop.f32.mrf.mxu0
    %v1684 = vadd.f32 0.0, %v1683
    %v1685 = vpop.f32.mrf.mxu0
    %1686 = vdwg.mxu0
    %vm1687 = vcmp.ge.f32.partialorder %v1625, 0.0
    %vm1688 = vcmp.ge.f32.partialorder %v1628, 0.0
    %vm1689 = vcmp.ge.f32.partialorder %v1633, 0.0
    %vm1690 = vcmp.ge.f32.partialorder %v1636, 0.0
    %vm1691 = vcmp.ge.f32.partialorder %v1641, 0.0
    %vm1692 = vcmp.ge.f32.partialorder %v1644, 0.0
    %vm1693 = vcmp.ge.f32.partialorder %v1649, 0.0
    %vm1694 = vcmp.ge.f32.partialorder %v1652, 0.0
    %vm1695 = vcmp.ge.f32.partialorder %v1657, 0.0
    %vm1696 = vcmp.ge.f32.partialorder %v1660, 0.0
    %vm1697 = vcmp.ge.f32.partialorder %v1665, 0.0
    %vm1698 = vcmp.ge.f32.partialorder %v1668, 0.0
    %vm1699 = vcmp.ge.f32.partialorder %v1673, 0.0
    %vm1700 = vcmp.ge.f32.partialorder %v1676, 0.0
    %vm1701 = vcmp.ge.f32.partialorder %v1681, 0.0
    %vm1702 = vcmp.ge.f32.partialorder %v1684, 0.0
    %v1703 = vmul.f32 %v930, %v1625
    %v1704 = vmul.f32 %v930, %v1628
    %v1705 = vmul.f32 %v930, %v1633
    %v1706 = vmul.f32 %v930, %v1636
    %v1707 = vmul.f32 %v930, %v1641
    %v1708 = vmul.f32 %v930, %v1644
    %v1709 = vmul.f32 %v930, %v1649
    %v1710 = vmul.f32 %v930, %v1652
    %v1711 = vmul.f32 %v930, %v1657
    %v1712 = vmul.f32 %v930, %v1660
    %v1713 = vmul.f32 %v930, %v1665
    %v1714 = vmul.f32 %v930, %v1668
    %v1715 = vmul.f32 %v930, %v1673
    %v1716 = vmul.f32 %v930, %v1676
    %v1717 = vmul.f32 %v930, %v1681
    %v1718 = vmul.f32 %v930, %v1684
    %v1719 = vsel %vm1687, %v1625, %v1703
    %v1720 = vsel %vm1688, %v1628, %v1704
    %v1721 = vsel %vm1689, %v1633, %v1705
    %v1722 = vsel %vm1690, %v1636, %v1706
    %v1723 = vsel %vm1691, %v1641, %v1707
    %v1724 = vsel %vm1692, %v1644, %v1708
    %v1725 = vsel %vm1693, %v1649, %v1709
    %v1726 = vsel %vm1694, %v1652, %v1710
    %v1727 = vsel %vm1695, %v1657, %v1711
    %v1728 = vsel %vm1696, %v1660, %v1712
    %v1729 = vsel %vm1697, %v1665, %v1713
    %v1730 = vsel %vm1698, %v1668, %v1714
    %v1731 = vsel %vm1699, %v1673, %v1715
    %v1732 = vsel %vm1700, %v1676, %v1716
    %v1733 = vsel %vm1701, %v1681, %v1717
    %v1734 = vsel %vm1702, %v1684, %v1718
    %v1735 = vpack.c.bf16 %v1720, %v1719
    %v1736 = vpack.c.bf16 %v1722, %v1721
    %v1737 = vpack.c.bf16 %v1724, %v1723
    %v1738 = vpack.c.bf16 %v1726, %v1725
    %v1739 = vpack.c.bf16 %v1728, %v1727
    %v1740 = vpack.c.bf16 %v1730, %v1729
    %v1741 = vpack.c.bf16 %v1732, %v1731
    %v1742 = vpack.c.bf16 %v1734, %v1733
    %1743 = vmatprep.subr.bf16.mxu0 0
    %1744 = vmatpush1.bf16.msra.mxu0 %v1026
    %1745 = vmatprep.subr.bf16.mxu0 0
    %1746 = vmatpush1.bf16.msra.mxu0 %v1025
    %1747 = vmatprep.subr.bf16.mxu0 0
    %1748 = vmatpush1.bf16.msra.mxu0 %v1024
    %1749 = vmatprep.subr.bf16.mxu0 0
    %1750 = vmatpush1.bf16.msra.mxu0 %v1023
    %1751 = vmatprep.subr.bf16.mxu0 0
    %1752 = vmatpush1.bf16.msra.mxu0 %v1022
    %1753 = vmatprep.subr.bf16.mxu0 0
    %1754 = vmatpush1.bf16.msra.mxu0 %v1021
    %1755 = vmatprep.subr.bf16.mxu0 0
    %1756 = vmatpush1.bf16.msra.mxu0 %v1020
    %1757 = vmatprep.subr.bf16.mxu0 0
    %1758 = vmatpush1.bf16.msra.mxu0 %v1019
    %1759 = vmatprep.subr.bf16.mxu0 0
    %1760 = vmatpush2.bf16.msra.mxu0 0
    %1761 = vmatprep.subr.bf16.mxu0 0
    %1762 = vmatpush2.bf16.msra.mxu0 0
    %1763 = vmatprep.subr.bf16.mxu0 0
    %1764 = vmatpush2.bf16.msra.mxu0 0
    %1765 = vmatprep.subr.bf16.mxu0 0
    %1766 = vmatpush2.bf16.msra.mxu0 0
    %1767 = vmatprep.subr.bf16.mxu0 0
    %1768 = vmatpush2.bf16.msra.mxu0 0
    %1769 = vmatprep.subr.bf16.mxu0 0
    %1770 = vmatpush2.bf16.msra.mxu0 0
    %1771 = vmatprep.subr.bf16.mxu0 0
    %1772 = vmatpush2.bf16.msra.mxu0 0
    %1773 = vmatprep.subr.bf16.mxu0 0
    %1774 = vmatpush2.bf16.msra.mxu0 0
    %1775 = vmatprep.mubr.bf16.mxu0 0
    %1776 = vmatmul.mubr.bf16.gmra.mxu0 %v1735
    %v1777 = vpop.f32.mrf.mxu0
    %v1778 = vadd.f32 0.0, %v1777
    %v1779 = vpop.f32.mrf.mxu0
    %v1780 = vpop.f32.mrf.mxu0
    %v1781 = vadd.f32 0.0, %v1780
    %v1782 = vpop.f32.mrf.mxu0
    %1783 = vmatprep.mubr.bf16.mxu0 0
    %1784 = vmatmul.mubr.bf16.gmra.mxu0 %v1736
    %v1785 = vpop.f32.mrf.mxu0
    %v1786 = vadd.f32 0.0, %v1785
    %v1787 = vpop.f32.mrf.mxu0
    %v1788 = vpop.f32.mrf.mxu0
    %v1789 = vadd.f32 0.0, %v1788
    %v1790 = vpop.f32.mrf.mxu0
    %1791 = vmatprep.mubr.bf16.mxu0 0
    %1792 = vmatmul.mubr.bf16.gmra.mxu0 %v1737
    %v1793 = vpop.f32.mrf.mxu0
    %v1794 = vadd.f32 0.0, %v1793
    %v1795 = vpop.f32.mrf.mxu0
    %v1796 = vpop.f32.mrf.mxu0
    %v1797 = vadd.f32 0.0, %v1796
    %v1798 = vpop.f32.mrf.mxu0
    %1799 = vmatprep.mubr.bf16.mxu0 0
    %1800 = vmatmul.mubr.bf16.gmra.mxu0 %v1738
    %v1801 = vpop.f32.mrf.mxu0
    %v1802 = vadd.f32 0.0, %v1801
    %v1803 = vpop.f32.mrf.mxu0
    %v1804 = vpop.f32.mrf.mxu0
    %v1805 = vadd.f32 0.0, %v1804
    %v1806 = vpop.f32.mrf.mxu0
    %1807 = vmatprep.mubr.bf16.mxu0 0
    %1808 = vmatmul.mubr.bf16.gmra.mxu0 %v1739
    %v1809 = vpop.f32.mrf.mxu0
    %v1810 = vadd.f32 0.0, %v1809
    %v1811 = vpop.f32.mrf.mxu0
    %v1812 = vpop.f32.mrf.mxu0
    %v1813 = vadd.f32 0.0, %v1812
    %v1814 = vpop.f32.mrf.mxu0
    %1815 = vmatprep.mubr.bf16.mxu0 0
    %1816 = vmatmul.mubr.bf16.gmra.mxu0 %v1740
    %v1817 = vpop.f32.mrf.mxu0
    %v1818 = vadd.f32 0.0, %v1817
    %v1819 = vpop.f32.mrf.mxu0
    %v1820 = vpop.f32.mrf.mxu0
    %v1821 = vadd.f32 0.0, %v1820
    %v1822 = vpop.f32.mrf.mxu0
    %1823 = vmatprep.mubr.bf16.mxu0 0
    %1824 = vmatmul.mubr.bf16.gmra.mxu0 %v1741
    %v1825 = vpop.f32.mrf.mxu0
    %v1826 = vadd.f32 0.0, %v1825
    %v1827 = vpop.f32.mrf.mxu0
    %v1828 = vpop.f32.mrf.mxu0
    %v1829 = vadd.f32 0.0, %v1828
    %v1830 = vpop.f32.mrf.mxu0
    %1831 = vmatprep.mubr.bf16.mxu0 0
    %1832 = vmatmul.mubr.bf16.gmra.mxu0 %v1742
    %v1833 = vpop.f32.mrf.mxu0
    %v1834 = vadd.f32 0.0, %v1833
    %v1835 = vpop.f32.mrf.mxu0
    %v1836 = vpop.f32.mrf.mxu0
    %v1837 = vadd.f32 0.0, %v1836
    %v1838 = vpop.f32.mrf.mxu0
    %1839 = vdwg.mxu0
    %vm1840 = vcmp.ge.f32.partialorder %v1778, 0.0
    %vm1841 = vcmp.ge.f32.partialorder %v1781, 0.0
    %vm1842 = vcmp.ge.f32.partialorder %v1786, 0.0
    %vm1843 = vcmp.ge.f32.partialorder %v1789, 0.0
    %vm1844 = vcmp.ge.f32.partialorder %v1794, 0.0
    %vm1845 = vcmp.ge.f32.partialorder %v1797, 0.0
    %vm1846 = vcmp.ge.f32.partialorder %v1802, 0.0
    %vm1847 = vcmp.ge.f32.partialorder %v1805, 0.0
    %vm1848 = vcmp.ge.f32.partialorder %v1810, 0.0
    %vm1849 = vcmp.ge.f32.partialorder %v1813, 0.0
    %vm1850 = vcmp.ge.f32.partialorder %v1818, 0.0
    %vm1851 = vcmp.ge.f32.partialorder %v1821, 0.0
    %vm1852 = vcmp.ge.f32.partialorder %v1826, 0.0
    %vm1853 = vcmp.ge.f32.partialorder %v1829, 0.0
    %vm1854 = vcmp.ge.f32.partialorder %v1834, 0.0
    %vm1855 = vcmp.ge.f32.partialorder %v1837, 0.0
    %v1856 = vmul.f32 %v303, %v1778
    %v1857 = vmul.f32 %v303, %v1781
    %v1858 = vmul.f32 %v303, %v1786
    %v1859 = vmul.f32 %v303, %v1789
    %v1860 = vmul.f32 %v303, %v1794
    %v1861 = vmul.f32 %v303, %v1797
    %v1862 = vmul.f32 %v303, %v1802
    %v1863 = vmul.f32 %v303, %v1805
    %v1864 = vmul.f32 %v303, %v1810
    %v1865 = vmul.f32 %v303, %v1813
    %v1866 = vmul.f32 %v303, %v1818
    %v1867 = vmul.f32 %v303, %v1821
    %v1868 = vmul.f32 %v303, %v1826
    %v1869 = vmul.f32 %v303, %v1829
    %v1870 = vmul.f32 %v303, %v1834
    %v1871 = vmul.f32 %v303, %v1837
    %v1872 = vsel %vm1840, %v1778, %v1856
    %v1873 = vsel %vm1841, %v1781, %v1857
    %v1874 = vsel %vm1842, %v1786, %v1858
    %v1875 = vsel %vm1843, %v1789, %v1859
    %v1876 = vsel %vm1844, %v1794, %v1860
    %v1877 = vsel %vm1845, %v1797, %v1861
    %v1878 = vsel %vm1846, %v1802, %v1862
    %v1879 = vsel %vm1847, %v1805, %v1863
    %v1880 = vsel %vm1848, %v1810, %v1864
    %v1881 = vsel %vm1849, %v1813, %v1865
    %v1882 = vsel %vm1850, %v1818, %v1866
    %v1883 = vsel %vm1851, %v1821, %v1867
    %v1884 = vsel %vm1852, %v1826, %v1868
    %v1885 = vsel %vm1853, %v1829, %v1869
    %v1886 = vsel %vm1854, %v1834, %v1870
    %v1887 = vsel %vm1855, %v1837, %v1871
    %v1888 = vpack.c.bf16 %v1873, %v1872
    %v1889 = vpack.c.bf16 %v1875, %v1874
    %v1890 = vpack.c.bf16 %v1877, %v1876
    %v1891 = vpack.c.bf16 %v1879, %v1878
    %v1892 = vpack.c.bf16 %v1881, %v1880
    %v1893 = vpack.c.bf16 %v1883, %v1882
    %v1894 = vpack.c.bf16 %v1885, %v1884
    %v1895 = vpack.c.bf16 %v1887, %v1886
    %vm1896 = vcmp.lt.s32.totalorder %v77, 7
    %vm1897 = vcmp.lt.s32.totalorder %v78, 7
    %vm1898 = vcmp.lt.s32.totalorder %v79, 7
    %vm1899 = vcmp.lt.s32.totalorder %v80, 7
    %vm1900 = vcmp.lt.s32.totalorder %v81, 7
    %vm1901 = vcmp.lt.s32.totalorder %v82, 7
    %vm1902 = vcmp.lt.s32.totalorder %v83, 7
    %vm1903 = vcmp.lt.s32.totalorder %v84, 7
    %vm1904 = vcmp.lt.s32.totalorder %v85, 7
    %vm1905 = vcmp.lt.s32.totalorder %v86, 7
    %vm1906 = vcmp.lt.s32.totalorder %v87, 7
    %vm1907 = vcmp.lt.s32.totalorder %v88, 7
    %vm1908 = vcmp.lt.s32.totalorder %v89, 7
    %vm1909 = vcmp.lt.s32.totalorder %v90, 7
    %vm1910 = vcmp.lt.s32.totalorder %v91, 7
    %vm1911 = vcmp.lt.s32.totalorder %v92, 7
    %v1912 = vsel %vm1896, 1, 0
    %v1913 = vsel %vm1897, 1, 0
    %v1914 = vsel %vm1898, 1, 0
    %v1915 = vsel %vm1899, 1, 0
    %v1916 = vsel %vm1900, 1, 0
    %v1917 = vsel %vm1901, 1, 0
    %v1918 = vsel %vm1902, 1, 0
    %v1919 = vsel %vm1903, 1, 0
    %v1920 = vsel %vm1904, 1, 0
    %v1921 = vsel %vm1905, 1, 0
    %v1922 = vsel %vm1906, 1, 0
    %v1923 = vsel %vm1907, 1, 0
    %v1924 = vsel %vm1908, 1, 0
    %v1925 = vsel %vm1909, 1, 0
    %v1926 = vsel %vm1910, 1, 0
    %v1927 = vsel %vm1911, 1, 0
    %vm1928 = vcmp.eq.s32.totalorder %v1912, 1
    %vm1929 = vcmp.eq.s32.totalorder %v1913, 1
    %vm1930 = vcmp.eq.s32.totalorder %v1914, 1
    %vm1931 = vcmp.eq.s32.totalorder %v1915, 1
    %vm1932 = vcmp.eq.s32.totalorder %v1916, 1
    %vm1933 = vcmp.eq.s32.totalorder %v1917, 1
    %vm1934 = vcmp.eq.s32.totalorder %v1918, 1
    %vm1935 = vcmp.eq.s32.totalorder %v1919, 1
    %vm1936 = vcmp.eq.s32.totalorder %v1920, 1
    %vm1937 = vcmp.eq.s32.totalorder %v1921, 1
    %vm1938 = vcmp.eq.s32.totalorder %v1922, 1
    %vm1939 = vcmp.eq.s32.totalorder %v1923, 1
    %vm1940 = vcmp.eq.s32.totalorder %v1924, 1
    %vm1941 = vcmp.eq.s32.totalorder %v1925, 1
    %vm1942 = vcmp.eq.s32.totalorder %v1926, 1
    %vm1943 = vcmp.eq.s32.totalorder %v1927, 1
    %v1944 = vsel %vm1928, %v110, 0.0
    %v1945 = vsel %vm1929, %v111, 0.0
    %v1946 = vsel %vm1930, %v112, 0.0
    %v1947 = vsel %vm1931, %v113, 0.0
    %v1948 = vsel %vm1932, %v114, 0.0
    %v1949 = vsel %vm1933, %v115, 0.0
    %v1950 = vsel %vm1934, %v116, 0.0
    %v1951 = vsel %vm1935, %v117, 0.0
    %v1952 = vsel %vm1936, %v118, 0.0
    %v1953 = vsel %vm1937, %v119, 0.0
    %v1954 = vsel %vm1938, %v120, 0.0
    %v1955 = vsel %vm1939, %v121, 0.0
    %v1956 = vsel %vm1940, %v122, 0.0
    %v1957 = vsel %vm1941, %v123, 0.0
    %v1958 = vsel %vm1942, %v124, 0.0
    %v1959 = vsel %vm1943, %v109, 0.0
    %v1960 = vpack.c.bf16 %v1945, %v1944
    %v1961 = vpack.c.bf16 %v1947, %v1946
    %v1962 = vpack.c.bf16 %v1949, %v1948
    %v1963 = vpack.c.bf16 %v1951, %v1950
    %v1964 = vpack.c.bf16 %v1953, %v1952
    %v1965 = vpack.c.bf16 %v1955, %v1954
    %v1966 = vpack.c.bf16 %v1957, %v1956
    %v1967 = vpack.c.bf16 %v1959, %v1958
    %vm1968 = vmand %vm1896, %vm369
    %vm1969 = vmand %vm1897, %vm370
    %vm1970 = vmand %vm1898, %vm371
    %vm1971 = vmand %vm1899, %vm372
    %vm1972 = vmand %vm1900, %vm373
    %vm1973 = vmand %vm1901, %vm374
    %vm1974 = vmand %vm1902, %vm375
    %vm1975 = vmand %vm1903, %vm376
    %vm1976 = vmand %vm1904, %vm377
    %vm1977 = vmand %vm1905, %vm378
    %vm1978 = vmand %vm1906, %vm379
    %vm1979 = vmand %vm1907, %vm380
    %vm1980 = vmand %vm1908, %vm381
    %vm1981 = vmand %vm1909, %vm382
    %vm1982 = vmand %vm1910, %vm383
    %vm1983 = vmand %vm1911, %vm384
    %v1984 = vsel %vm1968, 1, 0
    %v1985 = vsel %vm1969, 1, 0
    %v1986 = vsel %vm1970, 1, 0
    %v1987 = vsel %vm1971, 1, 0
    %v1988 = vsel %vm1972, 1, 0
    %v1989 = vsel %vm1973, 1, 0
    %v1990 = vsel %vm1974, 1, 0
    %v1991 = vsel %vm1975, 1, 0
    %v1992 = vsel %vm1976, 1, 0
    %v1993 = vsel %vm1977, 1, 0
    %v1994 = vsel %vm1978, 1, 0
    %v1995 = vsel %vm1979, 1, 0
    %v1996 = vsel %vm1980, 1, 0
    %v1997 = vsel %vm1981, 1, 0
    %v1998 = vsel %vm1982, 1, 0
    %v1999 = vsel %vm1983, 1, 0
    %vm2000 = vcmp.eq.s32.totalorder %v1984, 1
    %vm2001 = vcmp.eq.s32.totalorder %v1985, 1
    %vm2002 = vcmp.eq.s32.totalorder %v1986, 1
    %vm2003 = vcmp.eq.s32.totalorder %v1987, 1
    %vm2004 = vcmp.eq.s32.totalorder %v1988, 1
    %vm2005 = vcmp.eq.s32.totalorder %v1989, 1
    %vm2006 = vcmp.eq.s32.totalorder %v1990, 1
    %vm2007 = vcmp.eq.s32.totalorder %v1991, 1
    %vm2008 = vcmp.eq.s32.totalorder %v1992, 1
    %vm2009 = vcmp.eq.s32.totalorder %v1993, 1
    %vm2010 = vcmp.eq.s32.totalorder %v1994, 1
    %vm2011 = vcmp.eq.s32.totalorder %v1995, 1
    %vm2012 = vcmp.eq.s32.totalorder %v1996, 1
    %vm2013 = vcmp.eq.s32.totalorder %v1997, 1
    %vm2014 = vcmp.eq.s32.totalorder %v1998, 1
    %vm2015 = vcmp.eq.s32.totalorder %v1999, 1
    %v2016 = vsel %vm2000, %v367, 0.0
    %v2017 = vsel %vm2001, %v366, 0.0
    %v2018 = vsel %vm2002, %v365, 0.0
    %v2019 = vsel %vm2003, %v364, 0.0
    %v2020 = vsel %vm2004, %v363, 0.0
    %v2021 = vsel %vm2005, %v362, 0.0
    %v2022 = vsel %vm2006, %v361, 0.0
    %v2023 = vsel %vm2007, %v360, 0.0
    %v2024 = vsel %vm2008, %v359, 0.0
    %v2025 = vsel %vm2009, %v358, 0.0
    %v2026 = vsel %vm2010, %v357, 0.0
    %v2027 = vsel %vm2011, %v356, 0.0
    %v2028 = vsel %vm2012, %v355, 0.0
    %v2029 = vsel %vm2013, %v354, 0.0
    %v2030 = vsel %vm2014, %v353, 0.0
    %v2031 = vsel %vm2015, %v368, 0.0
    %v2032 = vpack.c.bf16 %v2017, %v2016
    %v2033 = vpack.c.bf16 %v2019, %v2018
    %v2034 = vpack.c.bf16 %v2021, %v2020
    %v2035 = vpack.c.bf16 %v2023, %v2022
    %v2036 = vpack.c.bf16 %v2025, %v2024
    %v2037 = vpack.c.bf16 %v2027, %v2026
    %v2038 = vpack.c.bf16 %v2029, %v2028
    %v2039 = vpack.c.bf16 %v2031, %v2030
    %2048 = vrot.lane.b32.xlu0 %v2032, 64
    %v2049 = vpop.permute.xlu0 %2048
    %2050 = vrot.lane.b32.xlu0 %v2033, 64
    %v2051 = vpop.permute.xlu0 %2050
    %2052 = vrot.lane.b32.xlu0 %v2034, 64
    %v2053 = vpop.permute.xlu0 %2052
    %2054 = vrot.lane.b32.xlu0 %v2035, 64
    %v2055 = vpop.permute.xlu0 %2054
    %2056 = vrot.lane.b32.xlu0 %v2036, 64
    %v2057 = vpop.permute.xlu0 %2056
    %2058 = vrot.lane.b32.xlu0 %v2037, 64
    %v2059 = vpop.permute.xlu0 %2058
    %2060 = vrot.lane.b32.xlu0 %v2038, 64
    %v2061 = vpop.permute.xlu0 %2060
    %2062 = vrot.lane.b32.xlu0 %v2039, 64
    %v2063 = vpop.permute.xlu0 %2062
    %v2066 = vsel %vm165, %v1960, %v2049
    %v2070 = vsel %vm165, %v1961, %v2051
    %v2074 = vsel %vm165, %v1962, %v2053
    %v2078 = vsel %vm165, %v1963, %v2055
    %v2082 = vsel %vm165, %v1964, %v2057
    %v2086 = vsel %vm165, %v1965, %v2059
    %v2090 = vsel %vm165, %v1966, %v2061
    %v2094 = vsel %vm165, %v1967, %v2063
    %s2096 = scalar_lea.vmem %s4, 256
    %v2097 = vld [vmem:[%s2096] sm:$0xf]
    %v2098 = vld [vmem:[%s2096 + $0x4] sm:$0xf]
    %v2099 = vld [vmem:[%s2096 + $0x8] sm:$0xf]
    %v2100 = vld [vmem:[%s2096 + $0xc] sm:$0xf]
    %v2101 = vld [vmem:[%s2096 + $0x10] sm:$0xf]
    %v2102 = vld [vmem:[%s2096 + $0x14] sm:$0xf]
    %v2103 = vld [vmem:[%s2096 + $0x18] sm:$0xf]
    %v2104 = vld [vmem:[%s2096 + $0x1c] sm:$0xf]
    %v2105 = vld [vmem:[%s2096 + $0x20] sm:$0xf]
    %v2106 = vld [vmem:[%s2096 + $0x24] sm:$0xf]
    %v2107 = vld [vmem:[%s2096 + $0x28] sm:$0xf]
    %v2108 = vld [vmem:[%s2096 + $0x2c] sm:$0xf]
    %v2109 = vld [vmem:[%s2096 + $0x30] sm:$0xf]
    %v2110 = vld [vmem:[%s2096 + $0x34] sm:$0xf]
    %v2111 = vld [vmem:[%s2096 + $0x38] sm:$0xf]
    %v2112 = vld [vmem:[%s2096 + $0x3c] sm:$0xf]
    %v2113 = vld [vmem:[%s2096 + $0x40] sm:$0xf]
    %v2114 = vld [vmem:[%s2096 + $0x44] sm:$0xf]
    %v2115 = vld [vmem:[%s2096 + $0x48] sm:$0xf]
    %v2116 = vld [vmem:[%s2096 + $0x4c] sm:$0xf]
    %v2117 = vld [vmem:[%s2096 + $0x50] sm:$0xf]
    %v2118 = vld [vmem:[%s2096 + $0x54] sm:$0xf]
    %v2119 = vld [vmem:[%s2096 + $0x58] sm:$0xf]
    %v2120 = vld [vmem:[%s2096 + $0x5c] sm:$0xf]
    %v2121 = vld [vmem:[%s2096 + $0x60] sm:$0xf]
    %v2122 = vld [vmem:[%s2096 + $0x64] sm:$0xf]
    %v2123 = vld [vmem:[%s2096 + $0x68] sm:$0xf]
    %v2124 = vld [vmem:[%s2096 + $0x6c] sm:$0xf]
    %v2125 = vld [vmem:[%s2096 + $0x70] sm:$0xf]
    %v2126 = vld [vmem:[%s2096 + $0x74] sm:$0xf]
    %v2127 = vld [vmem:[%s2096 + $0x78] sm:$0xf]
    %v2128 = vld [vmem:[%s2096 + $0x7c] sm:$0xf]
    %v2161 = vunpack.c.l.b16 %v2097
    %v2162 = vunpack.c.l.b16 %v2098
    %v2163 = vunpack.c.l.b16 %v2099
    %v2164 = vunpack.c.l.b16 %v2100
    %v2165 = vunpack.c.l.b16 %v2101
    %v2166 = vunpack.c.l.b16 %v2102
    %v2167 = vunpack.c.l.b16 %v2103
    %v2168 = vunpack.c.l.b16 %v2104
    %v2169 = vunpack.c.l.b16 %v2105
    %v2170 = vunpack.c.l.b16 %v2106
    %v2171 = vunpack.c.l.b16 %v2107
    %v2172 = vunpack.c.l.b16 %v2108
    %v2173 = vunpack.c.l.b16 %v2109
    %v2174 = vunpack.c.l.b16 %v2110
    %v2175 = vunpack.c.l.b16 %v2111
    %v2176 = vunpack.c.l.b16 %v2112
    %v2177 = vunpack.c.l.b16 %v2113
    %v2178 = vunpack.c.l.b16 %v2114
    %v2179 = vunpack.c.l.b16 %v2115
    %v2180 = vunpack.c.l.b16 %v2116
    %v2181 = vunpack.c.l.b16 %v2117
    %v2182 = vunpack.c.l.b16 %v2118
    %v2183 = vunpack.c.l.b16 %v2119
    %v2184 = vunpack.c.l.b16 %v2120
    %v2185 = vunpack.c.l.b16 %v2121
    %v2186 = vunpack.c.l.b16 %v2122
    %v2187 = vunpack.c.l.b16 %v2123
    %v2188 = vunpack.c.l.b16 %v2124
    %v2189 = vunpack.c.l.b16 %v2125
    %v2190 = vunpack.c.l.b16 %v2126
    %v2191 = vunpack.c.l.b16 %v2127
    %v2192 = vunpack.c.l.b16 %v2128
    %v2193 = vpack.c.b16 %v2162, %v2161
    %v2194 = vpack.c.b16 %v2164, %v2163
    %v2195 = vpack.c.b16 %v2166, %v2165
    %v2196 = vpack.c.b16 %v2168, %v2167
    %v2197 = vpack.c.b16 %v2170, %v2169
    %v2198 = vpack.c.b16 %v2172, %v2171
    %v2199 = vpack.c.b16 %v2174, %v2173
    %v2200 = vpack.c.b16 %v2176, %v2175
    %v2201 = vpack.c.b16 %v2178, %v2177
    %v2202 = vpack.c.b16 %v2180, %v2179
    %v2203 = vpack.c.b16 %v2182, %v2181
    %v2204 = vpack.c.b16 %v2184, %v2183
    %v2205 = vpack.c.b16 %v2186, %v2185
    %v2206 = vpack.c.b16 %v2188, %v2187
    %v2207 = vpack.c.b16 %v2190, %v2189
    %v2208 = vpack.c.b16 %v2192, %v2191
    %2225 = vmatprep.subr.bf16.mxu0 0
    %2226 = vmatpush1.bf16.msra.mxu0 %v2200
    %2227 = vmatprep.subr.bf16.mxu0 0
    %2228 = vmatpush1.bf16.msra.mxu0 %v2199
    %2229 = vmatprep.subr.bf16.mxu0 0
    %2230 = vmatpush1.bf16.msra.mxu0 %v2198
    %2231 = vmatprep.subr.bf16.mxu0 0
    %2232 = vmatpush1.bf16.msra.mxu0 %v2197
    %2233 = vmatprep.subr.bf16.mxu0 0
    %2234 = vmatpush1.bf16.msra.mxu0 %v2196
    %2235 = vmatprep.subr.bf16.mxu0 0
    %2236 = vmatpush1.bf16.msra.mxu0 %v2195
    %2237 = vmatprep.subr.bf16.mxu0 0
    %2238 = vmatpush1.bf16.msra.mxu0 %v2194
    %2239 = vmatprep.subr.bf16.mxu0 0
    %2240 = vmatpush1.bf16.msra.mxu0 %v2193
    %2241 = vmatprep.subr.bf16.mxu0 0
    %2242 = vmatpush2.bf16.msra.mxu0 %v2208
    %2243 = vmatprep.subr.bf16.mxu0 0
    %2244 = vmatpush2.bf16.msra.mxu0 %v2207
    %2245 = vmatprep.subr.bf16.mxu0 0
    %2246 = vmatpush2.bf16.msra.mxu0 %v2206
    %2247 = vmatprep.subr.bf16.mxu0 0
    %2248 = vmatpush2.bf16.msra.mxu0 %v2205
    %2249 = vmatprep.subr.bf16.mxu0 0
    %2250 = vmatpush2.bf16.msra.mxu0 %v2204
    %2251 = vmatprep.subr.bf16.mxu0 0
    %2252 = vmatpush2.bf16.msra.mxu0 %v2203
    %2253 = vmatprep.subr.bf16.mxu0 0
    %2254 = vmatpush2.bf16.msra.mxu0 %v2202
    %2255 = vmatprep.subr.bf16.mxu0 0
    %2256 = vmatpush2.bf16.msra.mxu0 %v2201
    %2257 = vmatprep.mubr.bf16.mxu0 %v2066
    %2258 = vmatmul.mubr.bf16.gmra.mxu0 %v634
    %v2259 = vpop.f32.mrf.mxu0
    %v2260 = vadd.f32 0.0, %v2259
    %v2261 = vpop.f32.mrf.mxu0
    %v2262 = vpop.f32.mrf.mxu0
    %v2263 = vadd.f32 0.0, %v2262
    %v2264 = vpop.f32.mrf.mxu0
    %2265 = vmatprep.mubr.bf16.mxu0 %v2070
    %2266 = vmatmul.mubr.bf16.gmra.mxu0 %v637
    %v2267 = vpop.f32.mrf.mxu0
    %v2268 = vadd.f32 0.0, %v2267
    %v2269 = vpop.f32.mrf.mxu0
    %v2270 = vpop.f32.mrf.mxu0
    %v2271 = vadd.f32 0.0, %v2270
    %v2272 = vpop.f32.mrf.mxu0
    %2273 = vmatprep.mubr.bf16.mxu0 %v2074
    %2274 = vmatmul.mubr.bf16.gmra.mxu0 %v640
    %v2275 = vpop.f32.mrf.mxu0
    %v2276 = vadd.f32 0.0, %v2275
    %v2277 = vpop.f32.mrf.mxu0
    %v2278 = vpop.f32.mrf.mxu0
    %v2279 = vadd.f32 0.0, %v2278
    %v2280 = vpop.f32.mrf.mxu0
    %2281 = vmatprep.mubr.bf16.mxu0 %v2078
    %2282 = vmatmul.mubr.bf16.gmra.mxu0 %v643
    %v2283 = vpop.f32.mrf.mxu0
    %v2284 = vadd.f32 0.0, %v2283
    %v2285 = vpop.f32.mrf.mxu0
    %v2286 = vpop.f32.mrf.mxu0
    %v2287 = vadd.f32 0.0, %v2286
    %v2288 = vpop.f32.mrf.mxu0
    %2289 = vmatprep.mubr.bf16.mxu0 %v2082
    %2290 = vmatmul.mubr.bf16.gmra.mxu0 %v646
    %v2291 = vpop.f32.mrf.mxu0
    %v2292 = vadd.f32 0.0, %v2291
    %v2293 = vpop.f32.mrf.mxu0
    %v2294 = vpop.f32.mrf.mxu0
    %v2295 = vadd.f32 0.0, %v2294
    %v2296 = vpop.f32.mrf.mxu0
    %2297 = vmatprep.mubr.bf16.mxu0 %v2086
    %2298 = vmatmul.mubr.bf16.gmra.mxu0 %v649
    %v2299 = vpop.f32.mrf.mxu0
    %v2300 = vadd.f32 0.0, %v2299
    %v2301 = vpop.f32.mrf.mxu0
    %v2302 = vpop.f32.mrf.mxu0
    %v2303 = vadd.f32 0.0, %v2302
    %v2304 = vpop.f32.mrf.mxu0
    %2305 = vmatprep.mubr.bf16.mxu0 %v2090
    %2306 = vmatmul.mubr.bf16.gmra.mxu0 %v652
    %v2307 = vpop.f32.mrf.mxu0
    %v2308 = vadd.f32 0.0, %v2307
    %v2309 = vpop.f32.mrf.mxu0
    %v2310 = vpop.f32.mrf.mxu0
    %v2311 = vadd.f32 0.0, %v2310
    %v2312 = vpop.f32.mrf.mxu0
    %2313 = vmatprep.mubr.bf16.mxu0 %v2094
    %2314 = vmatmul.mubr.bf16.gmra.mxu0 %v655
    %v2315 = vpop.f32.mrf.mxu0
    %v2316 = vadd.f32 0.0, %v2315
    %v2317 = vpop.f32.mrf.mxu0
    %v2318 = vpop.f32.mrf.mxu0
    %v2319 = vadd.f32 0.0, %v2318
    %v2320 = vpop.f32.mrf.mxu0
    %2321 = vdwg.mxu0
    %vm2322 = vcmp.ge.f32.partialorder %v2260, 0.0
    %vm2323 = vcmp.ge.f32.partialorder %v2263, 0.0
    %vm2324 = vcmp.ge.f32.partialorder %v2268, 0.0
    %vm2325 = vcmp.ge.f32.partialorder %v2271, 0.0
    %vm2326 = vcmp.ge.f32.partialorder %v2276, 0.0
    %vm2327 = vcmp.ge.f32.partialorder %v2279, 0.0
    %vm2328 = vcmp.ge.f32.partialorder %v2284, 0.0
    %vm2329 = vcmp.ge.f32.partialorder %v2287, 0.0
    %vm2330 = vcmp.ge.f32.partialorder %v2292, 0.0
    %vm2331 = vcmp.ge.f32.partialorder %v2295, 0.0
    %vm2332 = vcmp.ge.f32.partialorder %v2300, 0.0
    %vm2333 = vcmp.ge.f32.partialorder %v2303, 0.0
    %vm2334 = vcmp.ge.f32.partialorder %v2308, 0.0
    %vm2335 = vcmp.ge.f32.partialorder %v2311, 0.0
    %vm2336 = vcmp.ge.f32.partialorder %v2316, 0.0
    %vm2337 = vcmp.ge.f32.partialorder %v2319, 0.0
    %v2338 = vmul.f32 %v930, %v2260
    %v2339 = vmul.f32 %v930, %v2263
    %v2340 = vmul.f32 %v930, %v2268
    %v2341 = vmul.f32 %v930, %v2271
    %v2342 = vmul.f32 %v930, %v2276
    %v2343 = vmul.f32 %v930, %v2279
    %v2344 = vmul.f32 %v930, %v2284
    %v2345 = vmul.f32 %v930, %v2287
    %v2346 = vmul.f32 %v930, %v2292
    %v2347 = vmul.f32 %v930, %v2295
    %v2348 = vmul.f32 %v930, %v2300
    %v2349 = vmul.f32 %v930, %v2303
    %v2350 = vmul.f32 %v930, %v2308
    %v2351 = vmul.f32 %v930, %v2311
    %v2352 = vmul.f32 %v930, %v2316
    %v2353 = vmul.f32 %v930, %v2319
    %v2354 = vsel %vm2322, %v2260, %v2338
    %v2355 = vsel %vm2323, %v2263, %v2339
    %v2356 = vsel %vm2324, %v2268, %v2340
    %v2357 = vsel %vm2325, %v2271, %v2341
    %v2358 = vsel %vm2326, %v2276, %v2342
    %v2359 = vsel %vm2327, %v2279, %v2343
    %v2360 = vsel %vm2328, %v2284, %v2344
    %v2361 = vsel %vm2329, %v2287, %v2345
    %v2362 = vsel %vm2330, %v2292, %v2346
    %v2363 = vsel %vm2331, %v2295, %v2347
    %v2364 = vsel %vm2332, %v2300, %v2348
    %v2365 = vsel %vm2333, %v2303, %v2349
    %v2366 = vsel %vm2334, %v2308, %v2350
    %v2367 = vsel %vm2335, %v2311, %v2351
    %v2368 = vsel %vm2336, %v2316, %v2352
    %v2369 = vsel %vm2337, %v2319, %v2353
    %v2370 = vpack.c.bf16 %v2355, %v2354
    %v2371 = vpack.c.bf16 %v2357, %v2356
    %v2372 = vpack.c.bf16 %v2359, %v2358
    %v2373 = vpack.c.bf16 %v2361, %v2360
    %v2374 = vpack.c.bf16 %v2363, %v2362
    %v2375 = vpack.c.bf16 %v2365, %v2364
    %v2376 = vpack.c.bf16 %v2367, %v2366
    %v2377 = vpack.c.bf16 %v2369, %v2368
    %2378 = vmatprep.subr.bf16.mxu0 0
    %2379 = vmatpush1.bf16.msra.mxu0 %v1026
    %2380 = vmatprep.subr.bf16.mxu0 0
    %2381 = vmatpush1.bf16.msra.mxu0 %v1025
    %2382 = vmatprep.subr.bf16.mxu0 0
    %2383 = vmatpush1.bf16.msra.mxu0 %v1024
    %2384 = vmatprep.subr.bf16.mxu0 0
    %2385 = vmatpush1.bf16.msra.mxu0 %v1023
    %2386 = vmatprep.subr.bf16.mxu0 0
    %2387 = vmatpush1.bf16.msra.mxu0 %v1022
    %2388 = vmatprep.subr.bf16.mxu0 0
    %2389 = vmatpush1.bf16.msra.mxu0 %v1021
    %2390 = vmatprep.subr.bf16.mxu0 0
    %2391 = vmatpush1.bf16.msra.mxu0 %v1020
    %2392 = vmatprep.subr.bf16.mxu0 0
    %2393 = vmatpush1.bf16.msra.mxu0 %v1019
    %2394 = vmatprep.subr.bf16.mxu0 0
    %2395 = vmatpush2.bf16.msra.mxu0 0
    %2396 = vmatprep.subr.bf16.mxu0 0
    %2397 = vmatpush2.bf16.msra.mxu0 0
    %2398 = vmatprep.subr.bf16.mxu0 0
    %2399 = vmatpush2.bf16.msra.mxu0 0
    %2400 = vmatprep.subr.bf16.mxu0 0
    %2401 = vmatpush2.bf16.msra.mxu0 0
    %2402 = vmatprep.subr.bf16.mxu0 0
    %2403 = vmatpush2.bf16.msra.mxu0 0
    %2404 = vmatprep.subr.bf16.mxu0 0
    %2405 = vmatpush2.bf16.msra.mxu0 0
    %2406 = vmatprep.subr.bf16.mxu0 0
    %2407 = vmatpush2.bf16.msra.mxu0 0
    %2408 = vmatprep.subr.bf16.mxu0 0
    %2409 = vmatpush2.bf16.msra.mxu0 0
    %2410 = vmatprep.mubr.bf16.mxu0 0
    %2411 = vmatmul.mubr.bf16.gmra.mxu0 %v2370
    %v2412 = vpop.f32.mrf.mxu0
    %v2413 = vadd.f32 0.0, %v2412
    %v2414 = vpop.f32.mrf.mxu0
    %v2415 = vpop.f32.mrf.mxu0
    %v2416 = vadd.f32 0.0, %v2415
    %v2417 = vpop.f32.mrf.mxu0
    %2418 = vmatprep.mubr.bf16.mxu0 0
    %2419 = vmatmul.mubr.bf16.gmra.mxu0 %v2371
    %v2420 = vpop.f32.mrf.mxu0
    %v2421 = vadd.f32 0.0, %v2420
    %v2422 = vpop.f32.mrf.mxu0
    %v2423 = vpop.f32.mrf.mxu0
    %v2424 = vadd.f32 0.0, %v2423
    %v2425 = vpop.f32.mrf.mxu0
    %2426 = vmatprep.mubr.bf16.mxu0 0
    %2427 = vmatmul.mubr.bf16.gmra.mxu0 %v2372
    %v2428 = vpop.f32.mrf.mxu0
    %v2429 = vadd.f32 0.0, %v2428
    %v2430 = vpop.f32.mrf.mxu0
    %v2431 = vpop.f32.mrf.mxu0
    %v2432 = vadd.f32 0.0, %v2431
    %v2433 = vpop.f32.mrf.mxu0
    %2434 = vmatprep.mubr.bf16.mxu0 0
    %2435 = vmatmul.mubr.bf16.gmra.mxu0 %v2373
    %v2436 = vpop.f32.mrf.mxu0
    %v2437 = vadd.f32 0.0, %v2436
    %v2438 = vpop.f32.mrf.mxu0
    %v2439 = vpop.f32.mrf.mxu0
    %v2440 = vadd.f32 0.0, %v2439
    %v2441 = vpop.f32.mrf.mxu0
    %2442 = vmatprep.mubr.bf16.mxu0 0
    %2443 = vmatmul.mubr.bf16.gmra.mxu0 %v2374
    %v2444 = vpop.f32.mrf.mxu0
    %v2445 = vadd.f32 0.0, %v2444
    %v2446 = vpop.f32.mrf.mxu0
    %v2447 = vpop.f32.mrf.mxu0
    %v2448 = vadd.f32 0.0, %v2447
    %v2449 = vpop.f32.mrf.mxu0
    %2450 = vmatprep.mubr.bf16.mxu0 0
    %2451 = vmatmul.mubr.bf16.gmra.mxu0 %v2375
    %v2452 = vpop.f32.mrf.mxu0
    %v2453 = vadd.f32 0.0, %v2452
    %v2454 = vpop.f32.mrf.mxu0
    %v2455 = vpop.f32.mrf.mxu0
    %v2456 = vadd.f32 0.0, %v2455
    %v2457 = vpop.f32.mrf.mxu0
    %2458 = vmatprep.mubr.bf16.mxu0 0
    %2459 = vmatmul.mubr.bf16.gmra.mxu0 %v2376
    %v2460 = vpop.f32.mrf.mxu0
    %v2461 = vadd.f32 0.0, %v2460
    %v2462 = vpop.f32.mrf.mxu0
    %v2463 = vpop.f32.mrf.mxu0
    %v2464 = vadd.f32 0.0, %v2463
    %v2465 = vpop.f32.mrf.mxu0
    %2466 = vmatprep.mubr.bf16.mxu0 0
    %2467 = vmatmul.mubr.bf16.gmra.mxu0 %v2377
    %v2468 = vpop.f32.mrf.mxu0
    %v2469 = vadd.f32 0.0, %v2468
    %v2470 = vpop.f32.mrf.mxu0
    %v2471 = vpop.f32.mrf.mxu0
    %v2472 = vadd.f32 0.0, %v2471
    %v2473 = vpop.f32.mrf.mxu0
    %2474 = vdwg.mxu0
    %vm2475 = vcmp.ge.f32.partialorder %v2413, 0.0
    %vm2476 = vcmp.ge.f32.partialorder %v2416, 0.0
    %vm2477 = vcmp.ge.f32.partialorder %v2421, 0.0
    %vm2478 = vcmp.ge.f32.partialorder %v2424, 0.0
    %vm2479 = vcmp.ge.f32.partialorder %v2429, 0.0
    %vm2480 = vcmp.ge.f32.partialorder %v2432, 0.0
    %vm2481 = vcmp.ge.f32.partialorder %v2437, 0.0
    %vm2482 = vcmp.ge.f32.partialorder %v2440, 0.0
    %vm2483 = vcmp.ge.f32.partialorder %v2445, 0.0
    %vm2484 = vcmp.ge.f32.partialorder %v2448, 0.0
    %vm2485 = vcmp.ge.f32.partialorder %v2453, 0.0
    %vm2486 = vcmp.ge.f32.partialorder %v2456, 0.0
    %vm2487 = vcmp.ge.f32.partialorder %v2461, 0.0
    %vm2488 = vcmp.ge.f32.partialorder %v2464, 0.0
    %vm2489 = vcmp.ge.f32.partialorder %v2469, 0.0
    %vm2490 = vcmp.ge.f32.partialorder %v2472, 0.0
    %v2491 = vmul.f32 %v303, %v2413
    %v2492 = vmul.f32 %v303, %v2416
    %v2493 = vmul.f32 %v303, %v2421
    %v2494 = vmul.f32 %v303, %v2424
    %v2495 = vmul.f32 %v303, %v2429
    %v2496 = vmul.f32 %v303, %v2432
    %v2497 = vmul.f32 %v303, %v2437
    %v2498 = vmul.f32 %v303, %v2440
    %v2499 = vmul.f32 %v303, %v2445
    %v2500 = vmul.f32 %v303, %v2448
    %v2501 = vmul.f32 %v303, %v2453
    %v2502 = vmul.f32 %v303, %v2456
    %v2503 = vmul.f32 %v303, %v2461
    %v2504 = vmul.f32 %v303, %v2464
    %v2505 = vmul.f32 %v303, %v2469
    %v2506 = vmul.f32 %v303, %v2472
    %v2507 = vsel %vm2475, %v2413, %v2491
    %v2508 = vsel %vm2476, %v2416, %v2492
    %v2509 = vsel %vm2477, %v2421, %v2493
    %v2510 = vsel %vm2478, %v2424, %v2494
    %v2511 = vsel %vm2479, %v2429, %v2495
    %v2512 = vsel %vm2480, %v2432, %v2496
    %v2513 = vsel %vm2481, %v2437, %v2497
    %v2514 = vsel %vm2482, %v2440, %v2498
    %v2515 = vsel %vm2483, %v2445, %v2499
    %v2516 = vsel %vm2484, %v2448, %v2500
    %v2517 = vsel %vm2485, %v2453, %v2501
    %v2518 = vsel %vm2486, %v2456, %v2502
    %v2519 = vsel %vm2487, %v2461, %v2503
    %v2520 = vsel %vm2488, %v2464, %v2504
    %v2521 = vsel %vm2489, %v2469, %v2505
    %v2522 = vsel %vm2490, %v2472, %v2506
    %v2523 = vpack.c.bf16 %v2508, %v2507
    %v2524 = vpack.c.bf16 %v2510, %v2509
    %v2525 = vpack.c.bf16 %v2512, %v2511
    %v2526 = vpack.c.bf16 %v2514, %v2513
    %v2527 = vpack.c.bf16 %v2516, %v2515
    %v2528 = vpack.c.bf16 %v2518, %v2517
    %v2529 = vpack.c.bf16 %v2520, %v2519
    %v2530 = vpack.c.bf16 %v2522, %v2521
    %vm2531 = vmand %vm1896, %vm1221
    %vm2532 = vmand %vm1897, %vm1222
    %vm2533 = vmand %vm1898, %vm1223
    %vm2534 = vmand %vm1899, %vm1224
    %vm2535 = vmand %vm1900, %vm1225
    %vm2536 = vmand %vm1901, %vm1226
    %vm2537 = vmand %vm1902, %vm1227
    %vm2538 = vmand %vm1903, %vm1228
    %vm2539 = vmand %vm1904, %vm1229
    %vm2540 = vmand %vm1905, %vm1230
    %vm2541 = vmand %vm1906, %vm1231
    %vm2542 = vmand %vm1907, %vm1232
    %vm2543 = vmand %vm1908, %vm1233
    %vm2544 = vmand %vm1909, %vm1234
    %vm2545 = vmand %vm1910, %vm1235
    %vm2546 = vmand %vm1911, %vm1236
    %v2547 = vsel %vm2531, 1, 0
    %v2548 = vsel %vm2532, 1, 0
    %v2549 = vsel %vm2533, 1, 0
    %v2550 = vsel %vm2534, 1, 0
    %v2551 = vsel %vm2535, 1, 0
    %v2552 = vsel %vm2536, 1, 0
    %v2553 = vsel %vm2537, 1, 0
    %v2554 = vsel %vm2538, 1, 0
    %v2555 = vsel %vm2539, 1, 0
    %v2556 = vsel %vm2540, 1, 0
    %v2557 = vsel %vm2541, 1, 0
    %v2558 = vsel %vm2542, 1, 0
    %v2559 = vsel %vm2543, 1, 0
    %v2560 = vsel %vm2544, 1, 0
    %v2561 = vsel %vm2545, 1, 0
    %v2562 = vsel %vm2546, 1, 0
    %vm2563 = vcmp.eq.s32.totalorder %v2547, 1
    %vm2564 = vcmp.eq.s32.totalorder %v2548, 1
    %vm2565 = vcmp.eq.s32.totalorder %v2549, 1
    %vm2566 = vcmp.eq.s32.totalorder %v2550, 1
    %vm2567 = vcmp.eq.s32.totalorder %v2551, 1
    %vm2568 = vcmp.eq.s32.totalorder %v2552, 1
    %vm2569 = vcmp.eq.s32.totalorder %v2553, 1
    %vm2570 = vcmp.eq.s32.totalorder %v2554, 1
    %vm2571 = vcmp.eq.s32.totalorder %v2555, 1
    %vm2572 = vcmp.eq.s32.totalorder %v2556, 1
    %vm2573 = vcmp.eq.s32.totalorder %v2557, 1
    %vm2574 = vcmp.eq.s32.totalorder %v2558, 1
    %vm2575 = vcmp.eq.s32.totalorder %v2559, 1
    %vm2576 = vcmp.eq.s32.totalorder %v2560, 1
    %vm2577 = vcmp.eq.s32.totalorder %v2561, 1
    %vm2578 = vcmp.eq.s32.totalorder %v2562, 1
    %v2579 = vsel %vm2563, %v1218, 0.0
    %v2580 = vsel %vm2564, %v1217, 0.0
    %v2581 = vsel %vm2565, %v1216, 0.0
    %v2582 = vsel %vm2566, %v1215, 0.0
    %v2583 = vsel %vm2567, %v1214, 0.0
    %v2584 = vsel %vm2568, %v1213, 0.0
    %v2585 = vsel %vm2569, %v1212, 0.0
    %v2586 = vsel %vm2570, %v1211, 0.0
    %v2587 = vsel %vm2571, %v1210, 0.0
    %v2588 = vsel %vm2572, %v1209, 0.0
    %v2589 = vsel %vm2573, %v1208, 0.0
    %v2590 = vsel %vm2574, %v1207, 0.0
    %v2591 = vsel %vm2575, %v1206, 0.0
    %v2592 = vsel %vm2576, %v1205, 0.0
    %v2593 = vsel %vm2577, %v1220, 0.0
    %v2594 = vsel %vm2578, %v1219, 0.0
    %v2595 = vpack.c.bf16 %v2580, %v2579
    %v2596 = vpack.c.bf16 %v2582, %v2581
    %v2597 = vpack.c.bf16 %v2584, %v2583
    %v2598 = vpack.c.bf16 %v2586, %v2585
    %v2599 = vpack.c.bf16 %v2588, %v2587
    %v2600 = vpack.c.bf16 %v2590, %v2589
    %v2601 = vpack.c.bf16 %v2592, %v2591
    %v2602 = vpack.c.bf16 %v2594, %v2593
    %2611 = vrot.lane.b32.xlu0 %v2595, 64
    %v2612 = vpop.permute.xlu0 %2611
    %2613 = vrot.lane.b32.xlu0 %v2596, 64
    %v2614 = vpop.permute.xlu0 %2613
    %2615 = vrot.lane.b32.xlu0 %v2597, 64
    %v2616 = vpop.permute.xlu0 %2615
    %2617 = vrot.lane.b32.xlu0 %v2598, 64
    %v2618 = vpop.permute.xlu0 %2617
    %2619 = vrot.lane.b32.xlu0 %v2599, 64
    %v2620 = vpop.permute.xlu0 %2619
    %2621 = vrot.lane.b32.xlu0 %v2600, 64
    %v2622 = vpop.permute.xlu0 %2621
    %2623 = vrot.lane.b32.xlu0 %v2601, 64
    %v2624 = vpop.permute.xlu0 %2623
    %2625 = vrot.lane.b32.xlu0 %v2602, 64
    %v2626 = vpop.permute.xlu0 %2625
    %v2628 = vsel %vm165, %v1960, %v2612
    %v2631 = vsel %vm165, %v1961, %v2614
    %v2634 = vsel %vm165, %v1962, %v2616
    %v2637 = vsel %vm165, %v1963, %v2618
    %v2640 = vsel %vm165, %v1964, %v2620
    %v2643 = vsel %vm165, %v1965, %v2622
    %v2646 = vsel %vm165, %v1966, %v2624
    %v2649 = vsel %vm165, %v1967, %v2626
    %s2651 = scalar_lea.vmem %s4, 384
    %v2652 = vld [vmem:[%s2651] sm:$0xf]
    %v2653 = vld [vmem:[%s2651 + $0x4] sm:$0xf]
    %v2654 = vld [vmem:[%s2651 + $0x8] sm:$0xf]
    %v2655 = vld [vmem:[%s2651 + $0xc] sm:$0xf]
    %v2656 = vld [vmem:[%s2651 + $0x10] sm:$0xf]
    %v2657 = vld [vmem:[%s2651 + $0x14] sm:$0xf]
    %v2658 = vld [vmem:[%s2651 + $0x18] sm:$0xf]
    %v2659 = vld [vmem:[%s2651 + $0x1c] sm:$0xf]
    %v2660 = vld [vmem:[%s2651 + $0x20] sm:$0xf]
    %v2661 = vld [vmem:[%s2651 + $0x24] sm:$0xf]
    %v2662 = vld [vmem:[%s2651 + $0x28] sm:$0xf]
    %v2663 = vld [vmem:[%s2651 + $0x2c] sm:$0xf]
    %v2664 = vld [vmem:[%s2651 + $0x30] sm:$0xf]
    %v2665 = vld [vmem:[%s2651 + $0x34] sm:$0xf]
    %v2666 = vld [vmem:[%s2651 + $0x38] sm:$0xf]
    %v2667 = vld [vmem:[%s2651 + $0x3c] sm:$0xf]
    %v2668 = vld [vmem:[%s2651 + $0x40] sm:$0xf]
    %v2669 = vld [vmem:[%s2651 + $0x44] sm:$0xf]
    %v2670 = vld [vmem:[%s2651 + $0x48] sm:$0xf]
    %v2671 = vld [vmem:[%s2651 + $0x4c] sm:$0xf]
    %v2672 = vld [vmem:[%s2651 + $0x50] sm:$0xf]
    %v2673 = vld [vmem:[%s2651 + $0x54] sm:$0xf]
    %v2674 = vld [vmem:[%s2651 + $0x58] sm:$0xf]
    %v2675 = vld [vmem:[%s2651 + $0x5c] sm:$0xf]
    %v2676 = vld [vmem:[%s2651 + $0x60] sm:$0xf]
    %v2677 = vld [vmem:[%s2651 + $0x64] sm:$0xf]
    %v2678 = vld [vmem:[%s2651 + $0x68] sm:$0xf]
    %v2679 = vld [vmem:[%s2651 + $0x6c] sm:$0xf]
    %v2680 = vld [vmem:[%s2651 + $0x70] sm:$0xf]
    %v2681 = vld [vmem:[%s2651 + $0x74] sm:$0xf]
    %v2682 = vld [vmem:[%s2651 + $0x78] sm:$0xf]
    %v2683 = vld [vmem:[%s2651 + $0x7c] sm:$0xf]
    %v2716 = vunpack.c.l.b16 %v2652
    %v2717 = vunpack.c.l.b16 %v2653
    %v2718 = vunpack.c.l.b16 %v2654
    %v2719 = vunpack.c.l.b16 %v2655
    %v2720 = vunpack.c.l.b16 %v2656
    %v2721 = vunpack.c.l.b16 %v2657
    %v2722 = vunpack.c.l.b16 %v2658
    %v2723 = vunpack.c.l.b16 %v2659
    %v2724 = vunpack.c.l.b16 %v2660
    %v2725 = vunpack.c.l.b16 %v2661
    %v2726 = vunpack.c.l.b16 %v2662
    %v2727 = vunpack.c.l.b16 %v2663
    %v2728 = vunpack.c.l.b16 %v2664
    %v2729 = vunpack.c.l.b16 %v2665
    %v2730 = vunpack.c.l.b16 %v2666
    %v2731 = vunpack.c.l.b16 %v2667
    %v2732 = vunpack.c.l.b16 %v2668
    %v2733 = vunpack.c.l.b16 %v2669
    %v2734 = vunpack.c.l.b16 %v2670
    %v2735 = vunpack.c.l.b16 %v2671
    %v2736 = vunpack.c.l.b16 %v2672
    %v2737 = vunpack.c.l.b16 %v2673
    %v2738 = vunpack.c.l.b16 %v2674
    %v2739 = vunpack.c.l.b16 %v2675
    %v2740 = vunpack.c.l.b16 %v2676
    %v2741 = vunpack.c.l.b16 %v2677
    %v2742 = vunpack.c.l.b16 %v2678
    %v2743 = vunpack.c.l.b16 %v2679
    %v2744 = vunpack.c.l.b16 %v2680
    %v2745 = vunpack.c.l.b16 %v2681
    %v2746 = vunpack.c.l.b16 %v2682
    %v2747 = vunpack.c.l.b16 %v2683
    %v2748 = vpack.c.b16 %v2717, %v2716
    %v2749 = vpack.c.b16 %v2719, %v2718
    %v2750 = vpack.c.b16 %v2721, %v2720
    %v2751 = vpack.c.b16 %v2723, %v2722
    %v2752 = vpack.c.b16 %v2725, %v2724
    %v2753 = vpack.c.b16 %v2727, %v2726
    %v2754 = vpack.c.b16 %v2729, %v2728
    %v2755 = vpack.c.b16 %v2731, %v2730
    %v2756 = vpack.c.b16 %v2733, %v2732
    %v2757 = vpack.c.b16 %v2735, %v2734
    %v2758 = vpack.c.b16 %v2737, %v2736
    %v2759 = vpack.c.b16 %v2739, %v2738
    %v2760 = vpack.c.b16 %v2741, %v2740
    %v2761 = vpack.c.b16 %v2743, %v2742
    %v2762 = vpack.c.b16 %v2745, %v2744
    %v2763 = vpack.c.b16 %v2747, %v2746
    %2780 = vmatprep.subr.bf16.mxu0 0
    %2781 = vmatpush1.bf16.msra.mxu0 %v2755
    %2782 = vmatprep.subr.bf16.mxu0 0
    %2783 = vmatpush1.bf16.msra.mxu0 %v2754
    %2784 = vmatprep.subr.bf16.mxu0 0
    %2785 = vmatpush1.bf16.msra.mxu0 %v2753
    %2786 = vmatprep.subr.bf16.mxu0 0
    %2787 = vmatpush1.bf16.msra.mxu0 %v2752
    %2788 = vmatprep.subr.bf16.mxu0 0
    %2789 = vmatpush1.bf16.msra.mxu0 %v2751
    %2790 = vmatprep.subr.bf16.mxu0 0
    %2791 = vmatpush1.bf16.msra.mxu0 %v2750
    %2792 = vmatprep.subr.bf16.mxu0 0
    %2793 = vmatpush1.bf16.msra.mxu0 %v2749
    %2794 = vmatprep.subr.bf16.mxu0 0
    %2795 = vmatpush1.bf16.msra.mxu0 %v2748
    %2796 = vmatprep.subr.bf16.mxu0 0
    %2797 = vmatpush2.bf16.msra.mxu0 %v2763
    %2798 = vmatprep.subr.bf16.mxu0 0
    %2799 = vmatpush2.bf16.msra.mxu0 %v2762
    %2800 = vmatprep.subr.bf16.mxu0 0
    %2801 = vmatpush2.bf16.msra.mxu0 %v2761
    %2802 = vmatprep.subr.bf16.mxu0 0
    %2803 = vmatpush2.bf16.msra.mxu0 %v2760
    %2804 = vmatprep.subr.bf16.mxu0 0
    %2805 = vmatpush2.bf16.msra.mxu0 %v2759
    %2806 = vmatprep.subr.bf16.mxu0 0
    %2807 = vmatpush2.bf16.msra.mxu0 %v2758
    %2808 = vmatprep.subr.bf16.mxu0 0
    %2809 = vmatpush2.bf16.msra.mxu0 %v2757
    %2810 = vmatprep.subr.bf16.mxu0 0
    %2811 = vmatpush2.bf16.msra.mxu0 %v2756
    %2812 = vmatprep.mubr.bf16.mxu0 %v2628
    %2813 = vmatmul.mubr.bf16.gmra.mxu0 %v1414
    %v2814 = vpop.f32.mrf.mxu0
    %v2815 = vadd.f32 0.0, %v2814
    %v2816 = vpop.f32.mrf.mxu0
    %v2817 = vpop.f32.mrf.mxu0
    %v2818 = vadd.f32 0.0, %v2817
    %v2819 = vpop.f32.mrf.mxu0
    %2820 = vmatprep.mubr.bf16.mxu0 %v2631
    %2821 = vmatmul.mubr.bf16.gmra.mxu0 %v1417
    %v2822 = vpop.f32.mrf.mxu0
    %v2823 = vadd.f32 0.0, %v2822
    %v2824 = vpop.f32.mrf.mxu0
    %v2825 = vpop.f32.mrf.mxu0
    %v2826 = vadd.f32 0.0, %v2825
    %v2827 = vpop.f32.mrf.mxu0
    %2828 = vmatprep.mubr.bf16.mxu0 %v2634
    %2829 = vmatmul.mubr.bf16.gmra.mxu0 %v1420
    %v2830 = vpop.f32.mrf.mxu0
    %v2831 = vadd.f32 0.0, %v2830
    %v2832 = vpop.f32.mrf.mxu0
    %v2833 = vpop.f32.mrf.mxu0
    %v2834 = vadd.f32 0.0, %v2833
    %v2835 = vpop.f32.mrf.mxu0
    %2836 = vmatprep.mubr.bf16.mxu0 %v2637
    %2837 = vmatmul.mubr.bf16.gmra.mxu0 %v1423
    %v2838 = vpop.f32.mrf.mxu0
    %v2839 = vadd.f32 0.0, %v2838
    %v2840 = vpop.f32.mrf.mxu0
    %v2841 = vpop.f32.mrf.mxu0
    %v2842 = vadd.f32 0.0, %v2841
    %v2843 = vpop.f32.mrf.mxu0
    %2844 = vmatprep.mubr.bf16.mxu0 %v2640
    %2845 = vmatmul.mubr.bf16.gmra.mxu0 %v1426
    %v2846 = vpop.f32.mrf.mxu0
    %v2847 = vadd.f32 0.0, %v2846
    %v2848 = vpop.f32.mrf.mxu0
    %v2849 = vpop.f32.mrf.mxu0
    %v2850 = vadd.f32 0.0, %v2849
    %v2851 = vpop.f32.mrf.mxu0
    %2852 = vmatprep.mubr.bf16.mxu0 %v2643
    %2853 = vmatmul.mubr.bf16.gmra.mxu0 %v1429
    %v2854 = vpop.f32.mrf.mxu0
    %v2855 = vadd.f32 0.0, %v2854
    %v2856 = vpop.f32.mrf.mxu0
    %v2857 = vpop.f32.mrf.mxu0
    %v2858 = vadd.f32 0.0, %v2857
    %v2859 = vpop.f32.mrf.mxu0
    %2860 = vmatprep.mubr.bf16.mxu0 %v2646
    %2861 = vmatmul.mubr.bf16.gmra.mxu0 %v1432
    %v2862 = vpop.f32.mrf.mxu0
    %v2863 = vadd.f32 0.0, %v2862
    %v2864 = vpop.f32.mrf.mxu0
    %v2865 = vpop.f32.mrf.mxu0
    %v2866 = vadd.f32 0.0, %v2865
    %v2867 = vpop.f32.mrf.mxu0
    %2868 = vmatprep.mubr.bf16.mxu0 %v2649
    %2869 = vmatmul.mubr.bf16.gmra.mxu0 %v1435
    %v2870 = vpop.f32.mrf.mxu0
    %v2871 = vadd.f32 0.0, %v2870
    %v2872 = vpop.f32.mrf.mxu0
    %v2873 = vpop.f32.mrf.mxu0
    %v2874 = vadd.f32 0.0, %v2873
    %v2875 = vpop.f32.mrf.mxu0
    %2876 = vdwg.mxu0
    %vm2877 = vcmp.ge.f32.partialorder %v2815, 0.0
    %vm2878 = vcmp.ge.f32.partialorder %v2818, 0.0
    %vm2879 = vcmp.ge.f32.partialorder %v2823, 0.0
    %vm2880 = vcmp.ge.f32.partialorder %v2826, 0.0
    %vm2881 = vcmp.ge.f32.partialorder %v2831, 0.0
    %vm2882 = vcmp.ge.f32.partialorder %v2834, 0.0
    %vm2883 = vcmp.ge.f32.partialorder %v2839, 0.0
    %vm2884 = vcmp.ge.f32.partialorder %v2842, 0.0
    %vm2885 = vcmp.ge.f32.partialorder %v2847, 0.0
    %vm2886 = vcmp.ge.f32.partialorder %v2850, 0.0
    %vm2887 = vcmp.ge.f32.partialorder %v2855, 0.0
    %vm2888 = vcmp.ge.f32.partialorder %v2858, 0.0
    %vm2889 = vcmp.ge.f32.partialorder %v2863, 0.0
    %vm2890 = vcmp.ge.f32.partialorder %v2866, 0.0
    %vm2891 = vcmp.ge.f32.partialorder %v2871, 0.0
    %vm2892 = vcmp.ge.f32.partialorder %v2874, 0.0
    %v2893 = vmul.f32 %v930, %v2815
    %v2894 = vmul.f32 %v930, %v2818
    %v2895 = vmul.f32 %v930, %v2823
    %v2896 = vmul.f32 %v930, %v2826
    %v2897 = vmul.f32 %v930, %v2831
    %v2898 = vmul.f32 %v930, %v2834
    %v2899 = vmul.f32 %v930, %v2839
    %v2900 = vmul.f32 %v930, %v2842
    %v2901 = vmul.f32 %v930, %v2847
    %v2902 = vmul.f32 %v930, %v2850
    %v2903 = vmul.f32 %v930, %v2855
    %v2904 = vmul.f32 %v930, %v2858
    %v2905 = vmul.f32 %v930, %v2863
    %v2906 = vmul.f32 %v930, %v2866
    %v2907 = vmul.f32 %v930, %v2871
    %v2908 = vmul.f32 %v930, %v2874
    %v2909 = vsel %vm2877, %v2815, %v2893
    %v2910 = vsel %vm2878, %v2818, %v2894
    %v2911 = vsel %vm2879, %v2823, %v2895
    %v2912 = vsel %vm2880, %v2826, %v2896
    %v2913 = vsel %vm2881, %v2831, %v2897
    %v2914 = vsel %vm2882, %v2834, %v2898
    %v2915 = vsel %vm2883, %v2839, %v2899
    %v2916 = vsel %vm2884, %v2842, %v2900
    %v2917 = vsel %vm2885, %v2847, %v2901
    %v2918 = vsel %vm2886, %v2850, %v2902
    %v2919 = vsel %vm2887, %v2855, %v2903
    %v2920 = vsel %vm2888, %v2858, %v2904
    %v2921 = vsel %vm2889, %v2863, %v2905
    %v2922 = vsel %vm2890, %v2866, %v2906
    %v2923 = vsel %vm2891, %v2871, %v2907
    %v2924 = vsel %vm2892, %v2874, %v2908
    %v2925 = vpack.c.bf16 %v2910, %v2909
    %v2926 = vpack.c.bf16 %v2912, %v2911
    %v2927 = vpack.c.bf16 %v2914, %v2913
    %v2928 = vpack.c.bf16 %v2916, %v2915
    %v2929 = vpack.c.bf16 %v2918, %v2917
    %v2930 = vpack.c.bf16 %v2920, %v2919
    %v2931 = vpack.c.bf16 %v2922, %v2921
    %v2932 = vpack.c.bf16 %v2924, %v2923
    %2933 = vmatprep.subr.bf16.mxu0 0
    %2934 = vmatpush1.bf16.msra.mxu0 %v1026
    %2935 = vmatprep.subr.bf16.mxu0 0
    %2936 = vmatpush1.bf16.msra.mxu0 %v1025
    %2937 = vmatprep.subr.bf16.mxu0 0
    %2938 = vmatpush1.bf16.msra.mxu0 %v1024
    %2939 = vmatprep.subr.bf16.mxu0 0
    %2940 = vmatpush1.bf16.msra.mxu0 %v1023
    %2941 = vmatprep.subr.bf16.mxu0 0
    %2942 = vmatpush1.bf16.msra.mxu0 %v1022
    %2943 = vmatprep.subr.bf16.mxu0 0
    %2944 = vmatpush1.bf16.msra.mxu0 %v1021
    %2945 = vmatprep.subr.bf16.mxu0 0
    %2946 = vmatpush1.bf16.msra.mxu0 %v1020
    %2947 = vmatprep.subr.bf16.mxu0 0
    %2948 = vmatpush1.bf16.msra.mxu0 %v1019
    %2949 = vmatprep.subr.bf16.mxu0 0
    %2950 = vmatpush2.bf16.msra.mxu0 0
    %2951 = vmatprep.subr.bf16.mxu0 0
    %2952 = vmatpush2.bf16.msra.mxu0 0
    %2953 = vmatprep.subr.bf16.mxu0 0
    %2954 = vmatpush2.bf16.msra.mxu0 0
    %2955 = vmatprep.subr.bf16.mxu0 0
    %2956 = vmatpush2.bf16.msra.mxu0 0
    %2957 = vmatprep.subr.bf16.mxu0 0
    %2958 = vmatpush2.bf16.msra.mxu0 0
    %2959 = vmatprep.subr.bf16.mxu0 0
    %2960 = vmatpush2.bf16.msra.mxu0 0
    %2961 = vmatprep.subr.bf16.mxu0 0
    %2962 = vmatpush2.bf16.msra.mxu0 0
    %2963 = vmatprep.subr.bf16.mxu0 0
    %2964 = vmatpush2.bf16.msra.mxu0 0
    %2965 = vmatprep.mubr.bf16.mxu0 0
    %2966 = vmatmul.mubr.bf16.gmra.mxu0 %v2925
    %v2967 = vpop.f32.mrf.mxu0
    %v2968 = vadd.f32 0.0, %v2967
    %v2969 = vpop.f32.mrf.mxu0
    %v2970 = vpop.f32.mrf.mxu0
    %v2971 = vadd.f32 0.0, %v2970
    %v2972 = vpop.f32.mrf.mxu0
    %2973 = vmatprep.mubr.bf16.mxu0 0
    %2974 = vmatmul.mubr.bf16.gmra.mxu0 %v2926
    %v2975 = vpop.f32.mrf.mxu0
    %v2976 = vadd.f32 0.0, %v2975
    %v2977 = vpop.f32.mrf.mxu0
    %v2978 = vpop.f32.mrf.mxu0
    %v2979 = vadd.f32 0.0, %v2978
    %v2980 = vpop.f32.mrf.mxu0
    %2981 = vmatprep.mubr.bf16.mxu0 0
    %2982 = vmatmul.mubr.bf16.gmra.mxu0 %v2927
    %v2983 = vpop.f32.mrf.mxu0
    %v2984 = vadd.f32 0.0, %v2983
    %v2985 = vpop.f32.mrf.mxu0
    %v2986 = vpop.f32.mrf.mxu0
    %v2987 = vadd.f32 0.0, %v2986
    %v2988 = vpop.f32.mrf.mxu0
    %2989 = vmatprep.mubr.bf16.mxu0 0
    %2990 = vmatmul.mubr.bf16.gmra.mxu0 %v2928
    %v2991 = vpop.f32.mrf.mxu0
    %v2992 = vadd.f32 0.0, %v2991
    %v2993 = vpop.f32.mrf.mxu0
    %v2994 = vpop.f32.mrf.mxu0
    %v2995 = vadd.f32 0.0, %v2994
    %v2996 = vpop.f32.mrf.mxu0
    %2997 = vmatprep.mubr.bf16.mxu0 0
    %2998 = vmatmul.mubr.bf16.gmra.mxu0 %v2929
    %v2999 = vpop.f32.mrf.mxu0
    %v3000 = vadd.f32 0.0, %v2999
    %v3001 = vpop.f32.mrf.mxu0
    %v3002 = vpop.f32.mrf.mxu0
    %v3003 = vadd.f32 0.0, %v3002
    %v3004 = vpop.f32.mrf.mxu0
    %3005 = vmatprep.mubr.bf16.mxu0 0
    %3006 = vmatmul.mubr.bf16.gmra.mxu0 %v2930
    %v3007 = vpop.f32.mrf.mxu0
    %v3008 = vadd.f32 0.0, %v3007
    %v3009 = vpop.f32.mrf.mxu0
    %v3010 = vpop.f32.mrf.mxu0
    %v3011 = vadd.f32 0.0, %v3010
    %v3012 = vpop.f32.mrf.mxu0
    %3013 = vmatprep.mubr.bf16.mxu0 0
    %3014 = vmatmul.mubr.bf16.gmra.mxu0 %v2931
    %v3015 = vpop.f32.mrf.mxu0
    %v3016 = vadd.f32 0.0, %v3015
    %v3017 = vpop.f32.mrf.mxu0
    %v3018 = vpop.f32.mrf.mxu0
    %v3019 = vadd.f32 0.0, %v3018
    %v3020 = vpop.f32.mrf.mxu0
    %3021 = vmatprep.mubr.bf16.mxu0 0
    %3022 = vmatmul.mubr.bf16.gmra.mxu0 %v2932
    %v3023 = vpop.f32.mrf.mxu0
    %v3024 = vadd.f32 0.0, %v3023
    %v3025 = vpop.f32.mrf.mxu0
    %v3026 = vpop.f32.mrf.mxu0
    %v3027 = vadd.f32 0.0, %v3026
    %v3028 = vpop.f32.mrf.mxu0
    %3029 = vdwg.mxu0
    %vm3030 = vcmp.ge.f32.partialorder %v2968, 0.0
    %vm3031 = vcmp.ge.f32.partialorder %v2971, 0.0
    %vm3032 = vcmp.ge.f32.partialorder %v2976, 0.0
    %vm3033 = vcmp.ge.f32.partialorder %v2979, 0.0
    %vm3034 = vcmp.ge.f32.partialorder %v2984, 0.0
    %vm3035 = vcmp.ge.f32.partialorder %v2987, 0.0
    %vm3036 = vcmp.ge.f32.partialorder %v2992, 0.0
    %vm3037 = vcmp.ge.f32.partialorder %v2995, 0.0
    %vm3038 = vcmp.ge.f32.partialorder %v3000, 0.0
    %vm3039 = vcmp.ge.f32.partialorder %v3003, 0.0
    %vm3040 = vcmp.ge.f32.partialorder %v3008, 0.0
    %vm3041 = vcmp.ge.f32.partialorder %v3011, 0.0
    %vm3042 = vcmp.ge.f32.partialorder %v3016, 0.0
    %vm3043 = vcmp.ge.f32.partialorder %v3019, 0.0
    %vm3044 = vcmp.ge.f32.partialorder %v3024, 0.0
    %vm3045 = vcmp.ge.f32.partialorder %v3027, 0.0
    %v3046 = vmul.f32 %v303, %v2968
    %v3047 = vmul.f32 %v303, %v2971
    %v3048 = vmul.f32 %v303, %v2976
    %v3049 = vmul.f32 %v303, %v2979
    %v3050 = vmul.f32 %v303, %v2984
    %v3051 = vmul.f32 %v303, %v2987
    %v3052 = vmul.f32 %v303, %v2992
    %v3053 = vmul.f32 %v303, %v2995
    %v3054 = vmul.f32 %v303, %v3000
    %v3055 = vmul.f32 %v303, %v3003
    %v3056 = vmul.f32 %v303, %v3008
    %v3057 = vmul.f32 %v303, %v3011
    %v3058 = vmul.f32 %v303, %v3016
    %v3059 = vmul.f32 %v303, %v3019
    %v3060 = vmul.f32 %v303, %v3024
    %v3061 = vmul.f32 %v303, %v3027
    %v3062 = vsel %vm3030, %v2968, %v3046
    %v3063 = vsel %vm3031, %v2971, %v3047
    %v3064 = vsel %vm3032, %v2976, %v3048
    %v3065 = vsel %vm3033, %v2979, %v3049
    %v3066 = vsel %vm3034, %v2984, %v3050
    %v3067 = vsel %vm3035, %v2987, %v3051
    %v3068 = vsel %vm3036, %v2992, %v3052
    %v3069 = vsel %vm3037, %v2995, %v3053
    %v3070 = vsel %vm3038, %v3000, %v3054
    %v3071 = vsel %vm3039, %v3003, %v3055
    %v3072 = vsel %vm3040, %v3008, %v3056
    %v3073 = vsel %vm3041, %v3011, %v3057
    %v3074 = vsel %vm3042, %v3016, %v3058
    %v3075 = vsel %vm3043, %v3019, %v3059
    %v3076 = vsel %vm3044, %v3024, %v3060
    %v3077 = vsel %vm3045, %v3027, %v3061
    %v3078 = vpack.c.bf16 %v3063, %v3062
    %v3079 = vpack.c.bf16 %v3065, %v3064
    %v3080 = vpack.c.bf16 %v3067, %v3066
    %v3081 = vpack.c.bf16 %v3069, %v3068
    %v3082 = vpack.c.bf16 %v3071, %v3070
    %v3083 = vpack.c.bf16 %v3073, %v3072
    %v3084 = vpack.c.bf16 %v3075, %v3074
    %v3085 = vpack.c.bf16 %v3077, %v3076
    %v3086 = vrot.slane %v947, 1
    %v3087 = vrot.slane %v948, 1
    %v3088 = vrot.slane %v949, 1
    %v3089 = vrot.slane %v950, 1
    %v3090 = vrot.slane %v951, 1
    %v3091 = vrot.slane %v952, 1
    %v3092 = vrot.slane %v953, 1
    %v3093 = vrot.slane %v954, 1
    %v3094 = vrot.slane %v955, 1
    %v3095 = vrot.slane %v956, 1
    %v3096 = vrot.slane %v957, 1
    %v3097 = vrot.slane %v958, 1
    %v3098 = vrot.slane %v959, 1
    %v3099 = vrot.slane %v960, 1
    %v3100 = vrot.slane %v961, 1
    %v3101 = vrot.slane %v962, 1
    %v3102 = vsel %vm1204, %v3100, %v3101
    %v3103 = vsel %vm1204, %v3099, %v3100
    %v3104 = vsel %vm1204, %v3098, %v3099
    %v3105 = vsel %vm1204, %v3097, %v3098
    %v3106 = vsel %vm1204, %v3096, %v3097
    %v3107 = vsel %vm1204, %v3095, %v3096
    %v3108 = vsel %vm1204, %v3094, %v3095
    %v3109 = vsel %vm1204, %v3093, %v3094
    %v3110 = vsel %vm1204, %v3092, %v3093
    %v3111 = vsel %vm1204, %v3091, %v3092
    %v3112 = vsel %vm1204, %v3090, %v3091
    %v3113 = vsel %vm1204, %v3089, %v3090
    %v3114 = vsel %vm1204, %v3088, %v3089
    %v3115 = vsel %vm1204, %v3087, %v3088
    %v3116 = vsel %vm1204, %v3086, %v3087
    %v3117 = vsel %vm1204, %v3101, %v3086
    %v3118 = vsel %vm1253, %v3116, 0.0
    %v3119 = vsel %vm1254, %v3115, 0.0
    %v3120 = vsel %vm1255, %v3114, 0.0
    %v3121 = vsel %vm1256, %v3113, 0.0
    %v3122 = vsel %vm1257, %v3112, 0.0
    %v3123 = vsel %vm1258, %v3111, 0.0
    %v3124 = vsel %vm1259, %v3110, 0.0
    %v3125 = vsel %vm1260, %v3109, 0.0
    %v3126 = vsel %vm1261, %v3108, 0.0
    %v3127 = vsel %vm1262, %v3107, 0.0
    %v3128 = vsel %vm1263, %v3106, 0.0
    %v3129 = vsel %vm1264, %v3105, 0.0
    %v3130 = vsel %vm1265, %v3104, 0.0
    %v3131 = vsel %vm1266, %v3103, 0.0
    %v3132 = vsel %vm1267, %v3102, 0.0
    %v3133 = vsel %vm1268, %v3117, 0.0
    %v3134 = vpack.c.bf16 %v3119, %v3118
    %v3135 = vpack.c.bf16 %v3121, %v3120
    %v3136 = vpack.c.bf16 %v3123, %v3122
    %v3137 = vpack.c.bf16 %v3125, %v3124
    %v3138 = vpack.c.bf16 %v3127, %v3126
    %v3139 = vpack.c.bf16 %v3129, %v3128
    %v3140 = vpack.c.bf16 %v3131, %v3130
    %v3141 = vpack.c.bf16 %v3133, %v3132
    %v3142 = vsel %vm1928, %v948, 0.0
    %v3143 = vsel %vm1929, %v949, 0.0
    %v3144 = vsel %vm1930, %v950, 0.0
    %v3145 = vsel %vm1931, %v951, 0.0
    %v3146 = vsel %vm1932, %v952, 0.0
    %v3147 = vsel %vm1933, %v953, 0.0
    %v3148 = vsel %vm1934, %v954, 0.0
    %v3149 = vsel %vm1935, %v955, 0.0
    %v3150 = vsel %vm1936, %v956, 0.0
    %v3151 = vsel %vm1937, %v957, 0.0
    %v3152 = vsel %vm1938, %v958, 0.0
    %v3153 = vsel %vm1939, %v959, 0.0
    %v3154 = vsel %vm1940, %v960, 0.0
    %v3155 = vsel %vm1941, %v961, 0.0
    %v3156 = vsel %vm1942, %v962, 0.0
    %v3157 = vsel %vm1943, %v947, 0.0
    %v3158 = vpack.c.bf16 %v3143, %v3142
    %v3159 = vpack.c.bf16 %v3145, %v3144
    %v3160 = vpack.c.bf16 %v3147, %v3146
    %v3161 = vpack.c.bf16 %v3149, %v3148
    %v3162 = vpack.c.bf16 %v3151, %v3150
    %v3163 = vpack.c.bf16 %v3153, %v3152
    %v3164 = vpack.c.bf16 %v3155, %v3154
    %v3165 = vpack.c.bf16 %v3157, %v3156
    %v3166 = vsel %vm2563, %v3115, 0.0
    %v3167 = vsel %vm2564, %v3114, 0.0
    %v3168 = vsel %vm2565, %v3113, 0.0
    %v3169 = vsel %vm2566, %v3112, 0.0
    %v3170 = vsel %vm2567, %v3111, 0.0
    %v3171 = vsel %vm2568, %v3110, 0.0
    %v3172 = vsel %vm2569, %v3109, 0.0
    %v3173 = vsel %vm2570, %v3108, 0.0
    %v3174 = vsel %vm2571, %v3107, 0.0
    %v3175 = vsel %vm2572, %v3106, 0.0
    %v3176 = vsel %vm2573, %v3105, 0.0
    %v3177 = vsel %vm2574, %v3104, 0.0
    %v3178 = vsel %vm2575, %v3103, 0.0
    %v3179 = vsel %vm2576, %v3102, 0.0
    %v3180 = vsel %vm2577, %v3117, 0.0
    %v3181 = vsel %vm2578, %v3116, 0.0
    %v3182 = vpack.c.bf16 %v3167, %v3166
    %v3183 = vpack.c.bf16 %v3169, %v3168
    %v3184 = vpack.c.bf16 %v3171, %v3170
    %v3185 = vpack.c.bf16 %v3173, %v3172
    %v3186 = vpack.c.bf16 %v3175, %v3174
    %v3187 = vpack.c.bf16 %v3177, %v3176
    %v3188 = vpack.c.bf16 %v3179, %v3178
    %v3189 = vpack.c.bf16 %v3181, %v3180
    %v3190 = vld [vmem:[%s5] sm:$0xf]
    %v3191 = vld [vmem:[%s5 + $0x4] sm:$0xf]
    %v3192 = vld [vmem:[%s5 + $0x8] sm:$0xf]
    %v3193 = vld [vmem:[%s5 + $0xc] sm:$0xf]
    %v3194 = vld [vmem:[%s5 + $0x10] sm:$0xf]
    %v3195 = vld [vmem:[%s5 + $0x14] sm:$0xf]
    %v3196 = vld [vmem:[%s5 + $0x18] sm:$0xf]
    %v3197 = vld [vmem:[%s5 + $0x1c] sm:$0xf]
    %v3198 = vld [vmem:[%s5 + $0x20] sm:$0xf]
    %v3199 = vld [vmem:[%s5 + $0x24] sm:$0xf]
    %v3200 = vld [vmem:[%s5 + $0x28] sm:$0xf]
    %v3201 = vld [vmem:[%s5 + $0x2c] sm:$0xf]
    %v3202 = vld [vmem:[%s5 + $0x30] sm:$0xf]
    %v3203 = vld [vmem:[%s5 + $0x34] sm:$0xf]
    %v3204 = vld [vmem:[%s5 + $0x38] sm:$0xf]
    %v3205 = vld [vmem:[%s5 + $0x3c] sm:$0xf]
    %v3206 = vld [vmem:[%s5 + $0x40] sm:$0xf]
    %v3207 = vld [vmem:[%s5 + $0x44] sm:$0xf]
    %v3208 = vld [vmem:[%s5 + $0x48] sm:$0xf]
    %v3209 = vld [vmem:[%s5 + $0x4c] sm:$0xf]
    %v3210 = vld [vmem:[%s5 + $0x50] sm:$0xf]
    %v3211 = vld [vmem:[%s5 + $0x54] sm:$0xf]
    %v3212 = vld [vmem:[%s5 + $0x58] sm:$0xf]
    %v3213 = vld [vmem:[%s5 + $0x5c] sm:$0xf]
    %v3214 = vld [vmem:[%s5 + $0x60] sm:$0xf]
    %v3215 = vld [vmem:[%s5 + $0x64] sm:$0xf]
    %v3216 = vld [vmem:[%s5 + $0x68] sm:$0xf]
    %v3217 = vld [vmem:[%s5 + $0x6c] sm:$0xf]
    %v3218 = vld [vmem:[%s5 + $0x70] sm:$0xf]
    %v3219 = vld [vmem:[%s5 + $0x74] sm:$0xf]
    %v3220 = vld [vmem:[%s5 + $0x78] sm:$0xf]
    %v3221 = vld [vmem:[%s5 + $0x7c] sm:$0xf]
    %v3222 = vld [vmem:[%s5 + $0x80] sm:$0xf]
    %v3223 = vld [vmem:[%s5 + $0x84] sm:$0xf]
    %v3224 = vld [vmem:[%s5 + $0x88] sm:$0xf]
    %v3225 = vld [vmem:[%s5 + $0x8c] sm:$0xf]
    %v3226 = vld [vmem:[%s5 + $0x90] sm:$0xf]
    %v3227 = vld [vmem:[%s5 + $0x94] sm:$0xf]
    %v3228 = vld [vmem:[%s5 + $0x98] sm:$0xf]
    %v3229 = vld [vmem:[%s5 + $0x9c] sm:$0xf]
    %v3230 = vld [vmem:[%s5 + $0xa0] sm:$0xf]
    %v3231 = vld [vmem:[%s5 + $0xa4] sm:$0xf]
    %v3232 = vld [vmem:[%s5 + $0xa8] sm:$0xf]
    %v3233 = vld [vmem:[%s5 + $0xac] sm:$0xf]
    %v3234 = vld [vmem:[%s5 + $0xb0] sm:$0xf]
    %v3235 = vld [vmem:[%s5 + $0xb4] sm:$0xf]
    %v3236 = vld [vmem:[%s5 + $0xb8] sm:$0xf]
    %v3237 = vld [vmem:[%s5 + $0xbc] sm:$0xf]
    %v3238 = vld [vmem:[%s5 + $0xc0] sm:$0xf]
    %v3239 = vld [vmem:[%s5 + $0xc4] sm:$0xf]
    %v3240 = vld [vmem:[%s5 + $0xc8] sm:$0xf]
    %v3241 = vld [vmem:[%s5 + $0xcc] sm:$0xf]
    %v3242 = vld [vmem:[%s5 + $0xd0] sm:$0xf]
    %v3243 = vld [vmem:[%s5 + $0xd4] sm:$0xf]
    %v3244 = vld [vmem:[%s5 + $0xd8] sm:$0xf]
    %v3245 = vld [vmem:[%s5 + $0xdc] sm:$0xf]
    %v3246 = vld [vmem:[%s5 + $0xe0] sm:$0xf]
    %v3247 = vld [vmem:[%s5 + $0xe4] sm:$0xf]
    %v3248 = vld [vmem:[%s5 + $0xe8] sm:$0xf]
    %v3249 = vld [vmem:[%s5 + $0xec] sm:$0xf]
    %v3250 = vld [vmem:[%s5 + $0xf0] sm:$0xf]
    %v3251 = vld [vmem:[%s5 + $0xf4] sm:$0xf]
    %v3252 = vld [vmem:[%s5 + $0xf8] sm:$0xf]
    %v3253 = vld [vmem:[%s5 + $0xfc] sm:$0xf]
    %v3254 = vrot.slane %v1719, 7
    %v3255 = vrot.slane %v1720, 7
    %v3256 = vrot.slane %v1721, 7
    %v3257 = vrot.slane %v1722, 7
    %v3258 = vrot.slane %v1723, 7
    %v3259 = vrot.slane %v1724, 7
    %v3260 = vrot.slane %v1725, 7
    %v3261 = vrot.slane %v1726, 7
    %v3262 = vrot.slane %v1727, 7
    %v3263 = vrot.slane %v1728, 7
    %v3264 = vrot.slane %v1729, 7
    %v3265 = vrot.slane %v1730, 7
    %v3266 = vrot.slane %v1731, 7
    %v3267 = vrot.slane %v1732, 7
    %v3268 = vrot.slane %v1733, 7
    %v3269 = vrot.slane %v1734, 7
    %v3270 = vsel %vm352, %v3268, %v3269
    %v3271 = vsel %vm352, %v3267, %v3268
    %v3272 = vsel %vm352, %v3266, %v3267
    %v3273 = vsel %vm352, %v3265, %v3266
    %v3274 = vsel %vm352, %v3264, %v3265
    %v3275 = vsel %vm352, %v3263, %v3264
    %v3276 = vsel %vm352, %v3262, %v3263
    %v3277 = vsel %vm352, %v3261, %v3262
    %v3278 = vsel %vm352, %v3260, %v3261
    %v3279 = vsel %vm352, %v3259, %v3260
    %v3280 = vsel %vm352, %v3258, %v3259
    %v3281 = vsel %vm352, %v3257, %v3258
    %v3282 = vsel %vm352, %v3256, %v3257
    %v3283 = vsel %vm352, %v3255, %v3256
    %v3284 = vsel %vm352, %v3254, %v3255
    %v3285 = vsel %vm352, %v3269, %v3254
    %v3286 = vsel %vm401, %v3285, 0.0
    %v3287 = vsel %vm402, %v3284, 0.0
    %v3288 = vsel %vm403, %v3283, 0.0
    %v3289 = vsel %vm404, %v3282, 0.0
    %v3290 = vsel %vm405, %v3281, 0.0
    %v3291 = vsel %vm406, %v3280, 0.0
    %v3292 = vsel %vm407, %v3279, 0.0
    %v3293 = vsel %vm408, %v3278, 0.0
    %v3294 = vsel %vm409, %v3277, 0.0
    %v3295 = vsel %vm410, %v3276, 0.0
    %v3296 = vsel %vm411, %v3275, 0.0
    %v3297 = vsel %vm412, %v3274, 0.0
    %v3298 = vsel %vm413, %v3273, 0.0
    %v3299 = vsel %vm414, %v3272, 0.0
    %v3300 = vsel %vm415, %v3271, 0.0
    %v3301 = vsel %vm416, %v3270, 0.0
    %v3302 = vpack.c.bf16 %v3287, %v3286
    %v3303 = vpack.c.bf16 %v3289, %v3288
    %v3304 = vpack.c.bf16 %v3291, %v3290
    %v3305 = vpack.c.bf16 %v3293, %v3292
    %v3306 = vpack.c.bf16 %v3295, %v3294
    %v3307 = vpack.c.bf16 %v3297, %v3296
    %v3308 = vpack.c.bf16 %v3299, %v3298
    %v3309 = vpack.c.bf16 %v3301, %v3300
    %v3310 = vsel %vm2000, %v3284, 0.0
    %v3311 = vsel %vm2001, %v3283, 0.0
    %v3312 = vsel %vm2002, %v3282, 0.0
    %v3313 = vsel %vm2003, %v3281, 0.0
    %v3314 = vsel %vm2004, %v3280, 0.0
    %v3315 = vsel %vm2005, %v3279, 0.0
    %v3316 = vsel %vm2006, %v3278, 0.0
    %v3317 = vsel %vm2007, %v3277, 0.0
    %v3318 = vsel %vm2008, %v3276, 0.0
    %v3319 = vsel %vm2009, %v3275, 0.0
    %v3320 = vsel %vm2010, %v3274, 0.0
    %v3321 = vsel %vm2011, %v3273, 0.0
    %v3322 = vsel %vm2012, %v3272, 0.0
    %v3323 = vsel %vm2013, %v3271, 0.0
    %v3324 = vsel %vm2014, %v3270, 0.0
    %v3325 = vsel %vm2015, %v3285, 0.0
    %v3326 = vpack.c.bf16 %v3311, %v3310
    %v3327 = vpack.c.bf16 %v3313, %v3312
    %v3328 = vpack.c.bf16 %v3315, %v3314
    %v3329 = vpack.c.bf16 %v3317, %v3316
    %v3330 = vpack.c.bf16 %v3319, %v3318
    %v3331 = vpack.c.bf16 %v3321, %v3320
    %v3332 = vpack.c.bf16 %v3323, %v3322
    %v3333 = vpack.c.bf16 %v3325, %v3324
    %v3334 = vsel %vm1928, %v1720, 0.0
    %v3335 = vsel %vm1929, %v1721, 0.0
    %v3336 = vsel %vm1930, %v1722, 0.0
    %v3337 = vsel %vm1931, %v1723, 0.0
    %v3338 = vsel %vm1932, %v1724, 0.0
    %v3339 = vsel %vm1933, %v1725, 0.0
    %v3340 = vsel %vm1934, %v1726, 0.0
    %v3341 = vsel %vm1935, %v1727, 0.0
    %v3342 = vsel %vm1936, %v1728, 0.0
    %v3343 = vsel %vm1937, %v1729, 0.0
    %v3344 = vsel %vm1938, %v1730, 0.0
    %v3345 = vsel %vm1939, %v1731, 0.0
    %v3346 = vsel %vm1940, %v1732, 0.0
    %v3347 = vsel %vm1941, %v1733, 0.0
    %v3348 = vsel %vm1942, %v1734, 0.0
    %v3349 = vsel %vm1943, %v1719, 0.0
    %v3350 = vpack.c.bf16 %v3335, %v3334
    %v3351 = vpack.c.bf16 %v3337, %v3336
    %v3352 = vpack.c.bf16 %v3339, %v3338
    %v3353 = vpack.c.bf16 %v3341, %v3340
    %v3354 = vpack.c.bf16 %v3343, %v3342
    %v3355 = vpack.c.bf16 %v3345, %v3344
    %v3356 = vpack.c.bf16 %v3347, %v3346
    %v3357 = vpack.c.bf16 %v3349, %v3348
    %s3358 = scalar_lea.vmem %s5, 256
    %v3359 = vld [vmem:[%s3358] sm:$0xf]
    %v3360 = vld [vmem:[%s3358 + $0x4] sm:$0xf]
    %v3361 = vld [vmem:[%s3358 + $0x8] sm:$0xf]
    %v3362 = vld [vmem:[%s3358 + $0xc] sm:$0xf]
    %v3363 = vld [vmem:[%s3358 + $0x10] sm:$0xf]
    %v3364 = vld [vmem:[%s3358 + $0x14] sm:$0xf]
    %v3365 = vld [vmem:[%s3358 + $0x18] sm:$0xf]
    %v3366 = vld [vmem:[%s3358 + $0x1c] sm:$0xf]
    %v3367 = vld [vmem:[%s3358 + $0x20] sm:$0xf]
    %v3368 = vld [vmem:[%s3358 + $0x24] sm:$0xf]
    %v3369 = vld [vmem:[%s3358 + $0x28] sm:$0xf]
    %v3370 = vld [vmem:[%s3358 + $0x2c] sm:$0xf]
    %v3371 = vld [vmem:[%s3358 + $0x30] sm:$0xf]
    %v3372 = vld [vmem:[%s3358 + $0x34] sm:$0xf]
    %v3373 = vld [vmem:[%s3358 + $0x38] sm:$0xf]
    %v3374 = vld [vmem:[%s3358 + $0x3c] sm:$0xf]
    %v3375 = vld [vmem:[%s3358 + $0x40] sm:$0xf]
    %v3376 = vld [vmem:[%s3358 + $0x44] sm:$0xf]
    %v3377 = vld [vmem:[%s3358 + $0x48] sm:$0xf]
    %v3378 = vld [vmem:[%s3358 + $0x4c] sm:$0xf]
    %v3379 = vld [vmem:[%s3358 + $0x50] sm:$0xf]
    %v3380 = vld [vmem:[%s3358 + $0x54] sm:$0xf]
    %v3381 = vld [vmem:[%s3358 + $0x58] sm:$0xf]
    %v3382 = vld [vmem:[%s3358 + $0x5c] sm:$0xf]
    %v3383 = vld [vmem:[%s3358 + $0x60] sm:$0xf]
    %v3384 = vld [vmem:[%s3358 + $0x64] sm:$0xf]
    %v3385 = vld [vmem:[%s3358 + $0x68] sm:$0xf]
    %v3386 = vld [vmem:[%s3358 + $0x6c] sm:$0xf]
    %v3387 = vld [vmem:[%s3358 + $0x70] sm:$0xf]
    %v3388 = vld [vmem:[%s3358 + $0x74] sm:$0xf]
    %v3389 = vld [vmem:[%s3358 + $0x78] sm:$0xf]
    %v3390 = vld [vmem:[%s3358 + $0x7c] sm:$0xf]
    %v3391 = vld [vmem:[%s3358 + $0x80] sm:$0xf]
    %v3392 = vld [vmem:[%s3358 + $0x84] sm:$0xf]
    %v3393 = vld [vmem:[%s3358 + $0x88] sm:$0xf]
    %v3394 = vld [vmem:[%s3358 + $0x8c] sm:$0xf]
    %v3395 = vld [vmem:[%s3358 + $0x90] sm:$0xf]
    %v3396 = vld [vmem:[%s3358 + $0x94] sm:$0xf]
    %v3397 = vld [vmem:[%s3358 + $0x98] sm:$0xf]
    %v3398 = vld [vmem:[%s3358 + $0x9c] sm:$0xf]
    %v3399 = vld [vmem:[%s3358 + $0xa0] sm:$0xf]
    %v3400 = vld [vmem:[%s3358 + $0xa4] sm:$0xf]
    %v3401 = vld [vmem:[%s3358 + $0xa8] sm:$0xf]
    %v3402 = vld [vmem:[%s3358 + $0xac] sm:$0xf]
    %v3403 = vld [vmem:[%s3358 + $0xb0] sm:$0xf]
    %v3404 = vld [vmem:[%s3358 + $0xb4] sm:$0xf]
    %v3405 = vld [vmem:[%s3358 + $0xb8] sm:$0xf]
    %v3406 = vld [vmem:[%s3358 + $0xbc] sm:$0xf]
    %v3407 = vld [vmem:[%s3358 + $0xc0] sm:$0xf]
    %v3408 = vld [vmem:[%s3358 + $0xc4] sm:$0xf]
    %v3409 = vld [vmem:[%s3358 + $0xc8] sm:$0xf]
    %v3410 = vld [vmem:[%s3358 + $0xcc] sm:$0xf]
    %v3411 = vld [vmem:[%s3358 + $0xd0] sm:$0xf]
    %v3412 = vld [vmem:[%s3358 + $0xd4] sm:$0xf]
    %v3413 = vld [vmem:[%s3358 + $0xd8] sm:$0xf]
    %v3414 = vld [vmem:[%s3358 + $0xdc] sm:$0xf]
    %v3415 = vld [vmem:[%s3358 + $0xe0] sm:$0xf]
    %v3416 = vld [vmem:[%s3358 + $0xe4] sm:$0xf]
    %v3417 = vld [vmem:[%s3358 + $0xe8] sm:$0xf]
    %v3418 = vld [vmem:[%s3358 + $0xec] sm:$0xf]
    %v3419 = vld [vmem:[%s3358 + $0xf0] sm:$0xf]
    %v3420 = vld [vmem:[%s3358 + $0xf4] sm:$0xf]
    %v3421 = vld [vmem:[%s3358 + $0xf8] sm:$0xf]
    %v3422 = vld [vmem:[%s3358 + $0xfc] sm:$0xf]
    %v3487 = vunpack.c.l.b16 %v3359
    %v3488 = vunpack.c.l.b16 %v3360
    %v3489 = vunpack.c.l.b16 %v3361
    %v3490 = vunpack.c.l.b16 %v3362
    %v3491 = vunpack.c.l.b16 %v3363
    %v3492 = vunpack.c.l.b16 %v3364
    %v3493 = vunpack.c.l.b16 %v3365
    %v3494 = vunpack.c.l.b16 %v3366
    %v3495 = vunpack.c.l.b16 %v3367
    %v3496 = vunpack.c.l.b16 %v3368
    %v3497 = vunpack.c.l.b16 %v3369
    %v3498 = vunpack.c.l.b16 %v3370
    %v3499 = vunpack.c.l.b16 %v3371
    %v3500 = vunpack.c.l.b16 %v3372
    %v3501 = vunpack.c.l.b16 %v3373
    %v3502 = vunpack.c.l.b16 %v3374
    %v3503 = vunpack.c.l.b16 %v3375
    %v3504 = vunpack.c.l.b16 %v3376
    %v3505 = vunpack.c.l.b16 %v3377
    %v3506 = vunpack.c.l.b16 %v3378
    %v3507 = vunpack.c.l.b16 %v3379
    %v3508 = vunpack.c.l.b16 %v3380
    %v3509 = vunpack.c.l.b16 %v3381
    %v3510 = vunpack.c.l.b16 %v3382
    %v3511 = vunpack.c.l.b16 %v3383
    %v3512 = vunpack.c.l.b16 %v3384
    %v3513 = vunpack.c.l.b16 %v3385
    %v3514 = vunpack.c.l.b16 %v3386
    %v3515 = vunpack.c.l.b16 %v3387
    %v3516 = vunpack.c.l.b16 %v3388
    %v3517 = vunpack.c.l.b16 %v3389
    %v3518 = vunpack.c.l.b16 %v3390
    %v3519 = vunpack.c.l.b16 %v3391
    %v3520 = vunpack.c.l.b16 %v3392
    %v3521 = vunpack.c.l.b16 %v3393
    %v3522 = vunpack.c.l.b16 %v3394
    %v3523 = vunpack.c.l.b16 %v3395
    %v3524 = vunpack.c.l.b16 %v3396
    %v3525 = vunpack.c.l.b16 %v3397
    %v3526 = vunpack.c.l.b16 %v3398
    %v3527 = vunpack.c.l.b16 %v3399
    %v3528 = vunpack.c.l.b16 %v3400
    %v3529 = vunpack.c.l.b16 %v3401
    %v3530 = vunpack.c.l.b16 %v3402
    %v3531 = vunpack.c.l.b16 %v3403
    %v3532 = vunpack.c.l.b16 %v3404
    %v3533 = vunpack.c.l.b16 %v3405
    %v3534 = vunpack.c.l.b16 %v3406
    %v3535 = vunpack.c.l.b16 %v3407
    %v3536 = vunpack.c.l.b16 %v3408
    %v3537 = vunpack.c.l.b16 %v3409
    %v3538 = vunpack.c.l.b16 %v3410
    %v3539 = vunpack.c.l.b16 %v3411
    %v3540 = vunpack.c.l.b16 %v3412
    %v3541 = vunpack.c.l.b16 %v3413
    %v3542 = vunpack.c.l.b16 %v3414
    %v3543 = vunpack.c.l.b16 %v3415
    %v3544 = vunpack.c.l.b16 %v3416
    %v3545 = vunpack.c.l.b16 %v3417
    %v3546 = vunpack.c.l.b16 %v3418
    %v3547 = vunpack.c.l.b16 %v3419
    %v3548 = vunpack.c.l.b16 %v3420
    %v3549 = vunpack.c.l.b16 %v3421
    %v3550 = vunpack.c.l.b16 %v3422
    %v3551 = vpack.c.b16 %v3488, %v3487
    %v3552 = vpack.c.b16 %v3490, %v3489
    %v3553 = vpack.c.b16 %v3492, %v3491
    %v3554 = vpack.c.b16 %v3494, %v3493
    %v3555 = vpack.c.b16 %v3496, %v3495
    %v3556 = vpack.c.b16 %v3498, %v3497
    %v3557 = vpack.c.b16 %v3500, %v3499
    %v3558 = vpack.c.b16 %v3502, %v3501
    %v3559 = vpack.c.b16 %v3504, %v3503
    %v3560 = vpack.c.b16 %v3506, %v3505
    %v3561 = vpack.c.b16 %v3508, %v3507
    %v3562 = vpack.c.b16 %v3510, %v3509
    %v3563 = vpack.c.b16 %v3512, %v3511
    %v3564 = vpack.c.b16 %v3514, %v3513
    %v3565 = vpack.c.b16 %v3516, %v3515
    %v3566 = vpack.c.b16 %v3518, %v3517
    %v3567 = vpack.c.b16 %v3520, %v3519
    %v3568 = vpack.c.b16 %v3522, %v3521
    %v3569 = vpack.c.b16 %v3524, %v3523
    %v3570 = vpack.c.b16 %v3526, %v3525
    %v3571 = vpack.c.b16 %v3528, %v3527
    %v3572 = vpack.c.b16 %v3530, %v3529
    %v3573 = vpack.c.b16 %v3532, %v3531
    %v3574 = vpack.c.b16 %v3534, %v3533
    %v3575 = vpack.c.b16 %v3536, %v3535
    %v3576 = vpack.c.b16 %v3538, %v3537
    %v3577 = vpack.c.b16 %v3540, %v3539
    %v3578 = vpack.c.b16 %v3542, %v3541
    %v3579 = vpack.c.b16 %v3544, %v3543
    %v3580 = vpack.c.b16 %v3546, %v3545
    %v3581 = vpack.c.b16 %v3548, %v3547
    %v3582 = vpack.c.b16 %v3550, %v3549
    %3615 = vmatprep.subr.bf16.mxu0 0
    %3616 = vmatpush1.bf16.msra.mxu0 %v3558
    %3617 = vmatprep.subr.bf16.mxu0 0
    %3618 = vmatpush1.bf16.msra.mxu0 %v3557
    %3619 = vmatprep.subr.bf16.mxu0 0
    %3620 = vmatpush1.bf16.msra.mxu0 %v3556
    %3621 = vmatprep.subr.bf16.mxu0 0
    %3622 = vmatpush1.bf16.msra.mxu0 %v3555
    %3623 = vmatprep.subr.bf16.mxu0 0
    %3624 = vmatpush1.bf16.msra.mxu0 %v3554
    %3625 = vmatprep.subr.bf16.mxu0 0
    %3626 = vmatpush1.bf16.msra.mxu0 %v3553
    %3627 = vmatprep.subr.bf16.mxu0 0
    %3628 = vmatpush1.bf16.msra.mxu0 %v3552
    %3629 = vmatprep.subr.bf16.mxu0 0
    %3630 = vmatpush1.bf16.msra.mxu0 %v3551
    %3631 = vmatprep.subr.bf16.mxu0 0
    %3632 = vmatpush2.bf16.msra.mxu0 %v3566
    %3633 = vmatprep.subr.bf16.mxu0 0
    %3634 = vmatpush2.bf16.msra.mxu0 %v3565
    %3635 = vmatprep.subr.bf16.mxu0 0
    %3636 = vmatpush2.bf16.msra.mxu0 %v3564
    %3637 = vmatprep.subr.bf16.mxu0 0
    %3638 = vmatpush2.bf16.msra.mxu0 %v3563
    %3639 = vmatprep.subr.bf16.mxu0 0
    %3640 = vmatpush2.bf16.msra.mxu0 %v3562
    %3641 = vmatprep.subr.bf16.mxu0 0
    %3642 = vmatpush2.bf16.msra.mxu0 %v3561
    %3643 = vmatprep.subr.bf16.mxu0 0
    %3644 = vmatpush2.bf16.msra.mxu0 %v3560
    %3645 = vmatprep.subr.bf16.mxu0 0
    %3646 = vmatpush2.bf16.msra.mxu0 %v3559
    %3647 = vmatprep.mubr.bf16.mxu0 %v1735
    %3648 = vmatmul.mubr.bf16.gmra.mxu0 %v3302
    %v3649 = vpop.f32.mrf.mxu0
    %v3650 = vadd.f32 0.0, %v3649
    %v3651 = vpop.f32.mrf.mxu0
    %v3652 = vpop.f32.mrf.mxu0
    %v3653 = vadd.f32 0.0, %v3652
    %v3654 = vpop.f32.mrf.mxu0
    %3655 = vmatprep.mubr.bf16.mxu0 %v1736
    %3656 = vmatmul.mubr.bf16.gmra.mxu0 %v3303
    %v3657 = vpop.f32.mrf.mxu0
    %v3658 = vadd.f32 0.0, %v3657
    %v3659 = vpop.f32.mrf.mxu0
    %v3660 = vpop.f32.mrf.mxu0
    %v3661 = vadd.f32 0.0, %v3660
    %v3662 = vpop.f32.mrf.mxu0
    %3663 = vmatprep.mubr.bf16.mxu0 %v1737
    %3664 = vmatmul.mubr.bf16.gmra.mxu0 %v3304
    %v3665 = vpop.f32.mrf.mxu0
    %v3666 = vadd.f32 0.0, %v3665
    %v3667 = vpop.f32.mrf.mxu0
    %v3668 = vpop.f32.mrf.mxu0
    %v3669 = vadd.f32 0.0, %v3668
    %v3670 = vpop.f32.mrf.mxu0
    %3671 = vmatprep.mubr.bf16.mxu0 %v1738
    %3672 = vmatmul.mubr.bf16.gmra.mxu0 %v3305
    %v3673 = vpop.f32.mrf.mxu0
    %v3674 = vadd.f32 0.0, %v3673
    %v3675 = vpop.f32.mrf.mxu0
    %v3676 = vpop.f32.mrf.mxu0
    %v3677 = vadd.f32 0.0, %v3676
    %v3678 = vpop.f32.mrf.mxu0
    %3679 = vmatprep.mubr.bf16.mxu0 %v1739
    %3680 = vmatmul.mubr.bf16.gmra.mxu0 %v3306
    %v3681 = vpop.f32.mrf.mxu0
    %v3682 = vadd.f32 0.0, %v3681
    %v3683 = vpop.f32.mrf.mxu0
    %v3684 = vpop.f32.mrf.mxu0
    %v3685 = vadd.f32 0.0, %v3684
    %v3686 = vpop.f32.mrf.mxu0
    %3687 = vmatprep.mubr.bf16.mxu0 %v1740
    %3688 = vmatmul.mubr.bf16.gmra.mxu0 %v3307
    %v3689 = vpop.f32.mrf.mxu0
    %v3690 = vadd.f32 0.0, %v3689
    %v3691 = vpop.f32.mrf.mxu0
    %v3692 = vpop.f32.mrf.mxu0
    %v3693 = vadd.f32 0.0, %v3692
    %v3694 = vpop.f32.mrf.mxu0
    %3695 = vmatprep.mubr.bf16.mxu0 %v1741
    %3696 = vmatmul.mubr.bf16.gmra.mxu0 %v3308
    %v3697 = vpop.f32.mrf.mxu0
    %v3698 = vadd.f32 0.0, %v3697
    %v3699 = vpop.f32.mrf.mxu0
    %v3700 = vpop.f32.mrf.mxu0
    %v3701 = vadd.f32 0.0, %v3700
    %v3702 = vpop.f32.mrf.mxu0
    %3703 = vmatprep.mubr.bf16.mxu0 %v1742
    %3704 = vmatmul.mubr.bf16.gmra.mxu0 %v3309
    %v3705 = vpop.f32.mrf.mxu0
    %v3706 = vadd.f32 0.0, %v3705
    %v3707 = vpop.f32.mrf.mxu0
    %v3708 = vpop.f32.mrf.mxu0
    %v3709 = vadd.f32 0.0, %v3708
    %v3710 = vpop.f32.mrf.mxu0
    %3711 = vdwg.mxu0
    %3712 = vmatprep.subr.bf16.mxu0 0
    %3713 = vmatpush1.bf16.msra.mxu0 %v3574
    %3714 = vmatprep.subr.bf16.mxu0 0
    %3715 = vmatpush1.bf16.msra.mxu0 %v3573
    %3716 = vmatprep.subr.bf16.mxu0 0
    %3717 = vmatpush1.bf16.msra.mxu0 %v3572
    %3718 = vmatprep.subr.bf16.mxu0 0
    %3719 = vmatpush1.bf16.msra.mxu0 %v3571
    %3720 = vmatprep.subr.bf16.mxu0 0
    %3721 = vmatpush1.bf16.msra.mxu0 %v3570
    %3722 = vmatprep.subr.bf16.mxu0 0
    %3723 = vmatpush1.bf16.msra.mxu0 %v3569
    %3724 = vmatprep.subr.bf16.mxu0 0
    %3725 = vmatpush1.bf16.msra.mxu0 %v3568
    %3726 = vmatprep.subr.bf16.mxu0 0
    %3727 = vmatpush1.bf16.msra.mxu0 %v3567
    %3728 = vmatprep.subr.bf16.mxu0 0
    %3729 = vmatpush2.bf16.msra.mxu0 %v3582
    %3730 = vmatprep.subr.bf16.mxu0 0
    %3731 = vmatpush2.bf16.msra.mxu0 %v3581
    %3732 = vmatprep.subr.bf16.mxu0 0
    %3733 = vmatpush2.bf16.msra.mxu0 %v3580
    %3734 = vmatprep.subr.bf16.mxu0 0
    %3735 = vmatpush2.bf16.msra.mxu0 %v3579
    %3736 = vmatprep.subr.bf16.mxu0 0
    %3737 = vmatpush2.bf16.msra.mxu0 %v3578
    %3738 = vmatprep.subr.bf16.mxu0 0
    %3739 = vmatpush2.bf16.msra.mxu0 %v3577
    %3740 = vmatprep.subr.bf16.mxu0 0
    %3741 = vmatpush2.bf16.msra.mxu0 %v3576
    %3742 = vmatprep.subr.bf16.mxu0 0
    %3743 = vmatpush2.bf16.msra.mxu0 %v3575
    %3744 = vmatprep.mubr.bf16.mxu0 %v3350
    %3745 = vmatmul.mubr.bf16.gmra.mxu0 %v3326
    %v3746 = vpop.f32.mrf.mxu0
    %v3747 = vadd.f32 %v3650, %v3746
    %v3748 = vpop.f32.mrf.mxu0
    %v3749 = vpop.f32.mrf.mxu0
    %v3750 = vadd.f32 %v3653, %v3749
    %v3751 = vpop.f32.mrf.mxu0
    %3752 = vmatprep.mubr.bf16.mxu0 %v3351
    %3753 = vmatmul.mubr.bf16.gmra.mxu0 %v3327
    %v3754 = vpop.f32.mrf.mxu0
    %v3755 = vadd.f32 %v3658, %v3754
    %v3756 = vpop.f32.mrf.mxu0
    %v3757 = vpop.f32.mrf.mxu0
    %v3758 = vadd.f32 %v3661, %v3757
    %v3759 = vpop.f32.mrf.mxu0
    %3760 = vmatprep.mubr.bf16.mxu0 %v3352
    %3761 = vmatmul.mubr.bf16.gmra.mxu0 %v3328
    %v3762 = vpop.f32.mrf.mxu0
    %v3763 = vadd.f32 %v3666, %v3762
    %v3764 = vpop.f32.mrf.mxu0
    %v3765 = vpop.f32.mrf.mxu0
    %v3766 = vadd.f32 %v3669, %v3765
    %v3767 = vpop.f32.mrf.mxu0
    %3768 = vmatprep.mubr.bf16.mxu0 %v3353
    %3769 = vmatmul.mubr.bf16.gmra.mxu0 %v3329
    %v3770 = vpop.f32.mrf.mxu0
    %v3771 = vadd.f32 %v3674, %v3770
    %v3772 = vpop.f32.mrf.mxu0
    %v3773 = vpop.f32.mrf.mxu0
    %v3774 = vadd.f32 %v3677, %v3773
    %v3775 = vpop.f32.mrf.mxu0
    %3776 = vmatprep.mubr.bf16.mxu0 %v3354
    %3777 = vmatmul.mubr.bf16.gmra.mxu0 %v3330
    %v3778 = vpop.f32.mrf.mxu0
    %v3779 = vadd.f32 %v3682, %v3778
    %v3780 = vpop.f32.mrf.mxu0
    %v3781 = vpop.f32.mrf.mxu0
    %v3782 = vadd.f32 %v3685, %v3781
    %v3783 = vpop.f32.mrf.mxu0
    %3784 = vmatprep.mubr.bf16.mxu0 %v3355
    %3785 = vmatmul.mubr.bf16.gmra.mxu0 %v3331
    %v3786 = vpop.f32.mrf.mxu0
    %v3787 = vadd.f32 %v3690, %v3786
    %v3788 = vpop.f32.mrf.mxu0
    %v3789 = vpop.f32.mrf.mxu0
    %v3790 = vadd.f32 %v3693, %v3789
    %v3791 = vpop.f32.mrf.mxu0
    %3792 = vmatprep.mubr.bf16.mxu0 %v3356
    %3793 = vmatmul.mubr.bf16.gmra.mxu0 %v3332
    %v3794 = vpop.f32.mrf.mxu0
    %v3795 = vadd.f32 %v3698, %v3794
    %v3796 = vpop.f32.mrf.mxu0
    %v3797 = vpop.f32.mrf.mxu0
    %v3798 = vadd.f32 %v3701, %v3797
    %v3799 = vpop.f32.mrf.mxu0
    %3800 = vmatprep.mubr.bf16.mxu0 %v3357
    %3801 = vmatmul.mubr.bf16.gmra.mxu0 %v3333
    %v3802 = vpop.f32.mrf.mxu0
    %v3803 = vadd.f32 %v3706, %v3802
    %v3804 = vpop.f32.mrf.mxu0
    %v3805 = vpop.f32.mrf.mxu0
    %v3806 = vadd.f32 %v3709, %v3805
    %v3807 = vpop.f32.mrf.mxu0
    %3808 = vdwg.mxu0
    %v3873 = vunpack.c.l.b16 %v3190
    %v3874 = vunpack.c.l.b16 %v3191
    %v3875 = vunpack.c.l.b16 %v3192
    %v3876 = vunpack.c.l.b16 %v3193
    %v3877 = vunpack.c.l.b16 %v3194
    %v3878 = vunpack.c.l.b16 %v3195
    %v3879 = vunpack.c.l.b16 %v3196
    %v3880 = vunpack.c.l.b16 %v3197
    %v3881 = vunpack.c.l.b16 %v3198
    %v3882 = vunpack.c.l.b16 %v3199
    %v3883 = vunpack.c.l.b16 %v3200
    %v3884 = vunpack.c.l.b16 %v3201
    %v3885 = vunpack.c.l.b16 %v3202
    %v3886 = vunpack.c.l.b16 %v3203
    %v3887 = vunpack.c.l.b16 %v3204
    %v3888 = vunpack.c.l.b16 %v3205
    %v3889 = vunpack.c.l.b16 %v3206
    %v3890 = vunpack.c.l.b16 %v3207
    %v3891 = vunpack.c.l.b16 %v3208
    %v3892 = vunpack.c.l.b16 %v3209
    %v3893 = vunpack.c.l.b16 %v3210
    %v3894 = vunpack.c.l.b16 %v3211
    %v3895 = vunpack.c.l.b16 %v3212
    %v3896 = vunpack.c.l.b16 %v3213
    %v3897 = vunpack.c.l.b16 %v3214
    %v3898 = vunpack.c.l.b16 %v3215
    %v3899 = vunpack.c.l.b16 %v3216
    %v3900 = vunpack.c.l.b16 %v3217
    %v3901 = vunpack.c.l.b16 %v3218
    %v3902 = vunpack.c.l.b16 %v3219
    %v3903 = vunpack.c.l.b16 %v3220
    %v3904 = vunpack.c.l.b16 %v3221
    %v3905 = vunpack.c.l.b16 %v3222
    %v3906 = vunpack.c.l.b16 %v3223
    %v3907 = vunpack.c.l.b16 %v3224
    %v3908 = vunpack.c.l.b16 %v3225
    %v3909 = vunpack.c.l.b16 %v3226
    %v3910 = vunpack.c.l.b16 %v3227
    %v3911 = vunpack.c.l.b16 %v3228
    %v3912 = vunpack.c.l.b16 %v3229
    %v3913 = vunpack.c.l.b16 %v3230
    %v3914 = vunpack.c.l.b16 %v3231
    %v3915 = vunpack.c.l.b16 %v3232
    %v3916 = vunpack.c.l.b16 %v3233
    %v3917 = vunpack.c.l.b16 %v3234
    %v3918 = vunpack.c.l.b16 %v3235
    %v3919 = vunpack.c.l.b16 %v3236
    %v3920 = vunpack.c.l.b16 %v3237
    %v3921 = vunpack.c.l.b16 %v3238
    %v3922 = vunpack.c.l.b16 %v3239
    %v3923 = vunpack.c.l.b16 %v3240
    %v3924 = vunpack.c.l.b16 %v3241
    %v3925 = vunpack.c.l.b16 %v3242
    %v3926 = vunpack.c.l.b16 %v3243
    %v3927 = vunpack.c.l.b16 %v3244
    %v3928 = vunpack.c.l.b16 %v3245
    %v3929 = vunpack.c.l.b16 %v3246
    %v3930 = vunpack.c.l.b16 %v3247
    %v3931 = vunpack.c.l.b16 %v3248
    %v3932 = vunpack.c.l.b16 %v3249
    %v3933 = vunpack.c.l.b16 %v3250
    %v3934 = vunpack.c.l.b16 %v3251
    %v3935 = vunpack.c.l.b16 %v3252
    %v3936 = vunpack.c.l.b16 %v3253
    %v3937 = vpack.c.b16 %v3874, %v3873
    %v3938 = vpack.c.b16 %v3876, %v3875
    %v3939 = vpack.c.b16 %v3878, %v3877
    %v3940 = vpack.c.b16 %v3880, %v3879
    %v3941 = vpack.c.b16 %v3882, %v3881
    %v3942 = vpack.c.b16 %v3884, %v3883
    %v3943 = vpack.c.b16 %v3886, %v3885
    %v3944 = vpack.c.b16 %v3888, %v3887
    %v3945 = vpack.c.b16 %v3890, %v3889
    %v3946 = vpack.c.b16 %v3892, %v3891
    %v3947 = vpack.c.b16 %v3894, %v3893
    %v3948 = vpack.c.b16 %v3896, %v3895
    %v3949 = vpack.c.b16 %v3898, %v3897
    %v3950 = vpack.c.b16 %v3900, %v3899
    %v3951 = vpack.c.b16 %v3902, %v3901
    %v3952 = vpack.c.b16 %v3904, %v3903
    %v3953 = vpack.c.b16 %v3906, %v3905
    %v3954 = vpack.c.b16 %v3908, %v3907
    %v3955 = vpack.c.b16 %v3910, %v3909
    %v3956 = vpack.c.b16 %v3912, %v3911
    %v3957 = vpack.c.b16 %v3914, %v3913
    %v3958 = vpack.c.b16 %v3916, %v3915
    %v3959 = vpack.c.b16 %v3918, %v3917
    %v3960 = vpack.c.b16 %v3920, %v3919
    %v3961 = vpack.c.b16 %v3922, %v3921
    %v3962 = vpack.c.b16 %v3924, %v3923
    %v3963 = vpack.c.b16 %v3926, %v3925
    %v3964 = vpack.c.b16 %v3928, %v3927
    %v3965 = vpack.c.b16 %v3930, %v3929
    %v3966 = vpack.c.b16 %v3932, %v3931
    %v3967 = vpack.c.b16 %v3934, %v3933
    %v3968 = vpack.c.b16 %v3936, %v3935
    %4001 = vmatprep.subr.bf16.mxu0 0
    %4002 = vmatpush1.bf16.msra.mxu0 %v3944
    %4003 = vmatprep.subr.bf16.mxu0 0
    %4004 = vmatpush1.bf16.msra.mxu0 %v3943
    %4005 = vmatprep.subr.bf16.mxu0 0
    %4006 = vmatpush1.bf16.msra.mxu0 %v3942
    %4007 = vmatprep.subr.bf16.mxu0 0
    %4008 = vmatpush1.bf16.msra.mxu0 %v3941
    %4009 = vmatprep.subr.bf16.mxu0 0
    %4010 = vmatpush1.bf16.msra.mxu0 %v3940
    %4011 = vmatprep.subr.bf16.mxu0 0
    %4012 = vmatpush1.bf16.msra.mxu0 %v3939
    %4013 = vmatprep.subr.bf16.mxu0 0
    %4014 = vmatpush1.bf16.msra.mxu0 %v3938
    %4015 = vmatprep.subr.bf16.mxu0 0
    %4016 = vmatpush1.bf16.msra.mxu0 %v3937
    %4017 = vmatprep.subr.bf16.mxu0 0
    %4018 = vmatpush2.bf16.msra.mxu0 %v3952
    %4019 = vmatprep.subr.bf16.mxu0 0
    %4020 = vmatpush2.bf16.msra.mxu0 %v3951
    %4021 = vmatprep.subr.bf16.mxu0 0
    %4022 = vmatpush2.bf16.msra.mxu0 %v3950
    %4023 = vmatprep.subr.bf16.mxu0 0
    %4024 = vmatpush2.bf16.msra.mxu0 %v3949
    %4025 = vmatprep.subr.bf16.mxu0 0
    %4026 = vmatpush2.bf16.msra.mxu0 %v3948
    %4027 = vmatprep.subr.bf16.mxu0 0
    %4028 = vmatpush2.bf16.msra.mxu0 %v3947
    %4029 = vmatprep.subr.bf16.mxu0 0
    %4030 = vmatpush2.bf16.msra.mxu0 %v3946
    %4031 = vmatprep.subr.bf16.mxu0 0
    %4032 = vmatpush2.bf16.msra.mxu0 %v3945
    %4033 = vmatprep.mubr.bf16.mxu0 %v3134
    %4034 = vmatmul.mubr.bf16.gmra.mxu0 %v963
    %v4035 = vpop.f32.mrf.mxu0
    %v4036 = vadd.f32 %v3747, %v4035
    %v4037 = vpop.f32.mrf.mxu0
    %v4038 = vpop.f32.mrf.mxu0
    %v4039 = vadd.f32 %v3750, %v4038
    %v4040 = vpop.f32.mrf.mxu0
    %4041 = vmatprep.mubr.bf16.mxu0 %v3135
    %4042 = vmatmul.mubr.bf16.gmra.mxu0 %v964
    %v4043 = vpop.f32.mrf.mxu0
    %v4044 = vadd.f32 %v3755, %v4043
    %v4045 = vpop.f32.mrf.mxu0
    %v4046 = vpop.f32.mrf.mxu0
    %v4047 = vadd.f32 %v3758, %v4046
    %v4048 = vpop.f32.mrf.mxu0
    %4049 = vmatprep.mubr.bf16.mxu0 %v3136
    %4050 = vmatmul.mubr.bf16.gmra.mxu0 %v965
    %v4051 = vpop.f32.mrf.mxu0
    %v4052 = vadd.f32 %v3763, %v4051
    %v4053 = vpop.f32.mrf.mxu0
    %v4054 = vpop.f32.mrf.mxu0
    %v4055 = vadd.f32 %v3766, %v4054
    %v4056 = vpop.f32.mrf.mxu0
    %4057 = vmatprep.mubr.bf16.mxu0 %v3137
    %4058 = vmatmul.mubr.bf16.gmra.mxu0 %v966
    %v4059 = vpop.f32.mrf.mxu0
    %v4060 = vadd.f32 %v3771, %v4059
    %v4061 = vpop.f32.mrf.mxu0
    %v4062 = vpop.f32.mrf.mxu0
    %v4063 = vadd.f32 %v3774, %v4062
    %v4064 = vpop.f32.mrf.mxu0
    %4065 = vmatprep.mubr.bf16.mxu0 %v3138
    %4066 = vmatmul.mubr.bf16.gmra.mxu0 %v967
    %v4067 = vpop.f32.mrf.mxu0
    %v4068 = vadd.f32 %v3779, %v4067
    %v4069 = vpop.f32.mrf.mxu0
    %v4070 = vpop.f32.mrf.mxu0
    %v4071 = vadd.f32 %v3782, %v4070
    %v4072 = vpop.f32.mrf.mxu0
    %4073 = vmatprep.mubr.bf16.mxu0 %v3139
    %4074 = vmatmul.mubr.bf16.gmra.mxu0 %v968
    %v4075 = vpop.f32.mrf.mxu0
    %v4076 = vadd.f32 %v3787, %v4075
    %v4077 = vpop.f32.mrf.mxu0
    %v4078 = vpop.f32.mrf.mxu0
    %v4079 = vadd.f32 %v3790, %v4078
    %v4080 = vpop.f32.mrf.mxu0
    %4081 = vmatprep.mubr.bf16.mxu0 %v3140
    %4082 = vmatmul.mubr.bf16.gmra.mxu0 %v969
    %v4083 = vpop.f32.mrf.mxu0
    %v4084 = vadd.f32 %v3795, %v4083
    %v4085 = vpop.f32.mrf.mxu0
    %v4086 = vpop.f32.mrf.mxu0
    %v4087 = vadd.f32 %v3798, %v4086
    %v4088 = vpop.f32.mrf.mxu0
    %4089 = vmatprep.mubr.bf16.mxu0 %v3141
    %4090 = vmatmul.mubr.bf16.gmra.mxu0 %v970
    %v4091 = vpop.f32.mrf.mxu0
    %v4092 = vadd.f32 %v3803, %v4091
    %v4093 = vpop.f32.mrf.mxu0
    %v4094 = vpop.f32.mrf.mxu0
    %v4095 = vadd.f32 %v3806, %v4094
    %v4096 = vpop.f32.mrf.mxu0
    %4097 = vdwg.mxu0
    %4098 = vmatprep.subr.bf16.mxu0 0
    %4099 = vmatpush1.bf16.msra.mxu0 %v3960
    %4100 = vmatprep.subr.bf16.mxu0 0
    %4101 = vmatpush1.bf16.msra.mxu0 %v3959
    %4102 = vmatprep.subr.bf16.mxu0 0
    %4103 = vmatpush1.bf16.msra.mxu0 %v3958
    %4104 = vmatprep.subr.bf16.mxu0 0
    %4105 = vmatpush1.bf16.msra.mxu0 %v3957
    %4106 = vmatprep.subr.bf16.mxu0 0
    %4107 = vmatpush1.bf16.msra.mxu0 %v3956
    %4108 = vmatprep.subr.bf16.mxu0 0
    %4109 = vmatpush1.bf16.msra.mxu0 %v3955
    %4110 = vmatprep.subr.bf16.mxu0 0
    %4111 = vmatpush1.bf16.msra.mxu0 %v3954
    %4112 = vmatprep.subr.bf16.mxu0 0
    %4113 = vmatpush1.bf16.msra.mxu0 %v3953
    %4114 = vmatprep.subr.bf16.mxu0 0
    %4115 = vmatpush2.bf16.msra.mxu0 %v3968
    %4116 = vmatprep.subr.bf16.mxu0 0
    %4117 = vmatpush2.bf16.msra.mxu0 %v3967
    %4118 = vmatprep.subr.bf16.mxu0 0
    %4119 = vmatpush2.bf16.msra.mxu0 %v3966
    %4120 = vmatprep.subr.bf16.mxu0 0
    %4121 = vmatpush2.bf16.msra.mxu0 %v3965
    %4122 = vmatprep.subr.bf16.mxu0 0
    %4123 = vmatpush2.bf16.msra.mxu0 %v3964
    %4124 = vmatprep.subr.bf16.mxu0 0
    %4125 = vmatpush2.bf16.msra.mxu0 %v3963
    %4126 = vmatprep.subr.bf16.mxu0 0
    %4127 = vmatpush2.bf16.msra.mxu0 %v3962
    %4128 = vmatprep.subr.bf16.mxu0 0
    %4129 = vmatpush2.bf16.msra.mxu0 %v3961
    %4130 = vmatprep.mubr.bf16.mxu0 %v3182
    %4131 = vmatmul.mubr.bf16.gmra.mxu0 %v3158
    %v4132 = vpop.f32.mrf.mxu0
    %v4133 = vadd.f32 %v4036, %v4132
    %v4134 = vpop.f32.mrf.mxu0
    %v4135 = vpop.f32.mrf.mxu0
    %v4136 = vadd.f32 %v4039, %v4135
    %v4137 = vpop.f32.mrf.mxu0
    %4138 = vmatprep.mubr.bf16.mxu0 %v3183
    %4139 = vmatmul.mubr.bf16.gmra.mxu0 %v3159
    %v4140 = vpop.f32.mrf.mxu0
    %v4141 = vadd.f32 %v4044, %v4140
    %v4142 = vpop.f32.mrf.mxu0
    %v4143 = vpop.f32.mrf.mxu0
    %v4144 = vadd.f32 %v4047, %v4143
    %v4145 = vpop.f32.mrf.mxu0
    %4146 = vmatprep.mubr.bf16.mxu0 %v3184
    %4147 = vmatmul.mubr.bf16.gmra.mxu0 %v3160
    %v4148 = vpop.f32.mrf.mxu0
    %v4149 = vadd.f32 %v4052, %v4148
    %v4150 = vpop.f32.mrf.mxu0
    %v4151 = vpop.f32.mrf.mxu0
    %v4152 = vadd.f32 %v4055, %v4151
    %v4153 = vpop.f32.mrf.mxu0
    %4154 = vmatprep.mubr.bf16.mxu0 %v3185
    %4155 = vmatmul.mubr.bf16.gmra.mxu0 %v3161
    %v4156 = vpop.f32.mrf.mxu0
    %v4157 = vadd.f32 %v4060, %v4156
    %v4158 = vpop.f32.mrf.mxu0
    %v4159 = vpop.f32.mrf.mxu0
    %v4160 = vadd.f32 %v4063, %v4159
    %v4161 = vpop.f32.mrf.mxu0
    %4162 = vmatprep.mubr.bf16.mxu0 %v3186
    %4163 = vmatmul.mubr.bf16.gmra.mxu0 %v3162
    %v4164 = vpop.f32.mrf.mxu0
    %v4165 = vadd.f32 %v4068, %v4164
    %v4166 = vpop.f32.mrf.mxu0
    %v4167 = vpop.f32.mrf.mxu0
    %v4168 = vadd.f32 %v4071, %v4167
    %v4169 = vpop.f32.mrf.mxu0
    %4170 = vmatprep.mubr.bf16.mxu0 %v3187
    %4171 = vmatmul.mubr.bf16.gmra.mxu0 %v3163
    %v4172 = vpop.f32.mrf.mxu0
    %v4173 = vadd.f32 %v4076, %v4172
    %v4174 = vpop.f32.mrf.mxu0
    %v4175 = vpop.f32.mrf.mxu0
    %v4176 = vadd.f32 %v4079, %v4175
    %v4177 = vpop.f32.mrf.mxu0
    %4178 = vmatprep.mubr.bf16.mxu0 %v3188
    %4179 = vmatmul.mubr.bf16.gmra.mxu0 %v3164
    %v4180 = vpop.f32.mrf.mxu0
    %v4181 = vadd.f32 %v4084, %v4180
    %v4182 = vpop.f32.mrf.mxu0
    %v4183 = vpop.f32.mrf.mxu0
    %v4184 = vadd.f32 %v4087, %v4183
    %v4185 = vpop.f32.mrf.mxu0
    %4186 = vmatprep.mubr.bf16.mxu0 %v3189
    %4187 = vmatmul.mubr.bf16.gmra.mxu0 %v3165
    %v4188 = vpop.f32.mrf.mxu0
    %v4189 = vadd.f32 %v4092, %v4188
    %v4190 = vpop.f32.mrf.mxu0
    %v4191 = vpop.f32.mrf.mxu0
    %v4192 = vadd.f32 %v4095, %v4191
    %v4193 = vpop.f32.mrf.mxu0
    %4194 = vdwg.mxu0
    %v4195 = vsel %vm473, %v2369, 0.0
    %v4196 = vsel %vm474, %v2354, 0.0
    %v4197 = vsel %vm475, %v2355, 0.0
    %v4198 = vsel %vm476, %v2356, 0.0
    %v4199 = vsel %vm477, %v2357, 0.0
    %v4200 = vsel %vm478, %v2358, 0.0
    %v4201 = vsel %vm479, %v2359, 0.0
    %v4202 = vsel %vm480, %v2360, 0.0
    %v4203 = vsel %vm481, %v2361, 0.0
    %v4204 = vsel %vm482, %v2362, 0.0
    %v4205 = vsel %vm483, %v2363, 0.0
    %v4206 = vsel %vm484, %v2364, 0.0
    %v4207 = vsel %vm485, %v2365, 0.0
    %v4208 = vsel %vm486, %v2366, 0.0
    %v4209 = vsel %vm487, %v2367, 0.0
    %v4210 = vsel %vm488, %v2368, 0.0
    %v4211 = vpack.c.bf16 %v4196, %v4195
    %v4212 = vpack.c.bf16 %v4198, %v4197
    %v4213 = vpack.c.bf16 %v4200, %v4199
    %v4214 = vpack.c.bf16 %v4202, %v4201
    %v4215 = vpack.c.bf16 %v4204, %v4203
    %v4216 = vpack.c.bf16 %v4206, %v4205
    %v4217 = vpack.c.bf16 %v4208, %v4207
    %v4218 = vpack.c.bf16 %v4210, %v4209
    %v4219 = vrot.slane %v2354, 1
    %v4220 = vrot.slane %v2355, 1
    %v4221 = vrot.slane %v2356, 1
    %v4222 = vrot.slane %v2357, 1
    %v4223 = vrot.slane %v2358, 1
    %v4224 = vrot.slane %v2359, 1
    %v4225 = vrot.slane %v2360, 1
    %v4226 = vrot.slane %v2361, 1
    %v4227 = vrot.slane %v2362, 1
    %v4228 = vrot.slane %v2363, 1
    %v4229 = vrot.slane %v2364, 1
    %v4230 = vrot.slane %v2365, 1
    %v4231 = vrot.slane %v2366, 1
    %v4232 = vrot.slane %v2367, 1
    %v4233 = vrot.slane %v2368, 1
    %v4234 = vrot.slane %v2369, 1
    %v4235 = vsel %vm1204, %v4233, %v4234
    %v4236 = vsel %vm1204, %v4232, %v4233
    %v4237 = vsel %vm1204, %v4231, %v4232
    %v4238 = vsel %vm1204, %v4230, %v4231
    %v4239 = vsel %vm1204, %v4229, %v4230
    %v4240 = vsel %vm1204, %v4228, %v4229
    %v4241 = vsel %vm1204, %v4227, %v4228
    %v4242 = vsel %vm1204, %v4226, %v4227
    %v4243 = vsel %vm1204, %v4225, %v4226
    %v4244 = vsel %vm1204, %v4224, %v4225
    %v4245 = vsel %vm1204, %v4223, %v4224
    %v4246 = vsel %vm1204, %v4222, %v4223
    %v4247 = vsel %vm1204, %v4221, %v4222
    %v4248 = vsel %vm1204, %v4220, %v4221
    %v4249 = vsel %vm1204, %v4219, %v4220
    %v4250 = vsel %vm1204, %v4234, %v4219
    %v4251 = vsel %vm1325, %v4250, 0.0
    %v4252 = vsel %vm1326, %v4249, 0.0
    %v4253 = vsel %vm1327, %v4248, 0.0
    %v4254 = vsel %vm1328, %v4247, 0.0
    %v4255 = vsel %vm1329, %v4246, 0.0
    %v4256 = vsel %vm1330, %v4245, 0.0
    %v4257 = vsel %vm1331, %v4244, 0.0
    %v4258 = vsel %vm1332, %v4243, 0.0
    %v4259 = vsel %vm1333, %v4242, 0.0
    %v4260 = vsel %vm1334, %v4241, 0.0
    %v4261 = vsel %vm1335, %v4240, 0.0
    %v4262 = vsel %vm1336, %v4239, 0.0
    %v4263 = vsel %vm1337, %v4238, 0.0
    %v4264 = vsel %vm1338, %v4237, 0.0
    %v4265 = vsel %vm1339, %v4236, 0.0
    %v4266 = vsel %vm1340, %v4235, 0.0
    %v4267 = vpack.c.bf16 %v4252, %v4251
    %v4268 = vpack.c.bf16 %v4254, %v4253
    %v4269 = vpack.c.bf16 %v4256, %v4255
    %v4270 = vpack.c.bf16 %v4258, %v4257
    %v4271 = vpack.c.bf16 %v4260, %v4259
    %v4272 = vpack.c.bf16 %v4262, %v4261
    %v4273 = vpack.c.bf16 %v4264, %v4263
    %v4274 = vpack.c.bf16 %v4266, %v4265
    %v4275 = vsel %vm1253, %v4249, 0.0
    %v4276 = vsel %vm1254, %v4248, 0.0
    %v4277 = vsel %vm1255, %v4247, 0.0
    %v4278 = vsel %vm1256, %v4246, 0.0
    %v4279 = vsel %vm1257, %v4245, 0.0
    %v4280 = vsel %vm1258, %v4244, 0.0
    %v4281 = vsel %vm1259, %v4243, 0.0
    %v4282 = vsel %vm1260, %v4242, 0.0
    %v4283 = vsel %vm1261, %v4241, 0.0
    %v4284 = vsel %vm1262, %v4240, 0.0
    %v4285 = vsel %vm1263, %v4239, 0.0
    %v4286 = vsel %vm1264, %v4238, 0.0
    %v4287 = vsel %vm1265, %v4237, 0.0
    %v4288 = vsel %vm1266, %v4236, 0.0
    %v4289 = vsel %vm1267, %v4235, 0.0
    %v4290 = vsel %vm1268, %v4250, 0.0
    %v4291 = vpack.c.bf16 %v4276, %v4275
    %v4292 = vpack.c.bf16 %v4278, %v4277
    %v4293 = vpack.c.bf16 %v4280, %v4279
    %v4294 = vpack.c.bf16 %v4282, %v4281
    %v4295 = vpack.c.bf16 %v4284, %v4283
    %v4296 = vpack.c.bf16 %v4286, %v4285
    %v4297 = vpack.c.bf16 %v4288, %v4287
    %v4298 = vpack.c.bf16 %v4290, %v4289
    %s4299 = scalar_lea.vmem %s5, 512
    %v4300 = vld [vmem:[%s4299] sm:$0xf]
    %v4301 = vld [vmem:[%s4299 + $0x4] sm:$0xf]
    %v4302 = vld [vmem:[%s4299 + $0x8] sm:$0xf]
    %v4303 = vld [vmem:[%s4299 + $0xc] sm:$0xf]
    %v4304 = vld [vmem:[%s4299 + $0x10] sm:$0xf]
    %v4305 = vld [vmem:[%s4299 + $0x14] sm:$0xf]
    %v4306 = vld [vmem:[%s4299 + $0x18] sm:$0xf]
    %v4307 = vld [vmem:[%s4299 + $0x1c] sm:$0xf]
    %v4308 = vld [vmem:[%s4299 + $0x20] sm:$0xf]
    %v4309 = vld [vmem:[%s4299 + $0x24] sm:$0xf]
    %v4310 = vld [vmem:[%s4299 + $0x28] sm:$0xf]
    %v4311 = vld [vmem:[%s4299 + $0x2c] sm:$0xf]
    %v4312 = vld [vmem:[%s4299 + $0x30] sm:$0xf]
    %v4313 = vld [vmem:[%s4299 + $0x34] sm:$0xf]
    %v4314 = vld [vmem:[%s4299 + $0x38] sm:$0xf]
    %v4315 = vld [vmem:[%s4299 + $0x3c] sm:$0xf]
    %v4316 = vld [vmem:[%s4299 + $0x40] sm:$0xf]
    %v4317 = vld [vmem:[%s4299 + $0x44] sm:$0xf]
    %v4318 = vld [vmem:[%s4299 + $0x48] sm:$0xf]
    %v4319 = vld [vmem:[%s4299 + $0x4c] sm:$0xf]
    %v4320 = vld [vmem:[%s4299 + $0x50] sm:$0xf]
    %v4321 = vld [vmem:[%s4299 + $0x54] sm:$0xf]
    %v4322 = vld [vmem:[%s4299 + $0x58] sm:$0xf]
    %v4323 = vld [vmem:[%s4299 + $0x5c] sm:$0xf]
    %v4324 = vld [vmem:[%s4299 + $0x60] sm:$0xf]
    %v4325 = vld [vmem:[%s4299 + $0x64] sm:$0xf]
    %v4326 = vld [vmem:[%s4299 + $0x68] sm:$0xf]
    %v4327 = vld [vmem:[%s4299 + $0x6c] sm:$0xf]
    %v4328 = vld [vmem:[%s4299 + $0x70] sm:$0xf]
    %v4329 = vld [vmem:[%s4299 + $0x74] sm:$0xf]
    %v4330 = vld [vmem:[%s4299 + $0x78] sm:$0xf]
    %v4331 = vld [vmem:[%s4299 + $0x7c] sm:$0xf]
    %v4332 = vld [vmem:[%s4299 + $0x80] sm:$0xf]
    %v4333 = vld [vmem:[%s4299 + $0x84] sm:$0xf]
    %v4334 = vld [vmem:[%s4299 + $0x88] sm:$0xf]
    %v4335 = vld [vmem:[%s4299 + $0x8c] sm:$0xf]
    %v4336 = vld [vmem:[%s4299 + $0x90] sm:$0xf]
    %v4337 = vld [vmem:[%s4299 + $0x94] sm:$0xf]
    %v4338 = vld [vmem:[%s4299 + $0x98] sm:$0xf]
    %v4339 = vld [vmem:[%s4299 + $0x9c] sm:$0xf]
    %v4340 = vld [vmem:[%s4299 + $0xa0] sm:$0xf]
    %v4341 = vld [vmem:[%s4299 + $0xa4] sm:$0xf]
    %v4342 = vld [vmem:[%s4299 + $0xa8] sm:$0xf]
    %v4343 = vld [vmem:[%s4299 + $0xac] sm:$0xf]
    %v4344 = vld [vmem:[%s4299 + $0xb0] sm:$0xf]
    %v4345 = vld [vmem:[%s4299 + $0xb4] sm:$0xf]
    %v4346 = vld [vmem:[%s4299 + $0xb8] sm:$0xf]
    %v4347 = vld [vmem:[%s4299 + $0xbc] sm:$0xf]
    %v4348 = vld [vmem:[%s4299 + $0xc0] sm:$0xf]
    %v4349 = vld [vmem:[%s4299 + $0xc4] sm:$0xf]
    %v4350 = vld [vmem:[%s4299 + $0xc8] sm:$0xf]
    %v4351 = vld [vmem:[%s4299 + $0xcc] sm:$0xf]
    %v4352 = vld [vmem:[%s4299 + $0xd0] sm:$0xf]
    %v4353 = vld [vmem:[%s4299 + $0xd4] sm:$0xf]
    %v4354 = vld [vmem:[%s4299 + $0xd8] sm:$0xf]
    %v4355 = vld [vmem:[%s4299 + $0xdc] sm:$0xf]
    %v4356 = vld [vmem:[%s4299 + $0xe0] sm:$0xf]
    %v4357 = vld [vmem:[%s4299 + $0xe4] sm:$0xf]
    %v4358 = vld [vmem:[%s4299 + $0xe8] sm:$0xf]
    %v4359 = vld [vmem:[%s4299 + $0xec] sm:$0xf]
    %v4360 = vld [vmem:[%s4299 + $0xf0] sm:$0xf]
    %v4361 = vld [vmem:[%s4299 + $0xf4] sm:$0xf]
    %v4362 = vld [vmem:[%s4299 + $0xf8] sm:$0xf]
    %v4363 = vld [vmem:[%s4299 + $0xfc] sm:$0xf]
    %v4428 = vunpack.c.l.b16 %v4300
    %v4429 = vunpack.c.l.b16 %v4301
    %v4430 = vunpack.c.l.b16 %v4302
    %v4431 = vunpack.c.l.b16 %v4303
    %v4432 = vunpack.c.l.b16 %v4304
    %v4433 = vunpack.c.l.b16 %v4305
    %v4434 = vunpack.c.l.b16 %v4306
    %v4435 = vunpack.c.l.b16 %v4307
    %v4436 = vunpack.c.l.b16 %v4308
    %v4437 = vunpack.c.l.b16 %v4309
    %v4438 = vunpack.c.l.b16 %v4310
    %v4439 = vunpack.c.l.b16 %v4311
    %v4440 = vunpack.c.l.b16 %v4312
    %v4441 = vunpack.c.l.b16 %v4313
    %v4442 = vunpack.c.l.b16 %v4314
    %v4443 = vunpack.c.l.b16 %v4315
    %v4444 = vunpack.c.l.b16 %v4316
    %v4445 = vunpack.c.l.b16 %v4317
    %v4446 = vunpack.c.l.b16 %v4318
    %v4447 = vunpack.c.l.b16 %v4319
    %v4448 = vunpack.c.l.b16 %v4320
    %v4449 = vunpack.c.l.b16 %v4321
    %v4450 = vunpack.c.l.b16 %v4322
    %v4451 = vunpack.c.l.b16 %v4323
    %v4452 = vunpack.c.l.b16 %v4324
    %v4453 = vunpack.c.l.b16 %v4325
    %v4454 = vunpack.c.l.b16 %v4326
    %v4455 = vunpack.c.l.b16 %v4327
    %v4456 = vunpack.c.l.b16 %v4328
    %v4457 = vunpack.c.l.b16 %v4329
    %v4458 = vunpack.c.l.b16 %v4330
    %v4459 = vunpack.c.l.b16 %v4331
    %v4460 = vunpack.c.l.b16 %v4332
    %v4461 = vunpack.c.l.b16 %v4333
    %v4462 = vunpack.c.l.b16 %v4334
    %v4463 = vunpack.c.l.b16 %v4335
    %v4464 = vunpack.c.l.b16 %v4336
    %v4465 = vunpack.c.l.b16 %v4337
    %v4466 = vunpack.c.l.b16 %v4338
    %v4467 = vunpack.c.l.b16 %v4339
    %v4468 = vunpack.c.l.b16 %v4340
    %v4469 = vunpack.c.l.b16 %v4341
    %v4470 = vunpack.c.l.b16 %v4342
    %v4471 = vunpack.c.l.b16 %v4343
    %v4472 = vunpack.c.l.b16 %v4344
    %v4473 = vunpack.c.l.b16 %v4345
    %v4474 = vunpack.c.l.b16 %v4346
    %v4475 = vunpack.c.l.b16 %v4347
    %v4476 = vunpack.c.l.b16 %v4348
    %v4477 = vunpack.c.l.b16 %v4349
    %v4478 = vunpack.c.l.b16 %v4350
    %v4479 = vunpack.c.l.b16 %v4351
    %v4480 = vunpack.c.l.b16 %v4352
    %v4481 = vunpack.c.l.b16 %v4353
    %v4482 = vunpack.c.l.b16 %v4354
    %v4483 = vunpack.c.l.b16 %v4355
    %v4484 = vunpack.c.l.b16 %v4356
    %v4485 = vunpack.c.l.b16 %v4357
    %v4486 = vunpack.c.l.b16 %v4358
    %v4487 = vunpack.c.l.b16 %v4359
    %v4488 = vunpack.c.l.b16 %v4360
    %v4489 = vunpack.c.l.b16 %v4361
    %v4490 = vunpack.c.l.b16 %v4362
    %v4491 = vunpack.c.l.b16 %v4363
    %v4492 = vpack.c.b16 %v4429, %v4428
    %v4493 = vpack.c.b16 %v4431, %v4430
    %v4494 = vpack.c.b16 %v4433, %v4432
    %v4495 = vpack.c.b16 %v4435, %v4434
    %v4496 = vpack.c.b16 %v4437, %v4436
    %v4497 = vpack.c.b16 %v4439, %v4438
    %v4498 = vpack.c.b16 %v4441, %v4440
    %v4499 = vpack.c.b16 %v4443, %v4442
    %v4500 = vpack.c.b16 %v4445, %v4444
    %v4501 = vpack.c.b16 %v4447, %v4446
    %v4502 = vpack.c.b16 %v4449, %v4448
    %v4503 = vpack.c.b16 %v4451, %v4450
    %v4504 = vpack.c.b16 %v4453, %v4452
    %v4505 = vpack.c.b16 %v4455, %v4454
    %v4506 = vpack.c.b16 %v4457, %v4456
    %v4507 = vpack.c.b16 %v4459, %v4458
    %v4508 = vpack.c.b16 %v4461, %v4460
    %v4509 = vpack.c.b16 %v4463, %v4462
    %v4510 = vpack.c.b16 %v4465, %v4464
    %v4511 = vpack.c.b16 %v4467, %v4466
    %v4512 = vpack.c.b16 %v4469, %v4468
    %v4513 = vpack.c.b16 %v4471, %v4470
    %v4514 = vpack.c.b16 %v4473, %v4472
    %v4515 = vpack.c.b16 %v4475, %v4474
    %v4516 = vpack.c.b16 %v4477, %v4476
    %v4517 = vpack.c.b16 %v4479, %v4478
    %v4518 = vpack.c.b16 %v4481, %v4480
    %v4519 = vpack.c.b16 %v4483, %v4482
    %v4520 = vpack.c.b16 %v4485, %v4484
    %v4521 = vpack.c.b16 %v4487, %v4486
    %v4522 = vpack.c.b16 %v4489, %v4488
    %v4523 = vpack.c.b16 %v4491, %v4490
    %4556 = vmatprep.subr.bf16.mxu0 0
    %4557 = vmatpush1.bf16.msra.mxu0 %v4499
    %4558 = vmatprep.subr.bf16.mxu0 0
    %4559 = vmatpush1.bf16.msra.mxu0 %v4498
    %4560 = vmatprep.subr.bf16.mxu0 0
    %4561 = vmatpush1.bf16.msra.mxu0 %v4497
    %4562 = vmatprep.subr.bf16.mxu0 0
    %4563 = vmatpush1.bf16.msra.mxu0 %v4496
    %4564 = vmatprep.subr.bf16.mxu0 0
    %4565 = vmatpush1.bf16.msra.mxu0 %v4495
    %4566 = vmatprep.subr.bf16.mxu0 0
    %4567 = vmatpush1.bf16.msra.mxu0 %v4494
    %4568 = vmatprep.subr.bf16.mxu0 0
    %4569 = vmatpush1.bf16.msra.mxu0 %v4493
    %4570 = vmatprep.subr.bf16.mxu0 0
    %4571 = vmatpush1.bf16.msra.mxu0 %v4492
    %4572 = vmatprep.subr.bf16.mxu0 0
    %4573 = vmatpush2.bf16.msra.mxu0 %v4507
    %4574 = vmatprep.subr.bf16.mxu0 0
    %4575 = vmatpush2.bf16.msra.mxu0 %v4506
    %4576 = vmatprep.subr.bf16.mxu0 0
    %4577 = vmatpush2.bf16.msra.mxu0 %v4505
    %4578 = vmatprep.subr.bf16.mxu0 0
    %4579 = vmatpush2.bf16.msra.mxu0 %v4504
    %4580 = vmatprep.subr.bf16.mxu0 0
    %4581 = vmatpush2.bf16.msra.mxu0 %v4503
    %4582 = vmatprep.subr.bf16.mxu0 0
    %4583 = vmatpush2.bf16.msra.mxu0 %v4502
    %4584 = vmatprep.subr.bf16.mxu0 0
    %4585 = vmatpush2.bf16.msra.mxu0 %v4501
    %4586 = vmatprep.subr.bf16.mxu0 0
    %4587 = vmatpush2.bf16.msra.mxu0 %v4500
    %4588 = vmatprep.mubr.bf16.mxu0 %v4267
    %4589 = vmatmul.mubr.bf16.gmra.mxu0 %v4211
    %v4590 = vpop.f32.mrf.mxu0
    %v4591 = vadd.f32 0.0, %v4590
    %v4592 = vpop.f32.mrf.mxu0
    %v4593 = vpop.f32.mrf.mxu0
    %v4594 = vadd.f32 0.0, %v4593
    %v4595 = vpop.f32.mrf.mxu0
    %4596 = vmatprep.mubr.bf16.mxu0 %v4268
    %4597 = vmatmul.mubr.bf16.gmra.mxu0 %v4212
    %v4598 = vpop.f32.mrf.mxu0
    %v4599 = vadd.f32 0.0, %v4598
    %v4600 = vpop.f32.mrf.mxu0
    %v4601 = vpop.f32.mrf.mxu0
    %v4602 = vadd.f32 0.0, %v4601
    %v4603 = vpop.f32.mrf.mxu0
    %4604 = vmatprep.mubr.bf16.mxu0 %v4269
    %4605 = vmatmul.mubr.bf16.gmra.mxu0 %v4213
    %v4606 = vpop.f32.mrf.mxu0
    %v4607 = vadd.f32 0.0, %v4606
    %v4608 = vpop.f32.mrf.mxu0
    %v4609 = vpop.f32.mrf.mxu0
    %v4610 = vadd.f32 0.0, %v4609
    %v4611 = vpop.f32.mrf.mxu0
    %4612 = vmatprep.mubr.bf16.mxu0 %v4270
    %4613 = vmatmul.mubr.bf16.gmra.mxu0 %v4214
    %v4614 = vpop.f32.mrf.mxu0
    %v4615 = vadd.f32 0.0, %v4614
    %v4616 = vpop.f32.mrf.mxu0
    %v4617 = vpop.f32.mrf.mxu0
    %v4618 = vadd.f32 0.0, %v4617
    %v4619 = vpop.f32.mrf.mxu0
    %4620 = vmatprep.mubr.bf16.mxu0 %v4271
    %4621 = vmatmul.mubr.bf16.gmra.mxu0 %v4215
    %v4622 = vpop.f32.mrf.mxu0
    %v4623 = vadd.f32 0.0, %v4622
    %v4624 = vpop.f32.mrf.mxu0
    %v4625 = vpop.f32.mrf.mxu0
    %v4626 = vadd.f32 0.0, %v4625
    %v4627 = vpop.f32.mrf.mxu0
    %4628 = vmatprep.mubr.bf16.mxu0 %v4272
    %4629 = vmatmul.mubr.bf16.gmra.mxu0 %v4216
    %v4630 = vpop.f32.mrf.mxu0
    %v4631 = vadd.f32 0.0, %v4630
    %v4632 = vpop.f32.mrf.mxu0
    %v4633 = vpop.f32.mrf.mxu0
    %v4634 = vadd.f32 0.0, %v4633
    %v4635 = vpop.f32.mrf.mxu0
    %4636 = vmatprep.mubr.bf16.mxu0 %v4273
    %4637 = vmatmul.mubr.bf16.gmra.mxu0 %v4217
    %v4638 = vpop.f32.mrf.mxu0
    %v4639 = vadd.f32 0.0, %v4638
    %v4640 = vpop.f32.mrf.mxu0
    %v4641 = vpop.f32.mrf.mxu0
    %v4642 = vadd.f32 0.0, %v4641
    %v4643 = vpop.f32.mrf.mxu0
    %4644 = vmatprep.mubr.bf16.mxu0 %v4274
    %4645 = vmatmul.mubr.bf16.gmra.mxu0 %v4218
    %v4646 = vpop.f32.mrf.mxu0
    %v4647 = vadd.f32 0.0, %v4646
    %v4648 = vpop.f32.mrf.mxu0
    %v4649 = vpop.f32.mrf.mxu0
    %v4650 = vadd.f32 0.0, %v4649
    %v4651 = vpop.f32.mrf.mxu0
    %4652 = vdwg.mxu0
    %4653 = vmatprep.subr.bf16.mxu0 0
    %4654 = vmatpush1.bf16.msra.mxu0 %v4515
    %4655 = vmatprep.subr.bf16.mxu0 0
    %4656 = vmatpush1.bf16.msra.mxu0 %v4514
    %4657 = vmatprep.subr.bf16.mxu0 0
    %4658 = vmatpush1.bf16.msra.mxu0 %v4513
    %4659 = vmatprep.subr.bf16.mxu0 0
    %4660 = vmatpush1.bf16.msra.mxu0 %v4512
    %4661 = vmatprep.subr.bf16.mxu0 0
    %4662 = vmatpush1.bf16.msra.mxu0 %v4511
    %4663 = vmatprep.subr.bf16.mxu0 0
    %4664 = vmatpush1.bf16.msra.mxu0 %v4510
    %4665 = vmatprep.subr.bf16.mxu0 0
    %4666 = vmatpush1.bf16.msra.mxu0 %v4509
    %4667 = vmatprep.subr.bf16.mxu0 0
    %4668 = vmatpush1.bf16.msra.mxu0 %v4508
    %4669 = vmatprep.subr.bf16.mxu0 0
    %4670 = vmatpush2.bf16.msra.mxu0 %v4523
    %4671 = vmatprep.subr.bf16.mxu0 0
    %4672 = vmatpush2.bf16.msra.mxu0 %v4522
    %4673 = vmatprep.subr.bf16.mxu0 0
    %4674 = vmatpush2.bf16.msra.mxu0 %v4521
    %4675 = vmatprep.subr.bf16.mxu0 0
    %4676 = vmatpush2.bf16.msra.mxu0 %v4520
    %4677 = vmatprep.subr.bf16.mxu0 0
    %4678 = vmatpush2.bf16.msra.mxu0 %v4519
    %4679 = vmatprep.subr.bf16.mxu0 0
    %4680 = vmatpush2.bf16.msra.mxu0 %v4518
    %4681 = vmatprep.subr.bf16.mxu0 0
    %4682 = vmatpush2.bf16.msra.mxu0 %v4517
    %4683 = vmatprep.subr.bf16.mxu0 0
    %4684 = vmatpush2.bf16.msra.mxu0 %v4516
    %4685 = vmatprep.mubr.bf16.mxu0 %v4291
    %4686 = vmatmul.mubr.bf16.gmra.mxu0 %v2370
    %v4687 = vpop.f32.mrf.mxu0
    %v4688 = vadd.f32 %v4591, %v4687
    %v4689 = vpop.f32.mrf.mxu0
    %v4690 = vpop.f32.mrf.mxu0
    %v4691 = vadd.f32 %v4594, %v4690
    %v4692 = vpop.f32.mrf.mxu0
    %4693 = vmatprep.mubr.bf16.mxu0 %v4292
    %4694 = vmatmul.mubr.bf16.gmra.mxu0 %v2371
    %v4695 = vpop.f32.mrf.mxu0
    %v4696 = vadd.f32 %v4599, %v4695
    %v4697 = vpop.f32.mrf.mxu0
    %v4698 = vpop.f32.mrf.mxu0
    %v4699 = vadd.f32 %v4602, %v4698
    %v4700 = vpop.f32.mrf.mxu0
    %4701 = vmatprep.mubr.bf16.mxu0 %v4293
    %4702 = vmatmul.mubr.bf16.gmra.mxu0 %v2372
    %v4703 = vpop.f32.mrf.mxu0
    %v4704 = vadd.f32 %v4607, %v4703
    %v4705 = vpop.f32.mrf.mxu0
    %v4706 = vpop.f32.mrf.mxu0
    %v4707 = vadd.f32 %v4610, %v4706
    %v4708 = vpop.f32.mrf.mxu0
    %4709 = vmatprep.mubr.bf16.mxu0 %v4294
    %4710 = vmatmul.mubr.bf16.gmra.mxu0 %v2373
    %v4711 = vpop.f32.mrf.mxu0
    %v4712 = vadd.f32 %v4615, %v4711
    %v4713 = vpop.f32.mrf.mxu0
    %v4714 = vpop.f32.mrf.mxu0
    %v4715 = vadd.f32 %v4618, %v4714
    %v4716 = vpop.f32.mrf.mxu0
    %4717 = vmatprep.mubr.bf16.mxu0 %v4295
    %4718 = vmatmul.mubr.bf16.gmra.mxu0 %v2374
    %v4719 = vpop.f32.mrf.mxu0
    %v4720 = vadd.f32 %v4623, %v4719
    %v4721 = vpop.f32.mrf.mxu0
    %v4722 = vpop.f32.mrf.mxu0
    %v4723 = vadd.f32 %v4626, %v4722
    %v4724 = vpop.f32.mrf.mxu0
    %4725 = vmatprep.mubr.bf16.mxu0 %v4296
    %4726 = vmatmul.mubr.bf16.gmra.mxu0 %v2375
    %v4727 = vpop.f32.mrf.mxu0
    %v4728 = vadd.f32 %v4631, %v4727
    %v4729 = vpop.f32.mrf.mxu0
    %v4730 = vpop.f32.mrf.mxu0
    %v4731 = vadd.f32 %v4634, %v4730
    %v4732 = vpop.f32.mrf.mxu0
    %4733 = vmatprep.mubr.bf16.mxu0 %v4297
    %4734 = vmatmul.mubr.bf16.gmra.mxu0 %v2376
    %v4735 = vpop.f32.mrf.mxu0
    %v4736 = vadd.f32 %v4639, %v4735
    %v4737 = vpop.f32.mrf.mxu0
    %v4738 = vpop.f32.mrf.mxu0
    %v4739 = vadd.f32 %v4642, %v4738
    %v4740 = vpop.f32.mrf.mxu0
    %4741 = vmatprep.mubr.bf16.mxu0 %v4298
    %4742 = vmatmul.mubr.bf16.gmra.mxu0 %v2377
    %v4743 = vpop.f32.mrf.mxu0
    %v4744 = vadd.f32 %v4647, %v4743
    %v4745 = vpop.f32.mrf.mxu0
    %v4746 = vpop.f32.mrf.mxu0
    %v4747 = vadd.f32 %v4650, %v4746
    %v4748 = vpop.f32.mrf.mxu0
    %4749 = vdwg.mxu0
    %v4750 = vadd.f32 %v4133, %v4688
    %v4751 = vadd.f32 %v4136, %v4691
    %v4752 = vadd.f32 %v4141, %v4696
    %v4753 = vadd.f32 %v4144, %v4699
    %v4754 = vadd.f32 %v4149, %v4704
    %v4755 = vadd.f32 %v4152, %v4707
    %v4756 = vadd.f32 %v4157, %v4712
    %v4757 = vadd.f32 %v4160, %v4715
    %v4758 = vadd.f32 %v4165, %v4720
    %v4759 = vadd.f32 %v4168, %v4723
    %v4760 = vadd.f32 %v4173, %v4728
    %v4761 = vadd.f32 %v4176, %v4731
    %v4762 = vadd.f32 %v4181, %v4736
    %v4763 = vadd.f32 %v4184, %v4739
    %v4764 = vadd.f32 %v4189, %v4744
    %v4765 = vadd.f32 %v4192, %v4747
    %v4766 = vrot.slane %v2909, 7
    %v4767 = vrot.slane %v2910, 7
    %v4768 = vrot.slane %v2911, 7
    %v4769 = vrot.slane %v2912, 7
    %v4770 = vrot.slane %v2913, 7
    %v4771 = vrot.slane %v2914, 7
    %v4772 = vrot.slane %v2915, 7
    %v4773 = vrot.slane %v2916, 7
    %v4774 = vrot.slane %v2917, 7
    %v4775 = vrot.slane %v2918, 7
    %v4776 = vrot.slane %v2919, 7
    %v4777 = vrot.slane %v2920, 7
    %v4778 = vrot.slane %v2921, 7
    %v4779 = vrot.slane %v2922, 7
    %v4780 = vrot.slane %v2923, 7
    %v4781 = vrot.slane %v2924, 7
    %v4782 = vsel %vm352, %v4780, %v4781
    %v4783 = vsel %vm352, %v4779, %v4780
    %v4784 = vsel %vm352, %v4778, %v4779
    %v4785 = vsel %vm352, %v4777, %v4778
    %v4786 = vsel %vm352, %v4776, %v4777
    %v4787 = vsel %vm352, %v4775, %v4776
    %v4788 = vsel %vm352, %v4774, %v4775
    %v4789 = vsel %vm352, %v4773, %v4774
    %v4790 = vsel %vm352, %v4772, %v4773
    %v4791 = vsel %vm352, %v4771, %v4772
    %v4792 = vsel %vm352, %v4770, %v4771
    %v4793 = vsel %vm352, %v4769, %v4770
    %v4794 = vsel %vm352, %v4768, %v4769
    %v4795 = vsel %vm352, %v4767, %v4768
    %v4796 = vsel %vm352, %v4766, %v4767
    %v4797 = vsel %vm352, %v4781, %v4766
    %v4798 = vsel %vm545, %v4782, 0.0
    %v4799 = vsel %vm546, %v4797, 0.0
    %v4800 = vsel %vm547, %v4796, 0.0
    %v4801 = vsel %vm548, %v4795, 0.0
    %v4802 = vsel %vm549, %v4794, 0.0
    %v4803 = vsel %vm550, %v4793, 0.0
    %v4804 = vsel %vm551, %v4792, 0.0
    %v4805 = vsel %vm552, %v4791, 0.0
    %v4806 = vsel %vm553, %v4790, 0.0
    %v4807 = vsel %vm554, %v4789, 0.0
    %v4808 = vsel %vm555, %v4788, 0.0
    %v4809 = vsel %vm556, %v4787, 0.0
    %v4810 = vsel %vm557, %v4786, 0.0
    %v4811 = vsel %vm558, %v4785, 0.0
    %v4812 = vsel %vm559, %v4784, 0.0
    %v4813 = vsel %vm560, %v4783, 0.0
    %v4814 = vpack.c.bf16 %v4799, %v4798
    %v4815 = vpack.c.bf16 %v4801, %v4800
    %v4816 = vpack.c.bf16 %v4803, %v4802
    %v4817 = vpack.c.bf16 %v4805, %v4804
    %v4818 = vpack.c.bf16 %v4807, %v4806
    %v4819 = vpack.c.bf16 %v4809, %v4808
    %v4820 = vpack.c.bf16 %v4811, %v4810
    %v4821 = vpack.c.bf16 %v4813, %v4812
    %v4822 = vsel %vm473, %v2924, 0.0
    %v4823 = vsel %vm474, %v2909, 0.0
    %v4824 = vsel %vm475, %v2910, 0.0
    %v4825 = vsel %vm476, %v2911, 0.0
    %v4826 = vsel %vm477, %v2912, 0.0
    %v4827 = vsel %vm478, %v2913, 0.0
    %v4828 = vsel %vm479, %v2914, 0.0
    %v4829 = vsel %vm480, %v2915, 0.0
    %v4830 = vsel %vm481, %v2916, 0.0
    %v4831 = vsel %vm482, %v2917, 0.0
    %v4832 = vsel %vm483, %v2918, 0.0
    %v4833 = vsel %vm484, %v2919, 0.0
    %v4834 = vsel %vm485, %v2920, 0.0
    %v4835 = vsel %vm486, %v2921, 0.0
    %v4836 = vsel %vm487, %v2922, 0.0
    %v4837 = vsel %vm488, %v2923, 0.0
    %v4838 = vpack.c.bf16 %v4823, %v4822
    %v4839 = vpack.c.bf16 %v4825, %v4824
    %v4840 = vpack.c.bf16 %v4827, %v4826
    %v4841 = vpack.c.bf16 %v4829, %v4828
    %v4842 = vpack.c.bf16 %v4831, %v4830
    %v4843 = vpack.c.bf16 %v4833, %v4832
    %v4844 = vpack.c.bf16 %v4835, %v4834
    %v4845 = vpack.c.bf16 %v4837, %v4836
    %v4846 = vsel %vm401, %v4797, 0.0
    %v4847 = vsel %vm402, %v4796, 0.0
    %v4848 = vsel %vm403, %v4795, 0.0
    %v4849 = vsel %vm404, %v4794, 0.0
    %v4850 = vsel %vm405, %v4793, 0.0
    %v4851 = vsel %vm406, %v4792, 0.0
    %v4852 = vsel %vm407, %v4791, 0.0
    %v4853 = vsel %vm408, %v4790, 0.0
    %v4854 = vsel %vm409, %v4789, 0.0
    %v4855 = vsel %vm410, %v4788, 0.0
    %v4856 = vsel %vm411, %v4787, 0.0
    %v4857 = vsel %vm412, %v4786, 0.0
    %v4858 = vsel %vm413, %v4785, 0.0
    %v4859 = vsel %vm414, %v4784, 0.0
    %v4860 = vsel %vm415, %v4783, 0.0
    %v4861 = vsel %vm416, %v4782, 0.0
    %v4862 = vpack.c.bf16 %v4847, %v4846
    %v4863 = vpack.c.bf16 %v4849, %v4848
    %v4864 = vpack.c.bf16 %v4851, %v4850
    %v4865 = vpack.c.bf16 %v4853, %v4852
    %v4866 = vpack.c.bf16 %v4855, %v4854
    %v4867 = vpack.c.bf16 %v4857, %v4856
    %v4868 = vpack.c.bf16 %v4859, %v4858
    %v4869 = vpack.c.bf16 %v4861, %v4860
    %s4870 = scalar_lea.vmem %s5, 768
    %v4871 = vld [vmem:[%s4870] sm:$0xf]
    %v4872 = vld [vmem:[%s4870 + $0x4] sm:$0xf]
    %v4873 = vld [vmem:[%s4870 + $0x8] sm:$0xf]
    %v4874 = vld [vmem:[%s4870 + $0xc] sm:$0xf]
    %v4875 = vld [vmem:[%s4870 + $0x10] sm:$0xf]
    %v4876 = vld [vmem:[%s4870 + $0x14] sm:$0xf]
    %v4877 = vld [vmem:[%s4870 + $0x18] sm:$0xf]
    %v4878 = vld [vmem:[%s4870 + $0x1c] sm:$0xf]
    %v4879 = vld [vmem:[%s4870 + $0x20] sm:$0xf]
    %v4880 = vld [vmem:[%s4870 + $0x24] sm:$0xf]
    %v4881 = vld [vmem:[%s4870 + $0x28] sm:$0xf]
    %v4882 = vld [vmem:[%s4870 + $0x2c] sm:$0xf]
    %v4883 = vld [vmem:[%s4870 + $0x30] sm:$0xf]
    %v4884 = vld [vmem:[%s4870 + $0x34] sm:$0xf]
    %v4885 = vld [vmem:[%s4870 + $0x38] sm:$0xf]
    %v4886 = vld [vmem:[%s4870 + $0x3c] sm:$0xf]
    %v4887 = vld [vmem:[%s4870 + $0x40] sm:$0xf]
    %v4888 = vld [vmem:[%s4870 + $0x44] sm:$0xf]
    %v4889 = vld [vmem:[%s4870 + $0x48] sm:$0xf]
    %v4890 = vld [vmem:[%s4870 + $0x4c] sm:$0xf]
    %v4891 = vld [vmem:[%s4870 + $0x50] sm:$0xf]
    %v4892 = vld [vmem:[%s4870 + $0x54] sm:$0xf]
    %v4893 = vld [vmem:[%s4870 + $0x58] sm:$0xf]
    %v4894 = vld [vmem:[%s4870 + $0x5c] sm:$0xf]
    %v4895 = vld [vmem:[%s4870 + $0x60] sm:$0xf]
    %v4896 = vld [vmem:[%s4870 + $0x64] sm:$0xf]
    %v4897 = vld [vmem:[%s4870 + $0x68] sm:$0xf]
    %v4898 = vld [vmem:[%s4870 + $0x6c] sm:$0xf]
    %v4899 = vld [vmem:[%s4870 + $0x70] sm:$0xf]
    %v4900 = vld [vmem:[%s4870 + $0x74] sm:$0xf]
    %v4901 = vld [vmem:[%s4870 + $0x78] sm:$0xf]
    %v4902 = vld [vmem:[%s4870 + $0x7c] sm:$0xf]
    %v4903 = vld [vmem:[%s4870 + $0x80] sm:$0xf]
    %v4904 = vld [vmem:[%s4870 + $0x84] sm:$0xf]
    %v4905 = vld [vmem:[%s4870 + $0x88] sm:$0xf]
    %v4906 = vld [vmem:[%s4870 + $0x8c] sm:$0xf]
    %v4907 = vld [vmem:[%s4870 + $0x90] sm:$0xf]
    %v4908 = vld [vmem:[%s4870 + $0x94] sm:$0xf]
    %v4909 = vld [vmem:[%s4870 + $0x98] sm:$0xf]
    %v4910 = vld [vmem:[%s4870 + $0x9c] sm:$0xf]
    %v4911 = vld [vmem:[%s4870 + $0xa0] sm:$0xf]
    %v4912 = vld [vmem:[%s4870 + $0xa4] sm:$0xf]
    %v4913 = vld [vmem:[%s4870 + $0xa8] sm:$0xf]
    %v4914 = vld [vmem:[%s4870 + $0xac] sm:$0xf]
    %v4915 = vld [vmem:[%s4870 + $0xb0] sm:$0xf]
    %v4916 = vld [vmem:[%s4870 + $0xb4] sm:$0xf]
    %v4917 = vld [vmem:[%s4870 + $0xb8] sm:$0xf]
    %v4918 = vld [vmem:[%s4870 + $0xbc] sm:$0xf]
    %v4919 = vld [vmem:[%s4870 + $0xc0] sm:$0xf]
    %v4920 = vld [vmem:[%s4870 + $0xc4] sm:$0xf]
    %v4921 = vld [vmem:[%s4870 + $0xc8] sm:$0xf]
    %v4922 = vld [vmem:[%s4870 + $0xcc] sm:$0xf]
    %v4923 = vld [vmem:[%s4870 + $0xd0] sm:$0xf]
    %v4924 = vld [vmem:[%s4870 + $0xd4] sm:$0xf]
    %v4925 = vld [vmem:[%s4870 + $0xd8] sm:$0xf]
    %v4926 = vld [vmem:[%s4870 + $0xdc] sm:$0xf]
    %v4927 = vld [vmem:[%s4870 + $0xe0] sm:$0xf]
    %v4928 = vld [vmem:[%s4870 + $0xe4] sm:$0xf]
    %v4929 = vld [vmem:[%s4870 + $0xe8] sm:$0xf]
    %v4930 = vld [vmem:[%s4870 + $0xec] sm:$0xf]
    %v4931 = vld [vmem:[%s4870 + $0xf0] sm:$0xf]
    %v4932 = vld [vmem:[%s4870 + $0xf4] sm:$0xf]
    %v4933 = vld [vmem:[%s4870 + $0xf8] sm:$0xf]
    %v4934 = vld [vmem:[%s4870 + $0xfc] sm:$0xf]
    %v4999 = vunpack.c.l.b16 %v4871
    %v5000 = vunpack.c.l.b16 %v4872
    %v5001 = vunpack.c.l.b16 %v4873
    %v5002 = vunpack.c.l.b16 %v4874
    %v5003 = vunpack.c.l.b16 %v4875
    %v5004 = vunpack.c.l.b16 %v4876
    %v5005 = vunpack.c.l.b16 %v4877
    %v5006 = vunpack.c.l.b16 %v4878
    %v5007 = vunpack.c.l.b16 %v4879
    %v5008 = vunpack.c.l.b16 %v4880
    %v5009 = vunpack.c.l.b16 %v4881
    %v5010 = vunpack.c.l.b16 %v4882
    %v5011 = vunpack.c.l.b16 %v4883
    %v5012 = vunpack.c.l.b16 %v4884
    %v5013 = vunpack.c.l.b16 %v4885
    %v5014 = vunpack.c.l.b16 %v4886
    %v5015 = vunpack.c.l.b16 %v4887
    %v5016 = vunpack.c.l.b16 %v4888
    %v5017 = vunpack.c.l.b16 %v4889
    %v5018 = vunpack.c.l.b16 %v4890
    %v5019 = vunpack.c.l.b16 %v4891
    %v5020 = vunpack.c.l.b16 %v4892
    %v5021 = vunpack.c.l.b16 %v4893
    %v5022 = vunpack.c.l.b16 %v4894
    %v5023 = vunpack.c.l.b16 %v4895
    %v5024 = vunpack.c.l.b16 %v4896
    %v5025 = vunpack.c.l.b16 %v4897
    %v5026 = vunpack.c.l.b16 %v4898
    %v5027 = vunpack.c.l.b16 %v4899
    %v5028 = vunpack.c.l.b16 %v4900
    %v5029 = vunpack.c.l.b16 %v4901
    %v5030 = vunpack.c.l.b16 %v4902
    %v5031 = vunpack.c.l.b16 %v4903
    %v5032 = vunpack.c.l.b16 %v4904
    %v5033 = vunpack.c.l.b16 %v4905
    %v5034 = vunpack.c.l.b16 %v4906
    %v5035 = vunpack.c.l.b16 %v4907
    %v5036 = vunpack.c.l.b16 %v4908
    %v5037 = vunpack.c.l.b16 %v4909
    %v5038 = vunpack.c.l.b16 %v4910
    %v5039 = vunpack.c.l.b16 %v4911
    %v5040 = vunpack.c.l.b16 %v4912
    %v5041 = vunpack.c.l.b16 %v4913
    %v5042 = vunpack.c.l.b16 %v4914
    %v5043 = vunpack.c.l.b16 %v4915
    %v5044 = vunpack.c.l.b16 %v4916
    %v5045 = vunpack.c.l.b16 %v4917
    %v5046 = vunpack.c.l.b16 %v4918
    %v5047 = vunpack.c.l.b16 %v4919
    %v5048 = vunpack.c.l.b16 %v4920
    %v5049 = vunpack.c.l.b16 %v4921
    %v5050 = vunpack.c.l.b16 %v4922
    %v5051 = vunpack.c.l.b16 %v4923
    %v5052 = vunpack.c.l.b16 %v4924
    %v5053 = vunpack.c.l.b16 %v4925
    %v5054 = vunpack.c.l.b16 %v4926
    %v5055 = vunpack.c.l.b16 %v4927
    %v5056 = vunpack.c.l.b16 %v4928
    %v5057 = vunpack.c.l.b16 %v4929
    %v5058 = vunpack.c.l.b16 %v4930
    %v5059 = vunpack.c.l.b16 %v4931
    %v5060 = vunpack.c.l.b16 %v4932
    %v5061 = vunpack.c.l.b16 %v4933
    %v5062 = vunpack.c.l.b16 %v4934
    %v5063 = vpack.c.b16 %v5000, %v4999
    %v5064 = vpack.c.b16 %v5002, %v5001
    %v5065 = vpack.c.b16 %v5004, %v5003
    %v5066 = vpack.c.b16 %v5006, %v5005
    %v5067 = vpack.c.b16 %v5008, %v5007
    %v5068 = vpack.c.b16 %v5010, %v5009
    %v5069 = vpack.c.b16 %v5012, %v5011
    %v5070 = vpack.c.b16 %v5014, %v5013
    %v5071 = vpack.c.b16 %v5016, %v5015
    %v5072 = vpack.c.b16 %v5018, %v5017
    %v5073 = vpack.c.b16 %v5020, %v5019
    %v5074 = vpack.c.b16 %v5022, %v5021
    %v5075 = vpack.c.b16 %v5024, %v5023
    %v5076 = vpack.c.b16 %v5026, %v5025
    %v5077 = vpack.c.b16 %v5028, %v5027
    %v5078 = vpack.c.b16 %v5030, %v5029
    %v5079 = vpack.c.b16 %v5032, %v5031
    %v5080 = vpack.c.b16 %v5034, %v5033
    %v5081 = vpack.c.b16 %v5036, %v5035
    %v5082 = vpack.c.b16 %v5038, %v5037
    %v5083 = vpack.c.b16 %v5040, %v5039
    %v5084 = vpack.c.b16 %v5042, %v5041
    %v5085 = vpack.c.b16 %v5044, %v5043
    %v5086 = vpack.c.b16 %v5046, %v5045
    %v5087 = vpack.c.b16 %v5048, %v5047
    %v5088 = vpack.c.b16 %v5050, %v5049
    %v5089 = vpack.c.b16 %v5052, %v5051
    %v5090 = vpack.c.b16 %v5054, %v5053
    %v5091 = vpack.c.b16 %v5056, %v5055
    %v5092 = vpack.c.b16 %v5058, %v5057
    %v5093 = vpack.c.b16 %v5060, %v5059
    %v5094 = vpack.c.b16 %v5062, %v5061
    %5127 = vmatprep.subr.bf16.mxu0 0
    %5128 = vmatpush1.bf16.msra.mxu0 %v5070
    %5129 = vmatprep.subr.bf16.mxu0 0
    %5130 = vmatpush1.bf16.msra.mxu0 %v5069
    %5131 = vmatprep.subr.bf16.mxu0 0
    %5132 = vmatpush1.bf16.msra.mxu0 %v5068
    %5133 = vmatprep.subr.bf16.mxu0 0
    %5134 = vmatpush1.bf16.msra.mxu0 %v5067
    %5135 = vmatprep.subr.bf16.mxu0 0
    %5136 = vmatpush1.bf16.msra.mxu0 %v5066
    %5137 = vmatprep.subr.bf16.mxu0 0
    %5138 = vmatpush1.bf16.msra.mxu0 %v5065
    %5139 = vmatprep.subr.bf16.mxu0 0
    %5140 = vmatpush1.bf16.msra.mxu0 %v5064
    %5141 = vmatprep.subr.bf16.mxu0 0
    %5142 = vmatpush1.bf16.msra.mxu0 %v5063
    %5143 = vmatprep.subr.bf16.mxu0 0
    %5144 = vmatpush2.bf16.msra.mxu0 %v5078
    %5145 = vmatprep.subr.bf16.mxu0 0
    %5146 = vmatpush2.bf16.msra.mxu0 %v5077
    %5147 = vmatprep.subr.bf16.mxu0 0
    %5148 = vmatpush2.bf16.msra.mxu0 %v5076
    %5149 = vmatprep.subr.bf16.mxu0 0
    %5150 = vmatpush2.bf16.msra.mxu0 %v5075
    %5151 = vmatprep.subr.bf16.mxu0 0
    %5152 = vmatpush2.bf16.msra.mxu0 %v5074
    %5153 = vmatprep.subr.bf16.mxu0 0
    %5154 = vmatpush2.bf16.msra.mxu0 %v5073
    %5155 = vmatprep.subr.bf16.mxu0 0
    %5156 = vmatpush2.bf16.msra.mxu0 %v5072
    %5157 = vmatprep.subr.bf16.mxu0 0
    %5158 = vmatpush2.bf16.msra.mxu0 %v5071
    %5159 = vmatprep.mubr.bf16.mxu0 %v4838
    %5160 = vmatmul.mubr.bf16.gmra.mxu0 %v4814
    %v5161 = vpop.f32.mrf.mxu0
    %v5162 = vadd.f32 0.0, %v5161
    %v5163 = vpop.f32.mrf.mxu0
    %v5164 = vpop.f32.mrf.mxu0
    %v5165 = vadd.f32 0.0, %v5164
    %v5166 = vpop.f32.mrf.mxu0
    %5167 = vmatprep.mubr.bf16.mxu0 %v4839
    %5168 = vmatmul.mubr.bf16.gmra.mxu0 %v4815
    %v5169 = vpop.f32.mrf.mxu0
    %v5170 = vadd.f32 0.0, %v5169
    %v5171 = vpop.f32.mrf.mxu0
    %v5172 = vpop.f32.mrf.mxu0
    %v5173 = vadd.f32 0.0, %v5172
    %v5174 = vpop.f32.mrf.mxu0
    %5175 = vmatprep.mubr.bf16.mxu0 %v4840
    %5176 = vmatmul.mubr.bf16.gmra.mxu0 %v4816
    %v5177 = vpop.f32.mrf.mxu0
    %v5178 = vadd.f32 0.0, %v5177
    %v5179 = vpop.f32.mrf.mxu0
    %v5180 = vpop.f32.mrf.mxu0
    %v5181 = vadd.f32 0.0, %v5180
    %v5182 = vpop.f32.mrf.mxu0
    %5183 = vmatprep.mubr.bf16.mxu0 %v4841
    %5184 = vmatmul.mubr.bf16.gmra.mxu0 %v4817
    %v5185 = vpop.f32.mrf.mxu0
    %v5186 = vadd.f32 0.0, %v5185
    %v5187 = vpop.f32.mrf.mxu0
    %v5188 = vpop.f32.mrf.mxu0
    %v5189 = vadd.f32 0.0, %v5188
    %v5190 = vpop.f32.mrf.mxu0
    %5191 = vmatprep.mubr.bf16.mxu0 %v4842
    %5192 = vmatmul.mubr.bf16.gmra.mxu0 %v4818
    %v5193 = vpop.f32.mrf.mxu0
    %v5194 = vadd.f32 0.0, %v5193
    %v5195 = vpop.f32.mrf.mxu0
    %v5196 = vpop.f32.mrf.mxu0
    %v5197 = vadd.f32 0.0, %v5196
    %v5198 = vpop.f32.mrf.mxu0
    %5199 = vmatprep.mubr.bf16.mxu0 %v4843
    %5200 = vmatmul.mubr.bf16.gmra.mxu0 %v4819
    %v5201 = vpop.f32.mrf.mxu0
    %v5202 = vadd.f32 0.0, %v5201
    %v5203 = vpop.f32.mrf.mxu0
    %v5204 = vpop.f32.mrf.mxu0
    %v5205 = vadd.f32 0.0, %v5204
    %v5206 = vpop.f32.mrf.mxu0
    %5207 = vmatprep.mubr.bf16.mxu0 %v4844
    %5208 = vmatmul.mubr.bf16.gmra.mxu0 %v4820
    %v5209 = vpop.f32.mrf.mxu0
    %v5210 = vadd.f32 0.0, %v5209
    %v5211 = vpop.f32.mrf.mxu0
    %v5212 = vpop.f32.mrf.mxu0
    %v5213 = vadd.f32 0.0, %v5212
    %v5214 = vpop.f32.mrf.mxu0
    %5215 = vmatprep.mubr.bf16.mxu0 %v4845
    %5216 = vmatmul.mubr.bf16.gmra.mxu0 %v4821
    %v5217 = vpop.f32.mrf.mxu0
    %v5218 = vadd.f32 0.0, %v5217
    %v5219 = vpop.f32.mrf.mxu0
    %v5220 = vpop.f32.mrf.mxu0
    %v5221 = vadd.f32 0.0, %v5220
    %v5222 = vpop.f32.mrf.mxu0
    %5223 = vdwg.mxu0
    %5224 = vmatprep.subr.bf16.mxu0 0
    %5225 = vmatpush1.bf16.msra.mxu0 %v5086
    %5226 = vmatprep.subr.bf16.mxu0 0
    %5227 = vmatpush1.bf16.msra.mxu0 %v5085
    %5228 = vmatprep.subr.bf16.mxu0 0
    %5229 = vmatpush1.bf16.msra.mxu0 %v5084
    %5230 = vmatprep.subr.bf16.mxu0 0
    %5231 = vmatpush1.bf16.msra.mxu0 %v5083
    %5232 = vmatprep.subr.bf16.mxu0 0
    %5233 = vmatpush1.bf16.msra.mxu0 %v5082
    %5234 = vmatprep.subr.bf16.mxu0 0
    %5235 = vmatpush1.bf16.msra.mxu0 %v5081
    %5236 = vmatprep.subr.bf16.mxu0 0
    %5237 = vmatpush1.bf16.msra.mxu0 %v5080
    %5238 = vmatprep.subr.bf16.mxu0 0
    %5239 = vmatpush1.bf16.msra.mxu0 %v5079
    %5240 = vmatprep.subr.bf16.mxu0 0
    %5241 = vmatpush2.bf16.msra.mxu0 %v5094
    %5242 = vmatprep.subr.bf16.mxu0 0
    %5243 = vmatpush2.bf16.msra.mxu0 %v5093
    %5244 = vmatprep.subr.bf16.mxu0 0
    %5245 = vmatpush2.bf16.msra.mxu0 %v5092
    %5246 = vmatprep.subr.bf16.mxu0 0
    %5247 = vmatpush2.bf16.msra.mxu0 %v5091
    %5248 = vmatprep.subr.bf16.mxu0 0
    %5249 = vmatpush2.bf16.msra.mxu0 %v5090
    %5250 = vmatprep.subr.bf16.mxu0 0
    %5251 = vmatpush2.bf16.msra.mxu0 %v5089
    %5252 = vmatprep.subr.bf16.mxu0 0
    %5253 = vmatpush2.bf16.msra.mxu0 %v5088
    %5254 = vmatprep.subr.bf16.mxu0 0
    %5255 = vmatpush2.bf16.msra.mxu0 %v5087
    %5256 = vmatprep.mubr.bf16.mxu0 %v2925
    %5257 = vmatmul.mubr.bf16.gmra.mxu0 %v4862
    %v5258 = vpop.f32.mrf.mxu0
    %v5259 = vadd.f32 %v5162, %v5258
    %v5260 = vpop.f32.mrf.mxu0
    %v5261 = vpop.f32.mrf.mxu0
    %v5262 = vadd.f32 %v5165, %v5261
    %v5263 = vpop.f32.mrf.mxu0
    %5264 = vmatprep.mubr.bf16.mxu0 %v2926
    %5265 = vmatmul.mubr.bf16.gmra.mxu0 %v4863
    %v5266 = vpop.f32.mrf.mxu0
    %v5267 = vadd.f32 %v5170, %v5266
    %v5268 = vpop.f32.mrf.mxu0
    %v5269 = vpop.f32.mrf.mxu0
    %v5270 = vadd.f32 %v5173, %v5269
    %v5271 = vpop.f32.mrf.mxu0
    %5272 = vmatprep.mubr.bf16.mxu0 %v2927
    %5273 = vmatmul.mubr.bf16.gmra.mxu0 %v4864
    %v5274 = vpop.f32.mrf.mxu0
    %v5275 = vadd.f32 %v5178, %v5274
    %v5276 = vpop.f32.mrf.mxu0
    %v5277 = vpop.f32.mrf.mxu0
    %v5278 = vadd.f32 %v5181, %v5277
    %v5279 = vpop.f32.mrf.mxu0
    %5280 = vmatprep.mubr.bf16.mxu0 %v2928
    %5281 = vmatmul.mubr.bf16.gmra.mxu0 %v4865
    %v5282 = vpop.f32.mrf.mxu0
    %v5283 = vadd.f32 %v5186, %v5282
    %v5284 = vpop.f32.mrf.mxu0
    %v5285 = vpop.f32.mrf.mxu0
    %v5286 = vadd.f32 %v5189, %v5285
    %v5287 = vpop.f32.mrf.mxu0
    %5288 = vmatprep.mubr.bf16.mxu0 %v2929
    %5289 = vmatmul.mubr.bf16.gmra.mxu0 %v4866
    %v5290 = vpop.f32.mrf.mxu0
    %v5291 = vadd.f32 %v5194, %v5290
    %v5292 = vpop.f32.mrf.mxu0
    %v5293 = vpop.f32.mrf.mxu0
    %v5294 = vadd.f32 %v5197, %v5293
    %v5295 = vpop.f32.mrf.mxu0
    %5296 = vmatprep.mubr.bf16.mxu0 %v2930
    %5297 = vmatmul.mubr.bf16.gmra.mxu0 %v4867
    %v5298 = vpop.f32.mrf.mxu0
    %v5299 = vadd.f32 %v5202, %v5298
    %v5300 = vpop.f32.mrf.mxu0
    %v5301 = vpop.f32.mrf.mxu0
    %v5302 = vadd.f32 %v5205, %v5301
    %v5303 = vpop.f32.mrf.mxu0
    %5304 = vmatprep.mubr.bf16.mxu0 %v2931
    %5305 = vmatmul.mubr.bf16.gmra.mxu0 %v4868
    %v5306 = vpop.f32.mrf.mxu0
    %v5307 = vadd.f32 %v5210, %v5306
    %v5308 = vpop.f32.mrf.mxu0
    %v5309 = vpop.f32.mrf.mxu0
    %v5310 = vadd.f32 %v5213, %v5309
    %v5311 = vpop.f32.mrf.mxu0
    %5312 = vmatprep.mubr.bf16.mxu0 %v2932
    %5313 = vmatmul.mubr.bf16.gmra.mxu0 %v4869
    %v5314 = vpop.f32.mrf.mxu0
    %v5315 = vadd.f32 %v5218, %v5314
    %v5316 = vpop.f32.mrf.mxu0
    %v5317 = vpop.f32.mrf.mxu0
    %v5318 = vadd.f32 %v5221, %v5317
    %v5319 = vpop.f32.mrf.mxu0
    %5320 = vdwg.mxu0
    %v5321 = vadd.f32 %v4750, %v5259
    %v5322 = vadd.f32 %v4751, %v5262
    %v5323 = vadd.f32 %v4752, %v5267
    %v5324 = vadd.f32 %v4753, %v5270
    %v5325 = vadd.f32 %v4754, %v5275
    %v5326 = vadd.f32 %v4755, %v5278
    %v5327 = vadd.f32 %v4756, %v5283
    %v5328 = vadd.f32 %v4757, %v5286
    %v5329 = vadd.f32 %v4758, %v5291
    %v5330 = vadd.f32 %v4759, %v5294
    %v5331 = vadd.f32 %v4760, %v5299
    %v5332 = vadd.f32 %v4761, %v5302
    %v5333 = vadd.f32 %v4762, %v5307
    %v5334 = vadd.f32 %v4763, %v5310
    %v5335 = vadd.f32 %v4764, %v5315
    %v5336 = vadd.f32 %v4765, %v5318
    %vm5337 = vcmp.ge.f32.partialorder %v5321, 0.0
    %vm5338 = vcmp.ge.f32.partialorder %v5322, 0.0
    %vm5339 = vcmp.ge.f32.partialorder %v5323, 0.0
    %vm5340 = vcmp.ge.f32.partialorder %v5324, 0.0
    %vm5341 = vcmp.ge.f32.partialorder %v5325, 0.0
    %vm5342 = vcmp.ge.f32.partialorder %v5326, 0.0
    %vm5343 = vcmp.ge.f32.partialorder %v5327, 0.0
    %vm5344 = vcmp.ge.f32.partialorder %v5328, 0.0
    %vm5345 = vcmp.ge.f32.partialorder %v5329, 0.0
    %vm5346 = vcmp.ge.f32.partialorder %v5330, 0.0
    %vm5347 = vcmp.ge.f32.partialorder %v5331, 0.0
    %vm5348 = vcmp.ge.f32.partialorder %v5332, 0.0
    %vm5349 = vcmp.ge.f32.partialorder %v5333, 0.0
    %vm5350 = vcmp.ge.f32.partialorder %v5334, 0.0
    %vm5351 = vcmp.ge.f32.partialorder %v5335, 0.0
    %vm5352 = vcmp.ge.f32.partialorder %v5336, 0.0
    %v5353 = vstv %s42
    %v5354 = vmul.f32 %v5353, %v5321
    %v5355 = vmul.f32 %v5353, %v5322
    %v5356 = vmul.f32 %v5353, %v5323
    %v5357 = vmul.f32 %v5353, %v5324
    %v5358 = vmul.f32 %v5353, %v5325
    %v5359 = vmul.f32 %v5353, %v5326
    %v5360 = vmul.f32 %v5353, %v5327
    %v5361 = vmul.f32 %v5353, %v5328
    %v5362 = vmul.f32 %v5353, %v5329
    %v5363 = vmul.f32 %v5353, %v5330
    %v5364 = vmul.f32 %v5353, %v5331
    %v5365 = vmul.f32 %v5353, %v5332
    %v5366 = vmul.f32 %v5353, %v5333
    %v5367 = vmul.f32 %v5353, %v5334
    %v5368 = vmul.f32 %v5353, %v5335
    %v5369 = vmul.f32 %v5353, %v5336
    %v5370 = vsel %vm5337, %v5321, %v5354
    %v5371 = vsel %vm5338, %v5322, %v5355
    %v5372 = vsel %vm5339, %v5323, %v5356
    %v5373 = vsel %vm5340, %v5324, %v5357
    %v5374 = vsel %vm5341, %v5325, %v5358
    %v5375 = vsel %vm5342, %v5326, %v5359
    %v5376 = vsel %vm5343, %v5327, %v5360
    %v5377 = vsel %vm5344, %v5328, %v5361
    %v5378 = vsel %vm5345, %v5329, %v5362
    %v5379 = vsel %vm5346, %v5330, %v5363
    %v5380 = vsel %vm5347, %v5331, %v5364
    %v5381 = vsel %vm5348, %v5332, %v5365
    %v5382 = vsel %vm5349, %v5333, %v5366
    %v5383 = vsel %vm5350, %v5334, %v5367
    %v5384 = vsel %vm5351, %v5335, %v5368
    %v5385 = vsel %vm5352, %v5336, %v5369
    %v5386 = vsub.f32 %v5370, %v320
    %v5387 = vsub.f32 %v5371, %v321
    %v5388 = vsub.f32 %v5372, %v322
    %v5389 = vsub.f32 %v5373, %v323
    %v5390 = vsub.f32 %v5374, %v324
    %v5391 = vsub.f32 %v5375, %v325
    %v5392 = vsub.f32 %v5376, %v326
    %v5393 = vsub.f32 %v5377, %v327
    %v5394 = vsub.f32 %v5378, %v328
    %v5395 = vsub.f32 %v5379, %v329
    %v5396 = vsub.f32 %v5380, %v330
    %v5397 = vsub.f32 %v5381, %v331
    %v5398 = vsub.f32 %v5382, %v332
    %v5399 = vsub.f32 %v5383, %v333
    %v5400 = vsub.f32 %v5384, %v334
    %v5401 = vsub.f32 %v5385, %v335
    %v5402 = vpack.c.bf16 %v5387, %v5386
    %v5403 = vpack.c.bf16 %v5389, %v5388
    %v5404 = vpack.c.bf16 %v5391, %v5390
    %v5405 = vpack.c.bf16 %v5393, %v5392
    %v5406 = vpack.c.bf16 %v5395, %v5394
    %v5407 = vpack.c.bf16 %v5397, %v5396
    %v5408 = vpack.c.bf16 %v5399, %v5398
    %v5409 = vpack.c.bf16 %v5401, %v5400
    %v5410 = vrot.slane %v5386, 7
    %v5411 = vrot.slane %v5387, 7
    %v5412 = vrot.slane %v5388, 7
    %v5413 = vrot.slane %v5389, 7
    %v5414 = vrot.slane %v5390, 7
    %v5415 = vrot.slane %v5391, 7
    %v5416 = vrot.slane %v5392, 7
    %v5417 = vrot.slane %v5393, 7
    %v5418 = vrot.slane %v5394, 7
    %v5419 = vrot.slane %v5395, 7
    %v5420 = vrot.slane %v5396, 7
    %v5421 = vrot.slane %v5397, 7
    %v5422 = vrot.slane %v5398, 7
    %v5423 = vrot.slane %v5399, 7
    %v5424 = vrot.slane %v5400, 7
    %v5425 = vrot.slane %v5401, 7
    %v5426 = vsel %vm352, %v5424, %v5425
    %v5427 = vsel %vm352, %v5423, %v5424
    %v5428 = vsel %vm352, %v5422, %v5423
    %v5429 = vsel %vm352, %v5421, %v5422
    %v5430 = vsel %vm352, %v5420, %v5421
    %v5431 = vsel %vm352, %v5419, %v5420
    %v5432 = vsel %vm352, %v5418, %v5419
    %v5433 = vsel %vm352, %v5417, %v5418
    %v5434 = vsel %vm352, %v5416, %v5417
    %v5435 = vsel %vm352, %v5415, %v5416
    %v5436 = vsel %vm352, %v5414, %v5415
    %v5437 = vsel %vm352, %v5413, %v5414
    %v5438 = vsel %vm352, %v5412, %v5413
    %v5439 = vsel %vm352, %v5411, %v5412
    %v5440 = vsel %vm352, %v5410, %v5411
    %v5441 = vsel %vm352, %v5425, %v5410
    %v5442 = vsel %vm401, %v5441, 0.0
    %v5443 = vsel %vm402, %v5440, 0.0
    %v5444 = vsel %vm403, %v5439, 0.0
    %v5445 = vsel %vm404, %v5438, 0.0
    %v5446 = vsel %vm405, %v5437, 0.0
    %v5447 = vsel %vm406, %v5436, 0.0
    %v5448 = vsel %vm407, %v5435, 0.0
    %v5449 = vsel %vm408, %v5434, 0.0
    %v5450 = vsel %vm409, %v5433, 0.0
    %v5451 = vsel %vm410, %v5432, 0.0
    %v5452 = vsel %vm411, %v5431, 0.0
    %v5453 = vsel %vm412, %v5430, 0.0
    %v5454 = vsel %vm413, %v5429, 0.0
    %v5455 = vsel %vm414, %v5428, 0.0
    %v5456 = vsel %vm415, %v5427, 0.0
    %v5457 = vsel %vm416, %v5426, 0.0
    %v5458 = vpack.c.bf16 %v5443, %v5442
    %v5459 = vpack.c.bf16 %v5445, %v5444
    %v5460 = vpack.c.bf16 %v5447, %v5446
    %v5461 = vpack.c.bf16 %v5449, %v5448
    %v5462 = vpack.c.bf16 %v5451, %v5450
    %v5463 = vpack.c.bf16 %v5453, %v5452
    %v5464 = vpack.c.bf16 %v5455, %v5454
    %v5465 = vpack.c.bf16 %v5457, %v5456
    %v5466 = vsel %vm473, %v5401, 0.0
    %v5467 = vsel %vm474, %v5386, 0.0
    %v5468 = vsel %vm475, %v5387, 0.0
    %v5469 = vsel %vm476, %v5388, 0.0
    %v5470 = vsel %vm477, %v5389, 0.0
    %v5471 = vsel %vm478, %v5390, 0.0
    %v5472 = vsel %vm479, %v5391, 0.0
    %v5473 = vsel %vm480, %v5392, 0.0
    %v5474 = vsel %vm481, %v5393, 0.0
    %v5475 = vsel %vm482, %v5394, 0.0
    %v5476 = vsel %vm483, %v5395, 0.0
    %v5477 = vsel %vm484, %v5396, 0.0
    %v5478 = vsel %vm485, %v5397, 0.0
    %v5479 = vsel %vm486, %v5398, 0.0
    %v5480 = vsel %vm487, %v5399, 0.0
    %v5481 = vsel %vm488, %v5400, 0.0
    %v5482 = vpack.c.bf16 %v5467, %v5466
    %v5483 = vpack.c.bf16 %v5469, %v5468
    %v5484 = vpack.c.bf16 %v5471, %v5470
    %v5485 = vpack.c.bf16 %v5473, %v5472
    %v5486 = vpack.c.bf16 %v5475, %v5474
    %v5487 = vpack.c.bf16 %v5477, %v5476
    %v5488 = vpack.c.bf16 %v5479, %v5478
    %v5489 = vpack.c.bf16 %v5481, %v5480
    %v5490 = vsel %vm545, %v5426, 0.0
    %v5491 = vsel %vm546, %v5441, 0.0
    %v5492 = vsel %vm547, %v5440, 0.0
    %v5493 = vsel %vm548, %v5439, 0.0
    %v5494 = vsel %vm549, %v5438, 0.0
    %v5495 = vsel %vm550, %v5437, 0.0
    %v5496 = vsel %vm551, %v5436, 0.0
    %v5497 = vsel %vm552, %v5435, 0.0
    %v5498 = vsel %vm553, %v5434, 0.0
    %v5499 = vsel %vm554, %v5433, 0.0
    %v5500 = vsel %vm555, %v5432, 0.0
    %v5501 = vsel %vm556, %v5431, 0.0
    %v5502 = vsel %vm557, %v5430, 0.0
    %v5503 = vsel %vm558, %v5429, 0.0
    %v5504 = vsel %vm559, %v5428, 0.0
    %v5505 = vsel %vm560, %v5427, 0.0
    %v5506 = vpack.c.bf16 %v5491, %v5490
    %v5507 = vpack.c.bf16 %v5493, %v5492
    %v5508 = vpack.c.bf16 %v5495, %v5494
    %v5509 = vpack.c.bf16 %v5497, %v5496
    %v5510 = vpack.c.bf16 %v5499, %v5498
    %v5511 = vpack.c.bf16 %v5501, %v5500
    %v5512 = vpack.c.bf16 %v5503, %v5502
    %v5513 = vpack.c.bf16 %v5505, %v5504
    %5522 = vrot.lane.b32.xlu0 %v5458, 64
    %v5523 = vpop.permute.xlu0 %5522
    %5524 = vrot.lane.b32.xlu0 %v5459, 64
    %v5525 = vpop.permute.xlu0 %5524
    %5526 = vrot.lane.b32.xlu0 %v5460, 64
    %v5527 = vpop.permute.xlu0 %5526
    %5528 = vrot.lane.b32.xlu0 %v5461, 64
    %v5529 = vpop.permute.xlu0 %5528
    %5530 = vrot.lane.b32.xlu0 %v5462, 64
    %v5531 = vpop.permute.xlu0 %5530
    %5532 = vrot.lane.b32.xlu0 %v5463, 64
    %v5533 = vpop.permute.xlu0 %5532
    %5534 = vrot.lane.b32.xlu0 %v5464, 64
    %v5535 = vpop.permute.xlu0 %5534
    %5536 = vrot.lane.b32.xlu0 %v5465, 64
    %v5537 = vpop.permute.xlu0 %5536
    %5546 = vrot.lane.b32.xlu0 %v5506, 64
    %v5547 = vpop.permute.xlu0 %5546
    %5548 = vrot.lane.b32.xlu0 %v5507, 64
    %v5549 = vpop.permute.xlu0 %5548
    %5550 = vrot.lane.b32.xlu0 %v5508, 64
    %v5551 = vpop.permute.xlu0 %5550
    %5552 = vrot.lane.b32.xlu0 %v5509, 64
    %v5553 = vpop.permute.xlu0 %5552
    %5554 = vrot.lane.b32.xlu0 %v5510, 64
    %v5555 = vpop.permute.xlu0 %5554
    %5556 = vrot.lane.b32.xlu0 %v5511, 64
    %v5557 = vpop.permute.xlu0 %5556
    %5558 = vrot.lane.b32.xlu0 %v5512, 64
    %v5559 = vpop.permute.xlu0 %5558
    %5560 = vrot.lane.b32.xlu0 %v5513, 64
    %v5561 = vpop.permute.xlu0 %5560
    %v5564 = vsel %vm165, %v5402, %v5523
    %v5568 = vsel %vm165, %v5403, %v5525
    %v5572 = vsel %vm165, %v5404, %v5527
    %v5576 = vsel %vm165, %v5405, %v5529
    %v5580 = vsel %vm165, %v5406, %v5531
    %v5584 = vsel %vm165, %v5407, %v5533
    %v5588 = vsel %vm165, %v5408, %v5535
    %v5592 = vsel %vm165, %v5409, %v5537
    %v5596 = vsel %vm165, %v5482, %v5547
    %v5600 = vsel %vm165, %v5483, %v5549
    %v5604 = vsel %vm165, %v5484, %v5551
    %v5608 = vsel %vm165, %v5485, %v5553
    %v5612 = vsel %vm165, %v5486, %v5555
    %v5616 = vsel %vm165, %v5487, %v5557
    %v5620 = vsel %vm165, %v5488, %v5559
    %v5624 = vsel %vm165, %v5489, %v5561
    %v5626 = vld [vmem:[%s6] sm:$0xf]
    %v5627 = vld [vmem:[%s6 + $0x4] sm:$0xf]
    %v5628 = vld [vmem:[%s6 + $0x8] sm:$0xf]
    %v5629 = vld [vmem:[%s6 + $0xc] sm:$0xf]
    %v5630 = vld [vmem:[%s6 + $0x10] sm:$0xf]
    %v5631 = vld [vmem:[%s6 + $0x14] sm:$0xf]
    %v5632 = vld [vmem:[%s6 + $0x18] sm:$0xf]
    %v5633 = vld [vmem:[%s6 + $0x1c] sm:$0xf]
    %v5634 = vld [vmem:[%s6 + $0x20] sm:$0xf]
    %v5635 = vld [vmem:[%s6 + $0x24] sm:$0xf]
    %v5636 = vld [vmem:[%s6 + $0x28] sm:$0xf]
    %v5637 = vld [vmem:[%s6 + $0x2c] sm:$0xf]
    %v5638 = vld [vmem:[%s6 + $0x30] sm:$0xf]
    %v5639 = vld [vmem:[%s6 + $0x34] sm:$0xf]
    %v5640 = vld [vmem:[%s6 + $0x38] sm:$0xf]
    %v5641 = vld [vmem:[%s6 + $0x3c] sm:$0xf]
    %v5642 = vld [vmem:[%s6 + $0x40] sm:$0xf]
    %v5643 = vld [vmem:[%s6 + $0x44] sm:$0xf]
    %v5644 = vld [vmem:[%s6 + $0x48] sm:$0xf]
    %v5645 = vld [vmem:[%s6 + $0x4c] sm:$0xf]
    %v5646 = vld [vmem:[%s6 + $0x50] sm:$0xf]
    %v5647 = vld [vmem:[%s6 + $0x54] sm:$0xf]
    %v5648 = vld [vmem:[%s6 + $0x58] sm:$0xf]
    %v5649 = vld [vmem:[%s6 + $0x5c] sm:$0xf]
    %v5650 = vld [vmem:[%s6 + $0x60] sm:$0xf]
    %v5651 = vld [vmem:[%s6 + $0x64] sm:$0xf]
    %v5652 = vld [vmem:[%s6 + $0x68] sm:$0xf]
    %v5653 = vld [vmem:[%s6 + $0x6c] sm:$0xf]
    %v5654 = vld [vmem:[%s6 + $0x70] sm:$0xf]
    %v5655 = vld [vmem:[%s6 + $0x74] sm:$0xf]
    %v5656 = vld [vmem:[%s6 + $0x78] sm:$0xf]
    %v5657 = vld [vmem:[%s6 + $0x7c] sm:$0xf]
    %v5690 = vunpack.c.l.b16 %v5626
    %v5691 = vunpack.c.l.b16 %v5627
    %v5692 = vunpack.c.l.b16 %v5628
    %v5693 = vunpack.c.l.b16 %v5629
    %v5694 = vunpack.c.l.b16 %v5630
    %v5695 = vunpack.c.l.b16 %v5631
    %v5696 = vunpack.c.l.b16 %v5632
    %v5697 = vunpack.c.l.b16 %v5633
    %v5698 = vunpack.c.l.b16 %v5634
    %v5699 = vunpack.c.l.b16 %v5635
    %v5700 = vunpack.c.l.b16 %v5636
    %v5701 = vunpack.c.l.b16 %v5637
    %v5702 = vunpack.c.l.b16 %v5638
    %v5703 = vunpack.c.l.b16 %v5639
    %v5704 = vunpack.c.l.b16 %v5640
    %v5705 = vunpack.c.l.b16 %v5641
    %v5706 = vunpack.c.l.b16 %v5642
    %v5707 = vunpack.c.l.b16 %v5643
    %v5708 = vunpack.c.l.b16 %v5644
    %v5709 = vunpack.c.l.b16 %v5645
    %v5710 = vunpack.c.l.b16 %v5646
    %v5711 = vunpack.c.l.b16 %v5647
    %v5712 = vunpack.c.l.b16 %v5648
    %v5713 = vunpack.c.l.b16 %v5649
    %v5714 = vunpack.c.l.b16 %v5650
    %v5715 = vunpack.c.l.b16 %v5651
    %v5716 = vunpack.c.l.b16 %v5652
    %v5717 = vunpack.c.l.b16 %v5653
    %v5718 = vunpack.c.l.b16 %v5654
    %v5719 = vunpack.c.l.b16 %v5655
    %v5720 = vunpack.c.l.b16 %v5656
    %v5721 = vunpack.c.l.b16 %v5657
    %v5722 = vpack.c.b16 %v5691, %v5690
    %v5723 = vpack.c.b16 %v5693, %v5692
    %v5724 = vpack.c.b16 %v5695, %v5694
    %v5725 = vpack.c.b16 %v5697, %v5696
    %v5726 = vpack.c.b16 %v5699, %v5698
    %v5727 = vpack.c.b16 %v5701, %v5700
    %v5728 = vpack.c.b16 %v5703, %v5702
    %v5729 = vpack.c.b16 %v5705, %v5704
    %v5730 = vpack.c.b16 %v5707, %v5706
    %v5731 = vpack.c.b16 %v5709, %v5708
    %v5732 = vpack.c.b16 %v5711, %v5710
    %v5733 = vpack.c.b16 %v5713, %v5712
    %v5734 = vpack.c.b16 %v5715, %v5714
    %v5735 = vpack.c.b16 %v5717, %v5716
    %v5736 = vpack.c.b16 %v5719, %v5718
    %v5737 = vpack.c.b16 %v5721, %v5720
    %5754 = vmatprep.subr.bf16.mxu0 0
    %5755 = vmatpush1.bf16.msra.mxu0 %v5729
    %5756 = vmatprep.subr.bf16.mxu0 0
    %5757 = vmatpush1.bf16.msra.mxu0 %v5728
    %5758 = vmatprep.subr.bf16.mxu0 0
    %5759 = vmatpush1.bf16.msra.mxu0 %v5727
    %5760 = vmatprep.subr.bf16.mxu0 0
    %5761 = vmatpush1.bf16.msra.mxu0 %v5726
    %5762 = vmatprep.subr.bf16.mxu0 0
    %5763 = vmatpush1.bf16.msra.mxu0 %v5725
    %5764 = vmatprep.subr.bf16.mxu0 0
    %5765 = vmatpush1.bf16.msra.mxu0 %v5724
    %5766 = vmatprep.subr.bf16.mxu0 0
    %5767 = vmatpush1.bf16.msra.mxu0 %v5723
    %5768 = vmatprep.subr.bf16.mxu0 0
    %5769 = vmatpush1.bf16.msra.mxu0 %v5722
    %5770 = vmatprep.subr.bf16.mxu0 0
    %5771 = vmatpush2.bf16.msra.mxu0 %v5737
    %5772 = vmatprep.subr.bf16.mxu0 0
    %5773 = vmatpush2.bf16.msra.mxu0 %v5736
    %5774 = vmatprep.subr.bf16.mxu0 0
    %5775 = vmatpush2.bf16.msra.mxu0 %v5735
    %5776 = vmatprep.subr.bf16.mxu0 0
    %5777 = vmatpush2.bf16.msra.mxu0 %v5734
    %5778 = vmatprep.subr.bf16.mxu0 0
    %5779 = vmatpush2.bf16.msra.mxu0 %v5733
    %5780 = vmatprep.subr.bf16.mxu0 0
    %5781 = vmatpush2.bf16.msra.mxu0 %v5732
    %5782 = vmatprep.subr.bf16.mxu0 0
    %5783 = vmatpush2.bf16.msra.mxu0 %v5731
    %5784 = vmatprep.subr.bf16.mxu0 0
    %5785 = vmatpush2.bf16.msra.mxu0 %v5730
    %5786 = vmatprep.mubr.bf16.mxu0 %v5596
    %5787 = vmatmul.mubr.bf16.gmra.mxu0 %v5564
    %v5788 = vpop.f32.mrf.mxu0
    %v5789 = vadd.f32 0.0, %v5788
    %v5790 = vpop.f32.mrf.mxu0
    %v5791 = vpop.f32.mrf.mxu0
    %v5792 = vadd.f32 0.0, %v5791
    %v5793 = vpop.f32.mrf.mxu0
    %5794 = vmatprep.mubr.bf16.mxu0 %v5600
    %5795 = vmatmul.mubr.bf16.gmra.mxu0 %v5568
    %v5796 = vpop.f32.mrf.mxu0
    %v5797 = vadd.f32 0.0, %v5796
    %v5798 = vpop.f32.mrf.mxu0
    %v5799 = vpop.f32.mrf.mxu0
    %v5800 = vadd.f32 0.0, %v5799
    %v5801 = vpop.f32.mrf.mxu0
    %5802 = vmatprep.mubr.bf16.mxu0 %v5604
    %5803 = vmatmul.mubr.bf16.gmra.mxu0 %v5572
    %v5804 = vpop.f32.mrf.mxu0
    %v5805 = vadd.f32 0.0, %v5804
    %v5806 = vpop.f32.mrf.mxu0
    %v5807 = vpop.f32.mrf.mxu0
    %v5808 = vadd.f32 0.0, %v5807
    %v5809 = vpop.f32.mrf.mxu0
    %5810 = vmatprep.mubr.bf16.mxu0 %v5608
    %5811 = vmatmul.mubr.bf16.gmra.mxu0 %v5576
    %v5812 = vpop.f32.mrf.mxu0
    %v5813 = vadd.f32 0.0, %v5812
    %v5814 = vpop.f32.mrf.mxu0
    %v5815 = vpop.f32.mrf.mxu0
    %v5816 = vadd.f32 0.0, %v5815
    %v5817 = vpop.f32.mrf.mxu0
    %5818 = vmatprep.mubr.bf16.mxu0 %v5612
    %5819 = vmatmul.mubr.bf16.gmra.mxu0 %v5580
    %v5820 = vpop.f32.mrf.mxu0
    %v5821 = vadd.f32 0.0, %v5820
    %v5822 = vpop.f32.mrf.mxu0
    %v5823 = vpop.f32.mrf.mxu0
    %v5824 = vadd.f32 0.0, %v5823
    %v5825 = vpop.f32.mrf.mxu0
    %5826 = vmatprep.mubr.bf16.mxu0 %v5616
    %5827 = vmatmul.mubr.bf16.gmra.mxu0 %v5584
    %v5828 = vpop.f32.mrf.mxu0
    %v5829 = vadd.f32 0.0, %v5828
    %v5830 = vpop.f32.mrf.mxu0
    %v5831 = vpop.f32.mrf.mxu0
    %v5832 = vadd.f32 0.0, %v5831
    %v5833 = vpop.f32.mrf.mxu0
    %5834 = vmatprep.mubr.bf16.mxu0 %v5620
    %5835 = vmatmul.mubr.bf16.gmra.mxu0 %v5588
    %v5836 = vpop.f32.mrf.mxu0
    %v5837 = vadd.f32 0.0, %v5836
    %v5838 = vpop.f32.mrf.mxu0
    %v5839 = vpop.f32.mrf.mxu0
    %v5840 = vadd.f32 0.0, %v5839
    %v5841 = vpop.f32.mrf.mxu0
    %5842 = vmatprep.mubr.bf16.mxu0 %v5624
    %5843 = vmatmul.mubr.bf16.gmra.mxu0 %v5592
    %v5844 = vpop.f32.mrf.mxu0
    %v5845 = vadd.f32 0.0, %v5844
    %v5846 = vpop.f32.mrf.mxu0
    %v5847 = vpop.f32.mrf.mxu0
    %v5848 = vadd.f32 0.0, %v5847
    %v5849 = vpop.f32.mrf.mxu0
    %5850 = vdwg.mxu0
    %vm5851 = vcmp.ge.f32.partialorder %v5789, 0.0
    %vm5852 = vcmp.ge.f32.partialorder %v5792, 0.0
    %vm5853 = vcmp.ge.f32.partialorder %v5797, 0.0
    %vm5854 = vcmp.ge.f32.partialorder %v5800, 0.0
    %vm5855 = vcmp.ge.f32.partialorder %v5805, 0.0
    %vm5856 = vcmp.ge.f32.partialorder %v5808, 0.0
    %vm5857 = vcmp.ge.f32.partialorder %v5813, 0.0
    %vm5858 = vcmp.ge.f32.partialorder %v5816, 0.0
    %vm5859 = vcmp.ge.f32.partialorder %v5821, 0.0
    %vm5860 = vcmp.ge.f32.partialorder %v5824, 0.0
    %vm5861 = vcmp.ge.f32.partialorder %v5829, 0.0
    %vm5862 = vcmp.ge.f32.partialorder %v5832, 0.0
    %vm5863 = vcmp.ge.f32.partialorder %v5837, 0.0
    %vm5864 = vcmp.ge.f32.partialorder %v5840, 0.0
    %vm5865 = vcmp.ge.f32.partialorder %v5845, 0.0
    %vm5866 = vcmp.ge.f32.partialorder %v5848, 0.0
    %v5867 = vstv %s43
    %v5868 = vmul.f32 %v5867, %v5789
    %v5869 = vmul.f32 %v5867, %v5792
    %v5870 = vmul.f32 %v5867, %v5797
    %v5871 = vmul.f32 %v5867, %v5800
    %v5872 = vmul.f32 %v5867, %v5805
    %v5873 = vmul.f32 %v5867, %v5808
    %v5874 = vmul.f32 %v5867, %v5813
    %v5875 = vmul.f32 %v5867, %v5816
    %v5876 = vmul.f32 %v5867, %v5821
    %v5877 = vmul.f32 %v5867, %v5824
    %v5878 = vmul.f32 %v5867, %v5829
    %v5879 = vmul.f32 %v5867, %v5832
    %v5880 = vmul.f32 %v5867, %v5837
    %v5881 = vmul.f32 %v5867, %v5840
    %v5882 = vmul.f32 %v5867, %v5845
    %v5883 = vmul.f32 %v5867, %v5848
    %v5884 = vsel %vm5851, %v5789, %v5868
    %v5885 = vsel %vm5852, %v5792, %v5869
    %v5886 = vsel %vm5853, %v5797, %v5870
    %v5887 = vsel %vm5854, %v5800, %v5871
    %v5888 = vsel %vm5855, %v5805, %v5872
    %v5889 = vsel %vm5856, %v5808, %v5873
    %v5890 = vsel %vm5857, %v5813, %v5874
    %v5891 = vsel %vm5858, %v5816, %v5875
    %v5892 = vsel %vm5859, %v5821, %v5876
    %v5893 = vsel %vm5860, %v5824, %v5877
    %v5894 = vsel %vm5861, %v5829, %v5878
    %v5895 = vsel %vm5862, %v5832, %v5879
    %v5896 = vsel %vm5863, %v5837, %v5880
    %v5897 = vsel %vm5864, %v5840, %v5881
    %v5898 = vsel %vm5865, %v5845, %v5882
    %v5899 = vsel %vm5866, %v5848, %v5883
    %v5900 = vunpack.c.l.bf16 %v1180
    %v5901 = vunpack.c.h.bf16 %v1180
    %v5902 = vunpack.c.l.bf16 %v1181
    %v5903 = vunpack.c.h.bf16 %v1181
    %v5904 = vunpack.c.l.bf16 %v1182
    %v5905 = vunpack.c.h.bf16 %v1182
    %v5906 = vunpack.c.l.bf16 %v1183
    %v5907 = vunpack.c.h.bf16 %v1183
    %v5908 = vunpack.c.l.bf16 %v1184
    %v5909 = vunpack.c.h.bf16 %v1184
    %v5910 = vunpack.c.l.bf16 %v1185
    %v5911 = vunpack.c.h.bf16 %v1185
    %v5912 = vunpack.c.l.bf16 %v1186
    %v5913 = vunpack.c.h.bf16 %v1186
    %v5914 = vunpack.c.l.bf16 %v1187
    %v5915 = vunpack.c.h.bf16 %v1187
    %v5916 = vadd.f32 %v5884, %v5900
    %v5917 = vadd.f32 %v5885, %v5901
    %v5918 = vadd.f32 %v5886, %v5902
    %v5919 = vadd.f32 %v5887, %v5903
    %v5920 = vadd.f32 %v5888, %v5904
    %v5921 = vadd.f32 %v5889, %v5905
    %v5922 = vadd.f32 %v5890, %v5906
    %v5923 = vadd.f32 %v5891, %v5907
    %v5924 = vadd.f32 %v5892, %v5908
    %v5925 = vadd.f32 %v5893, %v5909
    %v5926 = vadd.f32 %v5894, %v5910
    %v5927 = vadd.f32 %v5895, %v5911
    %v5928 = vadd.f32 %v5896, %v5912
    %v5929 = vadd.f32 %v5897, %v5913
    %v5930 = vadd.f32 %v5898, %v5914
    %v5931 = vadd.f32 %v5899, %v5915
    %v5932 = vpack.c.bf16 %v5917, %v5916
    %v5933 = vpack.c.bf16 %v5919, %v5918
    %v5934 = vpack.c.bf16 %v5921, %v5920
    %v5935 = vpack.c.bf16 %v5923, %v5922
    %v5936 = vpack.c.bf16 %v5925, %v5924
    %v5937 = vpack.c.bf16 %v5927, %v5926
    %v5938 = vpack.c.bf16 %v5929, %v5928
    %v5939 = vpack.c.bf16 %v5931, %v5930
    %v5948 = vunpack.c.l.b16 %v5932
    %v5949 = vunpack.c.h.b16 %v5932
    %v5950 = vunpack.c.l.b16 %v5933
    %v5951 = vunpack.c.h.b16 %v5933
    %v5952 = vunpack.c.l.b16 %v5934
    %v5953 = vunpack.c.h.b16 %v5934
    %v5954 = vunpack.c.l.b16 %v5935
    %v5955 = vunpack.c.h.b16 %v5935
    %v5956 = vunpack.c.l.b16 %v5936
    %v5957 = vunpack.c.h.b16 %v5936
    %v5958 = vunpack.c.l.b16 %v5937
    %v5959 = vunpack.c.h.b16 %v5937
    %v5960 = vunpack.c.l.b16 %v5938
    %v5961 = vunpack.c.h.b16 %v5938
    %v5962 = vunpack.c.l.b16 %v5939
    %v5963 = vunpack.c.h.b16 %v5939
    %v5964 = vpack.c.b16 %v5948, %v5948
    %v5965 = vpack.c.b16 %v5949, %v5949
    %v5966 = vpack.c.b16 %v5950, %v5950
    %v5967 = vpack.c.b16 %v5951, %v5951
    %v5968 = vpack.c.b16 %v5952, %v5952
    %v5969 = vpack.c.b16 %v5953, %v5953
    %v5970 = vpack.c.b16 %v5954, %v5954
    %v5971 = vpack.c.b16 %v5955, %v5955
    %v5972 = vpack.c.b16 %v5956, %v5956
    %v5973 = vpack.c.b16 %v5957, %v5957
    %v5974 = vpack.c.b16 %v5958, %v5958
    %v5975 = vpack.c.b16 %v5959, %v5959
    %v5976 = vpack.c.b16 %v5960, %v5960
    %v5977 = vpack.c.b16 %v5961, %v5961
    %v5978 = vpack.c.b16 %v5962, %v5962
    %v5979 = vpack.c.b16 %v5963, %v5963
    %5996 = vst [vmem:[%s7] sm:$0xf] %v5964
    %5997 = vst [vmem:[%s7 + $0x4] sm:$0xf] %v5965
    %5998 = vst [vmem:[%s7 + $0x8] sm:$0xf] %v5966
    %5999 = vst [vmem:[%s7 + $0xc] sm:$0xf] %v5967
    %6000 = vst [vmem:[%s7 + $0x10] sm:$0xf] %v5968
    %6001 = vst [vmem:[%s7 + $0x14] sm:$0xf] %v5969
    %6002 = vst [vmem:[%s7 + $0x18] sm:$0xf] %v5970
    %6003 = vst [vmem:[%s7 + $0x1c] sm:$0xf] %v5971
    %6004 = vst [vmem:[%s7 + $0x20] sm:$0xf] %v5972
    %6005 = vst [vmem:[%s7 + $0x24] sm:$0xf] %v5973
    %6006 = vst [vmem:[%s7 + $0x28] sm:$0xf] %v5974
    %6007 = vst [vmem:[%s7 + $0x2c] sm:$0xf] %v5975
    %6008 = vst [vmem:[%s7 + $0x30] sm:$0xf] %v5976
    %6009 = vst [vmem:[%s7 + $0x34] sm:$0xf] %v5977
    %6010 = vst [vmem:[%s7 + $0x38] sm:$0xf] %v5978
    %6011 = vst [vmem:[%s7 + $0x3c] sm:$0xf] %v5979
    %v6012 = vrot.slane %v5386, 1
    %v6013 = vrot.slane %v5387, 1
    %v6014 = vrot.slane %v5388, 1
    %v6015 = vrot.slane %v5389, 1
    %v6016 = vrot.slane %v5390, 1
    %v6017 = vrot.slane %v5391, 1
    %v6018 = vrot.slane %v5392, 1
    %v6019 = vrot.slane %v5393, 1
    %v6020 = vrot.slane %v5394, 1
    %v6021 = vrot.slane %v5395, 1
    %v6022 = vrot.slane %v5396, 1
    %v6023 = vrot.slane %v5397, 1
    %v6024 = vrot.slane %v5398, 1
    %v6025 = vrot.slane %v5399, 1
    %v6026 = vrot.slane %v5400, 1
    %v6027 = vrot.slane %v5401, 1
    %v6028 = vsel %vm1204, %v6026, %v6027
    %v6029 = vsel %vm1204, %v6025, %v6026
    %v6030 = vsel %vm1204, %v6024, %v6025
    %v6031 = vsel %vm1204, %v6023, %v6024
    %v6032 = vsel %vm1204, %v6022, %v6023
    %v6033 = vsel %vm1204, %v6021, %v6022
    %v6034 = vsel %vm1204, %v6020, %v6021
    %v6035 = vsel %vm1204, %v6019, %v6020
    %v6036 = vsel %vm1204, %v6018, %v6019
    %v6037 = vsel %vm1204, %v6017, %v6018
    %v6038 = vsel %vm1204, %v6016, %v6017
    %v6039 = vsel %vm1204, %v6015, %v6016
    %v6040 = vsel %vm1204, %v6014, %v6015
    %v6041 = vsel %vm1204, %v6013, %v6014
    %v6042 = vsel %vm1204, %v6012, %v6013
    %v6043 = vsel %vm1204, %v6027, %v6012
    %v6044 = vsel %vm1253, %v6042, 0.0
    %v6045 = vsel %vm1254, %v6041, 0.0
    %v6046 = vsel %vm1255, %v6040, 0.0
    %v6047 = vsel %vm1256, %v6039, 0.0
    %v6048 = vsel %vm1257, %v6038, 0.0
    %v6049 = vsel %vm1258, %v6037, 0.0
    %v6050 = vsel %vm1259, %v6036, 0.0
    %v6051 = vsel %vm1260, %v6035, 0.0
    %v6052 = vsel %vm1261, %v6034, 0.0
    %v6053 = vsel %vm1262, %v6033, 0.0
    %v6054 = vsel %vm1263, %v6032, 0.0
    %v6055 = vsel %vm1264, %v6031, 0.0
    %v6056 = vsel %vm1265, %v6030, 0.0
    %v6057 = vsel %vm1266, %v6029, 0.0
    %v6058 = vsel %vm1267, %v6028, 0.0
    %v6059 = vsel %vm1268, %v6043, 0.0
    %v6060 = vpack.c.bf16 %v6045, %v6044
    %v6061 = vpack.c.bf16 %v6047, %v6046
    %v6062 = vpack.c.bf16 %v6049, %v6048
    %v6063 = vpack.c.bf16 %v6051, %v6050
    %v6064 = vpack.c.bf16 %v6053, %v6052
    %v6065 = vpack.c.bf16 %v6055, %v6054
    %v6066 = vpack.c.bf16 %v6057, %v6056
    %v6067 = vpack.c.bf16 %v6059, %v6058
    %v6068 = vsel %vm1325, %v6043, 0.0
    %v6069 = vsel %vm1326, %v6042, 0.0
    %v6070 = vsel %vm1327, %v6041, 0.0
    %v6071 = vsel %vm1328, %v6040, 0.0
    %v6072 = vsel %vm1329, %v6039, 0.0
    %v6073 = vsel %vm1330, %v6038, 0.0
    %v6074 = vsel %vm1331, %v6037, 0.0
    %v6075 = vsel %vm1332, %v6036, 0.0
    %v6076 = vsel %vm1333, %v6035, 0.0
    %v6077 = vsel %vm1334, %v6034, 0.0
    %v6078 = vsel %vm1335, %v6033, 0.0
    %v6079 = vsel %vm1336, %v6032, 0.0
    %v6080 = vsel %vm1337, %v6031, 0.0
    %v6081 = vsel %vm1338, %v6030, 0.0
    %v6082 = vsel %vm1339, %v6029, 0.0
    %v6083 = vsel %vm1340, %v6028, 0.0
    %v6084 = vpack.c.bf16 %v6069, %v6068
    %v6085 = vpack.c.bf16 %v6071, %v6070
    %v6086 = vpack.c.bf16 %v6073, %v6072
    %v6087 = vpack.c.bf16 %v6075, %v6074
    %v6088 = vpack.c.bf16 %v6077, %v6076
    %v6089 = vpack.c.bf16 %v6079, %v6078
    %v6090 = vpack.c.bf16 %v6081, %v6080
    %v6091 = vpack.c.bf16 %v6083, %v6082
    %6100 = vrot.lane.b32.xlu0 %v6060, 64
    %v6101 = vpop.permute.xlu0 %6100
    %6102 = vrot.lane.b32.xlu0 %v6061, 64
    %v6103 = vpop.permute.xlu0 %6102
    %6104 = vrot.lane.b32.xlu0 %v6062, 64
    %v6105 = vpop.permute.xlu0 %6104
    %6106 = vrot.lane.b32.xlu0 %v6063, 64
    %v6107 = vpop.permute.xlu0 %6106
    %6108 = vrot.lane.b32.xlu0 %v6064, 64
    %v6109 = vpop.permute.xlu0 %6108
    %6110 = vrot.lane.b32.xlu0 %v6065, 64
    %v6111 = vpop.permute.xlu0 %6110
    %6112 = vrot.lane.b32.xlu0 %v6066, 64
    %v6113 = vpop.permute.xlu0 %6112
    %6114 = vrot.lane.b32.xlu0 %v6067, 64
    %v6115 = vpop.permute.xlu0 %6114
    %6124 = vrot.lane.b32.xlu0 %v6084, 64
    %v6125 = vpop.permute.xlu0 %6124
    %6126 = vrot.lane.b32.xlu0 %v6085, 64
    %v6127 = vpop.permute.xlu0 %6126
    %6128 = vrot.lane.b32.xlu0 %v6086, 64
    %v6129 = vpop.permute.xlu0 %6128
    %6130 = vrot.lane.b32.xlu0 %v6087, 64
    %v6131 = vpop.permute.xlu0 %6130
    %6132 = vrot.lane.b32.xlu0 %v6088, 64
    %v6133 = vpop.permute.xlu0 %6132
    %6134 = vrot.lane.b32.xlu0 %v6089, 64
    %v6135 = vpop.permute.xlu0 %6134
    %6136 = vrot.lane.b32.xlu0 %v6090, 64
    %v6137 = vpop.permute.xlu0 %6136
    %6138 = vrot.lane.b32.xlu0 %v6091, 64
    %v6139 = vpop.permute.xlu0 %6138
    %v6141 = vsel %vm165, %v5402, %v6101
    %v6144 = vsel %vm165, %v5403, %v6103
    %v6147 = vsel %vm165, %v5404, %v6105
    %v6150 = vsel %vm165, %v5405, %v6107
    %v6153 = vsel %vm165, %v5406, %v6109
    %v6156 = vsel %vm165, %v5407, %v6111
    %v6159 = vsel %vm165, %v5408, %v6113
    %v6162 = vsel %vm165, %v5409, %v6115
    %v6165 = vsel %vm165, %v5482, %v6125
    %v6168 = vsel %vm165, %v5483, %v6127
    %v6171 = vsel %vm165, %v5484, %v6129
    %v6174 = vsel %vm165, %v5485, %v6131
    %v6177 = vsel %vm165, %v5486, %v6133
    %v6180 = vsel %vm165, %v5487, %v6135
    %v6183 = vsel %vm165, %v5488, %v6137
    %v6186 = vsel %vm165, %v5489, %v6139
    %s6188 = scalar_lea.vmem %s6, 128
    %v6189 = vld [vmem:[%s6188] sm:$0xf]
    %v6190 = vld [vmem:[%s6188 + $0x4] sm:$0xf]
    %v6191 = vld [vmem:[%s6188 + $0x8] sm:$0xf]
    %v6192 = vld [vmem:[%s6188 + $0xc] sm:$0xf]
    %v6193 = vld [vmem:[%s6188 + $0x10] sm:$0xf]
    %v6194 = vld [vmem:[%s6188 + $0x14] sm:$0xf]
    %v6195 = vld [vmem:[%s6188 + $0x18] sm:$0xf]
    %v6196 = vld [vmem:[%s6188 + $0x1c] sm:$0xf]
    %v6197 = vld [vmem:[%s6188 + $0x20] sm:$0xf]
    %v6198 = vld [vmem:[%s6188 + $0x24] sm:$0xf]
    %v6199 = vld [vmem:[%s6188 + $0x28] sm:$0xf]
    %v6200 = vld [vmem:[%s6188 + $0x2c] sm:$0xf]
    %v6201 = vld [vmem:[%s6188 + $0x30] sm:$0xf]
    %v6202 = vld [vmem:[%s6188 + $0x34] sm:$0xf]
    %v6203 = vld [vmem:[%s6188 + $0x38] sm:$0xf]
    %v6204 = vld [vmem:[%s6188 + $0x3c] sm:$0xf]
    %v6205 = vld [vmem:[%s6188 + $0x40] sm:$0xf]
    %v6206 = vld [vmem:[%s6188 + $0x44] sm:$0xf]
    %v6207 = vld [vmem:[%s6188 + $0x48] sm:$0xf]
    %v6208 = vld [vmem:[%s6188 + $0x4c] sm:$0xf]
    %v6209 = vld [vmem:[%s6188 + $0x50] sm:$0xf]
    %v6210 = vld [vmem:[%s6188 + $0x54] sm:$0xf]
    %v6211 = vld [vmem:[%s6188 + $0x58] sm:$0xf]
    %v6212 = vld [vmem:[%s6188 + $0x5c] sm:$0xf]
    %v6213 = vld [vmem:[%s6188 + $0x60] sm:$0xf]
    %v6214 = vld [vmem:[%s6188 + $0x64] sm:$0xf]
    %v6215 = vld [vmem:[%s6188 + $0x68] sm:$0xf]
    %v6216 = vld [vmem:[%s6188 + $0x6c] sm:$0xf]
    %v6217 = vld [vmem:[%s6188 + $0x70] sm:$0xf]
    %v6218 = vld [vmem:[%s6188 + $0x74] sm:$0xf]
    %v6219 = vld [vmem:[%s6188 + $0x78] sm:$0xf]
    %v6220 = vld [vmem:[%s6188 + $0x7c] sm:$0xf]
    %v6253 = vunpack.c.l.b16 %v6189
    %v6254 = vunpack.c.l.b16 %v6190
    %v6255 = vunpack.c.l.b16 %v6191
    %v6256 = vunpack.c.l.b16 %v6192
    %v6257 = vunpack.c.l.b16 %v6193
    %v6258 = vunpack.c.l.b16 %v6194
    %v6259 = vunpack.c.l.b16 %v6195
    %v6260 = vunpack.c.l.b16 %v6196
    %v6261 = vunpack.c.l.b16 %v6197
    %v6262 = vunpack.c.l.b16 %v6198
    %v6263 = vunpack.c.l.b16 %v6199
    %v6264 = vunpack.c.l.b16 %v6200
    %v6265 = vunpack.c.l.b16 %v6201
    %v6266 = vunpack.c.l.b16 %v6202
    %v6267 = vunpack.c.l.b16 %v6203
    %v6268 = vunpack.c.l.b16 %v6204
    %v6269 = vunpack.c.l.b16 %v6205
    %v6270 = vunpack.c.l.b16 %v6206
    %v6271 = vunpack.c.l.b16 %v6207
    %v6272 = vunpack.c.l.b16 %v6208
    %v6273 = vunpack.c.l.b16 %v6209
    %v6274 = vunpack.c.l.b16 %v6210
    %v6275 = vunpack.c.l.b16 %v6211
    %v6276 = vunpack.c.l.b16 %v6212
    %v6277 = vunpack.c.l.b16 %v6213
    %v6278 = vunpack.c.l.b16 %v6214
    %v6279 = vunpack.c.l.b16 %v6215
    %v6280 = vunpack.c.l.b16 %v6216
    %v6281 = vunpack.c.l.b16 %v6217
    %v6282 = vunpack.c.l.b16 %v6218
    %v6283 = vunpack.c.l.b16 %v6219
    %v6284 = vunpack.c.l.b16 %v6220
    %v6285 = vpack.c.b16 %v6254, %v6253
    %v6286 = vpack.c.b16 %v6256, %v6255
    %v6287 = vpack.c.b16 %v6258, %v6257
    %v6288 = vpack.c.b16 %v6260, %v6259
    %v6289 = vpack.c.b16 %v6262, %v6261
    %v6290 = vpack.c.b16 %v6264, %v6263
    %v6291 = vpack.c.b16 %v6266, %v6265
    %v6292 = vpack.c.b16 %v6268, %v6267
    %v6293 = vpack.c.b16 %v6270, %v6269
    %v6294 = vpack.c.b16 %v6272, %v6271
    %v6295 = vpack.c.b16 %v6274, %v6273
    %v6296 = vpack.c.b16 %v6276, %v6275
    %v6297 = vpack.c.b16 %v6278, %v6277
    %v6298 = vpack.c.b16 %v6280, %v6279
    %v6299 = vpack.c.b16 %v6282, %v6281
    %v6300 = vpack.c.b16 %v6284, %v6283
    %6317 = vmatprep.subr.bf16.mxu0 0
    %6318 = vmatpush1.bf16.msra.mxu0 %v6292
    %6319 = vmatprep.subr.bf16.mxu0 0
    %6320 = vmatpush1.bf16.msra.mxu0 %v6291
    %6321 = vmatprep.subr.bf16.mxu0 0
    %6322 = vmatpush1.bf16.msra.mxu0 %v6290
    %6323 = vmatprep.subr.bf16.mxu0 0
    %6324 = vmatpush1.bf16.msra.mxu0 %v6289
    %6325 = vmatprep.subr.bf16.mxu0 0
    %6326 = vmatpush1.bf16.msra.mxu0 %v6288
    %6327 = vmatprep.subr.bf16.mxu0 0
    %6328 = vmatpush1.bf16.msra.mxu0 %v6287
    %6329 = vmatprep.subr.bf16.mxu0 0
    %6330 = vmatpush1.bf16.msra.mxu0 %v6286
    %6331 = vmatprep.subr.bf16.mxu0 0
    %6332 = vmatpush1.bf16.msra.mxu0 %v6285
    %6333 = vmatprep.subr.bf16.mxu0 0
    %6334 = vmatpush2.bf16.msra.mxu0 %v6300
    %6335 = vmatprep.subr.bf16.mxu0 0
    %6336 = vmatpush2.bf16.msra.mxu0 %v6299
    %6337 = vmatprep.subr.bf16.mxu0 0
    %6338 = vmatpush2.bf16.msra.mxu0 %v6298
    %6339 = vmatprep.subr.bf16.mxu0 0
    %6340 = vmatpush2.bf16.msra.mxu0 %v6297
    %6341 = vmatprep.subr.bf16.mxu0 0
    %6342 = vmatpush2.bf16.msra.mxu0 %v6296
    %6343 = vmatprep.subr.bf16.mxu0 0
    %6344 = vmatpush2.bf16.msra.mxu0 %v6295
    %6345 = vmatprep.subr.bf16.mxu0 0
    %6346 = vmatpush2.bf16.msra.mxu0 %v6294
    %6347 = vmatprep.subr.bf16.mxu0 0
    %6348 = vmatpush2.bf16.msra.mxu0 %v6293
    %6349 = vmatprep.mubr.bf16.mxu0 %v6165
    %6350 = vmatmul.mubr.bf16.gmra.mxu0 %v6141
    %v6351 = vpop.f32.mrf.mxu0
    %v6352 = vadd.f32 0.0, %v6351
    %v6353 = vpop.f32.mrf.mxu0
    %v6354 = vpop.f32.mrf.mxu0
    %v6355 = vadd.f32 0.0, %v6354
    %v6356 = vpop.f32.mrf.mxu0
    %6357 = vmatprep.mubr.bf16.mxu0 %v6168
    %6358 = vmatmul.mubr.bf16.gmra.mxu0 %v6144
    %v6359 = vpop.f32.mrf.mxu0
    %v6360 = vadd.f32 0.0, %v6359
    %v6361 = vpop.f32.mrf.mxu0
    %v6362 = vpop.f32.mrf.mxu0
    %v6363 = vadd.f32 0.0, %v6362
    %v6364 = vpop.f32.mrf.mxu0
    %6365 = vmatprep.mubr.bf16.mxu0 %v6171
    %6366 = vmatmul.mubr.bf16.gmra.mxu0 %v6147
    %v6367 = vpop.f32.mrf.mxu0
    %v6368 = vadd.f32 0.0, %v6367
    %v6369 = vpop.f32.mrf.mxu0
    %v6370 = vpop.f32.mrf.mxu0
    %v6371 = vadd.f32 0.0, %v6370
    %v6372 = vpop.f32.mrf.mxu0
    %6373 = vmatprep.mubr.bf16.mxu0 %v6174
    %6374 = vmatmul.mubr.bf16.gmra.mxu0 %v6150
    %v6375 = vpop.f32.mrf.mxu0
    %v6376 = vadd.f32 0.0, %v6375
    %v6377 = vpop.f32.mrf.mxu0
    %v6378 = vpop.f32.mrf.mxu0
    %v6379 = vadd.f32 0.0, %v6378
    %v6380 = vpop.f32.mrf.mxu0
    %6381 = vmatprep.mubr.bf16.mxu0 %v6177
    %6382 = vmatmul.mubr.bf16.gmra.mxu0 %v6153
    %v6383 = vpop.f32.mrf.mxu0
    %v6384 = vadd.f32 0.0, %v6383
    %v6385 = vpop.f32.mrf.mxu0
    %v6386 = vpop.f32.mrf.mxu0
    %v6387 = vadd.f32 0.0, %v6386
    %v6388 = vpop.f32.mrf.mxu0
    %6389 = vmatprep.mubr.bf16.mxu0 %v6180
    %6390 = vmatmul.mubr.bf16.gmra.mxu0 %v6156
    %v6391 = vpop.f32.mrf.mxu0
    %v6392 = vadd.f32 0.0, %v6391
    %v6393 = vpop.f32.mrf.mxu0
    %v6394 = vpop.f32.mrf.mxu0
    %v6395 = vadd.f32 0.0, %v6394
    %v6396 = vpop.f32.mrf.mxu0
    %6397 = vmatprep.mubr.bf16.mxu0 %v6183
    %6398 = vmatmul.mubr.bf16.gmra.mxu0 %v6159
    %v6399 = vpop.f32.mrf.mxu0
    %v6400 = vadd.f32 0.0, %v6399
    %v6401 = vpop.f32.mrf.mxu0
    %v6402 = vpop.f32.mrf.mxu0
    %v6403 = vadd.f32 0.0, %v6402
    %v6404 = vpop.f32.mrf.mxu0
    %6405 = vmatprep.mubr.bf16.mxu0 %v6186
    %6406 = vmatmul.mubr.bf16.gmra.mxu0 %v6162
    %v6407 = vpop.f32.mrf.mxu0
    %v6408 = vadd.f32 0.0, %v6407
    %v6409 = vpop.f32.mrf.mxu0
    %v6410 = vpop.f32.mrf.mxu0
    %v6411 = vadd.f32 0.0, %v6410
    %v6412 = vpop.f32.mrf.mxu0
    %6413 = vdwg.mxu0
    %vm6414 = vcmp.ge.f32.partialorder %v6352, 0.0
    %vm6415 = vcmp.ge.f32.partialorder %v6355, 0.0
    %vm6416 = vcmp.ge.f32.partialorder %v6360, 0.0
    %vm6417 = vcmp.ge.f32.partialorder %v6363, 0.0
    %vm6418 = vcmp.ge.f32.partialorder %v6368, 0.0
    %vm6419 = vcmp.ge.f32.partialorder %v6371, 0.0
    %vm6420 = vcmp.ge.f32.partialorder %v6376, 0.0
    %vm6421 = vcmp.ge.f32.partialorder %v6379, 0.0
    %vm6422 = vcmp.ge.f32.partialorder %v6384, 0.0
    %vm6423 = vcmp.ge.f32.partialorder %v6387, 0.0
    %vm6424 = vcmp.ge.f32.partialorder %v6392, 0.0
    %vm6425 = vcmp.ge.f32.partialorder %v6395, 0.0
    %vm6426 = vcmp.ge.f32.partialorder %v6400, 0.0
    %vm6427 = vcmp.ge.f32.partialorder %v6403, 0.0
    %vm6428 = vcmp.ge.f32.partialorder %v6408, 0.0
    %vm6429 = vcmp.ge.f32.partialorder %v6411, 0.0
    %v6430 = vmul.f32 %v5867, %v6352
    %v6431 = vmul.f32 %v5867, %v6355
    %v6432 = vmul.f32 %v5867, %v6360
    %v6433 = vmul.f32 %v5867, %v6363
    %v6434 = vmul.f32 %v5867, %v6368
    %v6435 = vmul.f32 %v5867, %v6371
    %v6436 = vmul.f32 %v5867, %v6376
    %v6437 = vmul.f32 %v5867, %v6379
    %v6438 = vmul.f32 %v5867, %v6384
    %v6439 = vmul.f32 %v5867, %v6387
    %v6440 = vmul.f32 %v5867, %v6392
    %v6441 = vmul.f32 %v5867, %v6395
    %v6442 = vmul.f32 %v5867, %v6400
    %v6443 = vmul.f32 %v5867, %v6403
    %v6444 = vmul.f32 %v5867, %v6408
    %v6445 = vmul.f32 %v5867, %v6411
    %v6446 = vsel %vm6414, %v6352, %v6430
    %v6447 = vsel %vm6415, %v6355, %v6431
    %v6448 = vsel %vm6416, %v6360, %v6432
    %v6449 = vsel %vm6417, %v6363, %v6433
    %v6450 = vsel %vm6418, %v6368, %v6434
    %v6451 = vsel %vm6419, %v6371, %v6435
    %v6452 = vsel %vm6420, %v6376, %v6436
    %v6453 = vsel %vm6421, %v6379, %v6437
    %v6454 = vsel %vm6422, %v6384, %v6438
    %v6455 = vsel %vm6423, %v6387, %v6439
    %v6456 = vsel %vm6424, %v6392, %v6440
    %v6457 = vsel %vm6425, %v6395, %v6441
    %v6458 = vsel %vm6426, %v6400, %v6442
    %v6459 = vsel %vm6427, %v6403, %v6443
    %v6460 = vsel %vm6428, %v6408, %v6444
    %v6461 = vsel %vm6429, %v6411, %v6445
    %v6462 = vunpack.c.l.bf16 %v1888
    %v6463 = vunpack.c.h.bf16 %v1888
    %v6464 = vunpack.c.l.bf16 %v1889
    %v6465 = vunpack.c.h.bf16 %v1889
    %v6466 = vunpack.c.l.bf16 %v1890
    %v6467 = vunpack.c.h.bf16 %v1890
    %v6468 = vunpack.c.l.bf16 %v1891
    %v6469 = vunpack.c.h.bf16 %v1891
    %v6470 = vunpack.c.l.bf16 %v1892
    %v6471 = vunpack.c.h.bf16 %v1892
    %v6472 = vunpack.c.l.bf16 %v1893
    %v6473 = vunpack.c.h.bf16 %v1893
    %v6474 = vunpack.c.l.bf16 %v1894
    %v6475 = vunpack.c.h.bf16 %v1894
    %v6476 = vunpack.c.l.bf16 %v1895
    %v6477 = vunpack.c.h.bf16 %v1895
    %v6478 = vadd.f32 %v6446, %v6462
    %v6479 = vadd.f32 %v6447, %v6463
    %v6480 = vadd.f32 %v6448, %v6464
    %v6481 = vadd.f32 %v6449, %v6465
    %v6482 = vadd.f32 %v6450, %v6466
    %v6483 = vadd.f32 %v6451, %v6467
    %v6484 = vadd.f32 %v6452, %v6468
    %v6485 = vadd.f32 %v6453, %v6469
    %v6486 = vadd.f32 %v6454, %v6470
    %v6487 = vadd.f32 %v6455, %v6471
    %v6488 = vadd.f32 %v6456, %v6472
    %v6489 = vadd.f32 %v6457, %v6473
    %v6490 = vadd.f32 %v6458, %v6474
    %v6491 = vadd.f32 %v6459, %v6475
    %v6492 = vadd.f32 %v6460, %v6476
    %v6493 = vadd.f32 %v6461, %v6477
    %v6494 = vpack.c.bf16 %v6479, %v6478
    %v6495 = vpack.c.bf16 %v6481, %v6480
    %v6496 = vpack.c.bf16 %v6483, %v6482
    %v6497 = vpack.c.bf16 %v6485, %v6484
    %v6498 = vpack.c.bf16 %v6487, %v6486
    %v6499 = vpack.c.bf16 %v6489, %v6488
    %v6500 = vpack.c.bf16 %v6491, %v6490
    %v6501 = vpack.c.bf16 %v6493, %v6492
    %v6510 = vunpack.c.l.b16 %v6494
    %v6511 = vunpack.c.h.b16 %v6494
    %v6512 = vunpack.c.l.b16 %v6495
    %v6513 = vunpack.c.h.b16 %v6495
    %v6514 = vunpack.c.l.b16 %v6496
    %v6515 = vunpack.c.h.b16 %v6496
    %v6516 = vunpack.c.l.b16 %v6497
    %v6517 = vunpack.c.h.b16 %v6497
    %v6518 = vunpack.c.l.b16 %v6498
    %v6519 = vunpack.c.h.b16 %v6498
    %v6520 = vunpack.c.l.b16 %v6499
    %v6521 = vunpack.c.h.b16 %v6499
    %v6522 = vunpack.c.l.b16 %v6500
    %v6523 = vunpack.c.h.b16 %v6500
    %v6524 = vunpack.c.l.b16 %v6501
    %v6525 = vunpack.c.h.b16 %v6501
    %v6526 = vpack.c.b16 %v6510, %v6510
    %v6527 = vpack.c.b16 %v6511, %v6511
    %v6528 = vpack.c.b16 %v6512, %v6512
    %v6529 = vpack.c.b16 %v6513, %v6513
    %v6530 = vpack.c.b16 %v6514, %v6514
    %v6531 = vpack.c.b16 %v6515, %v6515
    %v6532 = vpack.c.b16 %v6516, %v6516
    %v6533 = vpack.c.b16 %v6517, %v6517
    %v6534 = vpack.c.b16 %v6518, %v6518
    %v6535 = vpack.c.b16 %v6519, %v6519
    %v6536 = vpack.c.b16 %v6520, %v6520
    %v6537 = vpack.c.b16 %v6521, %v6521
    %v6538 = vpack.c.b16 %v6522, %v6522
    %v6539 = vpack.c.b16 %v6523, %v6523
    %v6540 = vpack.c.b16 %v6524, %v6524
    %v6541 = vpack.c.b16 %v6525, %v6525
    %s6558 = scalar_lea.vmem %s7, 64
    %6559 = vst [vmem:[%s6558] sm:$0xf] %v6526
    %6560 = vst [vmem:[%s6558 + $0x4] sm:$0xf] %v6527
    %6561 = vst [vmem:[%s6558 + $0x8] sm:$0xf] %v6528
    %6562 = vst [vmem:[%s6558 + $0xc] sm:$0xf] %v6529
    %6563 = vst [vmem:[%s6558 + $0x10] sm:$0xf] %v6530
    %6564 = vst [vmem:[%s6558 + $0x14] sm:$0xf] %v6531
    %6565 = vst [vmem:[%s6558 + $0x18] sm:$0xf] %v6532
    %6566 = vst [vmem:[%s6558 + $0x1c] sm:$0xf] %v6533
    %6567 = vst [vmem:[%s6558 + $0x20] sm:$0xf] %v6534
    %6568 = vst [vmem:[%s6558 + $0x24] sm:$0xf] %v6535
    %6569 = vst [vmem:[%s6558 + $0x28] sm:$0xf] %v6536
    %6570 = vst [vmem:[%s6558 + $0x2c] sm:$0xf] %v6537
    %6571 = vst [vmem:[%s6558 + $0x30] sm:$0xf] %v6538
    %6572 = vst [vmem:[%s6558 + $0x34] sm:$0xf] %v6539
    %6573 = vst [vmem:[%s6558 + $0x38] sm:$0xf] %v6540
    %6574 = vst [vmem:[%s6558 + $0x3c] sm:$0xf] %v6541
    %v6575 = vsel %vm1928, %v5387, 0.0
    %v6576 = vsel %vm1929, %v5388, 0.0
    %v6577 = vsel %vm1930, %v5389, 0.0
    %v6578 = vsel %vm1931, %v5390, 0.0
    %v6579 = vsel %vm1932, %v5391, 0.0
    %v6580 = vsel %vm1933, %v5392, 0.0
    %v6581 = vsel %vm1934, %v5393, 0.0
    %v6582 = vsel %vm1935, %v5394, 0.0
    %v6583 = vsel %vm1936, %v5395, 0.0
    %v6584 = vsel %vm1937, %v5396, 0.0
    %v6585 = vsel %vm1938, %v5397, 0.0
    %v6586 = vsel %vm1939, %v5398, 0.0
    %v6587 = vsel %vm1940, %v5399, 0.0
    %v6588 = vsel %vm1941, %v5400, 0.0
    %v6589 = vsel %vm1942, %v5401, 0.0
    %v6590 = vsel %vm1943, %v5386, 0.0
    %v6591 = vpack.c.bf16 %v6576, %v6575
    %v6592 = vpack.c.bf16 %v6578, %v6577
    %v6593 = vpack.c.bf16 %v6580, %v6579
    %v6594 = vpack.c.bf16 %v6582, %v6581
    %v6595 = vpack.c.bf16 %v6584, %v6583
    %v6596 = vpack.c.bf16 %v6586, %v6585
    %v6597 = vpack.c.bf16 %v6588, %v6587
    %v6598 = vpack.c.bf16 %v6590, %v6589
    %v6599 = vsel %vm2000, %v5440, 0.0
    %v6600 = vsel %vm2001, %v5439, 0.0
    %v6601 = vsel %vm2002, %v5438, 0.0
    %v6602 = vsel %vm2003, %v5437, 0.0
    %v6603 = vsel %vm2004, %v5436, 0.0
    %v6604 = vsel %vm2005, %v5435, 0.0
    %v6605 = vsel %vm2006, %v5434, 0.0
    %v6606 = vsel %vm2007, %v5433, 0.0
    %v6607 = vsel %vm2008, %v5432, 0.0
    %v6608 = vsel %vm2009, %v5431, 0.0
    %v6609 = vsel %vm2010, %v5430, 0.0
    %v6610 = vsel %vm2011, %v5429, 0.0
    %v6611 = vsel %vm2012, %v5428, 0.0
    %v6612 = vsel %vm2013, %v5427, 0.0
    %v6613 = vsel %vm2014, %v5426, 0.0
    %v6614 = vsel %vm2015, %v5441, 0.0
    %v6615 = vpack.c.bf16 %v6600, %v6599
    %v6616 = vpack.c.bf16 %v6602, %v6601
    %v6617 = vpack.c.bf16 %v6604, %v6603
    %v6618 = vpack.c.bf16 %v6606, %v6605
    %v6619 = vpack.c.bf16 %v6608, %v6607
    %v6620 = vpack.c.bf16 %v6610, %v6609
    %v6621 = vpack.c.bf16 %v6612, %v6611
    %v6622 = vpack.c.bf16 %v6614, %v6613
    %6631 = vrot.lane.b32.xlu0 %v6615, 64
    %v6632 = vpop.permute.xlu0 %6631
    %6633 = vrot.lane.b32.xlu0 %v6616, 64
    %v6634 = vpop.permute.xlu0 %6633
    %6635 = vrot.lane.b32.xlu0 %v6617, 64
    %v6636 = vpop.permute.xlu0 %6635
    %6637 = vrot.lane.b32.xlu0 %v6618, 64
    %v6638 = vpop.permute.xlu0 %6637
    %6639 = vrot.lane.b32.xlu0 %v6619, 64
    %v6640 = vpop.permute.xlu0 %6639
    %6641 = vrot.lane.b32.xlu0 %v6620, 64
    %v6642 = vpop.permute.xlu0 %6641
    %6643 = vrot.lane.b32.xlu0 %v6621, 64
    %v6644 = vpop.permute.xlu0 %6643
    %6645 = vrot.lane.b32.xlu0 %v6622, 64
    %v6646 = vpop.permute.xlu0 %6645
    %v6649 = vsel %vm165, %v6591, %v6632
    %v6653 = vsel %vm165, %v6592, %v6634
    %v6657 = vsel %vm165, %v6593, %v6636
    %v6661 = vsel %vm165, %v6594, %v6638
    %v6665 = vsel %vm165, %v6595, %v6640
    %v6669 = vsel %vm165, %v6596, %v6642
    %v6673 = vsel %vm165, %v6597, %v6644
    %v6677 = vsel %vm165, %v6598, %v6646
    %s6679 = scalar_lea.vmem %s6, 256
    %v6680 = vld [vmem:[%s6679] sm:$0xf]
    %v6681 = vld [vmem:[%s6679 + $0x4] sm:$0xf]
    %v6682 = vld [vmem:[%s6679 + $0x8] sm:$0xf]
    %v6683 = vld [vmem:[%s6679 + $0xc] sm:$0xf]
    %v6684 = vld [vmem:[%s6679 + $0x10] sm:$0xf]
    %v6685 = vld [vmem:[%s6679 + $0x14] sm:$0xf]
    %v6686 = vld [vmem:[%s6679 + $0x18] sm:$0xf]
    %v6687 = vld [vmem:[%s6679 + $0x1c] sm:$0xf]
    %v6688 = vld [vmem:[%s6679 + $0x20] sm:$0xf]
    %v6689 = vld [vmem:[%s6679 + $0x24] sm:$0xf]
    %v6690 = vld [vmem:[%s6679 + $0x28] sm:$0xf]
    %v6691 = vld [vmem:[%s6679 + $0x2c] sm:$0xf]
    %v6692 = vld [vmem:[%s6679 + $0x30] sm:$0xf]
    %v6693 = vld [vmem:[%s6679 + $0x34] sm:$0xf]
    %v6694 = vld [vmem:[%s6679 + $0x38] sm:$0xf]
    %v6695 = vld [vmem:[%s6679 + $0x3c] sm:$0xf]
    %v6696 = vld [vmem:[%s6679 + $0x40] sm:$0xf]
    %v6697 = vld [vmem:[%s6679 + $0x44] sm:$0xf]
    %v6698 = vld [vmem:[%s6679 + $0x48] sm:$0xf]
    %v6699 = vld [vmem:[%s6679 + $0x4c] sm:$0xf]
    %v6700 = vld [vmem:[%s6679 + $0x50] sm:$0xf]
    %v6701 = vld [vmem:[%s6679 + $0x54] sm:$0xf]
    %v6702 = vld [vmem:[%s6679 + $0x58] sm:$0xf]
    %v6703 = vld [vmem:[%s6679 + $0x5c] sm:$0xf]
    %v6704 = vld [vmem:[%s6679 + $0x60] sm:$0xf]
    %v6705 = vld [vmem:[%s6679 + $0x64] sm:$0xf]
    %v6706 = vld [vmem:[%s6679 + $0x68] sm:$0xf]
    %v6707 = vld [vmem:[%s6679 + $0x6c] sm:$0xf]
    %v6708 = vld [vmem:[%s6679 + $0x70] sm:$0xf]
    %v6709 = vld [vmem:[%s6679 + $0x74] sm:$0xf]
    %v6710 = vld [vmem:[%s6679 + $0x78] sm:$0xf]
    %v6711 = vld [vmem:[%s6679 + $0x7c] sm:$0xf]
    %v6744 = vunpack.c.l.b16 %v6680
    %v6745 = vunpack.c.l.b16 %v6681
    %v6746 = vunpack.c.l.b16 %v6682
    %v6747 = vunpack.c.l.b16 %v6683
    %v6748 = vunpack.c.l.b16 %v6684
    %v6749 = vunpack.c.l.b16 %v6685
    %v6750 = vunpack.c.l.b16 %v6686
    %v6751 = vunpack.c.l.b16 %v6687
    %v6752 = vunpack.c.l.b16 %v6688
    %v6753 = vunpack.c.l.b16 %v6689
    %v6754 = vunpack.c.l.b16 %v6690
    %v6755 = vunpack.c.l.b16 %v6691
    %v6756 = vunpack.c.l.b16 %v6692
    %v6757 = vunpack.c.l.b16 %v6693
    %v6758 = vunpack.c.l.b16 %v6694
    %v6759 = vunpack.c.l.b16 %v6695
    %v6760 = vunpack.c.l.b16 %v6696
    %v6761 = vunpack.c.l.b16 %v6697
    %v6762 = vunpack.c.l.b16 %v6698
    %v6763 = vunpack.c.l.b16 %v6699
    %v6764 = vunpack.c.l.b16 %v6700
    %v6765 = vunpack.c.l.b16 %v6701
    %v6766 = vunpack.c.l.b16 %v6702
    %v6767 = vunpack.c.l.b16 %v6703
    %v6768 = vunpack.c.l.b16 %v6704
    %v6769 = vunpack.c.l.b16 %v6705
    %v6770 = vunpack.c.l.b16 %v6706
    %v6771 = vunpack.c.l.b16 %v6707
    %v6772 = vunpack.c.l.b16 %v6708
    %v6773 = vunpack.c.l.b16 %v6709
    %v6774 = vunpack.c.l.b16 %v6710
    %v6775 = vunpack.c.l.b16 %v6711
    %v6776 = vpack.c.b16 %v6745, %v6744
    %v6777 = vpack.c.b16 %v6747, %v6746
    %v6778 = vpack.c.b16 %v6749, %v6748
    %v6779 = vpack.c.b16 %v6751, %v6750
    %v6780 = vpack.c.b16 %v6753, %v6752
    %v6781 = vpack.c.b16 %v6755, %v6754
    %v6782 = vpack.c.b16 %v6757, %v6756
    %v6783 = vpack.c.b16 %v6759, %v6758
    %v6784 = vpack.c.b16 %v6761, %v6760
    %v6785 = vpack.c.b16 %v6763, %v6762
    %v6786 = vpack.c.b16 %v6765, %v6764
    %v6787 = vpack.c.b16 %v6767, %v6766
    %v6788 = vpack.c.b16 %v6769, %v6768
    %v6789 = vpack.c.b16 %v6771, %v6770
    %v6790 = vpack.c.b16 %v6773, %v6772
    %v6791 = vpack.c.b16 %v6775, %v6774
    %6808 = vmatprep.subr.bf16.mxu0 0
    %6809 = vmatpush1.bf16.msra.mxu0 %v6783
    %6810 = vmatprep.subr.bf16.mxu0 0
    %6811 = vmatpush1.bf16.msra.mxu0 %v6782
    %6812 = vmatprep.subr.bf16.mxu0 0
    %6813 = vmatpush1.bf16.msra.mxu0 %v6781
    %6814 = vmatprep.subr.bf16.mxu0 0
    %6815 = vmatpush1.bf16.msra.mxu0 %v6780
    %6816 = vmatprep.subr.bf16.mxu0 0
    %6817 = vmatpush1.bf16.msra.mxu0 %v6779
    %6818 = vmatprep.subr.bf16.mxu0 0
    %6819 = vmatpush1.bf16.msra.mxu0 %v6778
    %6820 = vmatprep.subr.bf16.mxu0 0
    %6821 = vmatpush1.bf16.msra.mxu0 %v6777
    %6822 = vmatprep.subr.bf16.mxu0 0
    %6823 = vmatpush1.bf16.msra.mxu0 %v6776
    %6824 = vmatprep.subr.bf16.mxu0 0
    %6825 = vmatpush2.bf16.msra.mxu0 %v6791
    %6826 = vmatprep.subr.bf16.mxu0 0
    %6827 = vmatpush2.bf16.msra.mxu0 %v6790
    %6828 = vmatprep.subr.bf16.mxu0 0
    %6829 = vmatpush2.bf16.msra.mxu0 %v6789
    %6830 = vmatprep.subr.bf16.mxu0 0
    %6831 = vmatpush2.bf16.msra.mxu0 %v6788
    %6832 = vmatprep.subr.bf16.mxu0 0
    %6833 = vmatpush2.bf16.msra.mxu0 %v6787
    %6834 = vmatprep.subr.bf16.mxu0 0
    %6835 = vmatpush2.bf16.msra.mxu0 %v6786
    %6836 = vmatprep.subr.bf16.mxu0 0
    %6837 = vmatpush2.bf16.msra.mxu0 %v6785
    %6838 = vmatprep.subr.bf16.mxu0 0
    %6839 = vmatpush2.bf16.msra.mxu0 %v6784
    %6840 = vmatprep.mubr.bf16.mxu0 %v6649
    %6841 = vmatmul.mubr.bf16.gmra.mxu0 %v5564
    %v6842 = vpop.f32.mrf.mxu0
    %v6843 = vadd.f32 0.0, %v6842
    %v6844 = vpop.f32.mrf.mxu0
    %v6845 = vpop.f32.mrf.mxu0
    %v6846 = vadd.f32 0.0, %v6845
    %v6847 = vpop.f32.mrf.mxu0
    %6848 = vmatprep.mubr.bf16.mxu0 %v6653
    %6849 = vmatmul.mubr.bf16.gmra.mxu0 %v5568
    %v6850 = vpop.f32.mrf.mxu0
    %v6851 = vadd.f32 0.0, %v6850
    %v6852 = vpop.f32.mrf.mxu0
    %v6853 = vpop.f32.mrf.mxu0
    %v6854 = vadd.f32 0.0, %v6853
    %v6855 = vpop.f32.mrf.mxu0
    %6856 = vmatprep.mubr.bf16.mxu0 %v6657
    %6857 = vmatmul.mubr.bf16.gmra.mxu0 %v5572
    %v6858 = vpop.f32.mrf.mxu0
    %v6859 = vadd.f32 0.0, %v6858
    %v6860 = vpop.f32.mrf.mxu0
    %v6861 = vpop.f32.mrf.mxu0
    %v6862 = vadd.f32 0.0, %v6861
    %v6863 = vpop.f32.mrf.mxu0
    %6864 = vmatprep.mubr.bf16.mxu0 %v6661
    %6865 = vmatmul.mubr.bf16.gmra.mxu0 %v5576
    %v6866 = vpop.f32.mrf.mxu0
    %v6867 = vadd.f32 0.0, %v6866
    %v6868 = vpop.f32.mrf.mxu0
    %v6869 = vpop.f32.mrf.mxu0
    %v6870 = vadd.f32 0.0, %v6869
    %v6871 = vpop.f32.mrf.mxu0
    %6872 = vmatprep.mubr.bf16.mxu0 %v6665
    %6873 = vmatmul.mubr.bf16.gmra.mxu0 %v5580
    %v6874 = vpop.f32.mrf.mxu0
    %v6875 = vadd.f32 0.0, %v6874
    %v6876 = vpop.f32.mrf.mxu0
    %v6877 = vpop.f32.mrf.mxu0
    %v6878 = vadd.f32 0.0, %v6877
    %v6879 = vpop.f32.mrf.mxu0
    %6880 = vmatprep.mubr.bf16.mxu0 %v6669
    %6881 = vmatmul.mubr.bf16.gmra.mxu0 %v5584
    %v6882 = vpop.f32.mrf.mxu0
    %v6883 = vadd.f32 0.0, %v6882
    %v6884 = vpop.f32.mrf.mxu0
    %v6885 = vpop.f32.mrf.mxu0
    %v6886 = vadd.f32 0.0, %v6885
    %v6887 = vpop.f32.mrf.mxu0
    %6888 = vmatprep.mubr.bf16.mxu0 %v6673
    %6889 = vmatmul.mubr.bf16.gmra.mxu0 %v5588
    %v6890 = vpop.f32.mrf.mxu0
    %v6891 = vadd.f32 0.0, %v6890
    %v6892 = vpop.f32.mrf.mxu0
    %v6893 = vpop.f32.mrf.mxu0
    %v6894 = vadd.f32 0.0, %v6893
    %v6895 = vpop.f32.mrf.mxu0
    %6896 = vmatprep.mubr.bf16.mxu0 %v6677
    %6897 = vmatmul.mubr.bf16.gmra.mxu0 %v5592
    %v6898 = vpop.f32.mrf.mxu0
    %v6899 = vadd.f32 0.0, %v6898
    %v6900 = vpop.f32.mrf.mxu0
    %v6901 = vpop.f32.mrf.mxu0
    %v6902 = vadd.f32 0.0, %v6901
    %v6903 = vpop.f32.mrf.mxu0
    %6904 = vdwg.mxu0
    %vm6905 = vcmp.ge.f32.partialorder %v6843, 0.0
    %vm6906 = vcmp.ge.f32.partialorder %v6846, 0.0
    %vm6907 = vcmp.ge.f32.partialorder %v6851, 0.0
    %vm6908 = vcmp.ge.f32.partialorder %v6854, 0.0
    %vm6909 = vcmp.ge.f32.partialorder %v6859, 0.0
    %vm6910 = vcmp.ge.f32.partialorder %v6862, 0.0
    %vm6911 = vcmp.ge.f32.partialorder %v6867, 0.0
    %vm6912 = vcmp.ge.f32.partialorder %v6870, 0.0
    %vm6913 = vcmp.ge.f32.partialorder %v6875, 0.0
    %vm6914 = vcmp.ge.f32.partialorder %v6878, 0.0
    %vm6915 = vcmp.ge.f32.partialorder %v6883, 0.0
    %vm6916 = vcmp.ge.f32.partialorder %v6886, 0.0
    %vm6917 = vcmp.ge.f32.partialorder %v6891, 0.0
    %vm6918 = vcmp.ge.f32.partialorder %v6894, 0.0
    %vm6919 = vcmp.ge.f32.partialorder %v6899, 0.0
    %vm6920 = vcmp.ge.f32.partialorder %v6902, 0.0
    %v6921 = vmul.f32 %v5867, %v6843
    %v6922 = vmul.f32 %v5867, %v6846
    %v6923 = vmul.f32 %v5867, %v6851
    %v6924 = vmul.f32 %v5867, %v6854
    %v6925 = vmul.f32 %v5867, %v6859
    %v6926 = vmul.f32 %v5867, %v6862
    %v6927 = vmul.f32 %v5867, %v6867
    %v6928 = vmul.f32 %v5867, %v6870
    %v6929 = vmul.f32 %v5867, %v6875
    %v6930 = vmul.f32 %v5867, %v6878
    %v6931 = vmul.f32 %v5867, %v6883
    %v6932 = vmul.f32 %v5867, %v6886
    %v6933 = vmul.f32 %v5867, %v6891
    %v6934 = vmul.f32 %v5867, %v6894
    %v6935 = vmul.f32 %v5867, %v6899
    %v6936 = vmul.f32 %v5867, %v6902
    %v6937 = vsel %vm6905, %v6843, %v6921
    %v6938 = vsel %vm6906, %v6846, %v6922
    %v6939 = vsel %vm6907, %v6851, %v6923
    %v6940 = vsel %vm6908, %v6854, %v6924
    %v6941 = vsel %vm6909, %v6859, %v6925
    %v6942 = vsel %vm6910, %v6862, %v6926
    %v6943 = vsel %vm6911, %v6867, %v6927
    %v6944 = vsel %vm6912, %v6870, %v6928
    %v6945 = vsel %vm6913, %v6875, %v6929
    %v6946 = vsel %vm6914, %v6878, %v6930
    %v6947 = vsel %vm6915, %v6883, %v6931
    %v6948 = vsel %vm6916, %v6886, %v6932
    %v6949 = vsel %vm6917, %v6891, %v6933
    %v6950 = vsel %vm6918, %v6894, %v6934
    %v6951 = vsel %vm6919, %v6899, %v6935
    %v6952 = vsel %vm6920, %v6902, %v6936
    %v6953 = vunpack.c.l.bf16 %v2523
    %v6954 = vunpack.c.h.bf16 %v2523
    %v6955 = vunpack.c.l.bf16 %v2524
    %v6956 = vunpack.c.h.bf16 %v2524
    %v6957 = vunpack.c.l.bf16 %v2525
    %v6958 = vunpack.c.h.bf16 %v2525
    %v6959 = vunpack.c.l.bf16 %v2526
    %v6960 = vunpack.c.h.bf16 %v2526
    %v6961 = vunpack.c.l.bf16 %v2527
    %v6962 = vunpack.c.h.bf16 %v2527
    %v6963 = vunpack.c.l.bf16 %v2528
    %v6964 = vunpack.c.h.bf16 %v2528
    %v6965 = vunpack.c.l.bf16 %v2529
    %v6966 = vunpack.c.h.bf16 %v2529
    %v6967 = vunpack.c.l.bf16 %v2530
    %v6968 = vunpack.c.h.bf16 %v2530
    %v6969 = vadd.f32 %v6937, %v6953
    %v6970 = vadd.f32 %v6938, %v6954
    %v6971 = vadd.f32 %v6939, %v6955
    %v6972 = vadd.f32 %v6940, %v6956
    %v6973 = vadd.f32 %v6941, %v6957
    %v6974 = vadd.f32 %v6942, %v6958
    %v6975 = vadd.f32 %v6943, %v6959
    %v6976 = vadd.f32 %v6944, %v6960
    %v6977 = vadd.f32 %v6945, %v6961
    %v6978 = vadd.f32 %v6946, %v6962
    %v6979 = vadd.f32 %v6947, %v6963
    %v6980 = vadd.f32 %v6948, %v6964
    %v6981 = vadd.f32 %v6949, %v6965
    %v6982 = vadd.f32 %v6950, %v6966
    %v6983 = vadd.f32 %v6951, %v6967
    %v6984 = vadd.f32 %v6952, %v6968
    %v6985 = vpack.c.bf16 %v6970, %v6969
    %v6986 = vpack.c.bf16 %v6972, %v6971
    %v6987 = vpack.c.bf16 %v6974, %v6973
    %v6988 = vpack.c.bf16 %v6976, %v6975
    %v6989 = vpack.c.bf16 %v6978, %v6977
    %v6990 = vpack.c.bf16 %v6980, %v6979
    %v6991 = vpack.c.bf16 %v6982, %v6981
    %v6992 = vpack.c.bf16 %v6984, %v6983
    %v7001 = vunpack.c.l.b16 %v6985
    %v7002 = vunpack.c.h.b16 %v6985
    %v7003 = vunpack.c.l.b16 %v6986
    %v7004 = vunpack.c.h.b16 %v6986
    %v7005 = vunpack.c.l.b16 %v6987
    %v7006 = vunpack.c.h.b16 %v6987
    %v7007 = vunpack.c.l.b16 %v6988
    %v7008 = vunpack.c.h.b16 %v6988
    %v7009 = vunpack.c.l.b16 %v6989
    %v7010 = vunpack.c.h.b16 %v6989
    %v7011 = vunpack.c.l.b16 %v6990
    %v7012 = vunpack.c.h.b16 %v6990
    %v7013 = vunpack.c.l.b16 %v6991
    %v7014 = vunpack.c.h.b16 %v6991
    %v7015 = vunpack.c.l.b16 %v6992
    %v7016 = vunpack.c.h.b16 %v6992
    %v7017 = vpack.c.b16 %v7001, %v7001
    %v7018 = vpack.c.b16 %v7002, %v7002
    %v7019 = vpack.c.b16 %v7003, %v7003
    %v7020 = vpack.c.b16 %v7004, %v7004
    %v7021 = vpack.c.b16 %v7005, %v7005
    %v7022 = vpack.c.b16 %v7006, %v7006
    %v7023 = vpack.c.b16 %v7007, %v7007
    %v7024 = vpack.c.b16 %v7008, %v7008
    %v7025 = vpack.c.b16 %v7009, %v7009
    %v7026 = vpack.c.b16 %v7010, %v7010
    %v7027 = vpack.c.b16 %v7011, %v7011
    %v7028 = vpack.c.b16 %v7012, %v7012
    %v7029 = vpack.c.b16 %v7013, %v7013
    %v7030 = vpack.c.b16 %v7014, %v7014
    %v7031 = vpack.c.b16 %v7015, %v7015
    %v7032 = vpack.c.b16 %v7016, %v7016
    %s7049 = scalar_lea.vmem %s7, 128
    %7050 = vst [vmem:[%s7049] sm:$0xf] %v7017
    %7051 = vst [vmem:[%s7049 + $0x4] sm:$0xf] %v7018
    %7052 = vst [vmem:[%s7049 + $0x8] sm:$0xf] %v7019
    %7053 = vst [vmem:[%s7049 + $0xc] sm:$0xf] %v7020
    %7054 = vst [vmem:[%s7049 + $0x10] sm:$0xf] %v7021
    %7055 = vst [vmem:[%s7049 + $0x14] sm:$0xf] %v7022
    %7056 = vst [vmem:[%s7049 + $0x18] sm:$0xf] %v7023
    %7057 = vst [vmem:[%s7049 + $0x1c] sm:$0xf] %v7024
    %7058 = vst [vmem:[%s7049 + $0x20] sm:$0xf] %v7025
    %7059 = vst [vmem:[%s7049 + $0x24] sm:$0xf] %v7026
    %7060 = vst [vmem:[%s7049 + $0x28] sm:$0xf] %v7027
    %7061 = vst [vmem:[%s7049 + $0x2c] sm:$0xf] %v7028
    %7062 = vst [vmem:[%s7049 + $0x30] sm:$0xf] %v7029
    %7063 = vst [vmem:[%s7049 + $0x34] sm:$0xf] %v7030
    %7064 = vst [vmem:[%s7049 + $0x38] sm:$0xf] %v7031
    %7065 = vst [vmem:[%s7049 + $0x3c] sm:$0xf] %v7032
    %v7066 = vsel %vm2563, %v6041, 0.0
    %v7067 = vsel %vm2564, %v6040, 0.0
    %v7068 = vsel %vm2565, %v6039, 0.0
    %v7069 = vsel %vm2566, %v6038, 0.0
    %v7070 = vsel %vm2567, %v6037, 0.0
    %v7071 = vsel %vm2568, %v6036, 0.0
    %v7072 = vsel %vm2569, %v6035, 0.0
    %v7073 = vsel %vm2570, %v6034, 0.0
    %v7074 = vsel %vm2571, %v6033, 0.0
    %v7075 = vsel %vm2572, %v6032, 0.0
    %v7076 = vsel %vm2573, %v6031, 0.0
    %v7077 = vsel %vm2574, %v6030, 0.0
    %v7078 = vsel %vm2575, %v6029, 0.0
    %v7079 = vsel %vm2576, %v6028, 0.0
    %v7080 = vsel %vm2577, %v6043, 0.0
    %v7081 = vsel %vm2578, %v6042, 0.0
    %v7082 = vpack.c.bf16 %v7067, %v7066
    %v7083 = vpack.c.bf16 %v7069, %v7068
    %v7084 = vpack.c.bf16 %v7071, %v7070
    %v7085 = vpack.c.bf16 %v7073, %v7072
    %v7086 = vpack.c.bf16 %v7075, %v7074
    %v7087 = vpack.c.bf16 %v7077, %v7076
    %v7088 = vpack.c.bf16 %v7079, %v7078
    %v7089 = vpack.c.bf16 %v7081, %v7080
    %7098 = vrot.lane.b32.xlu0 %v7082, 64
    %v7099 = vpop.permute.xlu0 %7098
    %7100 = vrot.lane.b32.xlu0 %v7083, 64
    %v7101 = vpop.permute.xlu0 %7100
    %7102 = vrot.lane.b32.xlu0 %v7084, 64
    %v7103 = vpop.permute.xlu0 %7102
    %7104 = vrot.lane.b32.xlu0 %v7085, 64
    %v7105 = vpop.permute.xlu0 %7104
    %7106 = vrot.lane.b32.xlu0 %v7086, 64
    %v7107 = vpop.permute.xlu0 %7106
    %7108 = vrot.lane.b32.xlu0 %v7087, 64
    %v7109 = vpop.permute.xlu0 %7108
    %7110 = vrot.lane.b32.xlu0 %v7088, 64
    %v7111 = vpop.permute.xlu0 %7110
    %7112 = vrot.lane.b32.xlu0 %v7089, 64
    %v7113 = vpop.permute.xlu0 %7112
    %v7115 = vsel %vm165, %v6591, %v7099
    %v7118 = vsel %vm165, %v6592, %v7101
    %v7121 = vsel %vm165, %v6593, %v7103
    %v7124 = vsel %vm165, %v6594, %v7105
    %v7127 = vsel %vm165, %v6595, %v7107
    %v7130 = vsel %vm165, %v6596, %v7109
    %v7133 = vsel %vm165, %v6597, %v7111
    %v7136 = vsel %vm165, %v6598, %v7113
    %s7138 = scalar_lea.vmem %s6, 384
    %v7139 = vld [vmem:[%s7138] sm:$0xf]
    %v7140 = vld [vmem:[%s7138 + $0x4] sm:$0xf]
    %v7141 = vld [vmem:[%s7138 + $0x8] sm:$0xf]
    %v7142 = vld [vmem:[%s7138 + $0xc] sm:$0xf]
    %v7143 = vld [vmem:[%s7138 + $0x10] sm:$0xf]
    %v7144 = vld [vmem:[%s7138 + $0x14] sm:$0xf]
    %v7145 = vld [vmem:[%s7138 + $0x18] sm:$0xf]
    %v7146 = vld [vmem:[%s7138 + $0x1c] sm:$0xf]
    %v7147 = vld [vmem:[%s7138 + $0x20] sm:$0xf]
    %v7148 = vld [vmem:[%s7138 + $0x24] sm:$0xf]
    %v7149 = vld [vmem:[%s7138 + $0x28] sm:$0xf]
    %v7150 = vld [vmem:[%s7138 + $0x2c] sm:$0xf]
    %v7151 = vld [vmem:[%s7138 + $0x30] sm:$0xf]
    %v7152 = vld [vmem:[%s7138 + $0x34] sm:$0xf]
    %v7153 = vld [vmem:[%s7138 + $0x38] sm:$0xf]
    %v7154 = vld [vmem:[%s7138 + $0x3c] sm:$0xf]
    %v7155 = vld [vmem:[%s7138 + $0x40] sm:$0xf]
    %v7156 = vld [vmem:[%s7138 + $0x44] sm:$0xf]
    %v7157 = vld [vmem:[%s7138 + $0x48] sm:$0xf]
    %v7158 = vld [vmem:[%s7138 + $0x4c] sm:$0xf]
    %v7159 = vld [vmem:[%s7138 + $0x50] sm:$0xf]
    %v7160 = vld [vmem:[%s7138 + $0x54] sm:$0xf]
    %v7161 = vld [vmem:[%s7138 + $0x58] sm:$0xf]
    %v7162 = vld [vmem:[%s7138 + $0x5c] sm:$0xf]
    %v7163 = vld [vmem:[%s7138 + $0x60] sm:$0xf]
    %v7164 = vld [vmem:[%s7138 + $0x64] sm:$0xf]
    %v7165 = vld [vmem:[%s7138 + $0x68] sm:$0xf]
    %v7166 = vld [vmem:[%s7138 + $0x6c] sm:$0xf]
    %v7167 = vld [vmem:[%s7138 + $0x70] sm:$0xf]
    %v7168 = vld [vmem:[%s7138 + $0x74] sm:$0xf]
    %v7169 = vld [vmem:[%s7138 + $0x78] sm:$0xf]
    %v7170 = vld [vmem:[%s7138 + $0x7c] sm:$0xf]
    %v7203 = vunpack.c.l.b16 %v7139
    %v7204 = vunpack.c.l.b16 %v7140
    %v7205 = vunpack.c.l.b16 %v7141
    %v7206 = vunpack.c.l.b16 %v7142
    %v7207 = vunpack.c.l.b16 %v7143
    %v7208 = vunpack.c.l.b16 %v7144
    %v7209 = vunpack.c.l.b16 %v7145
    %v7210 = vunpack.c.l.b16 %v7146
    %v7211 = vunpack.c.l.b16 %v7147
    %v7212 = vunpack.c.l.b16 %v7148
    %v7213 = vunpack.c.l.b16 %v7149
    %v7214 = vunpack.c.l.b16 %v7150
    %v7215 = vunpack.c.l.b16 %v7151
    %v7216 = vunpack.c.l.b16 %v7152
    %v7217 = vunpack.c.l.b16 %v7153
    %v7218 = vunpack.c.l.b16 %v7154
    %v7219 = vunpack.c.l.b16 %v7155
    %v7220 = vunpack.c.l.b16 %v7156
    %v7221 = vunpack.c.l.b16 %v7157
    %v7222 = vunpack.c.l.b16 %v7158
    %v7223 = vunpack.c.l.b16 %v7159
    %v7224 = vunpack.c.l.b16 %v7160
    %v7225 = vunpack.c.l.b16 %v7161
    %v7226 = vunpack.c.l.b16 %v7162
    %v7227 = vunpack.c.l.b16 %v7163
    %v7228 = vunpack.c.l.b16 %v7164
    %v7229 = vunpack.c.l.b16 %v7165
    %v7230 = vunpack.c.l.b16 %v7166
    %v7231 = vunpack.c.l.b16 %v7167
    %v7232 = vunpack.c.l.b16 %v7168
    %v7233 = vunpack.c.l.b16 %v7169
    %v7234 = vunpack.c.l.b16 %v7170
    %v7235 = vpack.c.b16 %v7204, %v7203
    %v7236 = vpack.c.b16 %v7206, %v7205
    %v7237 = vpack.c.b16 %v7208, %v7207
    %v7238 = vpack.c.b16 %v7210, %v7209
    %v7239 = vpack.c.b16 %v7212, %v7211
    %v7240 = vpack.c.b16 %v7214, %v7213
    %v7241 = vpack.c.b16 %v7216, %v7215
    %v7242 = vpack.c.b16 %v7218, %v7217
    %v7243 = vpack.c.b16 %v7220, %v7219
    %v7244 = vpack.c.b16 %v7222, %v7221
    %v7245 = vpack.c.b16 %v7224, %v7223
    %v7246 = vpack.c.b16 %v7226, %v7225
    %v7247 = vpack.c.b16 %v7228, %v7227
    %v7248 = vpack.c.b16 %v7230, %v7229
    %v7249 = vpack.c.b16 %v7232, %v7231
    %v7250 = vpack.c.b16 %v7234, %v7233
    %7267 = vmatprep.subr.bf16.mxu0 0
    %7268 = vmatpush1.bf16.msra.mxu0 %v7242
    %7269 = vmatprep.subr.bf16.mxu0 0
    %7270 = vmatpush1.bf16.msra.mxu0 %v7241
    %7271 = vmatprep.subr.bf16.mxu0 0
    %7272 = vmatpush1.bf16.msra.mxu0 %v7240
    %7273 = vmatprep.subr.bf16.mxu0 0
    %7274 = vmatpush1.bf16.msra.mxu0 %v7239
    %7275 = vmatprep.subr.bf16.mxu0 0
    %7276 = vmatpush1.bf16.msra.mxu0 %v7238
    %7277 = vmatprep.subr.bf16.mxu0 0
    %7278 = vmatpush1.bf16.msra.mxu0 %v7237
    %7279 = vmatprep.subr.bf16.mxu0 0
    %7280 = vmatpush1.bf16.msra.mxu0 %v7236
    %7281 = vmatprep.subr.bf16.mxu0 0
    %7282 = vmatpush1.bf16.msra.mxu0 %v7235
    %7283 = vmatprep.subr.bf16.mxu0 0
    %7284 = vmatpush2.bf16.msra.mxu0 %v7250
    %7285 = vmatprep.subr.bf16.mxu0 0
    %7286 = vmatpush2.bf16.msra.mxu0 %v7249
    %7287 = vmatprep.subr.bf16.mxu0 0
    %7288 = vmatpush2.bf16.msra.mxu0 %v7248
    %7289 = vmatprep.subr.bf16.mxu0 0
    %7290 = vmatpush2.bf16.msra.mxu0 %v7247
    %7291 = vmatprep.subr.bf16.mxu0 0
    %7292 = vmatpush2.bf16.msra.mxu0 %v7246
    %7293 = vmatprep.subr.bf16.mxu0 0
    %7294 = vmatpush2.bf16.msra.mxu0 %v7245
    %7295 = vmatprep.subr.bf16.mxu0 0
    %7296 = vmatpush2.bf16.msra.mxu0 %v7244
    %7297 = vmatprep.subr.bf16.mxu0 0
    %7298 = vmatpush2.bf16.msra.mxu0 %v7243
    %7299 = vmatprep.mubr.bf16.mxu0 %v7115
    %7300 = vmatmul.mubr.bf16.gmra.mxu0 %v6141
    %v7301 = vpop.f32.mrf.mxu0
    %v7302 = vadd.f32 0.0, %v7301
    %v7303 = vpop.f32.mrf.mxu0
    %v7304 = vpop.f32.mrf.mxu0
    %v7305 = vadd.f32 0.0, %v7304
    %v7306 = vpop.f32.mrf.mxu0
    %7307 = vmatprep.mubr.bf16.mxu0 %v7118
    %7308 = vmatmul.mubr.bf16.gmra.mxu0 %v6144
    %v7309 = vpop.f32.mrf.mxu0
    %v7310 = vadd.f32 0.0, %v7309
    %v7311 = vpop.f32.mrf.mxu0
    %v7312 = vpop.f32.mrf.mxu0
    %v7313 = vadd.f32 0.0, %v7312
    %v7314 = vpop.f32.mrf.mxu0
    %7315 = vmatprep.mubr.bf16.mxu0 %v7121
    %7316 = vmatmul.mubr.bf16.gmra.mxu0 %v6147
    %v7317 = vpop.f32.mrf.mxu0
    %v7318 = vadd.f32 0.0, %v7317
    %v7319 = vpop.f32.mrf.mxu0
    %v7320 = vpop.f32.mrf.mxu0
    %v7321 = vadd.f32 0.0, %v7320
    %v7322 = vpop.f32.mrf.mxu0
    %7323 = vmatprep.mubr.bf16.mxu0 %v7124
    %7324 = vmatmul.mubr.bf16.gmra.mxu0 %v6150
    %v7325 = vpop.f32.mrf.mxu0
    %v7326 = vadd.f32 0.0, %v7325
    %v7327 = vpop.f32.mrf.mxu0
    %v7328 = vpop.f32.mrf.mxu0
    %v7329 = vadd.f32 0.0, %v7328
    %v7330 = vpop.f32.mrf.mxu0
    %7331 = vmatprep.mubr.bf16.mxu0 %v7127
    %7332 = vmatmul.mubr.bf16.gmra.mxu0 %v6153
    %v7333 = vpop.f32.mrf.mxu0
    %v7334 = vadd.f32 0.0, %v7333
    %v7335 = vpop.f32.mrf.mxu0
    %v7336 = vpop.f32.mrf.mxu0
    %v7337 = vadd.f32 0.0, %v7336
    %v7338 = vpop.f32.mrf.mxu0
    %7339 = vmatprep.mubr.bf16.mxu0 %v7130
    %7340 = vmatmul.mubr.bf16.gmra.mxu0 %v6156
    %v7341 = vpop.f32.mrf.mxu0
    %v7342 = vadd.f32 0.0, %v7341
    %v7343 = vpop.f32.mrf.mxu0
    %v7344 = vpop.f32.mrf.mxu0
    %v7345 = vadd.f32 0.0, %v7344
    %v7346 = vpop.f32.mrf.mxu0
    %7347 = vmatprep.mubr.bf16.mxu0 %v7133
    %7348 = vmatmul.mubr.bf16.gmra.mxu0 %v6159
    %v7349 = vpop.f32.mrf.mxu0
    %v7350 = vadd.f32 0.0, %v7349
    %v7351 = vpop.f32.mrf.mxu0
    %v7352 = vpop.f32.mrf.mxu0
    %v7353 = vadd.f32 0.0, %v7352
    %v7354 = vpop.f32.mrf.mxu0
    %7355 = vmatprep.mubr.bf16.mxu0 %v7136
    %7356 = vmatmul.mubr.bf16.gmra.mxu0 %v6162
    %v7357 = vpop.f32.mrf.mxu0
    %v7358 = vadd.f32 0.0, %v7357
    %v7359 = vpop.f32.mrf.mxu0
    %v7360 = vpop.f32.mrf.mxu0
    %v7361 = vadd.f32 0.0, %v7360
    %v7362 = vpop.f32.mrf.mxu0
    %7363 = vdwg.mxu0
    %vm7364 = vcmp.ge.f32.partialorder %v7302, 0.0
    %vm7365 = vcmp.ge.f32.partialorder %v7305, 0.0
    %vm7366 = vcmp.ge.f32.partialorder %v7310, 0.0
    %vm7367 = vcmp.ge.f32.partialorder %v7313, 0.0
    %vm7368 = vcmp.ge.f32.partialorder %v7318, 0.0
    %vm7369 = vcmp.ge.f32.partialorder %v7321, 0.0
    %vm7370 = vcmp.ge.f32.partialorder %v7326, 0.0
    %vm7371 = vcmp.ge.f32.partialorder %v7329, 0.0
    %vm7372 = vcmp.ge.f32.partialorder %v7334, 0.0
    %vm7373 = vcmp.ge.f32.partialorder %v7337, 0.0
    %vm7374 = vcmp.ge.f32.partialorder %v7342, 0.0
    %vm7375 = vcmp.ge.f32.partialorder %v7345, 0.0
    %vm7376 = vcmp.ge.f32.partialorder %v7350, 0.0
    %vm7377 = vcmp.ge.f32.partialorder %v7353, 0.0
    %vm7378 = vcmp.ge.f32.partialorder %v7358, 0.0
    %vm7379 = vcmp.ge.f32.partialorder %v7361, 0.0
    %v7380 = vmul.f32 %v5867, %v7302
    %v7381 = vmul.f32 %v5867, %v7305
    %v7382 = vmul.f32 %v5867, %v7310
    %v7383 = vmul.f32 %v5867, %v7313
    %v7384 = vmul.f32 %v5867, %v7318
    %v7385 = vmul.f32 %v5867, %v7321
    %v7386 = vmul.f32 %v5867, %v7326
    %v7387 = vmul.f32 %v5867, %v7329
    %v7388 = vmul.f32 %v5867, %v7334
    %v7389 = vmul.f32 %v5867, %v7337
    %v7390 = vmul.f32 %v5867, %v7342
    %v7391 = vmul.f32 %v5867, %v7345
    %v7392 = vmul.f32 %v5867, %v7350
    %v7393 = vmul.f32 %v5867, %v7353
    %v7394 = vmul.f32 %v5867, %v7358
    %v7395 = vmul.f32 %v5867, %v7361
    %v7396 = vsel %vm7364, %v7302, %v7380
    %v7397 = vsel %vm7365, %v7305, %v7381
    %v7398 = vsel %vm7366, %v7310, %v7382
    %v7399 = vsel %vm7367, %v7313, %v7383
    %v7400 = vsel %vm7368, %v7318, %v7384
    %v7401 = vsel %vm7369, %v7321, %v7385
    %v7402 = vsel %vm7370, %v7326, %v7386
    %v7403 = vsel %vm7371, %v7329, %v7387
    %v7404 = vsel %vm7372, %v7334, %v7388
    %v7405 = vsel %vm7373, %v7337, %v7389
    %v7406 = vsel %vm7374, %v7342, %v7390
    %v7407 = vsel %vm7375, %v7345, %v7391
    %v7408 = vsel %vm7376, %v7350, %v7392
    %v7409 = vsel %vm7377, %v7353, %v7393
    %v7410 = vsel %vm7378, %v7358, %v7394
    %v7411 = vsel %vm7379, %v7361, %v7395
    %v7412 = vunpack.c.l.bf16 %v3078
    %v7413 = vunpack.c.h.bf16 %v3078
    %v7414 = vunpack.c.l.bf16 %v3079
    %v7415 = vunpack.c.h.bf16 %v3079
    %v7416 = vunpack.c.l.bf16 %v3080
    %v7417 = vunpack.c.h.bf16 %v3080
    %v7418 = vunpack.c.l.bf16 %v3081
    %v7419 = vunpack.c.h.bf16 %v3081
    %v7420 = vunpack.c.l.bf16 %v3082
    %v7421 = vunpack.c.h.bf16 %v3082
    %v7422 = vunpack.c.l.bf16 %v3083
    %v7423 = vunpack.c.h.bf16 %v3083
    %v7424 = vunpack.c.l.bf16 %v3084
    %v7425 = vunpack.c.h.bf16 %v3084
    %v7426 = vunpack.c.l.bf16 %v3085
    %v7427 = vunpack.c.h.bf16 %v3085
    %v7428 = vadd.f32 %v7396, %v7412
    %v7429 = vadd.f32 %v7397, %v7413
    %v7430 = vadd.f32 %v7398, %v7414
    %v7431 = vadd.f32 %v7399, %v7415
    %v7432 = vadd.f32 %v7400, %v7416
    %v7433 = vadd.f32 %v7401, %v7417
    %v7434 = vadd.f32 %v7402, %v7418
    %v7435 = vadd.f32 %v7403, %v7419
    %v7436 = vadd.f32 %v7404, %v7420
    %v7437 = vadd.f32 %v7405, %v7421
    %v7438 = vadd.f32 %v7406, %v7422
    %v7439 = vadd.f32 %v7407, %v7423
    %v7440 = vadd.f32 %v7408, %v7424
    %v7441 = vadd.f32 %v7409, %v7425
    %v7442 = vadd.f32 %v7410, %v7426
    %v7443 = vadd.f32 %v7411, %v7427
    %v7444 = vpack.c.bf16 %v7429, %v7428
    %v7445 = vpack.c.bf16 %v7431, %v7430
    %v7446 = vpack.c.bf16 %v7433, %v7432
    %v7447 = vpack.c.bf16 %v7435, %v7434
    %v7448 = vpack.c.bf16 %v7437, %v7436
    %v7449 = vpack.c.bf16 %v7439, %v7438
    %v7450 = vpack.c.bf16 %v7441, %v7440
    %v7451 = vpack.c.bf16 %v7443, %v7442
    %v7460 = vunpack.c.l.b16 %v7444
    %v7461 = vunpack.c.h.b16 %v7444
    %v7462 = vunpack.c.l.b16 %v7445
    %v7463 = vunpack.c.h.b16 %v7445
    %v7464 = vunpack.c.l.b16 %v7446
    %v7465 = vunpack.c.h.b16 %v7446
    %v7466 = vunpack.c.l.b16 %v7447
    %v7467 = vunpack.c.h.b16 %v7447
    %v7468 = vunpack.c.l.b16 %v7448
    %v7469 = vunpack.c.h.b16 %v7448
    %v7470 = vunpack.c.l.b16 %v7449
    %v7471 = vunpack.c.h.b16 %v7449
    %v7472 = vunpack.c.l.b16 %v7450
    %v7473 = vunpack.c.h.b16 %v7450
    %v7474 = vunpack.c.l.b16 %v7451
    %v7475 = vunpack.c.h.b16 %v7451
    %v7476 = vpack.c.b16 %v7460, %v7460
    %v7477 = vpack.c.b16 %v7461, %v7461
    %v7478 = vpack.c.b16 %v7462, %v7462
    %v7479 = vpack.c.b16 %v7463, %v7463
    %v7480 = vpack.c.b16 %v7464, %v7464
    %v7481 = vpack.c.b16 %v7465, %v7465
    %v7482 = vpack.c.b16 %v7466, %v7466
    %v7483 = vpack.c.b16 %v7467, %v7467
    %v7484 = vpack.c.b16 %v7468, %v7468
    %v7485 = vpack.c.b16 %v7469, %v7469
    %v7486 = vpack.c.b16 %v7470, %v7470
    %v7487 = vpack.c.b16 %v7471, %v7471
    %v7488 = vpack.c.b16 %v7472, %v7472
    %v7489 = vpack.c.b16 %v7473, %v7473
    %v7490 = vpack.c.b16 %v7474, %v7474
    %v7491 = vpack.c.b16 %v7475, %v7475
    %s7508 = scalar_lea.vmem %s7, 192
    %7509 = vst [vmem:[%s7508] sm:$0xf] %v7476
    %7510 = vst [vmem:[%s7508 + $0x4] sm:$0xf] %v7477
    %7511 = vst [vmem:[%s7508 + $0x8] sm:$0xf] %v7478
    %7512 = vst [vmem:[%s7508 + $0xc] sm:$0xf] %v7479
    %7513 = vst [vmem:[%s7508 + $0x10] sm:$0xf] %v7480
    %7514 = vst [vmem:[%s7508 + $0x14] sm:$0xf] %v7481
    %7515 = vst [vmem:[%s7508 + $0x18] sm:$0xf] %v7482
    %7516 = vst [vmem:[%s7508 + $0x1c] sm:$0xf] %v7483
    %7517 = vst [vmem:[%s7508 + $0x20] sm:$0xf] %v7484
    %7518 = vst [vmem:[%s7508 + $0x24] sm:$0xf] %v7485
    %7519 = vst [vmem:[%s7508 + $0x28] sm:$0xf] %v7486
    %7520 = vst [vmem:[%s7508 + $0x2c] sm:$0xf] %v7487
    %7521 = vst [vmem:[%s7508 + $0x30] sm:$0xf] %v7488
    %7522 = vst [vmem:[%s7508 + $0x34] sm:$0xf] %v7489
    %7523 = vst [vmem:[%s7508 + $0x38] sm:$0xf] %v7490
    %7524 = vst [vmem:[%s7508 + $0x3c] sm:$0xf] %v7491
    // Predicated region
    $region34: #{upblock1_forward.1} parent=1 // pred_check
      _
    $region35: #{upblock1_forward.1} parent=1 // pred_check_branch
      %7526 = sbr.rel (0) target = $region37
    $region36: #{upblock1_forward.1} parent=1 // pred_region
      _
    $region37: #{upblock1_forward.1} parent=1 // pred_fallthru
      _
    // Predicated region
    $region38: #{upblock1_forward.1} parent=1 // pred_check
      _
    $region39: #{upblock1_forward.1} parent=1 // pred_check_branch
      %7528 = sbr.rel (0) target = $region41
    $region40: #{upblock1_forward.1} parent=1 // pred_region
      _
    $region41: #{upblock1_forward.1} parent=1 // pred_fallthru
      _
    %7529 = vsyncpa [#allocation3], 1

</llo_original>
